<compile_context>
chip_gen: v6e
topology: v6e:2x2x1
jax: 0.10.0
libtpu: 0.0.40
codegen_flags: <defaults>
</compile_context>

<pallas_src>
import functools

import jax
import jax.numpy as jnp
import numpy as np
from jax.experimental import pallas as pl
from jax.experimental.pallas import tpu as pltpu

L = 512        # attention input dim (resnet feature size)
D = 128        # gated-attention hidden dim
HID = 256      # head hidden dim
NCLS = 7       # LinearClass output dim
ROWS_PER_BLOCK_TARGET = 256   # >=128 fills v5e MXU rows; 256 fills v6e/v7x


# ---------------------------------------------------------------------------
# One fused kernel: feature projection + gated attention + both heads for a
# block of Bb bags (M = Bb * s instance rows).
# TODO(synk): the real `res` backbone is an external module handed to Net();
# it is replaced here by a deterministic GAP + linear projection to 512.
# TODO(synk): nn.Dropout layers are treated as identity (inference mode).
# ---------------------------------------------------------------------------
def _net_kernel(x_ref, fw_ref, fb_ref, wvu_ref, bvu_ref, w12_ref, b12_ref,
                wh1_ref, bh1_ref, wh2_ref, bc2_ref, ob_ref,
                x1_ref, slab_ref, *, s):
    m_rows = x_ref.shape[0]                      # Bb * s instance rows
    bb = m_rows // s                             # bags in this block
    k1 = ob_ref.shape[1]
    ncls = bc2_ref.shape[1]
    slab_w = slab_ref.shape[1]

    # ---- stand-in resnet: GAP folded into one lane-dense feature matmul ----
    xb = x_ref[...].astype(jnp.bfloat16)                         # [M, C*H*W]
    x1 = (jnp.dot(xb, fw_ref[...], preferred_element_type=jnp.float32)
          + fb_ref[...])                                         # [M, L] f32
    # x1 is kept f32 to match the reference dtype; emit bf16 here to halve the
    # largest HBM writeback if downstream tolerates it.
    x1_ref[...] = x1

    # ---- GatedAttention: fused V|U matmul (bf16 MXU, f32 accum/elementwise) --
    avu = (jnp.dot(x1.astype(jnp.bfloat16), wvu_ref[...],
                   preferred_element_type=jnp.float32)
           + bvu_ref[...])                                       # [M, 2D]
    g = jnp.tanh(avu[:, :D]) * jax.nn.sigmoid(avu[:, D:])        # [M, D] f32
    sc = (jnp.dot(g, w12_ref[...], preferred_element_type=jnp.float32)
          + b12_ref[...])                                        # [M, 2]

    # per-bag softmax over the subset dimension (reshape -> reduce over s)
    sc3 = sc.reshape(bb, s, 2)
    sc3 = sc3 - jnp.max(sc3, axis=1, keepdims=True)
    e = jnp.exp(sc3)
    a3 = e * pl.reciprocal(jnp.sum(e, axis=1, keepdims=True),
                           approx=True)                          # [Bb, s, 2]

    # attention-weighted pooling, batched over bags: m[b,k,:] = sum_s a*x1
    m = jax.lax.dot_general(a3, x1.reshape(bb, s, L),
                            (((1,), (1,)), ((0,), (0,))),
                            preferred_element_type=jnp.float32)  # [Bb, 2, L]
    # stack M1 of all bags then M2 of all bags -> one [2*Bb, L] head input
    m2d = jnp.concatenate([m[:, 0, :], m[:, 1, :]], axis=0)      # [2Bb, L]

    # ---- heads: stacked [wl1 | wc1], then block-diag [wl2 ; wc2] -----------
    h = jnp.maximum(
        jnp.dot(m2d.astype(jnp.bfloat16), wh1_ref[...],
                preferred_element_type=jnp.float32) + bh1_ref[...],
        0.0)                                                     # [2Bb, 2*HID]
    r = jnp.dot(h.astype(jnp.bfloat16), wh2_ref[...],
                preferred_element_type=jnp.float32)              # [2Bb, 1+NCLS]
    x4 = r[:bb, 0:1]                                             # M1 rows -> Linear
    x7 = x4 + ob_ref[...]                                        # [Bb, k1]
    probas = jax.nn.sigmoid(x7)
    x8 = r[bb:, 1:] + bc2_ref[...]                               # [Bb, NCLS]
    a1 = a3[:, :, 0]                                             # [Bb, s]
    a2 = a3[:, :, 1]

    # pack all small per-bag outputs into one lane-dense slab (single store,
    # single lane-dense output DMA per grid step)
    parts = [x7, probas, x8, a1, a2]
    used = 2 * k1 + ncls + 2 * s
    if slab_w > used:
        parts.append(jnp.zeros((bb, slab_w - used), jnp.float32))
    slab_ref[...] = jnp.concatenate(parts, axis=-1)


# ---------------------------------------------------------------------------
# Parameter init (deterministic, PyTorch-Linear-style uniform ±1/sqrt(fan_in))
# ---------------------------------------------------------------------------
def _linear_params(key, fan_in, fan_out, bias=True):
    kw, kb = jax.random.split(key)
    bound = 1.0 / jnp.sqrt(float(fan_in))
    w = jax.random.uniform(kw, (fan_in, fan_out), jnp.float32, -bound, bound)
    if not bias:
        return w, None
    b = jax.random.uniform(kb, (1, fan_out), jnp.float32, -bound, bound)
    return w, b


def init_params(key, in_channels, num_classes):
    keys = jax.random.split(key, 8)
    p = {}
    p["feat_w"], p["feat_b"] = _linear_params(keys[0], in_channels, L)
    wv, bv = _linear_params(keys[1], L, D)
    wu, bu = _linear_params(keys[2], L, D)
    # fused attention_V | attention_U weights: one [L, 2D] bf16 MXU operand
    p["wvu"] = jnp.concatenate([wv, wu], axis=1).astype(jnp.bfloat16)
    p["bvu"] = jnp.concatenate([bv, bu], axis=1)                  # [1, 2D] f32
    w1, b1 = _linear_params(keys[3], D, 1)
    w2, b2 = _linear_params(keys[4], D, 1)
    p["w12"] = jnp.concatenate([w1, w2], axis=1)                  # [D, 2] f32
    p["b12"] = jnp.concatenate([b1, b2], axis=1)                  # [1, 2]
    wl1, bl1 = _linear_params(keys[5], L, HID)
    wl2, _ = _linear_params(keys[6], HID, 1, bias=False)
    wc1, bc1 = _linear_params(keys[7], L, HID)
    kc2 = jax.random.fold_in(key, 99)
    wc2, bc2 = _linear_params(kc2, HID, NCLS)
    # fused head weights: [wl1 | wc1] and block-diag([wl2, wc2])
    p["wh1"] = jnp.concatenate([wl1, wc1], axis=1).astype(jnp.bfloat16)  # [L, 2H]
    p["bh1"] = jnp.concatenate([bl1, bc1], axis=1)                        # [1, 2H]
    wh2 = jnp.zeros((2 * HID, 1 + NCLS), jnp.float32)
    wh2 = wh2.at[:HID, 0:1].set(wl2)
    wh2 = wh2.at[HID:, 1:].set(wc2)
    p["wh2"] = wh2.astype(jnp.bfloat16)                           # [2H, 1+NCLS]
    p["bc2"] = bc2                                                # [1, NCLS]
    p["linear_1_bias"] = jnp.zeros((1, num_classes - 1), jnp.float32)
    return p


# ---------------------------------------------------------------------------
# Net.forward — one fused pallas_call; bags batched per grid step.
# ---------------------------------------------------------------------------
@functools.partial(jax.jit,
                   static_argnames=("subset_size", "single_buffer_weights"))
def _net_forward_impl(x, params, subset_size, single_buffer_weights):
    n, c, h, w = x.shape
    s = subset_size
    bsz = n // s
    hw = h * w
    chw = c * hw
    k1 = params["linear_1_bias"].shape[1]

    # ---- bag batching: target >=128 (v5e) / 256 (v6e, v7x) matmul rows -----
    bb = max(1, min(bsz, ROWS_PER_BLOCK_TARGET // max(1, s)))
    nblk = -(-bsz // bb)
    if nblk > 1 and ((bb * s) % 8 != 0 or bb % 8 != 0):
        bb, nblk = bsz, 1            # keep multi-block shapes sublane-aligned
    bsz_pad = nblk * bb
    m_blk = bb * s

    # ---- packed lane-dense output slab layout -------------------------------
    used = 2 * k1 + NCLS + 2 * s
    slab_w = ((used + 127) // 128) * 128

    # ---- fold the GAP into the feature matmul ------------------------------
    # fw_big[c*hw + p, :] = feat_w[c, :] / (H*W)
    fw_big = (jnp.repeat(params["feat_w"], hw, axis=0)
              * (1.0 / hw)).astype(jnp.bfloat16)                  # [CHW, L]

    x2d = x.reshape(n, chw)
    if bsz_pad > bsz:
        x2d = jnp.pad(x2d, ((0, bsz_pad * s - n), (0, 0)))

    def wspec(shape):
        imap = lambda b, _nd=len(shape): (0,) * _nd
        if single_buffer_weights:
            # constant-index weights never need a second pipeline buffer
            return pl.BlockSpec(shape, imap, pipeline_mode=pl.Buffered(1))
        return pl.BlockSpec(shape, imap)

    # Only split across TensorCores (v7x) when each core gets >=128 rows.
    sem = ("parallel",) if (nblk > 1 and m_blk >= 128) else ("arbitrary",)

    x1_full, slab = pl.pallas_call(
        functools.partial(_net_kernel, s=s),
        out_shape=(
            jax.ShapeDtypeStruct((bsz_pad * s, L), jnp.float32),  # x1
            jax.ShapeDtypeStruct((bsz_pad, slab_w), jnp.float32),  # packed slab
        ),
        grid=(nblk,),
        in_specs=[
            pl.BlockSpec((m_blk, chw), lambda b: (b, 0)),         # x (lane-dense)
            wspec((chw, L)),                                      # fw_big (bf16)
            wspec((1, L)),                                        # feat_b
            wspec((L, 2 * D)),                                    # wvu (bf16)
            wspec((1, 2 * D)),                                    # bvu
            wspec((D, 2)),                                        # w12
            wspec((1, 2)),                                        # b12
            wspec((L, 2 * HID)),                                  # wh1 (bf16)
            wspec((1, 2 * HID)),                                  # bh1
            wspec((2 * HID, 1 + NCLS)),                           # wh2 (bf16)
            wspec((1, NCLS)),                                     # bc2
            wspec((1, k1)),                                       # linear_1_bias
        ],
        out_specs=(
            pl.BlockSpec((m_blk, L), lambda b: (b, 0)),
            pl.BlockSpec((bb, slab_w), lambda b: (b, 0)),
        ),
        compiler_params=pltpu.CompilerParams(
            dimension_semantics=sem,
            vmem_limit_bytes=32 * 1024 * 1024),
    )(x2d, fw_big, params["feat_b"], params["wvu"], params["bvu"],
      params["w12"], params["b12"], params["wh1"], params["bh1"],
      params["wh2"], params["bc2"], params["linear_1_bias"])

    # ---- unpack (cheap XLA slices on small arrays) --------------------------
    x1 = x1_full[:n]
    o = 0
    x7 = slab[:bsz, o:o + k1]; o += k1
    probas = slab[:bsz, o:o + k1]; o += k1
    x8 = slab[:bsz, o:o + NCLS]; o += NCLS
    a1 = slab[:bsz, o:o + s]; o += s
    a2 = slab[:bsz, o:o + s]
    return x1, x7, x8, probas, a1, a2


def net_forward(x, params, subset_size):
    try:
        return _net_forward_impl(x, params, subset_size, True)
    except Exception:
        # This jax build rejected pipeline_mode=pl.Buffered(1) on the constant
        # weight BlockSpecs; fall back to default double-buffering (identical
        # numerics, ~1 MiB extra VMEM).
        return _net_forward_impl(x, params, subset_size, False)


if __name__ == "__main__":
    num_classes = 5
    subset_size = 8
    B, C, H, W = 2, 4, 16, 16
    N = B * subset_size                                   # 16 bag instances

    key = jax.random.PRNGKey(0)
    kx, kp = jax.random.split(key)
    x = jax.random.normal(kx, (N, C, H, W), jnp.float32)
    params = init_params(kp, C, num_classes)

    outs = net_forward(x, params, subset_size)
    outs = jax.block_until_ready(outs)

    x1, x7, x8, probas, a1, a2 = outs
    assert x1.shape == (N, L)
    assert x7.shape == (B, num_classes - 1)
    assert x8.shape == (B, NCLS)
    assert probas.shape == (B, num_classes - 1)
    assert a1.shape == (B, subset_size) and a2.shape == (B, subset_size)
    # attention weights are a per-bag softmax -> rows sum to ~1
    np.testing.assert_allclose(np.asarray(a1).sum(-1), 1.0, rtol=5e-2)
    np.testing.assert_allclose(np.asarray(a2).sum(-1), 1.0, rtol=5e-2)
    print("KERNEL_OK")
</pallas_src>

<mosaic_0001>
module attributes {stable_mosaic.version = 11 : i64} {
  func.func @_net_kernel(%arg0: i32, %arg1: memref<16x1024xf32, #tpu.memory_space<vmem>>, %arg2: memref<1024x512xbf16, #tpu.memory_space<vmem>>, %arg3: memref<1x512xf32, #tpu.memory_space<vmem>>, %arg4: memref<512x256xbf16, #tpu.memory_space<vmem>>, %arg5: memref<1x256xf32, #tpu.memory_space<vmem>>, %arg6: memref<128x2xf32, #tpu.memory_space<vmem>>, %arg7: memref<1x2xf32, #tpu.memory_space<vmem>>, %arg8: memref<512x512xbf16, #tpu.memory_space<vmem>>, %arg9: memref<1x512xf32, #tpu.memory_space<vmem>>, %arg10: memref<512x8xbf16, #tpu.memory_space<vmem>>, %arg11: memref<1x7xf32, #tpu.memory_space<vmem>>, %arg12: memref<1x4xf32, #tpu.memory_space<vmem>>, %arg13: memref<16x512xf32, #tpu.memory_space<vmem>>, %arg14: memref<2x128xf32, #tpu.memory_space<vmem>>) attributes {dimension_semantics = [#tpu.dimension_semantics<arbitrary>], iteration_bounds = array<i64: 1>, scalar_prefetch = 0 : i64, scratch_operands = 0 : i64, tpu.core_type = #tpu.core_type<tc>, window_params = [{transform_indices = @transform_0, window_bounds = array<i64: 16, 1024>}, {pipeline_mode = #tpu.pipeline_mode<synchronous>, transform_indices = @transform_1, window_bounds = array<i64: 1024, 512>}, {pipeline_mode = #tpu.pipeline_mode<synchronous>, transform_indices = @transform_2, window_bounds = array<i64: 1, 512>}, {pipeline_mode = #tpu.pipeline_mode<synchronous>, transform_indices = @transform_3, window_bounds = array<i64: 512, 256>}, {pipeline_mode = #tpu.pipeline_mode<synchronous>, transform_indices = @transform_4, window_bounds = array<i64: 1, 256>}, {pipeline_mode = #tpu.pipeline_mode<synchronous>, transform_indices = @transform_5, window_bounds = array<i64: 128, 2>}, {pipeline_mode = #tpu.pipeline_mode<synchronous>, transform_indices = @transform_6, window_bounds = array<i64: 1, 2>}, {pipeline_mode = #tpu.pipeline_mode<synchronous>, transform_indices = @transform_7, window_bounds = array<i64: 512, 512>}, {pipeline_mode = #tpu.pipeline_mode<synchronous>, transform_indices = @transform_8, window_bounds = array<i64: 1, 512>}, {pipeline_mode = #tpu.pipeline_mode<synchronous>, transform_indices = @transform_9, window_bounds = array<i64: 512, 8>}, {pipeline_mode = #tpu.pipeline_mode<synchronous>, transform_indices = @transform_10, window_bounds = array<i64: 1, 7>}, {pipeline_mode = #tpu.pipeline_mode<synchronous>, transform_indices = @transform_11, window_bounds = array<i64: 1, 4>}, {transform_indices = @transform_12, window_bounds = array<i64: 16, 512>}, {transform_indices = @transform_13, window_bounds = array<i64: 2, 128>}]} {
    %c0 = arith.constant 0 : index
    %c0_0 = arith.constant 0 : index
    %0 = vector.load %arg1[%c0, %c0_0] : memref<16x1024xf32, #tpu.memory_space<vmem>>, vector<16x1024xf32>
    %1 = arith.truncf %0 : vector<16x1024xf32> to vector<16x1024xbf16>
    %c0_1 = arith.constant 0 : index
    %c0_2 = arith.constant 0 : index
    %2 = vector.load %arg2[%c0_1, %c0_2] : memref<1024x512xbf16, #tpu.memory_space<vmem>>, vector<1024x512xbf16>
    %cst = arith.constant dense<0.000000e+00> : vector<16x512xf32>
    %3 = tpu.matmul %1, %2, %cst {dimension_numbers = #tpu.dot_dimension_numbers<[1], [0], [0], [1], [0, 0, 1, 1], [], []>} : vector<16x1024xbf16>, vector<1024x512xbf16>, vector<16x512xf32> -> vector<16x512xf32>
    %c0_3 = arith.constant 0 : index
    %c0_4 = arith.constant 0 : index
    %4 = vector.load %arg3[%c0_3, %c0_4] : memref<1x512xf32, #tpu.memory_space<vmem>>, vector<1x512xf32>
    %5 = vector.broadcast %4 : vector<1x512xf32> to vector<16x512xf32>
    %6 = arith.addf %3, %5 : vector<16x512xf32>
    %c0_5 = arith.constant 0 : index
    %c0_6 = arith.constant 0 : index
    %7 = vector.load %arg13[%c0_5, %c0_6] : memref<16x512xf32, #tpu.memory_space<vmem>>, vector<16x512xf32>
    tpu.vector_store %arg13[%c0_5, %c0_6], %6 {strides = array<i32>} : memref<16x512xf32, #tpu.memory_space<vmem>>, vector<16x512xf32>,
    %8 = arith.truncf %6 : vector<16x512xf32> to vector<16x512xbf16>
    %c0_7 = arith.constant 0 : index
    %c0_8 = arith.constant 0 : index
    %9 = vector.load %arg4[%c0_7, %c0_8] : memref<512x256xbf16, #tpu.memory_space<vmem>>, vector<512x256xbf16>
    %cst_9 = arith.constant dense<0.000000e+00> : vector<16x256xf32>
    %10 = tpu.matmul %8, %9, %cst_9 {dimension_numbers = #tpu.dot_dimension_numbers<[1], [0], [0], [1], [0, 0, 1, 1], [], []>} : vector<16x512xbf16>, vector<512x256xbf16>, vector<16x256xf32> -> vector<16x256xf32>
    %c0_10 = arith.constant 0 : index
    %c0_11 = arith.constant 0 : index
    %11 = vector.load %arg5[%c0_10, %c0_11] : memref<1x256xf32, #tpu.memory_space<vmem>>, vector<1x256xf32>
    %12 = vector.broadcast %11 : vector<1x256xf32> to vector<16x256xf32>
    %13 = arith.addf %10, %12 : vector<16x256xf32>
    %14 = vector.extract_strided_slice %13 {offsets = [0, 0], sizes = [16, 128], strides = [1, 1]} : vector<16x256xf32> to vector<16x128xf32>
    %15 = math.tanh %14 : vector<16x128xf32>
    %16 = vector.extract_strided_slice %13 {offsets = [0, 128], sizes = [16, 128], strides = [1, 1]} : vector<16x256xf32> to vector<16x128xf32>
    %17 = arith.negf %16 : vector<16x128xf32>
    %18 = math.exp %17 : vector<16x128xf32>
    %cst_12 = arith.constant 1.000000e+00 : f32
    %19 = vector.broadcast %cst_12 : f32 to vector<16x128xf32>
    %20 = arith.addf %19, %18 : vector<16x128xf32>
    %21 = arith.divf %19, %20 : vector<16x128xf32>
    %22 = arith.mulf %15, %21 : vector<16x128xf32>
    %c0_13 = arith.constant 0 : index
    %c0_14 = arith.constant 0 : index
    %23 = vector.load %arg6[%c0_13, %c0_14] : memref<128x2xf32, #tpu.memory_space<vmem>>, vector<128x2xf32>
    %cst_15 = arith.constant dense<0.000000e+00> : vector<16x2xf32>
    %24 = tpu.matmul %22, %23, %cst_15 {dimension_numbers = #tpu.dot_dimension_numbers<[1], [0], [0], [1], [0, 0, 1, 1], [], []>} : vector<16x128xf32>, vector<128x2xf32>, vector<16x2xf32> -> vector<16x2xf32>
    %c0_16 = arith.constant 0 : index
    %c0_17 = arith.constant 0 : index
    %25 = vector.load %arg7[%c0_16, %c0_17] : memref<1x2xf32, #tpu.memory_space<vmem>>, vector<1x2xf32>
    %26 = vector.broadcast %25 : vector<1x2xf32> to vector<16x2xf32>
    %27 = arith.addf %24, %26 : vector<16x2xf32>
    %28 = vector.shape_cast %27 : vector<16x2xf32> to vector<2x8x2xf32>
    %cst_18 = arith.constant dense<0xFF800000> : vector<2x2xf32>
    %29 = vector.multi_reduction <maximumf>, %28, %cst_18 [1] : vector<2x8x2xf32> to vector<2x2xf32>
    %30 = vector.shape_cast %29 : vector<2x2xf32> to vector<2x1x2xf32>
    %31 = vector.broadcast %30 : vector<2x1x2xf32> to vector<2x8x2xf32>
    %32 = arith.subf %28, %31 : vector<2x8x2xf32>
    %33 = math.exp %32 : vector<2x8x2xf32>
    %cst_19 = arith.constant dense<0.000000e+00> : vector<2x2xf32>
    %34 = vector.multi_reduction <add>, %33, %cst_19 [1] : vector<2x8x2xf32> to vector<2x2xf32>
    %35 = vector.shape_cast %34 : vector<2x2xf32> to vector<2x1x2xf32>
    %36 = tpu.reciprocal %35 {approx = true} : vector<2x1x2xf32> -> vector<2x1x2xf32>
    %37 = vector.broadcast %36 : vector<2x1x2xf32> to vector<2x8x2xf32>
    %38 = arith.mulf %33, %37 : vector<2x8x2xf32>
    %39 = vector.shape_cast %6 : vector<16x512xf32> to vector<2x8x512xf32>
    %cst_20 = arith.constant dense<0.000000e+00> : vector<2x2x512xf32>
    %40 = tpu.matmul %38, %39, %cst_20 {dimension_numbers = #tpu.dot_dimension_numbers<[1], [1], [2], [2], [0, 0, 0, 2, 1, 2], [0], [0]>} : vector<2x8x2xf32>, vector<2x8x512xf32>, vector<2x2x512xf32> -> vector<2x2x512xf32>
    %41 = vector.extract_strided_slice %40 {offsets = [0, 0, 0], sizes = [2, 1, 512], strides = [1, 1, 1]} : vector<2x2x512xf32> to vector<2x1x512xf32>
    %42 = vector.shape_cast %41 : vector<2x1x512xf32> to vector<2x512xf32>
    %43 = vector.extract_strided_slice %40 {offsets = [0, 1, 0], sizes = [2, 1, 512], strides = [1, 1, 1]} : vector<2x2x512xf32> to vector<2x1x512xf32>
    %44 = vector.shape_cast %43 : vector<2x1x512xf32> to vector<2x512xf32>
    %45 = tpu.concatenate %42, %44 in 0 : vector<2x512xf32>, vector<2x512xf32> -> vector<4x512xf32>
    %46 = arith.truncf %45 : vector<4x512xf32> to vector<4x512xbf16>
    %c0_21 = arith.constant 0 : index
    %c0_22 = arith.constant 0 : index
    %47 = vector.load %arg8[%c0_21, %c0_22] : memref<512x512xbf16, #tpu.memory_space<vmem>>, vector<512x512xbf16>
    %cst_23 = arith.constant dense<0.000000e+00> : vector<4x512xf32>
    %48 = tpu.matmul %46, %47, %cst_23 {dimension_numbers = #tpu.dot_dimension_numbers<[1], [0], [0], [1], [0, 0, 1, 1], [], []>} : vector<4x512xbf16>, vector<512x512xbf16>, vector<4x512xf32> -> vector<4x512xf32>
    %c0_24 = arith.constant 0 : index
    %c0_25 = arith.constant 0 : index
    %49 = vector.load %arg9[%c0_24, %c0_25] : memref<1x512xf32, #tpu.memory_space<vmem>>, vector<1x512xf32>
    %50 = vector.broadcast %49 : vector<1x512xf32> to vector<4x512xf32>
    %51 = arith.addf %48, %50 : vector<4x512xf32>
    %cst_26 = arith.constant 0.000000e+00 : f32
    %52 = vector.broadcast %cst_26 : f32 to vector<4x512xf32>
    %53 = arith.maximumf %51, %52 : vector<4x512xf32>
    %54 = arith.truncf %53 : vector<4x512xf32> to vector<4x512xbf16>
    %c0_27 = arith.constant 0 : index
    %c0_28 = arith.constant 0 : index
    %55 = vector.load %arg10[%c0_27, %c0_28] : memref<512x8xbf16, #tpu.memory_space<vmem>>, vector<512x8xbf16>
    %cst_29 = arith.constant dense<0.000000e+00> : vector<4x8xf32>
    %56 = tpu.matmul %54, %55, %cst_29 {dimension_numbers = #tpu.dot_dimension_numbers<[1], [0], [0], [1], [0, 0, 1, 1], [], []>} : vector<4x512xbf16>, vector<512x8xbf16>, vector<4x8xf32> -> vector<4x8xf32>
    %57 = vector.extract_strided_slice %56 {offsets = [0, 0], sizes = [2, 1], strides = [1, 1]} : vector<4x8xf32> to vector<2x1xf32>
    %c0_30 = arith.constant 0 : index
    %c0_31 = arith.constant 0 : index
    %58 = vector.load %arg12[%c0_30, %c0_31] : memref<1x4xf32, #tpu.memory_space<vmem>>, vector<1x4xf32>
    %59 = vector.broadcast %57 : vector<2x1xf32> to vector<2x4xf32>
    %60 = vector.broadcast %58 : vector<1x4xf32> to vector<2x4xf32>
    %61 = arith.addf %59, %60 : vector<2x4xf32>
    %62 = arith.negf %61 : vector<2x4xf32>
    %63 = math.exp %62 : vector<2x4xf32>
    %cst_32 = arith.constant 1.000000e+00 : f32
    %64 = vector.broadcast %cst_32 : f32 to vector<2x4xf32>
    %65 = arith.addf %64, %63 : vector<2x4xf32>
    %66 = arith.divf %64, %65 : vector<2x4xf32>
    %67 = vector.extract_strided_slice %56 {offsets = [2, 1], sizes = [2, 7], strides = [1, 1]} : vector<4x8xf32> to vector<2x7xf32>
    %c0_33 = arith.constant 0 : index
    %c0_34 = arith.constant 0 : index
    %68 = vector.load %arg11[%c0_33, %c0_34] : memref<1x7xf32, #tpu.memory_space<vmem>>, vector<1x7xf32>
    %69 = vector.broadcast %68 : vector<1x7xf32> to vector<2x7xf32>
    %70 = arith.addf %67, %69 : vector<2x7xf32>
    %71 = vector.extract_strided_slice %38 {offsets = [0, 0, 0], sizes = [2, 8, 1], strides = [1, 1, 1]} : vector<2x8x2xf32> to vector<2x8x1xf32>
    %72 = vector.shape_cast %71 : vector<2x8x1xf32> to vector<2x8xf32>
    %73 = vector.extract_strided_slice %38 {offsets = [0, 0, 1], sizes = [2, 8, 1], strides = [1, 1, 1]} : vector<2x8x2xf32> to vector<2x8x1xf32>
    %74 = vector.shape_cast %73 : vector<2x8x1xf32> to vector<2x8xf32>
    %cst_35 = arith.constant 0.000000e+00 : f32
    %75 = vector.broadcast %cst_35 : f32 to vector<2x97xf32>
    %76 = tpu.concatenate %61, %66, %70, %72, %74, %75 in 1 : vector<2x4xf32>, vector<2x4xf32>, vector<2x7xf32>, vector<2x8xf32>, vector<2x8xf32>, vector<2x97xf32> -> vector<2x128xf32>
    %c0_36 = arith.constant 0 : index
    %c0_37 = arith.constant 0 : index
    %77 = vector.load %arg14[%c0_36, %c0_37] : memref<2x128xf32, #tpu.memory_space<vmem>>, vector<2x128xf32>
    tpu.vector_store %arg14[%c0_36, %c0_37], %76 {strides = array<i32>} : memref<2x128xf32, #tpu.memory_space<vmem>>, vector<2x128xf32>,
    return
  }
  func.func @transform_0(%arg0: i32) -> (i32, i32) {
    %c0_i32 = arith.constant 0 : i32
    %c0_i32_0 = arith.constant 0 : i32
    return %arg0, %c0_i32 : i32, i32
  }
  func.func @transform_1(%arg0: i32) -> (i32, i32) {
    %c0_i32 = arith.constant 0 : i32
    %c0_i32_0 = arith.constant 0 : i32
    %c0_i32_1 = arith.constant 0 : i32
    return %c0_i32, %c0_i32_0 : i32, i32
  }
  func.func @transform_2(%arg0: i32) -> (i32, i32) {
    %c0_i32 = arith.constant 0 : i32
    %c0_i32_0 = arith.constant 0 : i32
    %c0_i32_1 = arith.constant 0 : i32
    return %c0_i32, %c0_i32_0 : i32, i32
  }
  func.func @transform_3(%arg0: i32) -> (i32, i32) {
    %c0_i32 = arith.constant 0 : i32
    %c0_i32_0 = arith.constant 0 : i32
    %c0_i32_1 = arith.constant 0 : i32
    return %c0_i32, %c0_i32_0 : i32, i32
  }
  func.func @transform_4(%arg0: i32) -> (i32, i32) {
    %c0_i32 = arith.constant 0 : i32
    %c0_i32_0 = arith.constant 0 : i32
    %c0_i32_1 = arith.constant 0 : i32
    return %c0_i32, %c0_i32_0 : i32, i32
  }
  func.func @transform_5(%arg0: i32) -> (i32, i32) {
    %c0_i32 = arith.constant 0 : i32
    %c0_i32_0 = arith.constant 0 : i32
    %c0_i32_1 = arith.constant 0 : i32
    return %c0_i32, %c0_i32_0 : i32, i32
  }
  func.func @transform_6(%arg0: i32) -> (i32, i32) {
    %c0_i32 = arith.constant 0 : i32
    %c0_i32_0 = arith.constant 0 : i32
    %c0_i32_1 = arith.constant 0 : i32
    return %c0_i32, %c0_i32_0 : i32, i32
  }
  func.func @transform_7(%arg0: i32) -> (i32, i32) {
    %c0_i32 = arith.constant 0 : i32
    %c0_i32_0 = arith.constant 0 : i32
    %c0_i32_1 = arith.constant 0 : i32
    return %c0_i32, %c0_i32_0 : i32, i32
  }
  func.func @transform_8(%arg0: i32) -> (i32, i32) {
    %c0_i32 = arith.constant 0 : i32
    %c0_i32_0 = arith.constant 0 : i32
    %c0_i32_1 = arith.constant 0 : i32
    return %c0_i32, %c0_i32_0 : i32, i32
  }
  func.func @transform_9(%arg0: i32) -> (i32, i32) {
    %c0_i32 = arith.constant 0 : i32
    %c0_i32_0 = arith.constant 0 : i32
    %c0_i32_1 = arith.constant 0 : i32
    return %c0_i32, %c0_i32_0 : i32, i32
  }
  func.func @transform_10(%arg0: i32) -> (i32, i32) {
    %c0_i32 = arith.constant 0 : i32
    %c0_i32_0 = arith.constant 0 : i32
    %c0_i32_1 = arith.constant 0 : i32
    return %c0_i32, %c0_i32_0 : i32, i32
  }
  func.func @transform_11(%arg0: i32) -> (i32, i32) {
    %c0_i32 = arith.constant 0 : i32
    %c0_i32_0 = arith.constant 0 : i32
    %c0_i32_1 = arith.constant 0 : i32
    return %c0_i32, %c0_i32_0 : i32, i32
  }
  func.func @transform_12(%arg0: i32) -> (i32, i32) {
    %c0_i32 = arith.constant 0 : i32
    %c0_i32_0 = arith.constant 0 : i32
    return %arg0, %c0_i32 : i32, i32
  }
  func.func @transform_13(%arg0: i32) -> (i32, i32) {
    %c0_i32 = arith.constant 0 : i32
    %c0_i32_0 = arith.constant 0 : i32
    return %arg0, %c0_i32 : i32, i32
  }
}

module attributes {stable_mosaic.version = 11 : i64} {
  func.func @_net_kernel(%arg0: i32, %arg1: memref<16x1024xf32, #tpu.memory_space<vmem>>, %arg2: memref<1024x512xbf16, #tpu.memory_space<vmem>>, %arg3: memref<1x512xf32, #tpu.memory_space<vmem>>, %arg4: memref<512x256xbf16, #tpu.memory_space<vmem>>, %arg5: memref<1x256xf32, #tpu.memory_space<vmem>>, %arg6: memref<128x2xf32, #tpu.memory_space<vmem>>, %arg7: memref<1x2xf32, #tpu.memory_space<vmem>>, %arg8: memref<512x512xbf16, #tpu.memory_space<vmem>>, %arg9: memref<1x512xf32, #tpu.memory_space<vmem>>, %arg10: memref<512x8xbf16, #tpu.memory_space<vmem>>, %arg11: memref<1x7xf32, #tpu.memory_space<vmem>>, %arg12: memref<1x4xf32, #tpu.memory_space<vmem>>, %arg13: memref<16x512xf32, #tpu.memory_space<vmem>>, %arg14: memref<2x128xf32, #tpu.memory_space<vmem>>) attributes {dimension_semantics = [#tpu.dimension_semantics<arbitrary>], iteration_bounds = array<i64: 1>, scalar_prefetch = 0 : i64, scratch_operands = 0 : i64, tpu.core_type = #tpu.core_type<tc>, window_params = [{transform_indices = @transform_0, window_bounds = array<i64: 16, 1024>}, {pipeline_mode = #tpu.pipeline_mode<synchronous>, transform_indices = @transform_1, window_bounds = array<i64: 1024, 512>}, {pipeline_mode = #tpu.pipeline_mode<synchronous>, transform_indices = @transform_2, window_bounds = array<i64: 1, 512>}, {pipeline_mode = #tpu.pipeline_mode<synchronous>, transform_indices = @transform_3, window_bounds = array<i64: 512, 256>}, {pipeline_mode = #tpu.pipeline_mode<synchronous>, transform_indices = @transform_4, window_bounds = array<i64: 1, 256>}, {pipeline_mode = #tpu.pipeline_mode<synchronous>, transform_indices = @transform_5, window_bounds = array<i64: 128, 2>}, {pipeline_mode = #tpu.pipeline_mode<synchronous>, transform_indices = @transform_6, window_bounds = array<i64: 1, 2>}, {pipeline_mode = #tpu.pipeline_mode<synchronous>, transform_indices = @transform_7, window_bounds = array<i64: 512, 512>}, {pipeline_mode = #tpu.pipeline_mode<synchronous>, transform_indices = @transform_8, window_bounds = array<i64: 1, 512>}, {pipeline_mode = #tpu.pipeline_mode<synchronous>, transform_indices = @transform_9, window_bounds = array<i64: 512, 8>}, {pipeline_mode = #tpu.pipeline_mode<synchronous>, transform_indices = @transform_10, window_bounds = array<i64: 1, 7>}, {pipeline_mode = #tpu.pipeline_mode<synchronous>, transform_indices = @transform_11, window_bounds = array<i64: 1, 4>}, {transform_indices = @transform_12, window_bounds = array<i64: 16, 512>}, {transform_indices = @transform_13, window_bounds = array<i64: 2, 128>}]} {
    %c0 = arith.constant 0 : index
    %c0_0 = arith.constant 0 : index
    %0 = vector.load %arg1[%c0, %c0_0] : memref<16x1024xf32, #tpu.memory_space<vmem>>, vector<16x1024xf32>
    %1 = arith.truncf %0 : vector<16x1024xf32> to vector<16x1024xbf16>
    %c0_1 = arith.constant 0 : index
    %c0_2 = arith.constant 0 : index
    %2 = vector.load %arg2[%c0_1, %c0_2] : memref<1024x512xbf16, #tpu.memory_space<vmem>>, vector<1024x512xbf16>
    %cst = arith.constant dense<0.000000e+00> : vector<16x512xf32>
    %3 = tpu.matmul %1, %2, %cst {dimension_numbers = #tpu.dot_dimension_numbers<[1], [0], [0], [1], [0, 0, 1, 1], [], []>} : vector<16x1024xbf16>, vector<1024x512xbf16>, vector<16x512xf32> -> vector<16x512xf32>
    %c0_3 = arith.constant 0 : index
    %c0_4 = arith.constant 0 : index
    %4 = vector.load %arg3[%c0_3, %c0_4] : memref<1x512xf32, #tpu.memory_space<vmem>>, vector<1x512xf32>
    %5 = vector.broadcast %4 : vector<1x512xf32> to vector<16x512xf32>
    %6 = arith.addf %3, %5 : vector<16x512xf32>
    %c0_5 = arith.constant 0 : index
    %c0_6 = arith.constant 0 : index
    %7 = vector.load %arg13[%c0_5, %c0_6] : memref<16x512xf32, #tpu.memory_space<vmem>>, vector<16x512xf32>
    tpu.vector_store %arg13[%c0_5, %c0_6], %6 {strides = array<i32>} : memref<16x512xf32, #tpu.memory_space<vmem>>, vector<16x512xf32>,
    %8 = arith.truncf %6 : vector<16x512xf32> to vector<16x512xbf16>
    %c0_7 = arith.constant 0 : index
    %c0_8 = arith.constant 0 : index
    %9 = vector.load %arg4[%c0_7, %c0_8] : memref<512x256xbf16, #tpu.memory_space<vmem>>, vector<512x256xbf16>
    %cst_9 = arith.constant dense<0.000000e+00> : vector<16x256xf32>
    %10 = tpu.matmul %8, %9, %cst_9 {dimension_numbers = #tpu.dot_dimension_numbers<[1], [0], [0], [1], [0, 0, 1, 1], [], []>} : vector<16x512xbf16>, vector<512x256xbf16>, vector<16x256xf32> -> vector<16x256xf32>
    %c0_10 = arith.constant 0 : index
    %c0_11 = arith.constant 0 : index
    %11 = vector.load %arg5[%c0_10, %c0_11] : memref<1x256xf32, #tpu.memory_space<vmem>>, vector<1x256xf32>
    %12 = vector.broadcast %11 : vector<1x256xf32> to vector<16x256xf32>
    %13 = arith.addf %10, %12 : vector<16x256xf32>
    %14 = vector.extract_strided_slice %13 {offsets = [0, 0], sizes = [16, 128], strides = [1, 1]} : vector<16x256xf32> to vector<16x128xf32>
    %15 = math.tanh %14 : vector<16x128xf32>
    %16 = vector.extract_strided_slice %13 {offsets = [0, 128], sizes = [16, 128], strides = [1, 1]} : vector<16x256xf32> to vector<16x128xf32>
    %17 = arith.negf %16 : vector<16x128xf32>
    %18 = math.exp %17 : vector<16x128xf32>
    %cst_12 = arith.constant 1.000000e+00 : f32
    %19 = vector.broadcast %cst_12 : f32 to vector<16x128xf32>
    %20 = arith.addf %19, %18 : vector<16x128xf32>
    %21 = arith.divf %19, %20 : vector<16x128xf32>
    %22 = arith.mulf %15, %21 : vector<16x128xf32>
    %c0_13 = arith.constant 0 : index
    %c0_14 = arith.constant 0 : index
    %23 = vector.load %arg6[%c0_13, %c0_14] : memref<128x2xf32, #tpu.memory_space<vmem>>, vector<128x2xf32>
    %cst_15 = arith.constant dense<0.000000e+00> : vector<16x2xf32>
    %24 = tpu.matmul %22, %23, %cst_15 {dimension_numbers = #tpu.dot_dimension_numbers<[1], [0], [0], [1], [0, 0, 1, 1], [], []>} : vector<16x128xf32>, vector<128x2xf32>, vector<16x2xf32> -> vector<16x2xf32>
    %c0_16 = arith.constant 0 : index
    %c0_17 = arith.constant 0 : index
    %25 = vector.load %arg7[%c0_16, %c0_17] : memref<1x2xf32, #tpu.memory_space<vmem>>, vector<1x2xf32>
    %26 = vector.broadcast %25 : vector<1x2xf32> to vector<16x2xf32>
    %27 = arith.addf %24, %26 : vector<16x2xf32>
    %28 = vector.shape_cast %27 : vector<16x2xf32> to vector<2x8x2xf32>
    %cst_18 = arith.constant dense<0xFF800000> : vector<2x2xf32>
    %29 = vector.multi_reduction <maximumf>, %28, %cst_18 [1] : vector<2x8x2xf32> to vector<2x2xf32>
    %30 = vector.shape_cast %29 : vector<2x2xf32> to vector<2x1x2xf32>
    %31 = vector.broadcast %30 : vector<2x1x2xf32> to vector<2x8x2xf32>
    %32 = arith.subf %28, %31 : vector<2x8x2xf32>
    %33 = math.exp %32 : vector<2x8x2xf32>
    %cst_19 = arith.constant dense<0.000000e+00> : vector<2x2xf32>
    %34 = vector.multi_reduction <add>, %33, %cst_19 [1] : vector<2x8x2xf32> to vector<2x2xf32>
    %35 = vector.shape_cast %34 : vector<2x2xf32> to vector<2x1x2xf32>
    %36 = tpu.reciprocal %35 {approx = true} : vector<2x1x2xf32> -> vector<2x1x2xf32>
    %37 = vector.broadcast %36 : vector<2x1x2xf32> to vector<2x8x2xf32>
    %38 = arith.mulf %33, %37 : vector<2x8x2xf32>
    %39 = vector.shape_cast %6 : vector<16x512xf32> to vector<2x8x512xf32>
    %cst_20 = arith.constant dense<0.000000e+00> : vector<2x2x512xf32>
    %40 = tpu.matmul %38, %39, %cst_20 {dimension_numbers = #tpu.dot_dimension_numbers<[1], [1], [2], [2], [0, 0, 0, 2, 1, 2], [0], [0]>} : vector<2x8x2xf32>, vector<2x8x512xf32>, vector<2x2x512xf32> -> vector<2x2x512xf32>
    %41 = vector.extract_strided_slice %40 {offsets = [0, 0, 0], sizes = [2, 1, 512], strides = [1, 1, 1]} : vector<2x2x512xf32> to vector<2x1x512xf32>
    %42 = vector.shape_cast %41 : vector<2x1x512xf32> to vector<2x512xf32>
    %43 = vector.extract_strided_slice %40 {offsets = [0, 1, 0], sizes = [2, 1, 512], strides = [1, 1, 1]} : vector<2x2x512xf32> to vector<2x1x512xf32>
    %44 = vector.shape_cast %43 : vector<2x1x512xf32> to vector<2x512xf32>
    %45 = tpu.concatenate %42, %44 in 0 : vector<2x512xf32>, vector<2x512xf32> -> vector<4x512xf32>
    %46 = arith.truncf %45 : vector<4x512xf32> to vector<4x512xbf16>
    %c0_21 = arith.constant 0 : index
    %c0_22 = arith.constant 0 : index
    %47 = vector.load %arg8[%c0_21, %c0_22] : memref<512x512xbf16, #tpu.memory_space<vmem>>, vector<512x512xbf16>
    %cst_23 = arith.constant dense<0.000000e+00> : vector<4x512xf32>
    %48 = tpu.matmul %46, %47, %cst_23 {dimension_numbers = #tpu.dot_dimension_numbers<[1], [0], [0], [1], [0, 0, 1, 1], [], []>} : vector<4x512xbf16>, vector<512x512xbf16>, vector<4x512xf32> -> vector<4x512xf32>
    %c0_24 = arith.constant 0 : index
    %c0_25 = arith.constant 0 : index
    %49 = vector.load %arg9[%c0_24, %c0_25] : memref<1x512xf32, #tpu.memory_space<vmem>>, vector<1x512xf32>
    %50 = vector.broadcast %49 : vector<1x512xf32> to vector<4x512xf32>
    %51 = arith.addf %48, %50 : vector<4x512xf32>
    %cst_26 = arith.constant 0.000000e+00 : f32
    %52 = vector.broadcast %cst_26 : f32 to vector<4x512xf32>
    %53 = arith.maximumf %51, %52 : vector<4x512xf32>
    %54 = arith.truncf %53 : vector<4x512xf32> to vector<4x512xbf16>
    %c0_27 = arith.constant 0 : index
    %c0_28 = arith.constant 0 : index
    %55 = vector.load %arg10[%c0_27, %c0_28] : memref<512x8xbf16, #tpu.memory_space<vmem>>, vector<512x8xbf16>
    %cst_29 = arith.constant dense<0.000000e+00> : vector<4x8xf32>
    %56 = tpu.matmul %54, %55, %cst_29 {dimension_numbers = #tpu.dot_dimension_numbers<[1], [0], [0], [1], [0, 0, 1, 1], [], []>} : vector<4x512xbf16>, vector<512x8xbf16>, vector<4x8xf32> -> vector<4x8xf32>
    %57 = vector.extract_strided_slice %56 {offsets = [0, 0], sizes = [2, 1], strides = [1, 1]} : vector<4x8xf32> to vector<2x1xf32>
    %c0_30 = arith.constant 0 : index
    %c0_31 = arith.constant 0 : index
    %58 = vector.load %arg12[%c0_30, %c0_31] : memref<1x4xf32, #tpu.memory_space<vmem>>, vector<1x4xf32>
    %59 = vector.broadcast %57 : vector<2x1xf32> to vector<2x4xf32>
    %60 = vector.broadcast %58 : vector<1x4xf32> to vector<2x4xf32>
    %61 = arith.addf %59, %60 : vector<2x4xf32>
    %62 = arith.negf %61 : vector<2x4xf32>
    %63 = math.exp %62 : vector<2x4xf32>
    %cst_32 = arith.constant 1.000000e+00 : f32
    %64 = vector.broadcast %cst_32 : f32 to vector<2x4xf32>
    %65 = arith.addf %64, %63 : vector<2x4xf32>
    %66 = arith.divf %64, %65 : vector<2x4xf32>
    %67 = vector.extract_strided_slice %56 {offsets = [2, 1], sizes = [2, 7], strides = [1, 1]} : vector<4x8xf32> to vector<2x7xf32>
    %c0_33 = arith.constant 0 : index
    %c0_34 = arith.constant 0 : index
    %68 = vector.load %arg11[%c0_33, %c0_34] : memref<1x7xf32, #tpu.memory_space<vmem>>, vector<1x7xf32>
    %69 = vector.broadcast %68 : vector<1x7xf32> to vector<2x7xf32>
    %70 = arith.addf %67, %69 : vector<2x7xf32>
    %71 = vector.extract_strided_slice %38 {offsets = [0, 0, 0], sizes = [2, 8, 1], strides = [1, 1, 1]} : vector<2x8x2xf32> to vector<2x8x1xf32>
    %72 = vector.shape_cast %71 : vector<2x8x1xf32> to vector<2x8xf32>
    %73 = vector.extract_strided_slice %38 {offsets = [0, 0, 1], sizes = [2, 8, 1], strides = [1, 1, 1]} : vector<2x8x2xf32> to vector<2x8x1xf32>
    %74 = vector.shape_cast %73 : vector<2x8x1xf32> to vector<2x8xf32>
    %cst_35 = arith.constant 0.000000e+00 : f32
    %75 = vector.broadcast %cst_35 : f32 to vector<2x97xf32>
    %76 = tpu.concatenate %61, %66, %70, %72, %74, %75 in 1 : vector<2x4xf32>, vector<2x4xf32>, vector<2x7xf32>, vector<2x8xf32>, vector<2x8xf32>, vector<2x97xf32> -> vector<2x128xf32>
    %c0_36 = arith.constant 0 : index
    %c0_37 = arith.constant 0 : index
    %77 = vector.load %arg14[%c0_36, %c0_37] : memref<2x128xf32, #tpu.memory_space<vmem>>, vector<2x128xf32>
    tpu.vector_store %arg14[%c0_36, %c0_37], %76 {strides = array<i32>} : memref<2x128xf32, #tpu.memory_space<vmem>>, vector<2x128xf32>,
    return
  }
  func.func @transform_0(%arg0: i32) -> (i32, i32) {
    %c0_i32 = arith.constant 0 : i32
    %c0_i32_0 = arith.constant 0 : i32
    return %arg0, %c0_i32 : i32, i32
  }
  func.func @transform_1(%arg0: i32) -> (i32, i32) {
    %c0_i32 = arith.constant 0 : i32
    %c0_i32_0 = arith.constant 0 : i32
    %c0_i32_1 = arith.constant 0 : i32
    return %c0_i32, %c0_i32_0 : i32, i32
  }
  func.func @transform_2(%arg0: i32) -> (i32, i32) {
    %c0_i32 = arith.constant 0 : i32
    %c0_i32_0 = arith.constant 0 : i32
    %c0_i32_1 = arith.constant 0 : i32
    return %c0_i32, %c0_i32_0 : i32, i32
  }
  func.func @transform_3(%arg0: i32) -> (i32, i32) {
    %c0_i32 = arith.constant 0 : i32
    %c0_i32_0 = arith.constant 0 : i32
    %c0_i32_1 = arith.constant 0 : i32
    return %c0_i32, %c0_i32_0 : i32, i32
  }
  func.func @transform_4(%arg0: i32) -> (i32, i32) {
    %c0_i32 = arith.constant 0 : i32
    %c0_i32_0 = arith.constant 0 : i32
    %c0_i32_1 = arith.constant 0 : i32
    return %c0_i32, %c0_i32_0 : i32, i32
  }
  func.func @transform_5(%arg0: i32) -> (i32, i32) {
    %c0_i32 = arith.constant 0 : i32
    %c0_i32_0 = arith.constant 0 : i32
    %c0_i32_1 = arith.constant 0 : i32
    return %c0_i32, %c0_i32_0 : i32, i32
  }
  func.func @transform_6(%arg0: i32) -> (i32, i32) {
    %c0_i32 = arith.constant 0 : i32
    %c0_i32_0 = arith.constant 0 : i32
    %c0_i32_1 = arith.constant 0 : i32
    return %c0_i32, %c0_i32_0 : i32, i32
  }
  func.func @transform_7(%arg0: i32) -> (i32, i32) {
    %c0_i32 = arith.constant 0 : i32
    %c0_i32_0 = arith.constant 0 : i32
    %c0_i32_1 = arith.constant 0 : i32
    return %c0_i32, %c0_i32_0 : i32, i32
  }
  func.func @transform_8(%arg0: i32) -> (i32, i32) {
    %c0_i32 = arith.constant 0 : i32
    %c0_i32_0 = arith.constant 0 : i32
    %c0_i32_1 = arith.constant 0 : i32
    return %c0_i32, %c0_i32_0 : i32, i32
  }
  func.func @transform_9(%arg0: i32) -> (i32, i32) {
    %c0_i32 = arith.constant 0 : i32
    %c0_i32_0 = arith.constant 0 : i32
    %c0_i32_1 = arith.constant 0 : i32
    return %c0_i32, %c0_i32_0 : i32, i32
  }
  func.func @transform_10(%arg0: i32) -> (i32, i32) {
    %c0_i32 = arith.constant 0 : i32
    %c0_i32_0 = arith.constant 0 : i32
    %c0_i32_1 = arith.constant 0 : i32
    return %c0_i32, %c0_i32_0 : i32, i32
  }
  func.func @transform_11(%arg0: i32) -> (i32, i32) {
    %c0_i32 = arith.constant 0 : i32
    %c0_i32_0 = arith.constant 0 : i32
    %c0_i32_1 = arith.constant 0 : i32
    return %c0_i32, %c0_i32_0 : i32, i32
  }
  func.func @transform_12(%arg0: i32) -> (i32, i32) {
    %c0_i32 = arith.constant 0 : i32
    %c0_i32_0 = arith.constant 0 : i32
    return %arg0, %c0_i32 : i32, i32
  }
  func.func @transform_13(%arg0: i32) -> (i32, i32) {
    %c0_i32 = arith.constant 0 : i32
    %c0_i32_0 = arith.constant 0 : i32
    return %arg0, %c0_i32 : i32, i32
  }
}

</mosaic_0001>

<llo_original>
// kernel: _net_forward_impl.1
$region0: #{_net_forward_impl.1}
  #allocation0 [shape = 'u32[]', space=smem, size = 0x4, offset = 0x4, fixed_abs, tag = 'smem constant byte address 0x4 - core index']
  #allocation1 [shape = 'u32[144,128]{1,0:T(1,128)}', space=vmem, size = 0x12000, scoped, tag = 'internal scratch']
  %s0 = inlined_call_operand.vmem [shape: f32[16,1024], index: 0, kind: input, shape index: {}]
  %s1 = inlined_call_operand.vmem [shape: bf16[1024,512], index: 1, kind: input, shape index: {}]
  %s2 = inlined_call_operand.vmem [shape: f32[1,512], index: 2, kind: input, shape index: {}]
  %s3 = inlined_call_operand.vmem [shape: bf16[512,256], index: 3, kind: input, shape index: {}]
  %s4 = inlined_call_operand.vmem [shape: f32[1,256], index: 4, kind: input, shape index: {}]
  %s5 = inlined_call_operand.vmem [shape: f32[128,2], index: 5, kind: input, shape index: {}]
  %s6 = inlined_call_operand.vmem [shape: f32[1,2], index: 6, kind: input, shape index: {}]
  %s7 = inlined_call_operand.vmem [shape: bf16[512,512], index: 7, kind: input, shape index: {}]
  %s8 = inlined_call_operand.vmem [shape: f32[1,512], index: 8, kind: input, shape index: {}]
  %s9 = inlined_call_operand.vmem [shape: bf16[512,8], index: 9, kind: input, shape index: {}]
  %s10 = inlined_call_operand.vmem [shape: f32[1,7], index: 10, kind: input, shape index: {}]
  %s11 = inlined_call_operand.vmem [shape: f32[1,4], index: 11, kind: input, shape index: {}]
  %s12 = inlined_call_operand.hbm [shape: f32[16,512], index: 12, kind: output, shape index: {0}]
  %s13 = inlined_call_operand.vmem [shape: f32[2,128], index: 13, kind: output, shape index: {1}]
  %14 = xla_tuple %s12, %s13
  %s15 = sld [smem:[#allocation0]]
  $region66: #{_net_forward_impl.1} parent=0
    _
  %s17 = ssub.s32 1, %s15
  %s18 = scalar_select 0, %s17, %s15
  $region1: #{_net_forward_impl.1} parent=0
    #allocation2 [shape = 'u8[32768]{0}', space=vmem, size = 0x8000, scoped, tag = 'output window, operand 0, single buffered']
    #allocation3 [shape = 's32[1]{0}', space=sflag, size = 0x4, scoped, tag = 'scoped memory for _net_forward_impl.1']
    %19 = vsyncpa [#allocation3], 0
    // Predicated region
    $region2: #{_net_forward_impl.1} parent=1 // pred_check
      _
    $region3: #{_net_forward_impl.1} parent=1 // pred_check_branch
      %21 = sbr.rel (0) target = $region5
    $region4: #{_net_forward_impl.1} parent=1 // pred_region
      _
    $region5: #{_net_forward_impl.1} parent=1 // pred_fallthru
      _
    // Predicated region
    $region6: #{_net_forward_impl.1} parent=1 // pred_check
      _
    $region7: #{_net_forward_impl.1} parent=1 // pred_check_branch
      %23 = sbr.rel (0) target = $region9
    $region8: #{_net_forward_impl.1} parent=1 // pred_region
      _
    $region9: #{_net_forward_impl.1} parent=1 // pred_fallthru
      _
    // Predicated region
    $region10: #{_net_forward_impl.1} parent=1 // pred_check
      _
    $region11: #{_net_forward_impl.1} parent=1 // pred_check_branch
      %25 = sbr.rel (0) target = $region13
    $region12: #{_net_forward_impl.1} parent=1 // pred_region
      _
    $region13: #{_net_forward_impl.1} parent=1 // pred_fallthru
      _
    // Predicated region
    $region14: #{_net_forward_impl.1} parent=1 // pred_check
      _
    $region15: #{_net_forward_impl.1} parent=1 // pred_check_branch
      %27 = sbr.rel (0) target = $region17
    $region16: #{_net_forward_impl.1} parent=1 // pred_region
      _
    $region17: #{_net_forward_impl.1} parent=1 // pred_fallthru
      _
    // Predicated region
    $region18: #{_net_forward_impl.1} parent=1 // pred_check
      _
    $region19: #{_net_forward_impl.1} parent=1 // pred_check_branch
      %29 = sbr.rel (0) target = $region21
    $region20: #{_net_forward_impl.1} parent=1 // pred_region
      _
    $region21: #{_net_forward_impl.1} parent=1 // pred_fallthru
      _
    // Predicated region
    $region22: #{_net_forward_impl.1} parent=1 // pred_check
      _
    $region23: #{_net_forward_impl.1} parent=1 // pred_check_branch
      %31 = sbr.rel (0) target = $region25
    $region24: #{_net_forward_impl.1} parent=1 // pred_region
      _
    $region25: #{_net_forward_impl.1} parent=1 // pred_fallthru
      _
    // Predicated region
    $region26: #{_net_forward_impl.1} parent=1 // pred_check
      _
    $region27: #{_net_forward_impl.1} parent=1 // pred_check_branch
      %33 = sbr.rel (0) target = $region29
    $region28: #{_net_forward_impl.1} parent=1 // pred_region
      _
    $region29: #{_net_forward_impl.1} parent=1 // pred_fallthru
      _
    // Predicated region
    $region30: #{_net_forward_impl.1} parent=1 // pred_check
      _
    $region31: #{_net_forward_impl.1} parent=1 // pred_check_branch
      %35 = sbr.rel (0) target = $region33
    $region32: #{_net_forward_impl.1} parent=1 // pred_region
      _
    $region33: #{_net_forward_impl.1} parent=1 // pred_fallthru
      _
    // Predicated region
    $region34: #{_net_forward_impl.1} parent=1 // pred_check
      _
    $region35: #{_net_forward_impl.1} parent=1 // pred_check_branch
      %37 = sbr.rel (0) target = $region37
    $region36: #{_net_forward_impl.1} parent=1 // pred_region
      _
    $region37: #{_net_forward_impl.1} parent=1 // pred_fallthru
      _
    // Predicated region
    $region38: #{_net_forward_impl.1} parent=1 // pred_check
      _
    $region39: #{_net_forward_impl.1} parent=1 // pred_check_branch
      %39 = sbr.rel (0) target = $region41
    $region40: #{_net_forward_impl.1} parent=1 // pred_region
      _
    $region41: #{_net_forward_impl.1} parent=1 // pred_fallthru
      _
    // Predicated region
    $region42: #{_net_forward_impl.1} parent=1 // pred_check
      _
    $region43: #{_net_forward_impl.1} parent=1 // pred_check_branch
      %41 = sbr.rel (0) target = $region45
    $region44: #{_net_forward_impl.1} parent=1 // pred_region
      _
    $region45: #{_net_forward_impl.1} parent=1 // pred_fallthru
      _
    // Predicated region
    $region46: #{_net_forward_impl.1} parent=1 // pred_check
      _
    $region47: #{_net_forward_impl.1} parent=1 // pred_check_branch
      %43 = sbr.rel (0) target = $region49
    $region48: #{_net_forward_impl.1} parent=1 // pred_region
      _
    $region49: #{_net_forward_impl.1} parent=1 // pred_fallthru
      _
    %v45 = vld [vmem:[%s0] sm:$0xff]
    %v46 = vld [vmem:[%s0 + $0x8] sm:$0xff]
    %v47 = vld [vmem:[%s0 + $0x10] sm:$0xff]
    %v48 = vld [vmem:[%s0 + $0x18] sm:$0xff]
    %v49 = vld [vmem:[%s0 + $0x20] sm:$0xff]
    %v50 = vld [vmem:[%s0 + $0x28] sm:$0xff]
    %v51 = vld [vmem:[%s0 + $0x30] sm:$0xff]
    %v52 = vld [vmem:[%s0 + $0x38] sm:$0xff]
    %v53 = vld [vmem:[%s0 + $0x40] sm:$0xff]
    %v54 = vld [vmem:[%s0 + $0x48] sm:$0xff]
    %v55 = vld [vmem:[%s0 + $0x50] sm:$0xff]
    %v56 = vld [vmem:[%s0 + $0x58] sm:$0xff]
    %v57 = vld [vmem:[%s0 + $0x60] sm:$0xff]
    %v58 = vld [vmem:[%s0 + $0x68] sm:$0xff]
    %v59 = vld [vmem:[%s0 + $0x70] sm:$0xff]
    %v60 = vld [vmem:[%s0 + $0x78] sm:$0xff]
    %v61 = vpack.c.bf16 %v53, %v45
    %v62 = vpack.c.bf16 %v54, %v46
    %v63 = vpack.c.bf16 %v55, %v47
    %v64 = vpack.c.bf16 %v56, %v48
    %v65 = vpack.c.bf16 %v57, %v49
    %v66 = vpack.c.bf16 %v58, %v50
    %v67 = vpack.c.bf16 %v59, %v51
    %v68 = vpack.c.bf16 %v60, %v52
    %v69 = vld [vmem:[%s1] sm:$0xff]
    %v70 = vld [vmem:[%s1 + $0x8] sm:$0xff]
    %v71 = vld [vmem:[%s1 + $0x10] sm:$0xff]
    %v72 = vld [vmem:[%s1 + $0x18] sm:$0xff]
    %v73 = vld [vmem:[%s1 + $0x20] sm:$0xff]
    %v74 = vld [vmem:[%s1 + $0x28] sm:$0xff]
    %v75 = vld [vmem:[%s1 + $0x30] sm:$0xff]
    %v76 = vld [vmem:[%s1 + $0x38] sm:$0xff]
    %v77 = vld [vmem:[%s1 + $0x40] sm:$0xff]
    %v78 = vld [vmem:[%s1 + $0x48] sm:$0xff]
    %v79 = vld [vmem:[%s1 + $0x50] sm:$0xff]
    %v80 = vld [vmem:[%s1 + $0x58] sm:$0xff]
    %v81 = vld [vmem:[%s1 + $0x60] sm:$0xff]
    %v82 = vld [vmem:[%s1 + $0x68] sm:$0xff]
    %v83 = vld [vmem:[%s1 + $0x70] sm:$0xff]
    %v84 = vld [vmem:[%s1 + $0x78] sm:$0xff]
    %v85 = vld [vmem:[%s1 + $0x80] sm:$0xff]
    %v86 = vld [vmem:[%s1 + $0x88] sm:$0xff]
    %v87 = vld [vmem:[%s1 + $0x90] sm:$0xff]
    %v88 = vld [vmem:[%s1 + $0x98] sm:$0xff]
    %v89 = vld [vmem:[%s1 + $0xa0] sm:$0xff]
    %v90 = vld [vmem:[%s1 + $0xa8] sm:$0xff]
    %v91 = vld [vmem:[%s1 + $0xb0] sm:$0xff]
    %v92 = vld [vmem:[%s1 + $0xb8] sm:$0xff]
    %v93 = vld [vmem:[%s1 + $0xc0] sm:$0xff]
    %v94 = vld [vmem:[%s1 + $0xc8] sm:$0xff]
    %v95 = vld [vmem:[%s1 + $0xd0] sm:$0xff]
    %v96 = vld [vmem:[%s1 + $0xd8] sm:$0xff]
    %v97 = vld [vmem:[%s1 + $0xe0] sm:$0xff]
    %v98 = vld [vmem:[%s1 + $0xe8] sm:$0xff]
    %v99 = vld [vmem:[%s1 + $0xf0] sm:$0xff]
    %v100 = vld [vmem:[%s1 + $0xf8] sm:$0xff]
    %v101 = vld [vmem:[%s1 + $0x100] sm:$0xff]
    %v102 = vld [vmem:[%s1 + $0x108] sm:$0xff]
    %v103 = vld [vmem:[%s1 + $0x110] sm:$0xff]
    %v104 = vld [vmem:[%s1 + $0x118] sm:$0xff]
    %v105 = vld [vmem:[%s1 + $0x120] sm:$0xff]
    %v106 = vld [vmem:[%s1 + $0x128] sm:$0xff]
    %v107 = vld [vmem:[%s1 + $0x130] sm:$0xff]
    %v108 = vld [vmem:[%s1 + $0x138] sm:$0xff]
    %v109 = vld [vmem:[%s1 + $0x140] sm:$0xff]
    %v110 = vld [vmem:[%s1 + $0x148] sm:$0xff]
    %v111 = vld [vmem:[%s1 + $0x150] sm:$0xff]
    %v112 = vld [vmem:[%s1 + $0x158] sm:$0xff]
    %v113 = vld [vmem:[%s1 + $0x160] sm:$0xff]
    %v114 = vld [vmem:[%s1 + $0x168] sm:$0xff]
    %v115 = vld [vmem:[%s1 + $0x170] sm:$0xff]
    %v116 = vld [vmem:[%s1 + $0x178] sm:$0xff]
    %v117 = vld [vmem:[%s1 + $0x180] sm:$0xff]
    %v118 = vld [vmem:[%s1 + $0x188] sm:$0xff]
    %v119 = vld [vmem:[%s1 + $0x190] sm:$0xff]
    %v120 = vld [vmem:[%s1 + $0x198] sm:$0xff]
    %v121 = vld [vmem:[%s1 + $0x1a0] sm:$0xff]
    %v122 = vld [vmem:[%s1 + $0x1a8] sm:$0xff]
    %v123 = vld [vmem:[%s1 + $0x1b0] sm:$0xff]
    %v124 = vld [vmem:[%s1 + $0x1b8] sm:$0xff]
    %v125 = vld [vmem:[%s1 + $0x1c0] sm:$0xff]
    %v126 = vld [vmem:[%s1 + $0x1c8] sm:$0xff]
    %v127 = vld [vmem:[%s1 + $0x1d0] sm:$0xff]
    %v128 = vld [vmem:[%s1 + $0x1d8] sm:$0xff]
    %v129 = vld [vmem:[%s1 + $0x1e0] sm:$0xff]
    %v130 = vld [vmem:[%s1 + $0x1e8] sm:$0xff]
    %v131 = vld [vmem:[%s1 + $0x1f0] sm:$0xff]
    %v132 = vld [vmem:[%s1 + $0x1f8] sm:$0xff]
    %v133 = vld [vmem:[%s1 + $0x200] sm:$0xff]
    %v134 = vld [vmem:[%s1 + $0x208] sm:$0xff]
    %v135 = vld [vmem:[%s1 + $0x210] sm:$0xff]
    %v136 = vld [vmem:[%s1 + $0x218] sm:$0xff]
    %v137 = vld [vmem:[%s1 + $0x220] sm:$0xff]
    %v138 = vld [vmem:[%s1 + $0x228] sm:$0xff]
    %v139 = vld [vmem:[%s1 + $0x230] sm:$0xff]
    %v140 = vld [vmem:[%s1 + $0x238] sm:$0xff]
    %v141 = vld [vmem:[%s1 + $0x240] sm:$0xff]
    %v142 = vld [vmem:[%s1 + $0x248] sm:$0xff]
    %v143 = vld [vmem:[%s1 + $0x250] sm:$0xff]
    %v144 = vld [vmem:[%s1 + $0x258] sm:$0xff]
    %v145 = vld [vmem:[%s1 + $0x260] sm:$0xff]
    %v146 = vld [vmem:[%s1 + $0x268] sm:$0xff]
    %v147 = vld [vmem:[%s1 + $0x270] sm:$0xff]
    %v148 = vld [vmem:[%s1 + $0x278] sm:$0xff]
    %v149 = vld [vmem:[%s1 + $0x280] sm:$0xff]
    %v150 = vld [vmem:[%s1 + $0x288] sm:$0xff]
    %v151 = vld [vmem:[%s1 + $0x290] sm:$0xff]
    %v152 = vld [vmem:[%s1 + $0x298] sm:$0xff]
    %v153 = vld [vmem:[%s1 + $0x2a0] sm:$0xff]
    %v154 = vld [vmem:[%s1 + $0x2a8] sm:$0xff]
    %v155 = vld [vmem:[%s1 + $0x2b0] sm:$0xff]
    %v156 = vld [vmem:[%s1 + $0x2b8] sm:$0xff]
    %v157 = vld [vmem:[%s1 + $0x2c0] sm:$0xff]
    %v158 = vld [vmem:[%s1 + $0x2c8] sm:$0xff]
    %v159 = vld [vmem:[%s1 + $0x2d0] sm:$0xff]
    %v160 = vld [vmem:[%s1 + $0x2d8] sm:$0xff]
    %v161 = vld [vmem:[%s1 + $0x2e0] sm:$0xff]
    %v162 = vld [vmem:[%s1 + $0x2e8] sm:$0xff]
    %v163 = vld [vmem:[%s1 + $0x2f0] sm:$0xff]
    %v164 = vld [vmem:[%s1 + $0x2f8] sm:$0xff]
    %v165 = vld [vmem:[%s1 + $0x300] sm:$0xff]
    %v166 = vld [vmem:[%s1 + $0x308] sm:$0xff]
    %v167 = vld [vmem:[%s1 + $0x310] sm:$0xff]
    %v168 = vld [vmem:[%s1 + $0x318] sm:$0xff]
    %v169 = vld [vmem:[%s1 + $0x320] sm:$0xff]
    %v170 = vld [vmem:[%s1 + $0x328] sm:$0xff]
    %v171 = vld [vmem:[%s1 + $0x330] sm:$0xff]
    %v172 = vld [vmem:[%s1 + $0x338] sm:$0xff]
    %v173 = vld [vmem:[%s1 + $0x340] sm:$0xff]
    %v174 = vld [vmem:[%s1 + $0x348] sm:$0xff]
    %v175 = vld [vmem:[%s1 + $0x350] sm:$0xff]
    %v176 = vld [vmem:[%s1 + $0x358] sm:$0xff]
    %v177 = vld [vmem:[%s1 + $0x360] sm:$0xff]
    %v178 = vld [vmem:[%s1 + $0x368] sm:$0xff]
    %v179 = vld [vmem:[%s1 + $0x370] sm:$0xff]
    %v180 = vld [vmem:[%s1 + $0x378] sm:$0xff]
    %v181 = vld [vmem:[%s1 + $0x380] sm:$0xff]
    %v182 = vld [vmem:[%s1 + $0x388] sm:$0xff]
    %v183 = vld [vmem:[%s1 + $0x390] sm:$0xff]
    %v184 = vld [vmem:[%s1 + $0x398] sm:$0xff]
    %v185 = vld [vmem:[%s1 + $0x3a0] sm:$0xff]
    %v186 = vld [vmem:[%s1 + $0x3a8] sm:$0xff]
    %v187 = vld [vmem:[%s1 + $0x3b0] sm:$0xff]
    %v188 = vld [vmem:[%s1 + $0x3b8] sm:$0xff]
    %v189 = vld [vmem:[%s1 + $0x3c0] sm:$0xff]
    %v190 = vld [vmem:[%s1 + $0x3c8] sm:$0xff]
    %v191 = vld [vmem:[%s1 + $0x3d0] sm:$0xff]
    %v192 = vld [vmem:[%s1 + $0x3d8] sm:$0xff]
    %v193 = vld [vmem:[%s1 + $0x3e0] sm:$0xff]
    %v194 = vld [vmem:[%s1 + $0x3e8] sm:$0xff]
    %v195 = vld [vmem:[%s1 + $0x3f0] sm:$0xff]
    %v196 = vld [vmem:[%s1 + $0x3f8] sm:$0xff]
    %v197 = vld [vmem:[%s1 + $0x400] sm:$0xff]
    %v198 = vld [vmem:[%s1 + $0x408] sm:$0xff]
    %v199 = vld [vmem:[%s1 + $0x410] sm:$0xff]
    %v200 = vld [vmem:[%s1 + $0x418] sm:$0xff]
    %v201 = vld [vmem:[%s1 + $0x420] sm:$0xff]
    %v202 = vld [vmem:[%s1 + $0x428] sm:$0xff]
    %v203 = vld [vmem:[%s1 + $0x430] sm:$0xff]
    %v204 = vld [vmem:[%s1 + $0x438] sm:$0xff]
    %v205 = vld [vmem:[%s1 + $0x440] sm:$0xff]
    %v206 = vld [vmem:[%s1 + $0x448] sm:$0xff]
    %v207 = vld [vmem:[%s1 + $0x450] sm:$0xff]
    %v208 = vld [vmem:[%s1 + $0x458] sm:$0xff]
    %v209 = vld [vmem:[%s1 + $0x460] sm:$0xff]
    %v210 = vld [vmem:[%s1 + $0x468] sm:$0xff]
    %v211 = vld [vmem:[%s1 + $0x470] sm:$0xff]
    %v212 = vld [vmem:[%s1 + $0x478] sm:$0xff]
    %v213 = vld [vmem:[%s1 + $0x480] sm:$0xff]
    %v214 = vld [vmem:[%s1 + $0x488] sm:$0xff]
    %v215 = vld [vmem:[%s1 + $0x490] sm:$0xff]
    %v216 = vld [vmem:[%s1 + $0x498] sm:$0xff]
    %v217 = vld [vmem:[%s1 + $0x4a0] sm:$0xff]
    %v218 = vld [vmem:[%s1 + $0x4a8] sm:$0xff]
    %v219 = vld [vmem:[%s1 + $0x4b0] sm:$0xff]
    %v220 = vld [vmem:[%s1 + $0x4b8] sm:$0xff]
    %v221 = vld [vmem:[%s1 + $0x4c0] sm:$0xff]
    %v222 = vld [vmem:[%s1 + $0x4c8] sm:$0xff]
    %v223 = vld [vmem:[%s1 + $0x4d0] sm:$0xff]
    %v224 = vld [vmem:[%s1 + $0x4d8] sm:$0xff]
    %v225 = vld [vmem:[%s1 + $0x4e0] sm:$0xff]
    %v226 = vld [vmem:[%s1 + $0x4e8] sm:$0xff]
    %v227 = vld [vmem:[%s1 + $0x4f0] sm:$0xff]
    %v228 = vld [vmem:[%s1 + $0x4f8] sm:$0xff]
    %v229 = vld [vmem:[%s1 + $0x500] sm:$0xff]
    %v230 = vld [vmem:[%s1 + $0x508] sm:$0xff]
    %v231 = vld [vmem:[%s1 + $0x510] sm:$0xff]
    %v232 = vld [vmem:[%s1 + $0x518] sm:$0xff]
    %v233 = vld [vmem:[%s1 + $0x520] sm:$0xff]
    %v234 = vld [vmem:[%s1 + $0x528] sm:$0xff]
    %v235 = vld [vmem:[%s1 + $0x530] sm:$0xff]
    %v236 = vld [vmem:[%s1 + $0x538] sm:$0xff]
    %v237 = vld [vmem:[%s1 + $0x540] sm:$0xff]
    %v238 = vld [vmem:[%s1 + $0x548] sm:$0xff]
    %v239 = vld [vmem:[%s1 + $0x550] sm:$0xff]
    %v240 = vld [vmem:[%s1 + $0x558] sm:$0xff]
    %v241 = vld [vmem:[%s1 + $0x560] sm:$0xff]
    %v242 = vld [vmem:[%s1 + $0x568] sm:$0xff]
    %v243 = vld [vmem:[%s1 + $0x570] sm:$0xff]
    %v244 = vld [vmem:[%s1 + $0x578] sm:$0xff]
    %v245 = vld [vmem:[%s1 + $0x580] sm:$0xff]
    %v246 = vld [vmem:[%s1 + $0x588] sm:$0xff]
    %v247 = vld [vmem:[%s1 + $0x590] sm:$0xff]
    %v248 = vld [vmem:[%s1 + $0x598] sm:$0xff]
    %v249 = vld [vmem:[%s1 + $0x5a0] sm:$0xff]
    %v250 = vld [vmem:[%s1 + $0x5a8] sm:$0xff]
    %v251 = vld [vmem:[%s1 + $0x5b0] sm:$0xff]
    %v252 = vld [vmem:[%s1 + $0x5b8] sm:$0xff]
    %v253 = vld [vmem:[%s1 + $0x5c0] sm:$0xff]
    %v254 = vld [vmem:[%s1 + $0x5c8] sm:$0xff]
    %v255 = vld [vmem:[%s1 + $0x5d0] sm:$0xff]
    %v256 = vld [vmem:[%s1 + $0x5d8] sm:$0xff]
    %v257 = vld [vmem:[%s1 + $0x5e0] sm:$0xff]
    %v258 = vld [vmem:[%s1 + $0x5e8] sm:$0xff]
    %v259 = vld [vmem:[%s1 + $0x5f0] sm:$0xff]
    %v260 = vld [vmem:[%s1 + $0x5f8] sm:$0xff]
    %v261 = vld [vmem:[%s1 + $0x600] sm:$0xff]
    %v262 = vld [vmem:[%s1 + $0x608] sm:$0xff]
    %v263 = vld [vmem:[%s1 + $0x610] sm:$0xff]
    %v264 = vld [vmem:[%s1 + $0x618] sm:$0xff]
    %v265 = vld [vmem:[%s1 + $0x620] sm:$0xff]
    %v266 = vld [vmem:[%s1 + $0x628] sm:$0xff]
    %v267 = vld [vmem:[%s1 + $0x630] sm:$0xff]
    %v268 = vld [vmem:[%s1 + $0x638] sm:$0xff]
    %v269 = vld [vmem:[%s1 + $0x640] sm:$0xff]
    %v270 = vld [vmem:[%s1 + $0x648] sm:$0xff]
    %v271 = vld [vmem:[%s1 + $0x650] sm:$0xff]
    %v272 = vld [vmem:[%s1 + $0x658] sm:$0xff]
    %v273 = vld [vmem:[%s1 + $0x660] sm:$0xff]
    %v274 = vld [vmem:[%s1 + $0x668] sm:$0xff]
    %v275 = vld [vmem:[%s1 + $0x670] sm:$0xff]
    %v276 = vld [vmem:[%s1 + $0x678] sm:$0xff]
    %v277 = vld [vmem:[%s1 + $0x680] sm:$0xff]
    %v278 = vld [vmem:[%s1 + $0x688] sm:$0xff]
    %v279 = vld [vmem:[%s1 + $0x690] sm:$0xff]
    %v280 = vld [vmem:[%s1 + $0x698] sm:$0xff]
    %v281 = vld [vmem:[%s1 + $0x6a0] sm:$0xff]
    %v282 = vld [vmem:[%s1 + $0x6a8] sm:$0xff]
    %v283 = vld [vmem:[%s1 + $0x6b0] sm:$0xff]
    %v284 = vld [vmem:[%s1 + $0x6b8] sm:$0xff]
    %v285 = vld [vmem:[%s1 + $0x6c0] sm:$0xff]
    %v286 = vld [vmem:[%s1 + $0x6c8] sm:$0xff]
    %v287 = vld [vmem:[%s1 + $0x6d0] sm:$0xff]
    %v288 = vld [vmem:[%s1 + $0x6d8] sm:$0xff]
    %v289 = vld [vmem:[%s1 + $0x6e0] sm:$0xff]
    %v290 = vld [vmem:[%s1 + $0x6e8] sm:$0xff]
    %v291 = vld [vmem:[%s1 + $0x6f0] sm:$0xff]
    %v292 = vld [vmem:[%s1 + $0x6f8] sm:$0xff]
    %v293 = vld [vmem:[%s1 + $0x700] sm:$0xff]
    %v294 = vld [vmem:[%s1 + $0x708] sm:$0xff]
    %v295 = vld [vmem:[%s1 + $0x710] sm:$0xff]
    %v296 = vld [vmem:[%s1 + $0x718] sm:$0xff]
    %v297 = vld [vmem:[%s1 + $0x720] sm:$0xff]
    %v298 = vld [vmem:[%s1 + $0x728] sm:$0xff]
    %v299 = vld [vmem:[%s1 + $0x730] sm:$0xff]
    %v300 = vld [vmem:[%s1 + $0x738] sm:$0xff]
    %v301 = vld [vmem:[%s1 + $0x740] sm:$0xff]
    %v302 = vld [vmem:[%s1 + $0x748] sm:$0xff]
    %v303 = vld [vmem:[%s1 + $0x750] sm:$0xff]
    %v304 = vld [vmem:[%s1 + $0x758] sm:$0xff]
    %v305 = vld [vmem:[%s1 + $0x760] sm:$0xff]
    %v306 = vld [vmem:[%s1 + $0x768] sm:$0xff]
    %v307 = vld [vmem:[%s1 + $0x770] sm:$0xff]
    %v308 = vld [vmem:[%s1 + $0x778] sm:$0xff]
    %v309 = vld [vmem:[%s1 + $0x780] sm:$0xff]
    %v310 = vld [vmem:[%s1 + $0x788] sm:$0xff]
    %v311 = vld [vmem:[%s1 + $0x790] sm:$0xff]
    %v312 = vld [vmem:[%s1 + $0x798] sm:$0xff]
    %v313 = vld [vmem:[%s1 + $0x7a0] sm:$0xff]
    %v314 = vld [vmem:[%s1 + $0x7a8] sm:$0xff]
    %v315 = vld [vmem:[%s1 + $0x7b0] sm:$0xff]
    %v316 = vld [vmem:[%s1 + $0x7b8] sm:$0xff]
    %v317 = vld [vmem:[%s1 + $0x7c0] sm:$0xff]
    %v318 = vld [vmem:[%s1 + $0x7c8] sm:$0xff]
    %v319 = vld [vmem:[%s1 + $0x7d0] sm:$0xff]
    %v320 = vld [vmem:[%s1 + $0x7d8] sm:$0xff]
    %v321 = vld [vmem:[%s1 + $0x7e0] sm:$0xff]
    %v322 = vld [vmem:[%s1 + $0x7e8] sm:$0xff]
    %v323 = vld [vmem:[%s1 + $0x7f0] sm:$0xff]
    %v324 = vld [vmem:[%s1 + $0x7f8] sm:$0xff]
    %v325 = vld [vmem:[%s2] sm:$0xf]
    %v327 = vlaneseq
    %v328 = vshrl.u32 %v327, 7
    %v329 = vsub.s32 0, %v328
    %v330 = vrot.slane %v325, %v329
    %v331 = vlaneseq
    %v332 = vshrl.u32 %v331, 7
    %v333 = vsub.s32 1, %v332
    %v334 = vrot.slane %v325, %v333
    %v335 = vlaneseq
    %v336 = vshrl.u32 %v335, 7
    %v337 = vsub.s32 2, %v336
    %v338 = vrot.slane %v325, %v337
    %v339 = vlaneseq
    %v340 = vshrl.u32 %v339, 7
    %v341 = vsub.s32 3, %v340
    %v342 = vrot.slane %v325, %v341
    %v603 = vunpack.c.l.b16 %v69
    %v604 = vunpack.c.h.b16 %v69
    %v605 = vunpack.c.l.b16 %v70
    %v606 = vunpack.c.h.b16 %v70
    %v607 = vunpack.c.l.b16 %v71
    %v608 = vunpack.c.h.b16 %v71
    %v609 = vunpack.c.l.b16 %v72
    %v610 = vunpack.c.h.b16 %v72
    %v611 = vunpack.c.l.b16 %v73
    %v612 = vunpack.c.h.b16 %v73
    %v613 = vunpack.c.l.b16 %v74
    %v614 = vunpack.c.h.b16 %v74
    %v615 = vunpack.c.l.b16 %v75
    %v616 = vunpack.c.h.b16 %v75
    %v617 = vunpack.c.l.b16 %v76
    %v618 = vunpack.c.h.b16 %v76
    %v619 = vunpack.c.l.b16 %v77
    %v620 = vunpack.c.h.b16 %v77
    %v621 = vunpack.c.l.b16 %v78
    %v622 = vunpack.c.h.b16 %v78
    %v623 = vunpack.c.l.b16 %v79
    %v624 = vunpack.c.h.b16 %v79
    %v625 = vunpack.c.l.b16 %v80
    %v626 = vunpack.c.h.b16 %v80
    %v627 = vunpack.c.l.b16 %v81
    %v628 = vunpack.c.h.b16 %v81
    %v629 = vunpack.c.l.b16 %v82
    %v630 = vunpack.c.h.b16 %v82
    %v631 = vunpack.c.l.b16 %v83
    %v632 = vunpack.c.h.b16 %v83
    %v633 = vunpack.c.l.b16 %v84
    %v634 = vunpack.c.h.b16 %v84
    %v635 = vunpack.c.l.b16 %v85
    %v636 = vunpack.c.h.b16 %v85
    %v637 = vunpack.c.l.b16 %v86
    %v638 = vunpack.c.h.b16 %v86
    %v639 = vunpack.c.l.b16 %v87
    %v640 = vunpack.c.h.b16 %v87
    %v641 = vunpack.c.l.b16 %v88
    %v642 = vunpack.c.h.b16 %v88
    %v643 = vunpack.c.l.b16 %v89
    %v644 = vunpack.c.h.b16 %v89
    %v645 = vunpack.c.l.b16 %v90
    %v646 = vunpack.c.h.b16 %v90
    %v647 = vunpack.c.l.b16 %v91
    %v648 = vunpack.c.h.b16 %v91
    %v649 = vunpack.c.l.b16 %v92
    %v650 = vunpack.c.h.b16 %v92
    %v651 = vunpack.c.l.b16 %v93
    %v652 = vunpack.c.h.b16 %v93
    %v653 = vunpack.c.l.b16 %v94
    %v654 = vunpack.c.h.b16 %v94
    %v655 = vunpack.c.l.b16 %v95
    %v656 = vunpack.c.h.b16 %v95
    %v657 = vunpack.c.l.b16 %v96
    %v658 = vunpack.c.h.b16 %v96
    %v659 = vunpack.c.l.b16 %v97
    %v660 = vunpack.c.h.b16 %v97
    %v661 = vunpack.c.l.b16 %v98
    %v662 = vunpack.c.h.b16 %v98
    %v663 = vunpack.c.l.b16 %v99
    %v664 = vunpack.c.h.b16 %v99
    %v665 = vunpack.c.l.b16 %v100
    %v666 = vunpack.c.h.b16 %v100
    %v667 = vunpack.c.l.b16 %v101
    %v668 = vunpack.c.h.b16 %v101
    %v669 = vunpack.c.l.b16 %v102
    %v670 = vunpack.c.h.b16 %v102
    %v671 = vunpack.c.l.b16 %v103
    %v672 = vunpack.c.h.b16 %v103
    %v673 = vunpack.c.l.b16 %v104
    %v674 = vunpack.c.h.b16 %v104
    %v675 = vunpack.c.l.b16 %v105
    %v676 = vunpack.c.h.b16 %v105
    %v677 = vunpack.c.l.b16 %v106
    %v678 = vunpack.c.h.b16 %v106
    %v679 = vunpack.c.l.b16 %v107
    %v680 = vunpack.c.h.b16 %v107
    %v681 = vunpack.c.l.b16 %v108
    %v682 = vunpack.c.h.b16 %v108
    %v683 = vunpack.c.l.b16 %v109
    %v684 = vunpack.c.h.b16 %v109
    %v685 = vunpack.c.l.b16 %v110
    %v686 = vunpack.c.h.b16 %v110
    %v687 = vunpack.c.l.b16 %v111
    %v688 = vunpack.c.h.b16 %v111
    %v689 = vunpack.c.l.b16 %v112
    %v690 = vunpack.c.h.b16 %v112
    %v691 = vunpack.c.l.b16 %v113
    %v692 = vunpack.c.h.b16 %v113
    %v693 = vunpack.c.l.b16 %v114
    %v694 = vunpack.c.h.b16 %v114
    %v695 = vunpack.c.l.b16 %v115
    %v696 = vunpack.c.h.b16 %v115
    %v697 = vunpack.c.l.b16 %v116
    %v698 = vunpack.c.h.b16 %v116
    %v699 = vunpack.c.l.b16 %v117
    %v700 = vunpack.c.h.b16 %v117
    %v701 = vunpack.c.l.b16 %v118
    %v702 = vunpack.c.h.b16 %v118
    %v703 = vunpack.c.l.b16 %v119
    %v704 = vunpack.c.h.b16 %v119
    %v705 = vunpack.c.l.b16 %v120
    %v706 = vunpack.c.h.b16 %v120
    %v707 = vunpack.c.l.b16 %v121
    %v708 = vunpack.c.h.b16 %v121
    %v709 = vunpack.c.l.b16 %v122
    %v710 = vunpack.c.h.b16 %v122
    %v711 = vunpack.c.l.b16 %v123
    %v712 = vunpack.c.h.b16 %v123
    %v713 = vunpack.c.l.b16 %v124
    %v714 = vunpack.c.h.b16 %v124
    %v715 = vunpack.c.l.b16 %v125
    %v716 = vunpack.c.h.b16 %v125
    %v717 = vunpack.c.l.b16 %v126
    %v718 = vunpack.c.h.b16 %v126
    %v719 = vunpack.c.l.b16 %v127
    %v720 = vunpack.c.h.b16 %v127
    %v721 = vunpack.c.l.b16 %v128
    %v722 = vunpack.c.h.b16 %v128
    %v723 = vunpack.c.l.b16 %v129
    %v724 = vunpack.c.h.b16 %v129
    %v725 = vunpack.c.l.b16 %v130
    %v726 = vunpack.c.h.b16 %v130
    %v727 = vunpack.c.l.b16 %v131
    %v728 = vunpack.c.h.b16 %v131
    %v729 = vunpack.c.l.b16 %v132
    %v730 = vunpack.c.h.b16 %v132
    %v731 = vunpack.c.l.b16 %v133
    %v732 = vunpack.c.h.b16 %v133
    %v733 = vunpack.c.l.b16 %v134
    %v734 = vunpack.c.h.b16 %v134
    %v735 = vunpack.c.l.b16 %v135
    %v736 = vunpack.c.h.b16 %v135
    %v737 = vunpack.c.l.b16 %v136
    %v738 = vunpack.c.h.b16 %v136
    %v739 = vunpack.c.l.b16 %v137
    %v740 = vunpack.c.h.b16 %v137
    %v741 = vunpack.c.l.b16 %v138
    %v742 = vunpack.c.h.b16 %v138
    %v743 = vunpack.c.l.b16 %v139
    %v744 = vunpack.c.h.b16 %v139
    %v745 = vunpack.c.l.b16 %v140
    %v746 = vunpack.c.h.b16 %v140
    %v747 = vunpack.c.l.b16 %v141
    %v748 = vunpack.c.h.b16 %v141
    %v749 = vunpack.c.l.b16 %v142
    %v750 = vunpack.c.h.b16 %v142
    %v751 = vunpack.c.l.b16 %v143
    %v752 = vunpack.c.h.b16 %v143
    %v753 = vunpack.c.l.b16 %v144
    %v754 = vunpack.c.h.b16 %v144
    %v755 = vunpack.c.l.b16 %v145
    %v756 = vunpack.c.h.b16 %v145
    %v757 = vunpack.c.l.b16 %v146
    %v758 = vunpack.c.h.b16 %v146
    %v759 = vunpack.c.l.b16 %v147
    %v760 = vunpack.c.h.b16 %v147
    %v761 = vunpack.c.l.b16 %v148
    %v762 = vunpack.c.h.b16 %v148
    %v763 = vunpack.c.l.b16 %v149
    %v764 = vunpack.c.h.b16 %v149
    %v765 = vunpack.c.l.b16 %v150
    %v766 = vunpack.c.h.b16 %v150
    %v767 = vunpack.c.l.b16 %v151
    %v768 = vunpack.c.h.b16 %v151
    %v769 = vunpack.c.l.b16 %v152
    %v770 = vunpack.c.h.b16 %v152
    %v771 = vunpack.c.l.b16 %v153
    %v772 = vunpack.c.h.b16 %v153
    %v773 = vunpack.c.l.b16 %v154
    %v774 = vunpack.c.h.b16 %v154
    %v775 = vunpack.c.l.b16 %v155
    %v776 = vunpack.c.h.b16 %v155
    %v777 = vunpack.c.l.b16 %v156
    %v778 = vunpack.c.h.b16 %v156
    %v779 = vunpack.c.l.b16 %v157
    %v780 = vunpack.c.h.b16 %v157
    %v781 = vunpack.c.l.b16 %v158
    %v782 = vunpack.c.h.b16 %v158
    %v783 = vunpack.c.l.b16 %v159
    %v784 = vunpack.c.h.b16 %v159
    %v785 = vunpack.c.l.b16 %v160
    %v786 = vunpack.c.h.b16 %v160
    %v787 = vunpack.c.l.b16 %v161
    %v788 = vunpack.c.h.b16 %v161
    %v789 = vunpack.c.l.b16 %v162
    %v790 = vunpack.c.h.b16 %v162
    %v791 = vunpack.c.l.b16 %v163
    %v792 = vunpack.c.h.b16 %v163
    %v793 = vunpack.c.l.b16 %v164
    %v794 = vunpack.c.h.b16 %v164
    %v795 = vunpack.c.l.b16 %v165
    %v796 = vunpack.c.h.b16 %v165
    %v797 = vunpack.c.l.b16 %v166
    %v798 = vunpack.c.h.b16 %v166
    %v799 = vunpack.c.l.b16 %v167
    %v800 = vunpack.c.h.b16 %v167
    %v801 = vunpack.c.l.b16 %v168
    %v802 = vunpack.c.h.b16 %v168
    %v803 = vunpack.c.l.b16 %v169
    %v804 = vunpack.c.h.b16 %v169
    %v805 = vunpack.c.l.b16 %v170
    %v806 = vunpack.c.h.b16 %v170
    %v807 = vunpack.c.l.b16 %v171
    %v808 = vunpack.c.h.b16 %v171
    %v809 = vunpack.c.l.b16 %v172
    %v810 = vunpack.c.h.b16 %v172
    %v811 = vunpack.c.l.b16 %v173
    %v812 = vunpack.c.h.b16 %v173
    %v813 = vunpack.c.l.b16 %v174
    %v814 = vunpack.c.h.b16 %v174
    %v815 = vunpack.c.l.b16 %v175
    %v816 = vunpack.c.h.b16 %v175
    %v817 = vunpack.c.l.b16 %v176
    %v818 = vunpack.c.h.b16 %v176
    %v819 = vunpack.c.l.b16 %v177
    %v820 = vunpack.c.h.b16 %v177
    %v821 = vunpack.c.l.b16 %v178
    %v822 = vunpack.c.h.b16 %v178
    %v823 = vunpack.c.l.b16 %v179
    %v824 = vunpack.c.h.b16 %v179
    %v825 = vunpack.c.l.b16 %v180
    %v826 = vunpack.c.h.b16 %v180
    %v827 = vunpack.c.l.b16 %v181
    %v828 = vunpack.c.h.b16 %v181
    %v829 = vunpack.c.l.b16 %v182
    %v830 = vunpack.c.h.b16 %v182
    %v831 = vunpack.c.l.b16 %v183
    %v832 = vunpack.c.h.b16 %v183
    %v833 = vunpack.c.l.b16 %v184
    %v834 = vunpack.c.h.b16 %v184
    %v835 = vunpack.c.l.b16 %v185
    %v836 = vunpack.c.h.b16 %v185
    %v837 = vunpack.c.l.b16 %v186
    %v838 = vunpack.c.h.b16 %v186
    %v839 = vunpack.c.l.b16 %v187
    %v840 = vunpack.c.h.b16 %v187
    %v841 = vunpack.c.l.b16 %v188
    %v842 = vunpack.c.h.b16 %v188
    %v843 = vunpack.c.l.b16 %v189
    %v844 = vunpack.c.h.b16 %v189
    %v845 = vunpack.c.l.b16 %v190
    %v846 = vunpack.c.h.b16 %v190
    %v847 = vunpack.c.l.b16 %v191
    %v848 = vunpack.c.h.b16 %v191
    %v849 = vunpack.c.l.b16 %v192
    %v850 = vunpack.c.h.b16 %v192
    %v851 = vunpack.c.l.b16 %v193
    %v852 = vunpack.c.h.b16 %v193
    %v853 = vunpack.c.l.b16 %v194
    %v854 = vunpack.c.h.b16 %v194
    %v855 = vunpack.c.l.b16 %v195
    %v856 = vunpack.c.h.b16 %v195
    %v857 = vunpack.c.l.b16 %v196
    %v858 = vunpack.c.h.b16 %v196
    %v859 = vunpack.c.l.b16 %v197
    %v860 = vunpack.c.h.b16 %v197
    %v861 = vunpack.c.l.b16 %v198
    %v862 = vunpack.c.h.b16 %v198
    %v863 = vunpack.c.l.b16 %v199
    %v864 = vunpack.c.h.b16 %v199
    %v865 = vunpack.c.l.b16 %v200
    %v866 = vunpack.c.h.b16 %v200
    %v867 = vunpack.c.l.b16 %v201
    %v868 = vunpack.c.h.b16 %v201
    %v869 = vunpack.c.l.b16 %v202
    %v870 = vunpack.c.h.b16 %v202
    %v871 = vunpack.c.l.b16 %v203
    %v872 = vunpack.c.h.b16 %v203
    %v873 = vunpack.c.l.b16 %v204
    %v874 = vunpack.c.h.b16 %v204
    %v875 = vunpack.c.l.b16 %v205
    %v876 = vunpack.c.h.b16 %v205
    %v877 = vunpack.c.l.b16 %v206
    %v878 = vunpack.c.h.b16 %v206
    %v879 = vunpack.c.l.b16 %v207
    %v880 = vunpack.c.h.b16 %v207
    %v881 = vunpack.c.l.b16 %v208
    %v882 = vunpack.c.h.b16 %v208
    %v883 = vunpack.c.l.b16 %v209
    %v884 = vunpack.c.h.b16 %v209
    %v885 = vunpack.c.l.b16 %v210
    %v886 = vunpack.c.h.b16 %v210
    %v887 = vunpack.c.l.b16 %v211
    %v888 = vunpack.c.h.b16 %v211
    %v889 = vunpack.c.l.b16 %v212
    %v890 = vunpack.c.h.b16 %v212
    %v891 = vunpack.c.l.b16 %v213
    %v892 = vunpack.c.h.b16 %v213
    %v893 = vunpack.c.l.b16 %v214
    %v894 = vunpack.c.h.b16 %v214
    %v895 = vunpack.c.l.b16 %v215
    %v896 = vunpack.c.h.b16 %v215
    %v897 = vunpack.c.l.b16 %v216
    %v898 = vunpack.c.h.b16 %v216
    %v899 = vunpack.c.l.b16 %v217
    %v900 = vunpack.c.h.b16 %v217
    %v901 = vunpack.c.l.b16 %v218
    %v902 = vunpack.c.h.b16 %v218
    %v903 = vunpack.c.l.b16 %v219
    %v904 = vunpack.c.h.b16 %v219
    %v905 = vunpack.c.l.b16 %v220
    %v906 = vunpack.c.h.b16 %v220
    %v907 = vunpack.c.l.b16 %v221
    %v908 = vunpack.c.h.b16 %v221
    %v909 = vunpack.c.l.b16 %v222
    %v910 = vunpack.c.h.b16 %v222
    %v911 = vunpack.c.l.b16 %v223
    %v912 = vunpack.c.h.b16 %v223
    %v913 = vunpack.c.l.b16 %v224
    %v914 = vunpack.c.h.b16 %v224
    %v915 = vunpack.c.l.b16 %v225
    %v916 = vunpack.c.h.b16 %v225
    %v917 = vunpack.c.l.b16 %v226
    %v918 = vunpack.c.h.b16 %v226
    %v919 = vunpack.c.l.b16 %v227
    %v920 = vunpack.c.h.b16 %v227
    %v921 = vunpack.c.l.b16 %v228
    %v922 = vunpack.c.h.b16 %v228
    %v923 = vunpack.c.l.b16 %v229
    %v924 = vunpack.c.h.b16 %v229
    %v925 = vunpack.c.l.b16 %v230
    %v926 = vunpack.c.h.b16 %v230
    %v927 = vunpack.c.l.b16 %v231
    %v928 = vunpack.c.h.b16 %v231
    %v929 = vunpack.c.l.b16 %v232
    %v930 = vunpack.c.h.b16 %v232
    %v931 = vunpack.c.l.b16 %v233
    %v932 = vunpack.c.h.b16 %v233
    %v933 = vunpack.c.l.b16 %v234
    %v934 = vunpack.c.h.b16 %v234
    %v935 = vunpack.c.l.b16 %v235
    %v936 = vunpack.c.h.b16 %v235
    %v937 = vunpack.c.l.b16 %v236
    %v938 = vunpack.c.h.b16 %v236
    %v939 = vunpack.c.l.b16 %v237
    %v940 = vunpack.c.h.b16 %v237
    %v941 = vunpack.c.l.b16 %v238
    %v942 = vunpack.c.h.b16 %v238
    %v943 = vunpack.c.l.b16 %v239
    %v944 = vunpack.c.h.b16 %v239
    %v945 = vunpack.c.l.b16 %v240
    %v946 = vunpack.c.h.b16 %v240
    %v947 = vunpack.c.l.b16 %v241
    %v948 = vunpack.c.h.b16 %v241
    %v949 = vunpack.c.l.b16 %v242
    %v950 = vunpack.c.h.b16 %v242
    %v951 = vunpack.c.l.b16 %v243
    %v952 = vunpack.c.h.b16 %v243
    %v953 = vunpack.c.l.b16 %v244
    %v954 = vunpack.c.h.b16 %v244
    %v955 = vunpack.c.l.b16 %v245
    %v956 = vunpack.c.h.b16 %v245
    %v957 = vunpack.c.l.b16 %v246
    %v958 = vunpack.c.h.b16 %v246
    %v959 = vunpack.c.l.b16 %v247
    %v960 = vunpack.c.h.b16 %v247
    %v961 = vunpack.c.l.b16 %v248
    %v962 = vunpack.c.h.b16 %v248
    %v963 = vunpack.c.l.b16 %v249
    %v964 = vunpack.c.h.b16 %v249
    %v965 = vunpack.c.l.b16 %v250
    %v966 = vunpack.c.h.b16 %v250
    %v967 = vunpack.c.l.b16 %v251
    %v968 = vunpack.c.h.b16 %v251
    %v969 = vunpack.c.l.b16 %v252
    %v970 = vunpack.c.h.b16 %v252
    %v971 = vunpack.c.l.b16 %v253
    %v972 = vunpack.c.h.b16 %v253
    %v973 = vunpack.c.l.b16 %v254
    %v974 = vunpack.c.h.b16 %v254
    %v975 = vunpack.c.l.b16 %v255
    %v976 = vunpack.c.h.b16 %v255
    %v977 = vunpack.c.l.b16 %v256
    %v978 = vunpack.c.h.b16 %v256
    %v979 = vunpack.c.l.b16 %v257
    %v980 = vunpack.c.h.b16 %v257
    %v981 = vunpack.c.l.b16 %v258
    %v982 = vunpack.c.h.b16 %v258
    %v983 = vunpack.c.l.b16 %v259
    %v984 = vunpack.c.h.b16 %v259
    %v985 = vunpack.c.l.b16 %v260
    %v986 = vunpack.c.h.b16 %v260
    %v987 = vunpack.c.l.b16 %v261
    %v988 = vunpack.c.h.b16 %v261
    %v989 = vunpack.c.l.b16 %v262
    %v990 = vunpack.c.h.b16 %v262
    %v991 = vunpack.c.l.b16 %v263
    %v992 = vunpack.c.h.b16 %v263
    %v993 = vunpack.c.l.b16 %v264
    %v994 = vunpack.c.h.b16 %v264
    %v995 = vunpack.c.l.b16 %v265
    %v996 = vunpack.c.h.b16 %v265
    %v997 = vunpack.c.l.b16 %v266
    %v998 = vunpack.c.h.b16 %v266
    %v999 = vunpack.c.l.b16 %v267
    %v1000 = vunpack.c.h.b16 %v267
    %v1001 = vunpack.c.l.b16 %v268
    %v1002 = vunpack.c.h.b16 %v268
    %v1003 = vunpack.c.l.b16 %v269
    %v1004 = vunpack.c.h.b16 %v269
    %v1005 = vunpack.c.l.b16 %v270
    %v1006 = vunpack.c.h.b16 %v270
    %v1007 = vunpack.c.l.b16 %v271
    %v1008 = vunpack.c.h.b16 %v271
    %v1009 = vunpack.c.l.b16 %v272
    %v1010 = vunpack.c.h.b16 %v272
    %v1011 = vunpack.c.l.b16 %v273
    %v1012 = vunpack.c.h.b16 %v273
    %v1013 = vunpack.c.l.b16 %v274
    %v1014 = vunpack.c.h.b16 %v274
    %v1015 = vunpack.c.l.b16 %v275
    %v1016 = vunpack.c.h.b16 %v275
    %v1017 = vunpack.c.l.b16 %v276
    %v1018 = vunpack.c.h.b16 %v276
    %v1019 = vunpack.c.l.b16 %v277
    %v1020 = vunpack.c.h.b16 %v277
    %v1021 = vunpack.c.l.b16 %v278
    %v1022 = vunpack.c.h.b16 %v278
    %v1023 = vunpack.c.l.b16 %v279
    %v1024 = vunpack.c.h.b16 %v279
    %v1025 = vunpack.c.l.b16 %v280
    %v1026 = vunpack.c.h.b16 %v280
    %v1027 = vunpack.c.l.b16 %v281
    %v1028 = vunpack.c.h.b16 %v281
    %v1029 = vunpack.c.l.b16 %v282
    %v1030 = vunpack.c.h.b16 %v282
    %v1031 = vunpack.c.l.b16 %v283
    %v1032 = vunpack.c.h.b16 %v283
    %v1033 = vunpack.c.l.b16 %v284
    %v1034 = vunpack.c.h.b16 %v284
    %v1035 = vunpack.c.l.b16 %v285
    %v1036 = vunpack.c.h.b16 %v285
    %v1037 = vunpack.c.l.b16 %v286
    %v1038 = vunpack.c.h.b16 %v286
    %v1039 = vunpack.c.l.b16 %v287
    %v1040 = vunpack.c.h.b16 %v287
    %v1041 = vunpack.c.l.b16 %v288
    %v1042 = vunpack.c.h.b16 %v288
    %v1043 = vunpack.c.l.b16 %v289
    %v1044 = vunpack.c.h.b16 %v289
    %v1045 = vunpack.c.l.b16 %v290
    %v1046 = vunpack.c.h.b16 %v290
    %v1047 = vunpack.c.l.b16 %v291
    %v1048 = vunpack.c.h.b16 %v291
    %v1049 = vunpack.c.l.b16 %v292
    %v1050 = vunpack.c.h.b16 %v292
    %v1051 = vunpack.c.l.b16 %v293
    %v1052 = vunpack.c.h.b16 %v293
    %v1053 = vunpack.c.l.b16 %v294
    %v1054 = vunpack.c.h.b16 %v294
    %v1055 = vunpack.c.l.b16 %v295
    %v1056 = vunpack.c.h.b16 %v295
    %v1057 = vunpack.c.l.b16 %v296
    %v1058 = vunpack.c.h.b16 %v296
    %v1059 = vunpack.c.l.b16 %v297
    %v1060 = vunpack.c.h.b16 %v297
    %v1061 = vunpack.c.l.b16 %v298
    %v1062 = vunpack.c.h.b16 %v298
    %v1063 = vunpack.c.l.b16 %v299
    %v1064 = vunpack.c.h.b16 %v299
    %v1065 = vunpack.c.l.b16 %v300
    %v1066 = vunpack.c.h.b16 %v300
    %v1067 = vunpack.c.l.b16 %v301
    %v1068 = vunpack.c.h.b16 %v301
    %v1069 = vunpack.c.l.b16 %v302
    %v1070 = vunpack.c.h.b16 %v302
    %v1071 = vunpack.c.l.b16 %v303
    %v1072 = vunpack.c.h.b16 %v303
    %v1073 = vunpack.c.l.b16 %v304
    %v1074 = vunpack.c.h.b16 %v304
    %v1075 = vunpack.c.l.b16 %v305
    %v1076 = vunpack.c.h.b16 %v305
    %v1077 = vunpack.c.l.b16 %v306
    %v1078 = vunpack.c.h.b16 %v306
    %v1079 = vunpack.c.l.b16 %v307
    %v1080 = vunpack.c.h.b16 %v307
    %v1081 = vunpack.c.l.b16 %v308
    %v1082 = vunpack.c.h.b16 %v308
    %v1083 = vunpack.c.l.b16 %v309
    %v1084 = vunpack.c.h.b16 %v309
    %v1085 = vunpack.c.l.b16 %v310
    %v1086 = vunpack.c.h.b16 %v310
    %v1087 = vunpack.c.l.b16 %v311
    %v1088 = vunpack.c.h.b16 %v311
    %v1089 = vunpack.c.l.b16 %v312
    %v1090 = vunpack.c.h.b16 %v312
    %v1091 = vunpack.c.l.b16 %v313
    %v1092 = vunpack.c.h.b16 %v313
    %v1093 = vunpack.c.l.b16 %v314
    %v1094 = vunpack.c.h.b16 %v314
    %v1095 = vunpack.c.l.b16 %v315
    %v1096 = vunpack.c.h.b16 %v315
    %v1097 = vunpack.c.l.b16 %v316
    %v1098 = vunpack.c.h.b16 %v316
    %v1099 = vunpack.c.l.b16 %v317
    %v1100 = vunpack.c.h.b16 %v317
    %v1101 = vunpack.c.l.b16 %v318
    %v1102 = vunpack.c.h.b16 %v318
    %v1103 = vunpack.c.l.b16 %v319
    %v1104 = vunpack.c.h.b16 %v319
    %v1105 = vunpack.c.l.b16 %v320
    %v1106 = vunpack.c.h.b16 %v320
    %v1107 = vunpack.c.l.b16 %v321
    %v1108 = vunpack.c.h.b16 %v321
    %v1109 = vunpack.c.l.b16 %v322
    %v1110 = vunpack.c.h.b16 %v322
    %v1111 = vunpack.c.l.b16 %v323
    %v1112 = vunpack.c.h.b16 %v323
    %v1113 = vunpack.c.l.b16 %v324
    %v1114 = vunpack.c.h.b16 %v324
    %v1115 = vpack.c.b16 %v607, %v603
    %v1116 = vpack.c.b16 %v608, %v604
    %v1117 = vpack.c.b16 %v609, %v605
    %v1118 = vpack.c.b16 %v610, %v606
    %v1119 = vpack.c.b16 %v615, %v611
    %v1120 = vpack.c.b16 %v616, %v612
    %v1121 = vpack.c.b16 %v617, %v613
    %v1122 = vpack.c.b16 %v618, %v614
    %v1123 = vpack.c.b16 %v623, %v619
    %v1124 = vpack.c.b16 %v624, %v620
    %v1125 = vpack.c.b16 %v625, %v621
    %v1126 = vpack.c.b16 %v626, %v622
    %v1127 = vpack.c.b16 %v631, %v627
    %v1128 = vpack.c.b16 %v632, %v628
    %v1129 = vpack.c.b16 %v633, %v629
    %v1130 = vpack.c.b16 %v634, %v630
    %v1131 = vpack.c.b16 %v639, %v635
    %v1132 = vpack.c.b16 %v640, %v636
    %v1133 = vpack.c.b16 %v641, %v637
    %v1134 = vpack.c.b16 %v642, %v638
    %v1135 = vpack.c.b16 %v647, %v643
    %v1136 = vpack.c.b16 %v648, %v644
    %v1137 = vpack.c.b16 %v649, %v645
    %v1138 = vpack.c.b16 %v650, %v646
    %v1139 = vpack.c.b16 %v655, %v651
    %v1140 = vpack.c.b16 %v656, %v652
    %v1141 = vpack.c.b16 %v657, %v653
    %v1142 = vpack.c.b16 %v658, %v654
    %v1143 = vpack.c.b16 %v663, %v659
    %v1144 = vpack.c.b16 %v664, %v660
    %v1145 = vpack.c.b16 %v665, %v661
    %v1146 = vpack.c.b16 %v666, %v662
    %v1147 = vpack.c.b16 %v671, %v667
    %v1148 = vpack.c.b16 %v672, %v668
    %v1149 = vpack.c.b16 %v673, %v669
    %v1150 = vpack.c.b16 %v674, %v670
    %v1151 = vpack.c.b16 %v679, %v675
    %v1152 = vpack.c.b16 %v680, %v676
    %v1153 = vpack.c.b16 %v681, %v677
    %v1154 = vpack.c.b16 %v682, %v678
    %v1155 = vpack.c.b16 %v687, %v683
    %v1156 = vpack.c.b16 %v688, %v684
    %v1157 = vpack.c.b16 %v689, %v685
    %v1158 = vpack.c.b16 %v690, %v686
    %v1159 = vpack.c.b16 %v695, %v691
    %v1160 = vpack.c.b16 %v696, %v692
    %v1161 = vpack.c.b16 %v697, %v693
    %v1162 = vpack.c.b16 %v698, %v694
    %v1163 = vpack.c.b16 %v703, %v699
    %v1164 = vpack.c.b16 %v704, %v700
    %v1165 = vpack.c.b16 %v705, %v701
    %v1166 = vpack.c.b16 %v706, %v702
    %v1167 = vpack.c.b16 %v711, %v707
    %v1168 = vpack.c.b16 %v712, %v708
    %v1169 = vpack.c.b16 %v713, %v709
    %v1170 = vpack.c.b16 %v714, %v710
    %v1171 = vpack.c.b16 %v719, %v715
    %v1172 = vpack.c.b16 %v720, %v716
    %v1173 = vpack.c.b16 %v721, %v717
    %v1174 = vpack.c.b16 %v722, %v718
    %v1175 = vpack.c.b16 %v727, %v723
    %v1176 = vpack.c.b16 %v728, %v724
    %v1177 = vpack.c.b16 %v729, %v725
    %v1178 = vpack.c.b16 %v730, %v726
    %v1179 = vpack.c.b16 %v735, %v731
    %v1180 = vpack.c.b16 %v736, %v732
    %v1181 = vpack.c.b16 %v737, %v733
    %v1182 = vpack.c.b16 %v738, %v734
    %v1183 = vpack.c.b16 %v743, %v739
    %v1184 = vpack.c.b16 %v744, %v740
    %v1185 = vpack.c.b16 %v745, %v741
    %v1186 = vpack.c.b16 %v746, %v742
    %v1187 = vpack.c.b16 %v751, %v747
    %v1188 = vpack.c.b16 %v752, %v748
    %v1189 = vpack.c.b16 %v753, %v749
    %v1190 = vpack.c.b16 %v754, %v750
    %v1191 = vpack.c.b16 %v759, %v755
    %v1192 = vpack.c.b16 %v760, %v756
    %v1193 = vpack.c.b16 %v761, %v757
    %v1194 = vpack.c.b16 %v762, %v758
    %v1195 = vpack.c.b16 %v767, %v763
    %v1196 = vpack.c.b16 %v768, %v764
    %v1197 = vpack.c.b16 %v769, %v765
    %v1198 = vpack.c.b16 %v770, %v766
    %v1199 = vpack.c.b16 %v775, %v771
    %v1200 = vpack.c.b16 %v776, %v772
    %v1201 = vpack.c.b16 %v777, %v773
    %v1202 = vpack.c.b16 %v778, %v774
    %v1203 = vpack.c.b16 %v783, %v779
    %v1204 = vpack.c.b16 %v784, %v780
    %v1205 = vpack.c.b16 %v785, %v781
    %v1206 = vpack.c.b16 %v786, %v782
    %v1207 = vpack.c.b16 %v791, %v787
    %v1208 = vpack.c.b16 %v792, %v788
    %v1209 = vpack.c.b16 %v793, %v789
    %v1210 = vpack.c.b16 %v794, %v790
    %v1211 = vpack.c.b16 %v799, %v795
    %v1212 = vpack.c.b16 %v800, %v796
    %v1213 = vpack.c.b16 %v801, %v797
    %v1214 = vpack.c.b16 %v802, %v798
    %v1215 = vpack.c.b16 %v807, %v803
    %v1216 = vpack.c.b16 %v808, %v804
    %v1217 = vpack.c.b16 %v809, %v805
    %v1218 = vpack.c.b16 %v810, %v806
    %v1219 = vpack.c.b16 %v815, %v811
    %v1220 = vpack.c.b16 %v816, %v812
    %v1221 = vpack.c.b16 %v817, %v813
    %v1222 = vpack.c.b16 %v818, %v814
    %v1223 = vpack.c.b16 %v823, %v819
    %v1224 = vpack.c.b16 %v824, %v820
    %v1225 = vpack.c.b16 %v825, %v821
    %v1226 = vpack.c.b16 %v826, %v822
    %v1227 = vpack.c.b16 %v831, %v827
    %v1228 = vpack.c.b16 %v832, %v828
    %v1229 = vpack.c.b16 %v833, %v829
    %v1230 = vpack.c.b16 %v834, %v830
    %v1231 = vpack.c.b16 %v839, %v835
    %v1232 = vpack.c.b16 %v840, %v836
    %v1233 = vpack.c.b16 %v841, %v837
    %v1234 = vpack.c.b16 %v842, %v838
    %v1235 = vpack.c.b16 %v847, %v843
    %v1236 = vpack.c.b16 %v848, %v844
    %v1237 = vpack.c.b16 %v849, %v845
    %v1238 = vpack.c.b16 %v850, %v846
    %v1239 = vpack.c.b16 %v855, %v851
    %v1240 = vpack.c.b16 %v856, %v852
    %v1241 = vpack.c.b16 %v857, %v853
    %v1242 = vpack.c.b16 %v858, %v854
    %v1243 = vpack.c.b16 %v863, %v859
    %v1244 = vpack.c.b16 %v864, %v860
    %v1245 = vpack.c.b16 %v865, %v861
    %v1246 = vpack.c.b16 %v866, %v862
    %v1247 = vpack.c.b16 %v871, %v867
    %v1248 = vpack.c.b16 %v872, %v868
    %v1249 = vpack.c.b16 %v873, %v869
    %v1250 = vpack.c.b16 %v874, %v870
    %v1251 = vpack.c.b16 %v879, %v875
    %v1252 = vpack.c.b16 %v880, %v876
    %v1253 = vpack.c.b16 %v881, %v877
    %v1254 = vpack.c.b16 %v882, %v878
    %v1255 = vpack.c.b16 %v887, %v883
    %v1256 = vpack.c.b16 %v888, %v884
    %v1257 = vpack.c.b16 %v889, %v885
    %v1258 = vpack.c.b16 %v890, %v886
    %v1259 = vpack.c.b16 %v895, %v891
    %v1260 = vpack.c.b16 %v896, %v892
    %v1261 = vpack.c.b16 %v897, %v893
    %v1262 = vpack.c.b16 %v898, %v894
    %v1263 = vpack.c.b16 %v903, %v899
    %v1264 = vpack.c.b16 %v904, %v900
    %v1265 = vpack.c.b16 %v905, %v901
    %v1266 = vpack.c.b16 %v906, %v902
    %v1267 = vpack.c.b16 %v911, %v907
    %v1268 = vpack.c.b16 %v912, %v908
    %v1269 = vpack.c.b16 %v913, %v909
    %v1270 = vpack.c.b16 %v914, %v910
    %v1271 = vpack.c.b16 %v919, %v915
    %v1272 = vpack.c.b16 %v920, %v916
    %v1273 = vpack.c.b16 %v921, %v917
    %v1274 = vpack.c.b16 %v922, %v918
    %v1275 = vpack.c.b16 %v927, %v923
    %v1276 = vpack.c.b16 %v928, %v924
    %v1277 = vpack.c.b16 %v929, %v925
    %v1278 = vpack.c.b16 %v930, %v926
    %v1279 = vpack.c.b16 %v935, %v931
    %v1280 = vpack.c.b16 %v936, %v932
    %v1281 = vpack.c.b16 %v937, %v933
    %v1282 = vpack.c.b16 %v938, %v934
    %v1283 = vpack.c.b16 %v943, %v939
    %v1284 = vpack.c.b16 %v944, %v940
    %v1285 = vpack.c.b16 %v945, %v941
    %v1286 = vpack.c.b16 %v946, %v942
    %v1287 = vpack.c.b16 %v951, %v947
    %v1288 = vpack.c.b16 %v952, %v948
    %v1289 = vpack.c.b16 %v953, %v949
    %v1290 = vpack.c.b16 %v954, %v950
    %v1291 = vpack.c.b16 %v959, %v955
    %v1292 = vpack.c.b16 %v960, %v956
    %v1293 = vpack.c.b16 %v961, %v957
    %v1294 = vpack.c.b16 %v962, %v958
    %v1295 = vpack.c.b16 %v967, %v963
    %v1296 = vpack.c.b16 %v968, %v964
    %v1297 = vpack.c.b16 %v969, %v965
    %v1298 = vpack.c.b16 %v970, %v966
    %v1299 = vpack.c.b16 %v975, %v971
    %v1300 = vpack.c.b16 %v976, %v972
    %v1301 = vpack.c.b16 %v977, %v973
    %v1302 = vpack.c.b16 %v978, %v974
    %v1303 = vpack.c.b16 %v983, %v979
    %v1304 = vpack.c.b16 %v984, %v980
    %v1305 = vpack.c.b16 %v985, %v981
    %v1306 = vpack.c.b16 %v986, %v982
    %v1307 = vpack.c.b16 %v991, %v987
    %v1308 = vpack.c.b16 %v992, %v988
    %v1309 = vpack.c.b16 %v993, %v989
    %v1310 = vpack.c.b16 %v994, %v990
    %v1311 = vpack.c.b16 %v999, %v995
    %v1312 = vpack.c.b16 %v1000, %v996
    %v1313 = vpack.c.b16 %v1001, %v997
    %v1314 = vpack.c.b16 %v1002, %v998
    %v1315 = vpack.c.b16 %v1007, %v1003
    %v1316 = vpack.c.b16 %v1008, %v1004
    %v1317 = vpack.c.b16 %v1009, %v1005
    %v1318 = vpack.c.b16 %v1010, %v1006
    %v1319 = vpack.c.b16 %v1015, %v1011
    %v1320 = vpack.c.b16 %v1016, %v1012
    %v1321 = vpack.c.b16 %v1017, %v1013
    %v1322 = vpack.c.b16 %v1018, %v1014
    %v1323 = vpack.c.b16 %v1023, %v1019
    %v1324 = vpack.c.b16 %v1024, %v1020
    %v1325 = vpack.c.b16 %v1025, %v1021
    %v1326 = vpack.c.b16 %v1026, %v1022
    %v1327 = vpack.c.b16 %v1031, %v1027
    %v1328 = vpack.c.b16 %v1032, %v1028
    %v1329 = vpack.c.b16 %v1033, %v1029
    %v1330 = vpack.c.b16 %v1034, %v1030
    %v1331 = vpack.c.b16 %v1039, %v1035
    %v1332 = vpack.c.b16 %v1040, %v1036
    %v1333 = vpack.c.b16 %v1041, %v1037
    %v1334 = vpack.c.b16 %v1042, %v1038
    %v1335 = vpack.c.b16 %v1047, %v1043
    %v1336 = vpack.c.b16 %v1048, %v1044
    %v1337 = vpack.c.b16 %v1049, %v1045
    %v1338 = vpack.c.b16 %v1050, %v1046
    %v1339 = vpack.c.b16 %v1055, %v1051
    %v1340 = vpack.c.b16 %v1056, %v1052
    %v1341 = vpack.c.b16 %v1057, %v1053
    %v1342 = vpack.c.b16 %v1058, %v1054
    %v1343 = vpack.c.b16 %v1063, %v1059
    %v1344 = vpack.c.b16 %v1064, %v1060
    %v1345 = vpack.c.b16 %v1065, %v1061
    %v1346 = vpack.c.b16 %v1066, %v1062
    %v1347 = vpack.c.b16 %v1071, %v1067
    %v1348 = vpack.c.b16 %v1072, %v1068
    %v1349 = vpack.c.b16 %v1073, %v1069
    %v1350 = vpack.c.b16 %v1074, %v1070
    %v1351 = vpack.c.b16 %v1079, %v1075
    %v1352 = vpack.c.b16 %v1080, %v1076
    %v1353 = vpack.c.b16 %v1081, %v1077
    %v1354 = vpack.c.b16 %v1082, %v1078
    %v1355 = vpack.c.b16 %v1087, %v1083
    %v1356 = vpack.c.b16 %v1088, %v1084
    %v1357 = vpack.c.b16 %v1089, %v1085
    %v1358 = vpack.c.b16 %v1090, %v1086
    %v1359 = vpack.c.b16 %v1095, %v1091
    %v1360 = vpack.c.b16 %v1096, %v1092
    %v1361 = vpack.c.b16 %v1097, %v1093
    %v1362 = vpack.c.b16 %v1098, %v1094
    %v1363 = vpack.c.b16 %v1103, %v1099
    %v1364 = vpack.c.b16 %v1104, %v1100
    %v1365 = vpack.c.b16 %v1105, %v1101
    %v1366 = vpack.c.b16 %v1106, %v1102
    %v1367 = vpack.c.b16 %v1111, %v1107
    %v1368 = vpack.c.b16 %v1112, %v1108
    %v1369 = vpack.c.b16 %v1113, %v1109
    %v1370 = vpack.c.b16 %v1114, %v1110
    %1627 = vmatprep.subr.bf16.mxu0 %v1144
    %1628 = vmatpush1.bf16.msra.mxu0 %v1143
    %1629 = vmatprep.subr.bf16.mxu0 %v1140
    %1630 = vmatpush1.bf16.msra.mxu0 %v1139
    %1631 = vmatprep.subr.bf16.mxu0 %v1136
    %1632 = vmatpush1.bf16.msra.mxu0 %v1135
    %1633 = vmatprep.subr.bf16.mxu0 %v1132
    %1634 = vmatpush1.bf16.msra.mxu0 %v1131
    %1635 = vmatprep.subr.bf16.mxu0 %v1128
    %1636 = vmatpush1.bf16.msra.mxu0 %v1127
    %1637 = vmatprep.subr.bf16.mxu0 %v1124
    %1638 = vmatpush1.bf16.msra.mxu0 %v1123
    %1639 = vmatprep.subr.bf16.mxu0 %v1120
    %1640 = vmatpush1.bf16.msra.mxu0 %v1119
    %1641 = vmatprep.subr.bf16.mxu0 %v1116
    %1642 = vmatpush1.bf16.msra.mxu0 %v1115
    %1643 = vmatprep.subr.bf16.mxu0 %v1176
    %1644 = vmatpush2.bf16.msra.mxu0 %v1175
    %1645 = vmatprep.subr.bf16.mxu0 %v1172
    %1646 = vmatpush2.bf16.msra.mxu0 %v1171
    %1647 = vmatprep.subr.bf16.mxu0 %v1168
    %1648 = vmatpush2.bf16.msra.mxu0 %v1167
    %1649 = vmatprep.subr.bf16.mxu0 %v1164
    %1650 = vmatpush2.bf16.msra.mxu0 %v1163
    %1651 = vmatprep.subr.bf16.mxu0 %v1160
    %1652 = vmatpush2.bf16.msra.mxu0 %v1159
    %1653 = vmatprep.subr.bf16.mxu0 %v1156
    %1654 = vmatpush2.bf16.msra.mxu0 %v1155
    %1655 = vmatprep.subr.bf16.mxu0 %v1152
    %1656 = vmatpush2.bf16.msra.mxu0 %v1151
    %1657 = vmatprep.subr.bf16.mxu0 %v1148
    %1658 = vmatpush2.bf16.msra.mxu0 %v1147
    %1659 = vmatprep.mubr.bf16.mxu0 %v62
    %1660 = vmatmul.mubr.bf16.gmra.mxu0 %v61
    %v1661 = vpop.f32.mrf.mxu0
    %v1662 = vadd.f32 %v330, %v1661
    %v1663 = vpop.f32.mrf.mxu0
    %v1664 = vadd.f32 %v334, %v1663
    %v1665 = vpop.f32.mrf.mxu0
    %v1666 = vadd.f32 %v330, %v1665
    %v1667 = vpop.f32.mrf.mxu0
    %v1668 = vadd.f32 %v334, %v1667
    %1669 = vdwg.mxu0
    %1670 = vmatprep.subr.bf16.mxu0 %v1208
    %1671 = vmatpush1.bf16.msra.mxu0 %v1207
    %1672 = vmatprep.subr.bf16.mxu0 %v1204
    %1673 = vmatpush1.bf16.msra.mxu0 %v1203
    %1674 = vmatprep.subr.bf16.mxu0 %v1200
    %1675 = vmatpush1.bf16.msra.mxu0 %v1199
    %1676 = vmatprep.subr.bf16.mxu0 %v1196
    %1677 = vmatpush1.bf16.msra.mxu0 %v1195
    %1678 = vmatprep.subr.bf16.mxu0 %v1192
    %1679 = vmatpush1.bf16.msra.mxu0 %v1191
    %1680 = vmatprep.subr.bf16.mxu0 %v1188
    %1681 = vmatpush1.bf16.msra.mxu0 %v1187
    %1682 = vmatprep.subr.bf16.mxu0 %v1184
    %1683 = vmatpush1.bf16.msra.mxu0 %v1183
    %1684 = vmatprep.subr.bf16.mxu0 %v1180
    %1685 = vmatpush1.bf16.msra.mxu0 %v1179
    %1686 = vmatprep.subr.bf16.mxu0 %v1240
    %1687 = vmatpush2.bf16.msra.mxu0 %v1239
    %1688 = vmatprep.subr.bf16.mxu0 %v1236
    %1689 = vmatpush2.bf16.msra.mxu0 %v1235
    %1690 = vmatprep.subr.bf16.mxu0 %v1232
    %1691 = vmatpush2.bf16.msra.mxu0 %v1231
    %1692 = vmatprep.subr.bf16.mxu0 %v1228
    %1693 = vmatpush2.bf16.msra.mxu0 %v1227
    %1694 = vmatprep.subr.bf16.mxu0 %v1224
    %1695 = vmatpush2.bf16.msra.mxu0 %v1223
    %1696 = vmatprep.subr.bf16.mxu0 %v1220
    %1697 = vmatpush2.bf16.msra.mxu0 %v1219
    %1698 = vmatprep.subr.bf16.mxu0 %v1216
    %1699 = vmatpush2.bf16.msra.mxu0 %v1215
    %1700 = vmatprep.subr.bf16.mxu0 %v1212
    %1701 = vmatpush2.bf16.msra.mxu0 %v1211
    %1702 = vmatprep.mubr.bf16.mxu0 %v64
    %1703 = vmatmul.mubr.bf16.gmra.mxu0 %v63
    %v1704 = vpop.f32.mrf.mxu0
    %v1705 = vadd.f32 %v1662, %v1704
    %v1706 = vpop.f32.mrf.mxu0
    %v1707 = vadd.f32 %v1664, %v1706
    %v1708 = vpop.f32.mrf.mxu0
    %v1709 = vadd.f32 %v1666, %v1708
    %v1710 = vpop.f32.mrf.mxu0
    %v1711 = vadd.f32 %v1668, %v1710
    %1712 = vdwg.mxu0
    %1713 = vmatprep.subr.bf16.mxu0 %v1272
    %1714 = vmatpush1.bf16.msra.mxu0 %v1271
    %1715 = vmatprep.subr.bf16.mxu0 %v1268
    %1716 = vmatpush1.bf16.msra.mxu0 %v1267
    %1717 = vmatprep.subr.bf16.mxu0 %v1264
    %1718 = vmatpush1.bf16.msra.mxu0 %v1263
    %1719 = vmatprep.subr.bf16.mxu0 %v1260
    %1720 = vmatpush1.bf16.msra.mxu0 %v1259
    %1721 = vmatprep.subr.bf16.mxu0 %v1256
    %1722 = vmatpush1.bf16.msra.mxu0 %v1255
    %1723 = vmatprep.subr.bf16.mxu0 %v1252
    %1724 = vmatpush1.bf16.msra.mxu0 %v1251
    %1725 = vmatprep.subr.bf16.mxu0 %v1248
    %1726 = vmatpush1.bf16.msra.mxu0 %v1247
    %1727 = vmatprep.subr.bf16.mxu0 %v1244
    %1728 = vmatpush1.bf16.msra.mxu0 %v1243
    %1729 = vmatprep.subr.bf16.mxu0 %v1304
    %1730 = vmatpush2.bf16.msra.mxu0 %v1303
    %1731 = vmatprep.subr.bf16.mxu0 %v1300
    %1732 = vmatpush2.bf16.msra.mxu0 %v1299
    %1733 = vmatprep.subr.bf16.mxu0 %v1296
    %1734 = vmatpush2.bf16.msra.mxu0 %v1295
    %1735 = vmatprep.subr.bf16.mxu0 %v1292
    %1736 = vmatpush2.bf16.msra.mxu0 %v1291
    %1737 = vmatprep.subr.bf16.mxu0 %v1288
    %1738 = vmatpush2.bf16.msra.mxu0 %v1287
    %1739 = vmatprep.subr.bf16.mxu0 %v1284
    %1740 = vmatpush2.bf16.msra.mxu0 %v1283
    %1741 = vmatprep.subr.bf16.mxu0 %v1280
    %1742 = vmatpush2.bf16.msra.mxu0 %v1279
    %1743 = vmatprep.subr.bf16.mxu0 %v1276
    %1744 = vmatpush2.bf16.msra.mxu0 %v1275
    %1745 = vmatprep.mubr.bf16.mxu0 %v66
    %1746 = vmatmul.mubr.bf16.gmra.mxu0 %v65
    %v1747 = vpop.f32.mrf.mxu0
    %v1748 = vadd.f32 %v1705, %v1747
    %v1749 = vpop.f32.mrf.mxu0
    %v1750 = vadd.f32 %v1707, %v1749
    %v1751 = vpop.f32.mrf.mxu0
    %v1752 = vadd.f32 %v1709, %v1751
    %v1753 = vpop.f32.mrf.mxu0
    %v1754 = vadd.f32 %v1711, %v1753
    %1755 = vdwg.mxu0
    %1756 = vmatprep.subr.bf16.mxu0 %v1336
    %1757 = vmatpush1.bf16.msra.mxu0 %v1335
    %1758 = vmatprep.subr.bf16.mxu0 %v1332
    %1759 = vmatpush1.bf16.msra.mxu0 %v1331
    %1760 = vmatprep.subr.bf16.mxu0 %v1328
    %1761 = vmatpush1.bf16.msra.mxu0 %v1327
    %1762 = vmatprep.subr.bf16.mxu0 %v1324
    %1763 = vmatpush1.bf16.msra.mxu0 %v1323
    %1764 = vmatprep.subr.bf16.mxu0 %v1320
    %1765 = vmatpush1.bf16.msra.mxu0 %v1319
    %1766 = vmatprep.subr.bf16.mxu0 %v1316
    %1767 = vmatpush1.bf16.msra.mxu0 %v1315
    %1768 = vmatprep.subr.bf16.mxu0 %v1312
    %1769 = vmatpush1.bf16.msra.mxu0 %v1311
    %1770 = vmatprep.subr.bf16.mxu0 %v1308
    %1771 = vmatpush1.bf16.msra.mxu0 %v1307
    %1772 = vmatprep.subr.bf16.mxu0 %v1368
    %1773 = vmatpush2.bf16.msra.mxu0 %v1367
    %1774 = vmatprep.subr.bf16.mxu0 %v1364
    %1775 = vmatpush2.bf16.msra.mxu0 %v1363
    %1776 = vmatprep.subr.bf16.mxu0 %v1360
    %1777 = vmatpush2.bf16.msra.mxu0 %v1359
    %1778 = vmatprep.subr.bf16.mxu0 %v1356
    %1779 = vmatpush2.bf16.msra.mxu0 %v1355
    %1780 = vmatprep.subr.bf16.mxu0 %v1352
    %1781 = vmatpush2.bf16.msra.mxu0 %v1351
    %1782 = vmatprep.subr.bf16.mxu0 %v1348
    %1783 = vmatpush2.bf16.msra.mxu0 %v1347
    %1784 = vmatprep.subr.bf16.mxu0 %v1344
    %1785 = vmatpush2.bf16.msra.mxu0 %v1343
    %1786 = vmatprep.subr.bf16.mxu0 %v1340
    %1787 = vmatpush2.bf16.msra.mxu0 %v1339
    %1788 = vmatprep.mubr.bf16.mxu0 %v68
    %1789 = vmatmul.mubr.bf16.gmra.mxu0 %v67
    %v1790 = vpop.f32.mrf.mxu0
    %v1791 = vadd.f32 %v1748, %v1790
    %v1792 = vpop.f32.mrf.mxu0
    %v1793 = vadd.f32 %v1750, %v1792
    %v1794 = vpop.f32.mrf.mxu0
    %v1795 = vadd.f32 %v1752, %v1794
    %v1796 = vpop.f32.mrf.mxu0
    %v1797 = vadd.f32 %v1754, %v1796
    %1798 = vdwg.mxu0
    %1799 = vmatprep.subr.bf16.mxu0 %v1146
    %1800 = vmatpush1.bf16.msra.mxu0 %v1145
    %1801 = vmatprep.subr.bf16.mxu0 %v1142
    %1802 = vmatpush1.bf16.msra.mxu0 %v1141
    %1803 = vmatprep.subr.bf16.mxu0 %v1138
    %1804 = vmatpush1.bf16.msra.mxu0 %v1137
    %1805 = vmatprep.subr.bf16.mxu0 %v1134
    %1806 = vmatpush1.bf16.msra.mxu0 %v1133
    %1807 = vmatprep.subr.bf16.mxu0 %v1130
    %1808 = vmatpush1.bf16.msra.mxu0 %v1129
    %1809 = vmatprep.subr.bf16.mxu0 %v1126
    %1810 = vmatpush1.bf16.msra.mxu0 %v1125
    %1811 = vmatprep.subr.bf16.mxu0 %v1122
    %1812 = vmatpush1.bf16.msra.mxu0 %v1121
    %1813 = vmatprep.subr.bf16.mxu0 %v1118
    %1814 = vmatpush1.bf16.msra.mxu0 %v1117
    %1815 = vmatprep.subr.bf16.mxu0 %v1178
    %1816 = vmatpush2.bf16.msra.mxu0 %v1177
    %1817 = vmatprep.subr.bf16.mxu0 %v1174
    %1818 = vmatpush2.bf16.msra.mxu0 %v1173
    %1819 = vmatprep.subr.bf16.mxu0 %v1170
    %1820 = vmatpush2.bf16.msra.mxu0 %v1169
    %1821 = vmatprep.subr.bf16.mxu0 %v1166
    %1822 = vmatpush2.bf16.msra.mxu0 %v1165
    %1823 = vmatprep.subr.bf16.mxu0 %v1162
    %1824 = vmatpush2.bf16.msra.mxu0 %v1161
    %1825 = vmatprep.subr.bf16.mxu0 %v1158
    %1826 = vmatpush2.bf16.msra.mxu0 %v1157
    %1827 = vmatprep.subr.bf16.mxu0 %v1154
    %1828 = vmatpush2.bf16.msra.mxu0 %v1153
    %1829 = vmatprep.subr.bf16.mxu0 %v1150
    %1830 = vmatpush2.bf16.msra.mxu0 %v1149
    %1831 = vmatprep.mubr.bf16.mxu0 %v62
    %1832 = vmatmul.mubr.bf16.gmra.mxu0 %v61
    %v1833 = vpop.f32.mrf.mxu0
    %v1834 = vadd.f32 %v338, %v1833
    %v1835 = vpop.f32.mrf.mxu0
    %v1836 = vadd.f32 %v342, %v1835
    %v1837 = vpop.f32.mrf.mxu0
    %v1838 = vadd.f32 %v338, %v1837
    %v1839 = vpop.f32.mrf.mxu0
    %v1840 = vadd.f32 %v342, %v1839
    %1841 = vdwg.mxu0
    %1842 = vmatprep.subr.bf16.mxu0 %v1210
    %1843 = vmatpush1.bf16.msra.mxu0 %v1209
    %1844 = vmatprep.subr.bf16.mxu0 %v1206
    %1845 = vmatpush1.bf16.msra.mxu0 %v1205
    %1846 = vmatprep.subr.bf16.mxu0 %v1202
    %1847 = vmatpush1.bf16.msra.mxu0 %v1201
    %1848 = vmatprep.subr.bf16.mxu0 %v1198
    %1849 = vmatpush1.bf16.msra.mxu0 %v1197
    %1850 = vmatprep.subr.bf16.mxu0 %v1194
    %1851 = vmatpush1.bf16.msra.mxu0 %v1193
    %1852 = vmatprep.subr.bf16.mxu0 %v1190
    %1853 = vmatpush1.bf16.msra.mxu0 %v1189
    %1854 = vmatprep.subr.bf16.mxu0 %v1186
    %1855 = vmatpush1.bf16.msra.mxu0 %v1185
    %1856 = vmatprep.subr.bf16.mxu0 %v1182
    %1857 = vmatpush1.bf16.msra.mxu0 %v1181
    %1858 = vmatprep.subr.bf16.mxu0 %v1242
    %1859 = vmatpush2.bf16.msra.mxu0 %v1241
    %1860 = vmatprep.subr.bf16.mxu0 %v1238
    %1861 = vmatpush2.bf16.msra.mxu0 %v1237
    %1862 = vmatprep.subr.bf16.mxu0 %v1234
    %1863 = vmatpush2.bf16.msra.mxu0 %v1233
    %1864 = vmatprep.subr.bf16.mxu0 %v1230
    %1865 = vmatpush2.bf16.msra.mxu0 %v1229
    %1866 = vmatprep.subr.bf16.mxu0 %v1226
    %1867 = vmatpush2.bf16.msra.mxu0 %v1225
    %1868 = vmatprep.subr.bf16.mxu0 %v1222
    %1869 = vmatpush2.bf16.msra.mxu0 %v1221
    %1870 = vmatprep.subr.bf16.mxu0 %v1218
    %1871 = vmatpush2.bf16.msra.mxu0 %v1217
    %1872 = vmatprep.subr.bf16.mxu0 %v1214
    %1873 = vmatpush2.bf16.msra.mxu0 %v1213
    %1874 = vmatprep.mubr.bf16.mxu0 %v64
    %1875 = vmatmul.mubr.bf16.gmra.mxu0 %v63
    %v1876 = vpop.f32.mrf.mxu0
    %v1877 = vadd.f32 %v1834, %v1876
    %v1878 = vpop.f32.mrf.mxu0
    %v1879 = vadd.f32 %v1836, %v1878
    %v1880 = vpop.f32.mrf.mxu0
    %v1881 = vadd.f32 %v1838, %v1880
    %v1882 = vpop.f32.mrf.mxu0
    %v1883 = vadd.f32 %v1840, %v1882
    %1884 = vdwg.mxu0
    %1885 = vmatprep.subr.bf16.mxu0 %v1274
    %1886 = vmatpush1.bf16.msra.mxu0 %v1273
    %1887 = vmatprep.subr.bf16.mxu0 %v1270
    %1888 = vmatpush1.bf16.msra.mxu0 %v1269
    %1889 = vmatprep.subr.bf16.mxu0 %v1266
    %1890 = vmatpush1.bf16.msra.mxu0 %v1265
    %1891 = vmatprep.subr.bf16.mxu0 %v1262
    %1892 = vmatpush1.bf16.msra.mxu0 %v1261
    %1893 = vmatprep.subr.bf16.mxu0 %v1258
    %1894 = vmatpush1.bf16.msra.mxu0 %v1257
    %1895 = vmatprep.subr.bf16.mxu0 %v1254
    %1896 = vmatpush1.bf16.msra.mxu0 %v1253
    %1897 = vmatprep.subr.bf16.mxu0 %v1250
    %1898 = vmatpush1.bf16.msra.mxu0 %v1249
    %1899 = vmatprep.subr.bf16.mxu0 %v1246
    %1900 = vmatpush1.bf16.msra.mxu0 %v1245
    %1901 = vmatprep.subr.bf16.mxu0 %v1306
    %1902 = vmatpush2.bf16.msra.mxu0 %v1305
    %1903 = vmatprep.subr.bf16.mxu0 %v1302
    %1904 = vmatpush2.bf16.msra.mxu0 %v1301
    %1905 = vmatprep.subr.bf16.mxu0 %v1298
    %1906 = vmatpush2.bf16.msra.mxu0 %v1297
    %1907 = vmatprep.subr.bf16.mxu0 %v1294
    %1908 = vmatpush2.bf16.msra.mxu0 %v1293
    %1909 = vmatprep.subr.bf16.mxu0 %v1290
    %1910 = vmatpush2.bf16.msra.mxu0 %v1289
    %1911 = vmatprep.subr.bf16.mxu0 %v1286
    %1912 = vmatpush2.bf16.msra.mxu0 %v1285
    %1913 = vmatprep.subr.bf16.mxu0 %v1282
    %1914 = vmatpush2.bf16.msra.mxu0 %v1281
    %1915 = vmatprep.subr.bf16.mxu0 %v1278
    %1916 = vmatpush2.bf16.msra.mxu0 %v1277
    %1917 = vmatprep.mubr.bf16.mxu0 %v66
    %1918 = vmatmul.mubr.bf16.gmra.mxu0 %v65
    %v1919 = vpop.f32.mrf.mxu0
    %v1920 = vadd.f32 %v1877, %v1919
    %v1921 = vpop.f32.mrf.mxu0
    %v1922 = vadd.f32 %v1879, %v1921
    %v1923 = vpop.f32.mrf.mxu0
    %v1924 = vadd.f32 %v1881, %v1923
    %v1925 = vpop.f32.mrf.mxu0
    %v1926 = vadd.f32 %v1883, %v1925
    %1927 = vdwg.mxu0
    %1928 = vmatprep.subr.bf16.mxu0 %v1338
    %1929 = vmatpush1.bf16.msra.mxu0 %v1337
    %1930 = vmatprep.subr.bf16.mxu0 %v1334
    %1931 = vmatpush1.bf16.msra.mxu0 %v1333
    %1932 = vmatprep.subr.bf16.mxu0 %v1330
    %1933 = vmatpush1.bf16.msra.mxu0 %v1329
    %1934 = vmatprep.subr.bf16.mxu0 %v1326
    %1935 = vmatpush1.bf16.msra.mxu0 %v1325
    %1936 = vmatprep.subr.bf16.mxu0 %v1322
    %1937 = vmatpush1.bf16.msra.mxu0 %v1321
    %1938 = vmatprep.subr.bf16.mxu0 %v1318
    %1939 = vmatpush1.bf16.msra.mxu0 %v1317
    %1940 = vmatprep.subr.bf16.mxu0 %v1314
    %1941 = vmatpush1.bf16.msra.mxu0 %v1313
    %1942 = vmatprep.subr.bf16.mxu0 %v1310
    %1943 = vmatpush1.bf16.msra.mxu0 %v1309
    %1944 = vmatprep.subr.bf16.mxu0 %v1370
    %1945 = vmatpush2.bf16.msra.mxu0 %v1369
    %1946 = vmatprep.subr.bf16.mxu0 %v1366
    %1947 = vmatpush2.bf16.msra.mxu0 %v1365
    %1948 = vmatprep.subr.bf16.mxu0 %v1362
    %1949 = vmatpush2.bf16.msra.mxu0 %v1361
    %1950 = vmatprep.subr.bf16.mxu0 %v1358
    %1951 = vmatpush2.bf16.msra.mxu0 %v1357
    %1952 = vmatprep.subr.bf16.mxu0 %v1354
    %1953 = vmatpush2.bf16.msra.mxu0 %v1353
    %1954 = vmatprep.subr.bf16.mxu0 %v1350
    %1955 = vmatpush2.bf16.msra.mxu0 %v1349
    %1956 = vmatprep.subr.bf16.mxu0 %v1346
    %1957 = vmatpush2.bf16.msra.mxu0 %v1345
    %1958 = vmatprep.subr.bf16.mxu0 %v1342
    %1959 = vmatpush2.bf16.msra.mxu0 %v1341
    %1960 = vmatprep.mubr.bf16.mxu0 %v68
    %1961 = vmatmul.mubr.bf16.gmra.mxu0 %v67
    %v1962 = vpop.f32.mrf.mxu0
    %v1963 = vadd.f32 %v1920, %v1962
    %v1964 = vpop.f32.mrf.mxu0
    %v1965 = vadd.f32 %v1922, %v1964
    %v1966 = vpop.f32.mrf.mxu0
    %v1967 = vadd.f32 %v1924, %v1966
    %v1968 = vpop.f32.mrf.mxu0
    %v1969 = vadd.f32 %v1926, %v1968
    %1970 = vdwg.mxu0
    %1971 = vst [vmem:[#allocation2] sm:$0xff] %v1791
    %1972 = vst [vmem:[#allocation2 + $0x8] sm:$0xff] %v1793
    %1973 = vst [vmem:[#allocation2 + $0x10] sm:$0xff] %v1963
    %1974 = vst [vmem:[#allocation2 + $0x18] sm:$0xff] %v1965
    %1975 = vst [vmem:[#allocation2 + $0x20] sm:$0xff] %v1795
    %1976 = vst [vmem:[#allocation2 + $0x28] sm:$0xff] %v1797
    %1977 = vst [vmem:[#allocation2 + $0x30] sm:$0xff] %v1967
    %1978 = vst [vmem:[#allocation2 + $0x38] sm:$0xff] %v1969
    %v1979 = vpack.c.bf16 %v1795, %v1791
    %v1980 = vpack.c.bf16 %v1797, %v1793
    %v1981 = vpack.c.bf16 %v1967, %v1963
    %v1982 = vpack.c.bf16 %v1969, %v1965
    %v1983 = vld [vmem:[%s3] sm:$0xff]
    %v1984 = vld [vmem:[%s3 + $0x8] sm:$0xff]
    %v1985 = vld [vmem:[%s3 + $0x10] sm:$0xff]
    %v1986 = vld [vmem:[%s3 + $0x18] sm:$0xff]
    %v1987 = vld [vmem:[%s3 + $0x20] sm:$0xff]
    %v1988 = vld [vmem:[%s3 + $0x28] sm:$0xff]
    %v1989 = vld [vmem:[%s3 + $0x30] sm:$0xff]
    %v1990 = vld [vmem:[%s3 + $0x38] sm:$0xff]
    %v1991 = vld [vmem:[%s3 + $0x40] sm:$0xff]
    %v1992 = vld [vmem:[%s3 + $0x48] sm:$0xff]
    %v1993 = vld [vmem:[%s3 + $0x50] sm:$0xff]
    %v1994 = vld [vmem:[%s3 + $0x58] sm:$0xff]
    %v1995 = vld [vmem:[%s3 + $0x60] sm:$0xff]
    %v1996 = vld [vmem:[%s3 + $0x68] sm:$0xff]
    %v1997 = vld [vmem:[%s3 + $0x70] sm:$0xff]
    %v1998 = vld [vmem:[%s3 + $0x78] sm:$0xff]
    %v1999 = vld [vmem:[%s3 + $0x80] sm:$0xff]
    %v2000 = vld [vmem:[%s3 + $0x88] sm:$0xff]
    %v2001 = vld [vmem:[%s3 + $0x90] sm:$0xff]
    %v2002 = vld [vmem:[%s3 + $0x98] sm:$0xff]
    %v2003 = vld [vmem:[%s3 + $0xa0] sm:$0xff]
    %v2004 = vld [vmem:[%s3 + $0xa8] sm:$0xff]
    %v2005 = vld [vmem:[%s3 + $0xb0] sm:$0xff]
    %v2006 = vld [vmem:[%s3 + $0xb8] sm:$0xff]
    %v2007 = vld [vmem:[%s3 + $0xc0] sm:$0xff]
    %v2008 = vld [vmem:[%s3 + $0xc8] sm:$0xff]
    %v2009 = vld [vmem:[%s3 + $0xd0] sm:$0xff]
    %v2010 = vld [vmem:[%s3 + $0xd8] sm:$0xff]
    %v2011 = vld [vmem:[%s3 + $0xe0] sm:$0xff]
    %v2012 = vld [vmem:[%s3 + $0xe8] sm:$0xff]
    %v2013 = vld [vmem:[%s3 + $0xf0] sm:$0xff]
    %v2014 = vld [vmem:[%s3 + $0xf8] sm:$0xff]
    %v2015 = vld [vmem:[%s3 + $0x100] sm:$0xff]
    %v2016 = vld [vmem:[%s3 + $0x108] sm:$0xff]
    %v2017 = vld [vmem:[%s3 + $0x110] sm:$0xff]
    %v2018 = vld [vmem:[%s3 + $0x118] sm:$0xff]
    %v2019 = vld [vmem:[%s3 + $0x120] sm:$0xff]
    %v2020 = vld [vmem:[%s3 + $0x128] sm:$0xff]
    %v2021 = vld [vmem:[%s3 + $0x130] sm:$0xff]
    %v2022 = vld [vmem:[%s3 + $0x138] sm:$0xff]
    %v2023 = vld [vmem:[%s3 + $0x140] sm:$0xff]
    %v2024 = vld [vmem:[%s3 + $0x148] sm:$0xff]
    %v2025 = vld [vmem:[%s3 + $0x150] sm:$0xff]
    %v2026 = vld [vmem:[%s3 + $0x158] sm:$0xff]
    %v2027 = vld [vmem:[%s3 + $0x160] sm:$0xff]
    %v2028 = vld [vmem:[%s3 + $0x168] sm:$0xff]
    %v2029 = vld [vmem:[%s3 + $0x170] sm:$0xff]
    %v2030 = vld [vmem:[%s3 + $0x178] sm:$0xff]
    %v2031 = vld [vmem:[%s3 + $0x180] sm:$0xff]
    %v2032 = vld [vmem:[%s3 + $0x188] sm:$0xff]
    %v2033 = vld [vmem:[%s3 + $0x190] sm:$0xff]
    %v2034 = vld [vmem:[%s3 + $0x198] sm:$0xff]
    %v2035 = vld [vmem:[%s3 + $0x1a0] sm:$0xff]
    %v2036 = vld [vmem:[%s3 + $0x1a8] sm:$0xff]
    %v2037 = vld [vmem:[%s3 + $0x1b0] sm:$0xff]
    %v2038 = vld [vmem:[%s3 + $0x1b8] sm:$0xff]
    %v2039 = vld [vmem:[%s3 + $0x1c0] sm:$0xff]
    %v2040 = vld [vmem:[%s3 + $0x1c8] sm:$0xff]
    %v2041 = vld [vmem:[%s3 + $0x1d0] sm:$0xff]
    %v2042 = vld [vmem:[%s3 + $0x1d8] sm:$0xff]
    %v2043 = vld [vmem:[%s3 + $0x1e0] sm:$0xff]
    %v2044 = vld [vmem:[%s3 + $0x1e8] sm:$0xff]
    %v2045 = vld [vmem:[%s3 + $0x1f0] sm:$0xff]
    %v2046 = vld [vmem:[%s3 + $0x1f8] sm:$0xff]
    %v2047 = vld [vmem:[%s4] sm:$0x3]
    %v2049 = vlaneseq
    %v2050 = vshrl.u32 %v2049, 7
    %v2051 = vsub.s32 0, %v2050
    %v2052 = vrot.slane %v2047, %v2051
    %v2053 = vlaneseq
    %v2054 = vshrl.u32 %v2053, 7
    %v2055 = vsub.s32 1, %v2054
    %v2056 = vrot.slane %v2047, %v2055
    %v2123 = vunpack.c.l.b16 %v1983
    %v2124 = vunpack.c.h.b16 %v1983
    %v2125 = vunpack.c.l.b16 %v1984
    %v2126 = vunpack.c.h.b16 %v1984
    %v2127 = vunpack.c.l.b16 %v1985
    %v2128 = vunpack.c.h.b16 %v1985
    %v2129 = vunpack.c.l.b16 %v1986
    %v2130 = vunpack.c.h.b16 %v1986
    %v2131 = vunpack.c.l.b16 %v1987
    %v2132 = vunpack.c.h.b16 %v1987
    %v2133 = vunpack.c.l.b16 %v1988
    %v2134 = vunpack.c.h.b16 %v1988
    %v2135 = vunpack.c.l.b16 %v1989
    %v2136 = vunpack.c.h.b16 %v1989
    %v2137 = vunpack.c.l.b16 %v1990
    %v2138 = vunpack.c.h.b16 %v1990
    %v2139 = vunpack.c.l.b16 %v1991
    %v2140 = vunpack.c.h.b16 %v1991
    %v2141 = vunpack.c.l.b16 %v1992
    %v2142 = vunpack.c.h.b16 %v1992
    %v2143 = vunpack.c.l.b16 %v1993
    %v2144 = vunpack.c.h.b16 %v1993
    %v2145 = vunpack.c.l.b16 %v1994
    %v2146 = vunpack.c.h.b16 %v1994
    %v2147 = vunpack.c.l.b16 %v1995
    %v2148 = vunpack.c.h.b16 %v1995
    %v2149 = vunpack.c.l.b16 %v1996
    %v2150 = vunpack.c.h.b16 %v1996
    %v2151 = vunpack.c.l.b16 %v1997
    %v2152 = vunpack.c.h.b16 %v1997
    %v2153 = vunpack.c.l.b16 %v1998
    %v2154 = vunpack.c.h.b16 %v1998
    %v2155 = vunpack.c.l.b16 %v1999
    %v2156 = vunpack.c.h.b16 %v1999
    %v2157 = vunpack.c.l.b16 %v2000
    %v2158 = vunpack.c.h.b16 %v2000
    %v2159 = vunpack.c.l.b16 %v2001
    %v2160 = vunpack.c.h.b16 %v2001
    %v2161 = vunpack.c.l.b16 %v2002
    %v2162 = vunpack.c.h.b16 %v2002
    %v2163 = vunpack.c.l.b16 %v2003
    %v2164 = vunpack.c.h.b16 %v2003
    %v2165 = vunpack.c.l.b16 %v2004
    %v2166 = vunpack.c.h.b16 %v2004
    %v2167 = vunpack.c.l.b16 %v2005
    %v2168 = vunpack.c.h.b16 %v2005
    %v2169 = vunpack.c.l.b16 %v2006
    %v2170 = vunpack.c.h.b16 %v2006
    %v2171 = vunpack.c.l.b16 %v2007
    %v2172 = vunpack.c.h.b16 %v2007
    %v2173 = vunpack.c.l.b16 %v2008
    %v2174 = vunpack.c.h.b16 %v2008
    %v2175 = vunpack.c.l.b16 %v2009
    %v2176 = vunpack.c.h.b16 %v2009
    %v2177 = vunpack.c.l.b16 %v2010
    %v2178 = vunpack.c.h.b16 %v2010
    %v2179 = vunpack.c.l.b16 %v2011
    %v2180 = vunpack.c.h.b16 %v2011
    %v2181 = vunpack.c.l.b16 %v2012
    %v2182 = vunpack.c.h.b16 %v2012
    %v2183 = vunpack.c.l.b16 %v2013
    %v2184 = vunpack.c.h.b16 %v2013
    %v2185 = vunpack.c.l.b16 %v2014
    %v2186 = vunpack.c.h.b16 %v2014
    %v2187 = vunpack.c.l.b16 %v2015
    %v2188 = vunpack.c.h.b16 %v2015
    %v2189 = vunpack.c.l.b16 %v2016
    %v2190 = vunpack.c.h.b16 %v2016
    %v2191 = vunpack.c.l.b16 %v2017
    %v2192 = vunpack.c.h.b16 %v2017
    %v2193 = vunpack.c.l.b16 %v2018
    %v2194 = vunpack.c.h.b16 %v2018
    %v2195 = vunpack.c.l.b16 %v2019
    %v2196 = vunpack.c.h.b16 %v2019
    %v2197 = vunpack.c.l.b16 %v2020
    %v2198 = vunpack.c.h.b16 %v2020
    %v2199 = vunpack.c.l.b16 %v2021
    %v2200 = vunpack.c.h.b16 %v2021
    %v2201 = vunpack.c.l.b16 %v2022
    %v2202 = vunpack.c.h.b16 %v2022
    %v2203 = vunpack.c.l.b16 %v2023
    %v2204 = vunpack.c.h.b16 %v2023
    %v2205 = vunpack.c.l.b16 %v2024
    %v2206 = vunpack.c.h.b16 %v2024
    %v2207 = vunpack.c.l.b16 %v2025
    %v2208 = vunpack.c.h.b16 %v2025
    %v2209 = vunpack.c.l.b16 %v2026
    %v2210 = vunpack.c.h.b16 %v2026
    %v2211 = vunpack.c.l.b16 %v2027
    %v2212 = vunpack.c.h.b16 %v2027
    %v2213 = vunpack.c.l.b16 %v2028
    %v2214 = vunpack.c.h.b16 %v2028
    %v2215 = vunpack.c.l.b16 %v2029
    %v2216 = vunpack.c.h.b16 %v2029
    %v2217 = vunpack.c.l.b16 %v2030
    %v2218 = vunpack.c.h.b16 %v2030
    %v2219 = vunpack.c.l.b16 %v2031
    %v2220 = vunpack.c.h.b16 %v2031
    %v2221 = vunpack.c.l.b16 %v2032
    %v2222 = vunpack.c.h.b16 %v2032
    %v2223 = vunpack.c.l.b16 %v2033
    %v2224 = vunpack.c.h.b16 %v2033
    %v2225 = vunpack.c.l.b16 %v2034
    %v2226 = vunpack.c.h.b16 %v2034
    %v2227 = vunpack.c.l.b16 %v2035
    %v2228 = vunpack.c.h.b16 %v2035
    %v2229 = vunpack.c.l.b16 %v2036
    %v2230 = vunpack.c.h.b16 %v2036
    %v2231 = vunpack.c.l.b16 %v2037
    %v2232 = vunpack.c.h.b16 %v2037
    %v2233 = vunpack.c.l.b16 %v2038
    %v2234 = vunpack.c.h.b16 %v2038
    %v2235 = vunpack.c.l.b16 %v2039
    %v2236 = vunpack.c.h.b16 %v2039
    %v2237 = vunpack.c.l.b16 %v2040
    %v2238 = vunpack.c.h.b16 %v2040
    %v2239 = vunpack.c.l.b16 %v2041
    %v2240 = vunpack.c.h.b16 %v2041
    %v2241 = vunpack.c.l.b16 %v2042
    %v2242 = vunpack.c.h.b16 %v2042
    %v2243 = vunpack.c.l.b16 %v2043
    %v2244 = vunpack.c.h.b16 %v2043
    %v2245 = vunpack.c.l.b16 %v2044
    %v2246 = vunpack.c.h.b16 %v2044
    %v2247 = vunpack.c.l.b16 %v2045
    %v2248 = vunpack.c.h.b16 %v2045
    %v2249 = vunpack.c.l.b16 %v2046
    %v2250 = vunpack.c.h.b16 %v2046
    %v2251 = vpack.c.b16 %v2125, %v2123
    %v2252 = vpack.c.b16 %v2126, %v2124
    %v2253 = vpack.c.b16 %v2129, %v2127
    %v2254 = vpack.c.b16 %v2130, %v2128
    %v2255 = vpack.c.b16 %v2133, %v2131
    %v2256 = vpack.c.b16 %v2134, %v2132
    %v2257 = vpack.c.b16 %v2137, %v2135
    %v2258 = vpack.c.b16 %v2138, %v2136
    %v2259 = vpack.c.b16 %v2141, %v2139
    %v2260 = vpack.c.b16 %v2142, %v2140
    %v2261 = vpack.c.b16 %v2145, %v2143
    %v2262 = vpack.c.b16 %v2146, %v2144
    %v2263 = vpack.c.b16 %v2149, %v2147
    %v2264 = vpack.c.b16 %v2150, %v2148
    %v2265 = vpack.c.b16 %v2153, %v2151
    %v2266 = vpack.c.b16 %v2154, %v2152
    %v2267 = vpack.c.b16 %v2157, %v2155
    %v2268 = vpack.c.b16 %v2158, %v2156
    %v2269 = vpack.c.b16 %v2161, %v2159
    %v2270 = vpack.c.b16 %v2162, %v2160
    %v2271 = vpack.c.b16 %v2165, %v2163
    %v2272 = vpack.c.b16 %v2166, %v2164
    %v2273 = vpack.c.b16 %v2169, %v2167
    %v2274 = vpack.c.b16 %v2170, %v2168
    %v2275 = vpack.c.b16 %v2173, %v2171
    %v2276 = vpack.c.b16 %v2174, %v2172
    %v2277 = vpack.c.b16 %v2177, %v2175
    %v2278 = vpack.c.b16 %v2178, %v2176
    %v2279 = vpack.c.b16 %v2181, %v2179
    %v2280 = vpack.c.b16 %v2182, %v2180
    %v2281 = vpack.c.b16 %v2185, %v2183
    %v2282 = vpack.c.b16 %v2186, %v2184
    %v2283 = vpack.c.b16 %v2189, %v2187
    %v2284 = vpack.c.b16 %v2190, %v2188
    %v2285 = vpack.c.b16 %v2193, %v2191
    %v2286 = vpack.c.b16 %v2194, %v2192
    %v2287 = vpack.c.b16 %v2197, %v2195
    %v2288 = vpack.c.b16 %v2198, %v2196
    %v2289 = vpack.c.b16 %v2201, %v2199
    %v2290 = vpack.c.b16 %v2202, %v2200
    %v2291 = vpack.c.b16 %v2205, %v2203
    %v2292 = vpack.c.b16 %v2206, %v2204
    %v2293 = vpack.c.b16 %v2209, %v2207
    %v2294 = vpack.c.b16 %v2210, %v2208
    %v2295 = vpack.c.b16 %v2213, %v2211
    %v2296 = vpack.c.b16 %v2214, %v2212
    %v2297 = vpack.c.b16 %v2217, %v2215
    %v2298 = vpack.c.b16 %v2218, %v2216
    %v2299 = vpack.c.b16 %v2221, %v2219
    %v2300 = vpack.c.b16 %v2222, %v2220
    %v2301 = vpack.c.b16 %v2225, %v2223
    %v2302 = vpack.c.b16 %v2226, %v2224
    %v2303 = vpack.c.b16 %v2229, %v2227
    %v2304 = vpack.c.b16 %v2230, %v2228
    %v2305 = vpack.c.b16 %v2233, %v2231
    %v2306 = vpack.c.b16 %v2234, %v2232
    %v2307 = vpack.c.b16 %v2237, %v2235
    %v2308 = vpack.c.b16 %v2238, %v2236
    %v2309 = vpack.c.b16 %v2241, %v2239
    %v2310 = vpack.c.b16 %v2242, %v2240
    %v2311 = vpack.c.b16 %v2245, %v2243
    %v2312 = vpack.c.b16 %v2246, %v2244
    %v2313 = vpack.c.b16 %v2249, %v2247
    %v2314 = vpack.c.b16 %v2250, %v2248
    %2379 = vmatprep.subr.bf16.mxu0 %v2266
    %2380 = vmatpush1.bf16.msra.mxu0 %v2265
    %2381 = vmatprep.subr.bf16.mxu0 %v2264
    %2382 = vmatpush1.bf16.msra.mxu0 %v2263
    %2383 = vmatprep.subr.bf16.mxu0 %v2262
    %2384 = vmatpush1.bf16.msra.mxu0 %v2261
    %2385 = vmatprep.subr.bf16.mxu0 %v2260
    %2386 = vmatpush1.bf16.msra.mxu0 %v2259
    %2387 = vmatprep.subr.bf16.mxu0 %v2258
    %2388 = vmatpush1.bf16.msra.mxu0 %v2257
    %2389 = vmatprep.subr.bf16.mxu0 %v2256
    %2390 = vmatpush1.bf16.msra.mxu0 %v2255
    %2391 = vmatprep.subr.bf16.mxu0 %v2254
    %2392 = vmatpush1.bf16.msra.mxu0 %v2253
    %2393 = vmatprep.subr.bf16.mxu0 %v2252
    %2394 = vmatpush1.bf16.msra.mxu0 %v2251
    %2395 = vmatprep.subr.bf16.mxu0 %v2282
    %2396 = vmatpush2.bf16.msra.mxu0 %v2281
    %2397 = vmatprep.subr.bf16.mxu0 %v2280
    %2398 = vmatpush2.bf16.msra.mxu0 %v2279
    %2399 = vmatprep.subr.bf16.mxu0 %v2278
    %2400 = vmatpush2.bf16.msra.mxu0 %v2277
    %2401 = vmatprep.subr.bf16.mxu0 %v2276
    %2402 = vmatpush2.bf16.msra.mxu0 %v2275
    %2403 = vmatprep.subr.bf16.mxu0 %v2274
    %2404 = vmatpush2.bf16.msra.mxu0 %v2273
    %2405 = vmatprep.subr.bf16.mxu0 %v2272
    %2406 = vmatpush2.bf16.msra.mxu0 %v2271
    %2407 = vmatprep.subr.bf16.mxu0 %v2270
    %2408 = vmatpush2.bf16.msra.mxu0 %v2269
    %2409 = vmatprep.subr.bf16.mxu0 %v2268
    %2410 = vmatpush2.bf16.msra.mxu0 %v2267
    %2411 = vmatprep.mubr.bf16.mxu0 %v1980
    %2412 = vmatmul.mubr.bf16.gmra.mxu0 %v1979
    %v2413 = vpop.f32.mrf.mxu0
    %v2414 = vadd.f32 %v2052, %v2413
    %v2415 = vpop.f32.mrf.mxu0
    %v2416 = vadd.f32 %v2056, %v2415
    %v2417 = vpop.f32.mrf.mxu0
    %v2418 = vadd.f32 %v2052, %v2417
    %v2419 = vpop.f32.mrf.mxu0
    %v2420 = vadd.f32 %v2056, %v2419
    %2421 = vdwg.mxu0
    %2422 = vmatprep.subr.bf16.mxu0 %v2298
    %2423 = vmatpush1.bf16.msra.mxu0 %v2297
    %2424 = vmatprep.subr.bf16.mxu0 %v2296
    %2425 = vmatpush1.bf16.msra.mxu0 %v2295
    %2426 = vmatprep.subr.bf16.mxu0 %v2294
    %2427 = vmatpush1.bf16.msra.mxu0 %v2293
    %2428 = vmatprep.subr.bf16.mxu0 %v2292
    %2429 = vmatpush1.bf16.msra.mxu0 %v2291
    %2430 = vmatprep.subr.bf16.mxu0 %v2290
    %2431 = vmatpush1.bf16.msra.mxu0 %v2289
    %2432 = vmatprep.subr.bf16.mxu0 %v2288
    %2433 = vmatpush1.bf16.msra.mxu0 %v2287
    %2434 = vmatprep.subr.bf16.mxu0 %v2286
    %2435 = vmatpush1.bf16.msra.mxu0 %v2285
    %2436 = vmatprep.subr.bf16.mxu0 %v2284
    %2437 = vmatpush1.bf16.msra.mxu0 %v2283
    %2438 = vmatprep.subr.bf16.mxu0 %v2314
    %2439 = vmatpush2.bf16.msra.mxu0 %v2313
    %2440 = vmatprep.subr.bf16.mxu0 %v2312
    %2441 = vmatpush2.bf16.msra.mxu0 %v2311
    %2442 = vmatprep.subr.bf16.mxu0 %v2310
    %2443 = vmatpush2.bf16.msra.mxu0 %v2309
    %2444 = vmatprep.subr.bf16.mxu0 %v2308
    %2445 = vmatpush2.bf16.msra.mxu0 %v2307
    %2446 = vmatprep.subr.bf16.mxu0 %v2306
    %2447 = vmatpush2.bf16.msra.mxu0 %v2305
    %2448 = vmatprep.subr.bf16.mxu0 %v2304
    %2449 = vmatpush2.bf16.msra.mxu0 %v2303
    %2450 = vmatprep.subr.bf16.mxu0 %v2302
    %2451 = vmatpush2.bf16.msra.mxu0 %v2301
    %2452 = vmatprep.subr.bf16.mxu0 %v2300
    %2453 = vmatpush2.bf16.msra.mxu0 %v2299
    %2454 = vmatprep.mubr.bf16.mxu0 %v1982
    %2455 = vmatmul.mubr.bf16.gmra.mxu0 %v1981
    %v2456 = vpop.f32.mrf.mxu0
    %v2457 = vadd.f32 %v2414, %v2456
    %v2458 = vpop.f32.mrf.mxu0
    %v2459 = vadd.f32 %v2416, %v2458
    %v2460 = vpop.f32.mrf.mxu0
    %v2461 = vadd.f32 %v2418, %v2460
    %v2462 = vpop.f32.mrf.mxu0
    %v2463 = vadd.f32 %v2420, %v2462
    %2464 = vdwg.mxu0
    %v2465 = vtanh.pop %v2457
    %v2466 = vtanh.pop %v2461
    %v2467 = vxor.u32 %v2459, 2147483648
    %v2468 = vxor.u32 %v2463, 2147483648
    %v2469 = vmul.f32 %v2467, 1.442695
    %v2470 = vpow.pop %v2469
    %v2471 = vmul.f32 %v2468, 1.442695
    %v2472 = vpow.pop %v2471
    %v2473 = vadd.f32 %v2470, 1.0
    %v2474 = vadd.f32 %v2472, 1.0
    %v2475 = vrcp.pop %v2473
    %v2476 = vmul.f32 1.0, %v2475
    %v2477 = vrcp.pop %v2474
    %v2478 = vmul.f32 1.0, %v2477
    %v2479 = vmul.f32 %v2465, %v2476
    %v2480 = vmul.f32 %v2466, %v2478
    %v2481 = vld [vmem:[%s5] sm:$0xff]
    %v2482 = vld [vmem:[%s5 + $0x8] sm:$0xff]
    %v2483 = vld [vmem:[%s5 + $0x10] sm:$0xff]
    %v2484 = vld [vmem:[%s5 + $0x18] sm:$0xff]
    %v2485 = vld [vmem:[%s5 + $0x20] sm:$0xff]
    %v2486 = vld [vmem:[%s5 + $0x28] sm:$0xff]
    %v2487 = vld [vmem:[%s5 + $0x30] sm:$0xff]
    %v2488 = vld [vmem:[%s5 + $0x38] sm:$0xff]
    %v2489 = vld [vmem:[%s5 + $0x40] sm:$0xff]
    %v2490 = vld [vmem:[%s5 + $0x48] sm:$0xff]
    %v2491 = vld [vmem:[%s5 + $0x50] sm:$0xff]
    %v2492 = vld [vmem:[%s5 + $0x58] sm:$0xff]
    %v2493 = vld [vmem:[%s5 + $0x60] sm:$0xff]
    %v2494 = vld [vmem:[%s5 + $0x68] sm:$0xff]
    %v2495 = vld [vmem:[%s5 + $0x70] sm:$0xff]
    %v2496 = vld [vmem:[%s5 + $0x78] sm:$0xff]
    %v2497 = vld [vmem:[%s6] sm:$0x1]
    %v2499 = vlaneseq
    %v2500 = vshrl.u32 %v2499, 7
    %v2501 = vsub.s32 0, %v2500
    %v2502 = vrot.slane %v2497, %v2501
    %2504 = vmatprep.subr.mxu0 0.0
    %2505 = vmatpush1.msra.mxu0 %v2496
    %2506 = vmatprep.subr.mxu0 0.0
    %2507 = vmatpush1.msra.mxu0 %v2495
    %2508 = vmatprep.subr.mxu0 0.0
    %2509 = vmatpush1.msra.mxu0 %v2494
    %2510 = vmatprep.subr.mxu0 0.0
    %2511 = vmatpush1.msra.mxu0 %v2493
    %2512 = vmatprep.subr.mxu0 0.0
    %2513 = vmatpush1.msra.mxu0 %v2492
    %2514 = vmatprep.subr.mxu0 0.0
    %2515 = vmatpush1.msra.mxu0 %v2491
    %2516 = vmatprep.subr.mxu0 0.0
    %2517 = vmatpush1.msra.mxu0 %v2490
    %2518 = vmatprep.subr.mxu0 0.0
    %2519 = vmatpush1.msra.mxu0 %v2489
    %2520 = vmatprep.subr.mxu0 0.0
    %2521 = vmatpush1.msra.mxu0 %v2488
    %2522 = vmatprep.subr.mxu0 0.0
    %2523 = vmatpush1.msra.mxu0 %v2487
    %2524 = vmatprep.subr.mxu0 0.0
    %2525 = vmatpush1.msra.mxu0 %v2486
    %2526 = vmatprep.subr.mxu0 0.0
    %2527 = vmatpush1.msra.mxu0 %v2485
    %2528 = vmatprep.subr.mxu0 0.0
    %2529 = vmatpush1.msra.mxu0 %v2484
    %2530 = vmatprep.subr.mxu0 0.0
    %2531 = vmatpush1.msra.mxu0 %v2483
    %2532 = vmatprep.subr.mxu0 0.0
    %2533 = vmatpush1.msra.mxu0 %v2482
    %2534 = vmatprep.subr.mxu0 0.0
    %2535 = vmatpush1.msra.mxu0 %v2481
    %2536 = vmatprep.subr.mxu0 0.0
    %2537 = vmatpush2.msra.mxu0 0.0
    %2538 = vmatprep.subr.mxu0 0.0
    %2539 = vmatpush2.msra.mxu0 0.0
    %2540 = vmatprep.subr.mxu0 0.0
    %2541 = vmatpush2.msra.mxu0 0.0
    %2542 = vmatprep.subr.mxu0 0.0
    %2543 = vmatpush2.msra.mxu0 0.0
    %2544 = vmatprep.subr.mxu0 0.0
    %2545 = vmatpush2.msra.mxu0 0.0
    %2546 = vmatprep.subr.mxu0 0.0
    %2547 = vmatpush2.msra.mxu0 0.0
    %2548 = vmatprep.subr.mxu0 0.0
    %2549 = vmatpush2.msra.mxu0 0.0
    %2550 = vmatprep.subr.mxu0 0.0
    %2551 = vmatpush2.msra.mxu0 0.0
    %2552 = vmatprep.subr.mxu0 0.0
    %2553 = vmatpush2.msra.mxu0 0.0
    %2554 = vmatprep.subr.mxu0 0.0
    %2555 = vmatpush2.msra.mxu0 0.0
    %2556 = vmatprep.subr.mxu0 0.0
    %2557 = vmatpush2.msra.mxu0 0.0
    %2558 = vmatprep.subr.mxu0 0.0
    %2559 = vmatpush2.msra.mxu0 0.0
    %2560 = vmatprep.subr.mxu0 0.0
    %2561 = vmatpush2.msra.mxu0 0.0
    %2562 = vmatprep.subr.mxu0 0.0
    %2563 = vmatpush2.msra.mxu0 0.0
    %2564 = vmatprep.subr.mxu0 0.0
    %2565 = vmatpush2.msra.mxu0 0.0
    %2566 = vmatprep.subr.mxu0 0.0
    %2567 = vmatpush2.msra.mxu0 0.0
    %2568 = vmatprep.mubr.f32.mxu0 0.0
    %2569 = vmatmul.mubr.f32.gmra.mxu0 %v2479
    %v2570 = vpop.f32.mrf.mxu0
    %v2571 = vadd.f32 %v2502, %v2570
    %v2572 = vpop.f32.mrf.mxu0
    %2573 = vmatprep.mubr.f32.mxu0 0.0
    %2574 = vmatmul.mubr.f32.gmra.mxu0 %v2480
    %v2575 = vpop.f32.mrf.mxu0
    %v2576 = vadd.f32 %v2502, %v2575
    %v2577 = vpop.f32.mrf.mxu0
    %2578 = vdwg.mxu0
    %vm2579 = vcmask 15360
    %v2580 = vsel %vm2579, %v2571, -inf
    %v2581 = vrot.slane %v2580, 4
    %v2582 = vmax.f32 %v2580, %v2581
    %v2583 = vrot.slane %v2582, 2
    %v2584 = vmax.f32 %v2582, %v2583
    %v2585 = vrot.slane %v2584, 1
    %v2586 = vmax.f32 %v2584, %v2585
    %v2587 = vsel %vm2579, %v2576, -inf
    %v2588 = vrot.slane %v2587, 4
    %v2589 = vmax.f32 %v2587, %v2588
    %v2590 = vrot.slane %v2589, 2
    %v2591 = vmax.f32 %v2589, %v2590
    %v2592 = vrot.slane %v2591, 1
    %v2593 = vmax.f32 %v2591, %v2592
    %v2594 = vsub.f32 %v2571, %v2586
    %v2595 = vsub.f32 %v2576, %v2593
    %v2596 = vmul.f32 %v2594, 1.442695
    %v2597 = vpow.pop %v2596
    %v2598 = vmul.f32 %v2595, 1.442695
    %v2599 = vpow.pop %v2598
    %v2600 = vsel %vm2579, %v2597, 0.0
    %v2601 = vrot.slane %v2600, 4
    %v2602 = vadd.f32 %v2600, %v2601
    %v2603 = vrot.slane %v2602, 2
    %v2604 = vadd.f32 %v2602, %v2603
    %v2605 = vrot.slane %v2604, 1
    %v2606 = vadd.f32 %v2604, %v2605
    %v2607 = vsel %vm2579, %v2599, 0.0
    %v2608 = vrot.slane %v2607, 4
    %v2609 = vadd.f32 %v2607, %v2608
    %v2610 = vrot.slane %v2609, 2
    %v2611 = vadd.f32 %v2609, %v2610
    %v2612 = vrot.slane %v2611, 1
    %v2613 = vadd.f32 %v2611, %v2612
    %v2614 = vrcp.pop %v2606
    %v2615 = vrcp.pop %v2613
    %v2616 = vmul.f32 %v2597, %v2614
    %v2617 = vmul.f32 %v2599, %v2615
    %2618 = vxpose.xlu0.b32.start [1/16] %v2616, 128
    %2619 = vxpose.xlu0.b32.cont [2/16] 0.0, 128
    %2620 = vxpose.xlu0.b32.cont [3/16] 0.0, 128
    %2621 = vxpose.xlu0.b32.cont [4/16] 0.0, 128
    %2622 = vxpose.xlu0.b32.cont [5/16] 0.0, 128
    %2623 = vxpose.xlu0.b32.cont [6/16] 0.0, 128
    %2624 = vxpose.xlu0.b32.cont [7/16] 0.0, 128
    %2625 = vxpose.xlu0.b32.cont [8/16] 0.0, 128
    %2626 = vxpose.xlu0.b32.cont [9/16] 0.0, 128
    %2627 = vxpose.xlu0.b32.cont [10/16] 0.0, 128
    %2628 = vxpose.xlu0.b32.cont [11/16] 0.0, 128
    %2629 = vxpose.xlu0.b32.cont [12/16] 0.0, 128
    %2630 = vxpose.xlu0.b32.cont [13/16] 0.0, 128
    %2631 = vxpose.xlu0.b32.cont [14/16] 0.0, 128
    %2632 = vxpose.xlu0.b32.cont [15/16] 0.0, 128
    %2633 = vxpose.xlu0.b32.end [16/16] 0.0, 128
    %v2634 = vpop.trf.xlu0
    %v2635 = vpop.trf.xlu0
    %v2636 = vpop.trf.xlu0
    %v2637 = vpop.trf.xlu0
    %v2638 = vpop.trf.xlu0
    %v2639 = vpop.trf.xlu0
    %v2640 = vpop.trf.xlu0
    %v2641 = vpop.trf.xlu0
    %v2642 = vpop.trf.xlu0
    %v2643 = vpop.trf.xlu0
    %v2644 = vpop.trf.xlu0
    %v2645 = vpop.trf.xlu0
    %v2646 = vpop.trf.xlu0
    %v2647 = vpop.trf.xlu0
    %v2648 = vpop.trf.xlu0
    %v2649 = vpop.trf.xlu0
    %vm2650 = vcmask 64512
    %v2652 = vsel %vm2650, %v2634, 0
    %2654 = vmatprep.subr.mxu0 0.0
    %2655 = vmatpush1.msra.mxu0 0.0
    %2656 = vmatprep.subr.mxu0 0.0
    %2657 = vmatpush1.msra.mxu0 0.0
    %2658 = vmatprep.subr.mxu0 0.0
    %2659 = vmatpush1.msra.mxu0 0.0
    %2660 = vmatprep.subr.mxu0 0.0
    %2661 = vmatpush1.msra.mxu0 0.0
    %2662 = vmatprep.subr.mxu0 0.0
    %2663 = vmatpush1.msra.mxu0 0.0
    %2664 = vmatprep.subr.mxu0 0.0
    %2665 = vmatpush1.msra.mxu0 0.0
    %2666 = vmatprep.subr.mxu0 0.0
    %2667 = vmatpush1.msra.mxu0 0.0
    %2668 = vmatprep.subr.mxu0 0.0
    %2669 = vmatpush1.msra.mxu0 0.0
    %2670 = vmatprep.subr.mxu0 0.0
    %2671 = vmatpush1.msra.mxu0 0.0
    %2672 = vmatprep.subr.mxu0 0.0
    %2673 = vmatpush1.msra.mxu0 0.0
    %2674 = vmatprep.subr.mxu0 0.0
    %2675 = vmatpush1.msra.mxu0 0.0
    %2676 = vmatprep.subr.mxu0 0.0
    %2677 = vmatpush1.msra.mxu0 0.0
    %2678 = vmatprep.subr.mxu0 0.0
    %2679 = vmatpush1.msra.mxu0 0.0
    %2680 = vmatprep.subr.mxu0 0.0
    %2681 = vmatpush1.msra.mxu0 0.0
    %2682 = vmatprep.subr.mxu0 0.0
    %2683 = vmatpush1.msra.mxu0 0.0
    %2684 = vmatprep.subr.mxu0 %v1793
    %2685 = vmatpush1.msra.mxu0 %v1791
    %2686 = vmatprep.subr.mxu0 0.0
    %2687 = vmatpush2.msra.mxu0 0.0
    %2688 = vmatprep.subr.mxu0 0.0
    %2689 = vmatpush2.msra.mxu0 0.0
    %2690 = vmatprep.subr.mxu0 0.0
    %2691 = vmatpush2.msra.mxu0 0.0
    %2692 = vmatprep.subr.mxu0 0.0
    %2693 = vmatpush2.msra.mxu0 0.0
    %2694 = vmatprep.subr.mxu0 0.0
    %2695 = vmatpush2.msra.mxu0 0.0
    %2696 = vmatprep.subr.mxu0 0.0
    %2697 = vmatpush2.msra.mxu0 0.0
    %2698 = vmatprep.subr.mxu0 0.0
    %2699 = vmatpush2.msra.mxu0 0.0
    %2700 = vmatprep.subr.mxu0 0.0
    %2701 = vmatpush2.msra.mxu0 0.0
    %2702 = vmatprep.subr.mxu0 0.0
    %2703 = vmatpush2.msra.mxu0 0.0
    %2704 = vmatprep.subr.mxu0 0.0
    %2705 = vmatpush2.msra.mxu0 0.0
    %2706 = vmatprep.subr.mxu0 0.0
    %2707 = vmatpush2.msra.mxu0 0.0
    %2708 = vmatprep.subr.mxu0 0.0
    %2709 = vmatpush2.msra.mxu0 0.0
    %2710 = vmatprep.subr.mxu0 0.0
    %2711 = vmatpush2.msra.mxu0 0.0
    %2712 = vmatprep.subr.mxu0 0.0
    %2713 = vmatpush2.msra.mxu0 0.0
    %2714 = vmatprep.subr.mxu0 0.0
    %2715 = vmatpush2.msra.mxu0 0.0
    %2716 = vmatprep.subr.mxu0 0.0
    %2717 = vmatpush2.msra.mxu0 0.0
    %2718 = vmatprep.mubr.f32.mxu0 0.0
    %2719 = vmatmul.mubr.f32.gmra.mxu0 %v2652
    %v2720 = vpop.f32.mrf.mxu0
    %v2721 = vadd.f32 0.0, %v2720
    %v2722 = vpop.f32.mrf.mxu0
    %v2723 = vadd.f32 0.0, %v2722
    %2724 = vdwg.mxu0
    %2725 = vmatprep.subr.mxu0 0.0
    %2726 = vmatpush1.msra.mxu0 0.0
    %2727 = vmatprep.subr.mxu0 0.0
    %2728 = vmatpush1.msra.mxu0 0.0
    %2729 = vmatprep.subr.mxu0 0.0
    %2730 = vmatpush1.msra.mxu0 0.0
    %2731 = vmatprep.subr.mxu0 0.0
    %2732 = vmatpush1.msra.mxu0 0.0
    %2733 = vmatprep.subr.mxu0 0.0
    %2734 = vmatpush1.msra.mxu0 0.0
    %2735 = vmatprep.subr.mxu0 0.0
    %2736 = vmatpush1.msra.mxu0 0.0
    %2737 = vmatprep.subr.mxu0 0.0
    %2738 = vmatpush1.msra.mxu0 0.0
    %2739 = vmatprep.subr.mxu0 0.0
    %2740 = vmatpush1.msra.mxu0 0.0
    %2741 = vmatprep.subr.mxu0 0.0
    %2742 = vmatpush1.msra.mxu0 0.0
    %2743 = vmatprep.subr.mxu0 0.0
    %2744 = vmatpush1.msra.mxu0 0.0
    %2745 = vmatprep.subr.mxu0 0.0
    %2746 = vmatpush1.msra.mxu0 0.0
    %2747 = vmatprep.subr.mxu0 0.0
    %2748 = vmatpush1.msra.mxu0 0.0
    %2749 = vmatprep.subr.mxu0 0.0
    %2750 = vmatpush1.msra.mxu0 0.0
    %2751 = vmatprep.subr.mxu0 0.0
    %2752 = vmatpush1.msra.mxu0 0.0
    %2753 = vmatprep.subr.mxu0 0.0
    %2754 = vmatpush1.msra.mxu0 0.0
    %2755 = vmatprep.subr.mxu0 %v1965
    %2756 = vmatpush1.msra.mxu0 %v1963
    %2757 = vmatprep.subr.mxu0 0.0
    %2758 = vmatpush2.msra.mxu0 0.0
    %2759 = vmatprep.subr.mxu0 0.0
    %2760 = vmatpush2.msra.mxu0 0.0
    %2761 = vmatprep.subr.mxu0 0.0
    %2762 = vmatpush2.msra.mxu0 0.0
    %2763 = vmatprep.subr.mxu0 0.0
    %2764 = vmatpush2.msra.mxu0 0.0
    %2765 = vmatprep.subr.mxu0 0.0
    %2766 = vmatpush2.msra.mxu0 0.0
    %2767 = vmatprep.subr.mxu0 0.0
    %2768 = vmatpush2.msra.mxu0 0.0
    %2769 = vmatprep.subr.mxu0 0.0
    %2770 = vmatpush2.msra.mxu0 0.0
    %2771 = vmatprep.subr.mxu0 0.0
    %2772 = vmatpush2.msra.mxu0 0.0
    %2773 = vmatprep.subr.mxu0 0.0
    %2774 = vmatpush2.msra.mxu0 0.0
    %2775 = vmatprep.subr.mxu0 0.0
    %2776 = vmatpush2.msra.mxu0 0.0
    %2777 = vmatprep.subr.mxu0 0.0
    %2778 = vmatpush2.msra.mxu0 0.0
    %2779 = vmatprep.subr.mxu0 0.0
    %2780 = vmatpush2.msra.mxu0 0.0
    %2781 = vmatprep.subr.mxu0 0.0
    %2782 = vmatpush2.msra.mxu0 0.0
    %2783 = vmatprep.subr.mxu0 0.0
    %2784 = vmatpush2.msra.mxu0 0.0
    %2785 = vmatprep.subr.mxu0 0.0
    %2786 = vmatpush2.msra.mxu0 0.0
    %2787 = vmatprep.subr.mxu0 0.0
    %2788 = vmatpush2.msra.mxu0 0.0
    %2789 = vmatprep.mubr.f32.mxu0 0.0
    %2790 = vmatmul.mubr.f32.gmra.mxu0 %v2652
    %v2791 = vpop.f32.mrf.mxu0
    %v2792 = vadd.f32 0.0, %v2791
    %v2793 = vpop.f32.mrf.mxu0
    %v2794 = vadd.f32 0.0, %v2793
    %2795 = vdwg.mxu0
    %2796 = vxpose.xlu0.b32.start [1/16] %v2617, 128
    %2797 = vxpose.xlu0.b32.cont [2/16] 0.0, 128
    %2798 = vxpose.xlu0.b32.cont [3/16] 0.0, 128
    %2799 = vxpose.xlu0.b32.cont [4/16] 0.0, 128
    %2800 = vxpose.xlu0.b32.cont [5/16] 0.0, 128
    %2801 = vxpose.xlu0.b32.cont [6/16] 0.0, 128
    %2802 = vxpose.xlu0.b32.cont [7/16] 0.0, 128
    %2803 = vxpose.xlu0.b32.cont [8/16] 0.0, 128
    %2804 = vxpose.xlu0.b32.cont [9/16] 0.0, 128
    %2805 = vxpose.xlu0.b32.cont [10/16] 0.0, 128
    %2806 = vxpose.xlu0.b32.cont [11/16] 0.0, 128
    %2807 = vxpose.xlu0.b32.cont [12/16] 0.0, 128
    %2808 = vxpose.xlu0.b32.cont [13/16] 0.0, 128
    %2809 = vxpose.xlu0.b32.cont [14/16] 0.0, 128
    %2810 = vxpose.xlu0.b32.cont [15/16] 0.0, 128
    %2811 = vxpose.xlu0.b32.end [16/16] 0.0, 128
    %v2812 = vpop.trf.xlu0
    %v2813 = vpop.trf.xlu0
    %v2814 = vpop.trf.xlu0
    %v2815 = vpop.trf.xlu0
    %v2816 = vpop.trf.xlu0
    %v2817 = vpop.trf.xlu0
    %v2818 = vpop.trf.xlu0
    %v2819 = vpop.trf.xlu0
    %v2820 = vpop.trf.xlu0
    %v2821 = vpop.trf.xlu0
    %v2822 = vpop.trf.xlu0
    %v2823 = vpop.trf.xlu0
    %v2824 = vpop.trf.xlu0
    %v2825 = vpop.trf.xlu0
    %v2826 = vpop.trf.xlu0
    %v2827 = vpop.trf.xlu0
    %v2829 = vsel %vm2650, %v2812, 0
    %2831 = vmatprep.subr.mxu0 0.0
    %2832 = vmatpush1.msra.mxu0 0.0
    %2833 = vmatprep.subr.mxu0 0.0
    %2834 = vmatpush1.msra.mxu0 0.0
    %2835 = vmatprep.subr.mxu0 0.0
    %2836 = vmatpush1.msra.mxu0 0.0
    %2837 = vmatprep.subr.mxu0 0.0
    %2838 = vmatpush1.msra.mxu0 0.0
    %2839 = vmatprep.subr.mxu0 0.0
    %2840 = vmatpush1.msra.mxu0 0.0
    %2841 = vmatprep.subr.mxu0 0.0
    %2842 = vmatpush1.msra.mxu0 0.0
    %2843 = vmatprep.subr.mxu0 0.0
    %2844 = vmatpush1.msra.mxu0 0.0
    %2845 = vmatprep.subr.mxu0 0.0
    %2846 = vmatpush1.msra.mxu0 0.0
    %2847 = vmatprep.subr.mxu0 0.0
    %2848 = vmatpush1.msra.mxu0 0.0
    %2849 = vmatprep.subr.mxu0 0.0
    %2850 = vmatpush1.msra.mxu0 0.0
    %2851 = vmatprep.subr.mxu0 0.0
    %2852 = vmatpush1.msra.mxu0 0.0
    %2853 = vmatprep.subr.mxu0 0.0
    %2854 = vmatpush1.msra.mxu0 0.0
    %2855 = vmatprep.subr.mxu0 0.0
    %2856 = vmatpush1.msra.mxu0 0.0
    %2857 = vmatprep.subr.mxu0 0.0
    %2858 = vmatpush1.msra.mxu0 0.0
    %2859 = vmatprep.subr.mxu0 0.0
    %2860 = vmatpush1.msra.mxu0 0.0
    %2861 = vmatprep.subr.mxu0 %v1797
    %2862 = vmatpush1.msra.mxu0 %v1795
    %2863 = vmatprep.subr.mxu0 0.0
    %2864 = vmatpush2.msra.mxu0 0.0
    %2865 = vmatprep.subr.mxu0 0.0
    %2866 = vmatpush2.msra.mxu0 0.0
    %2867 = vmatprep.subr.mxu0 0.0
    %2868 = vmatpush2.msra.mxu0 0.0
    %2869 = vmatprep.subr.mxu0 0.0
    %2870 = vmatpush2.msra.mxu0 0.0
    %2871 = vmatprep.subr.mxu0 0.0
    %2872 = vmatpush2.msra.mxu0 0.0
    %2873 = vmatprep.subr.mxu0 0.0
    %2874 = vmatpush2.msra.mxu0 0.0
    %2875 = vmatprep.subr.mxu0 0.0
    %2876 = vmatpush2.msra.mxu0 0.0
    %2877 = vmatprep.subr.mxu0 0.0
    %2878 = vmatpush2.msra.mxu0 0.0
    %2879 = vmatprep.subr.mxu0 0.0
    %2880 = vmatpush2.msra.mxu0 0.0
    %2881 = vmatprep.subr.mxu0 0.0
    %2882 = vmatpush2.msra.mxu0 0.0
    %2883 = vmatprep.subr.mxu0 0.0
    %2884 = vmatpush2.msra.mxu0 0.0
    %2885 = vmatprep.subr.mxu0 0.0
    %2886 = vmatpush2.msra.mxu0 0.0
    %2887 = vmatprep.subr.mxu0 0.0
    %2888 = vmatpush2.msra.mxu0 0.0
    %2889 = vmatprep.subr.mxu0 0.0
    %2890 = vmatpush2.msra.mxu0 0.0
    %2891 = vmatprep.subr.mxu0 0.0
    %2892 = vmatpush2.msra.mxu0 0.0
    %2893 = vmatprep.subr.mxu0 0.0
    %2894 = vmatpush2.msra.mxu0 0.0
    %2895 = vmatprep.mubr.f32.mxu0 0.0
    %2896 = vmatmul.mubr.f32.gmra.mxu0 %v2829
    %v2897 = vpop.f32.mrf.mxu0
    %v2898 = vadd.f32 0.0, %v2897
    %v2899 = vpop.f32.mrf.mxu0
    %v2900 = vadd.f32 0.0, %v2899
    %2901 = vdwg.mxu0
    %2902 = vmatprep.subr.mxu0 0.0
    %2903 = vmatpush1.msra.mxu0 0.0
    %2904 = vmatprep.subr.mxu0 0.0
    %2905 = vmatpush1.msra.mxu0 0.0
    %2906 = vmatprep.subr.mxu0 0.0
    %2907 = vmatpush1.msra.mxu0 0.0
    %2908 = vmatprep.subr.mxu0 0.0
    %2909 = vmatpush1.msra.mxu0 0.0
    %2910 = vmatprep.subr.mxu0 0.0
    %2911 = vmatpush1.msra.mxu0 0.0
    %2912 = vmatprep.subr.mxu0 0.0
    %2913 = vmatpush1.msra.mxu0 0.0
    %2914 = vmatprep.subr.mxu0 0.0
    %2915 = vmatpush1.msra.mxu0 0.0
    %2916 = vmatprep.subr.mxu0 0.0
    %2917 = vmatpush1.msra.mxu0 0.0
    %2918 = vmatprep.subr.mxu0 0.0
    %2919 = vmatpush1.msra.mxu0 0.0
    %2920 = vmatprep.subr.mxu0 0.0
    %2921 = vmatpush1.msra.mxu0 0.0
    %2922 = vmatprep.subr.mxu0 0.0
    %2923 = vmatpush1.msra.mxu0 0.0
    %2924 = vmatprep.subr.mxu0 0.0
    %2925 = vmatpush1.msra.mxu0 0.0
    %2926 = vmatprep.subr.mxu0 0.0
    %2927 = vmatpush1.msra.mxu0 0.0
    %2928 = vmatprep.subr.mxu0 0.0
    %2929 = vmatpush1.msra.mxu0 0.0
    %2930 = vmatprep.subr.mxu0 0.0
    %2931 = vmatpush1.msra.mxu0 0.0
    %2932 = vmatprep.subr.mxu0 %v1969
    %2933 = vmatpush1.msra.mxu0 %v1967
    %2934 = vmatprep.subr.mxu0 0.0
    %2935 = vmatpush2.msra.mxu0 0.0
    %2936 = vmatprep.subr.mxu0 0.0
    %2937 = vmatpush2.msra.mxu0 0.0
    %2938 = vmatprep.subr.mxu0 0.0
    %2939 = vmatpush2.msra.mxu0 0.0
    %2940 = vmatprep.subr.mxu0 0.0
    %2941 = vmatpush2.msra.mxu0 0.0
    %2942 = vmatprep.subr.mxu0 0.0
    %2943 = vmatpush2.msra.mxu0 0.0
    %2944 = vmatprep.subr.mxu0 0.0
    %2945 = vmatpush2.msra.mxu0 0.0
    %2946 = vmatprep.subr.mxu0 0.0
    %2947 = vmatpush2.msra.mxu0 0.0
    %2948 = vmatprep.subr.mxu0 0.0
    %2949 = vmatpush2.msra.mxu0 0.0
    %2950 = vmatprep.subr.mxu0 0.0
    %2951 = vmatpush2.msra.mxu0 0.0
    %2952 = vmatprep.subr.mxu0 0.0
    %2953 = vmatpush2.msra.mxu0 0.0
    %2954 = vmatprep.subr.mxu0 0.0
    %2955 = vmatpush2.msra.mxu0 0.0
    %2956 = vmatprep.subr.mxu0 0.0
    %2957 = vmatpush2.msra.mxu0 0.0
    %2958 = vmatprep.subr.mxu0 0.0
    %2959 = vmatpush2.msra.mxu0 0.0
    %2960 = vmatprep.subr.mxu0 0.0
    %2961 = vmatpush2.msra.mxu0 0.0
    %2962 = vmatprep.subr.mxu0 0.0
    %2963 = vmatpush2.msra.mxu0 0.0
    %2964 = vmatprep.subr.mxu0 0.0
    %2965 = vmatpush2.msra.mxu0 0.0
    %2966 = vmatprep.mubr.f32.mxu0 0.0
    %2967 = vmatmul.mubr.f32.gmra.mxu0 %v2829
    %v2968 = vpop.f32.mrf.mxu0
    %v2969 = vadd.f32 0.0, %v2968
    %v2970 = vpop.f32.mrf.mxu0
    %v2971 = vadd.f32 0.0, %v2970
    %2972 = vdwg.mxu0
    %v2981 = vrot.slane %v2898, 7
    %vm2982 = vcmask 1041409
    %v2983 = vsel %vm2982, %v2981, %v2721
    %v2984 = vrot.slane %v2900, 7
    %v2985 = vsel %vm2982, %v2984, %v2723
    %v2986 = vrot.slane %v2969, 7
    %v2987 = vsel %vm2982, %v2986, %v2792
    %v2988 = vrot.slane %v2971, 7
    %v2989 = vsel %vm2982, %v2988, %v2794
    %v2994 = vrot.slane %v2721, 7
    %v2995 = vrot.slane %v2898, 6
    %vm2996 = vcmask 1043459
    %v2997 = vsel %vm2996, %v2995, %v2994
    %v2998 = vrot.slane %v2723, 7
    %v2999 = vrot.slane %v2900, 6
    %v3000 = vsel %vm2996, %v2999, %v2998
    %v3001 = vrot.slane %v2792, 7
    %v3002 = vrot.slane %v2969, 6
    %v3003 = vsel %vm2996, %v3002, %v3001
    %v3004 = vrot.slane %v2794, 7
    %v3005 = vrot.slane %v2971, 6
    %v3006 = vsel %vm2996, %v3005, %v3004
    %vm3011 = vcmask 1041408
    %v3012 = vsel %vm3011, %v2983, %v2997
    %v3013 = vsel %vm3011, %v2985, %v3000
    %v3014 = vsel %vm3011, %v2987, %v3003
    %v3015 = vsel %vm3011, %v2989, %v3006
    %v3016 = vpack.c.bf16 %v3012, %v3012
    %v3017 = vpack.c.bf16 %v3013, %v3013
    %v3018 = vpack.c.bf16 %v3014, %v3014
    %v3019 = vpack.c.bf16 %v3015, %v3015
    %v3020 = vld [vmem:[%s7] sm:$0xff]
    %v3021 = vld [vmem:[%s7 + $0x8] sm:$0xff]
    %v3022 = vld [vmem:[%s7 + $0x10] sm:$0xff]
    %v3023 = vld [vmem:[%s7 + $0x18] sm:$0xff]
    %v3024 = vld [vmem:[%s7 + $0x20] sm:$0xff]
    %v3025 = vld [vmem:[%s7 + $0x28] sm:$0xff]
    %v3026 = vld [vmem:[%s7 + $0x30] sm:$0xff]
    %v3027 = vld [vmem:[%s7 + $0x38] sm:$0xff]
    %v3028 = vld [vmem:[%s7 + $0x40] sm:$0xff]
    %v3029 = vld [vmem:[%s7 + $0x48] sm:$0xff]
    %v3030 = vld [vmem:[%s7 + $0x50] sm:$0xff]
    %v3031 = vld [vmem:[%s7 + $0x58] sm:$0xff]
    %v3032 = vld [vmem:[%s7 + $0x60] sm:$0xff]
    %v3033 = vld [vmem:[%s7 + $0x68] sm:$0xff]
    %v3034 = vld [vmem:[%s7 + $0x70] sm:$0xff]
    %v3035 = vld [vmem:[%s7 + $0x78] sm:$0xff]
    %v3036 = vld [vmem:[%s7 + $0x80] sm:$0xff]
    %v3037 = vld [vmem:[%s7 + $0x88] sm:$0xff]
    %v3038 = vld [vmem:[%s7 + $0x90] sm:$0xff]
    %v3039 = vld [vmem:[%s7 + $0x98] sm:$0xff]
    %v3040 = vld [vmem:[%s7 + $0xa0] sm:$0xff]
    %v3041 = vld [vmem:[%s7 + $0xa8] sm:$0xff]
    %v3042 = vld [vmem:[%s7 + $0xb0] sm:$0xff]
    %v3043 = vld [vmem:[%s7 + $0xb8] sm:$0xff]
    %v3044 = vld [vmem:[%s7 + $0xc0] sm:$0xff]
    %v3045 = vld [vmem:[%s7 + $0xc8] sm:$0xff]
    %v3046 = vld [vmem:[%s7 + $0xd0] sm:$0xff]
    %v3047 = vld [vmem:[%s7 + $0xd8] sm:$0xff]
    %v3048 = vld [vmem:[%s7 + $0xe0] sm:$0xff]
    %v3049 = vld [vmem:[%s7 + $0xe8] sm:$0xff]
    %v3050 = vld [vmem:[%s7 + $0xf0] sm:$0xff]
    %v3051 = vld [vmem:[%s7 + $0xf8] sm:$0xff]
    %v3052 = vld [vmem:[%s7 + $0x100] sm:$0xff]
    %v3053 = vld [vmem:[%s7 + $0x108] sm:$0xff]
    %v3054 = vld [vmem:[%s7 + $0x110] sm:$0xff]
    %v3055 = vld [vmem:[%s7 + $0x118] sm:$0xff]
    %v3056 = vld [vmem:[%s7 + $0x120] sm:$0xff]
    %v3057 = vld [vmem:[%s7 + $0x128] sm:$0xff]
    %v3058 = vld [vmem:[%s7 + $0x130] sm:$0xff]
    %v3059 = vld [vmem:[%s7 + $0x138] sm:$0xff]
    %v3060 = vld [vmem:[%s7 + $0x140] sm:$0xff]
    %v3061 = vld [vmem:[%s7 + $0x148] sm:$0xff]
    %v3062 = vld [vmem:[%s7 + $0x150] sm:$0xff]
    %v3063 = vld [vmem:[%s7 + $0x158] sm:$0xff]
    %v3064 = vld [vmem:[%s7 + $0x160] sm:$0xff]
    %v3065 = vld [vmem:[%s7 + $0x168] sm:$0xff]
    %v3066 = vld [vmem:[%s7 + $0x170] sm:$0xff]
    %v3067 = vld [vmem:[%s7 + $0x178] sm:$0xff]
    %v3068 = vld [vmem:[%s7 + $0x180] sm:$0xff]
    %v3069 = vld [vmem:[%s7 + $0x188] sm:$0xff]
    %v3070 = vld [vmem:[%s7 + $0x190] sm:$0xff]
    %v3071 = vld [vmem:[%s7 + $0x198] sm:$0xff]
    %v3072 = vld [vmem:[%s7 + $0x1a0] sm:$0xff]
    %v3073 = vld [vmem:[%s7 + $0x1a8] sm:$0xff]
    %v3074 = vld [vmem:[%s7 + $0x1b0] sm:$0xff]
    %v3075 = vld [vmem:[%s7 + $0x1b8] sm:$0xff]
    %v3076 = vld [vmem:[%s7 + $0x1c0] sm:$0xff]
    %v3077 = vld [vmem:[%s7 + $0x1c8] sm:$0xff]
    %v3078 = vld [vmem:[%s7 + $0x1d0] sm:$0xff]
    %v3079 = vld [vmem:[%s7 + $0x1d8] sm:$0xff]
    %v3080 = vld [vmem:[%s7 + $0x1e0] sm:$0xff]
    %v3081 = vld [vmem:[%s7 + $0x1e8] sm:$0xff]
    %v3082 = vld [vmem:[%s7 + $0x1f0] sm:$0xff]
    %v3083 = vld [vmem:[%s7 + $0x1f8] sm:$0xff]
    %v3084 = vld [vmem:[%s7 + $0x200] sm:$0xff]
    %v3085 = vld [vmem:[%s7 + $0x208] sm:$0xff]
    %v3086 = vld [vmem:[%s7 + $0x210] sm:$0xff]
    %v3087 = vld [vmem:[%s7 + $0x218] sm:$0xff]
    %v3088 = vld [vmem:[%s7 + $0x220] sm:$0xff]
    %v3089 = vld [vmem:[%s7 + $0x228] sm:$0xff]
    %v3090 = vld [vmem:[%s7 + $0x230] sm:$0xff]
    %v3091 = vld [vmem:[%s7 + $0x238] sm:$0xff]
    %v3092 = vld [vmem:[%s7 + $0x240] sm:$0xff]
    %v3093 = vld [vmem:[%s7 + $0x248] sm:$0xff]
    %v3094 = vld [vmem:[%s7 + $0x250] sm:$0xff]
    %v3095 = vld [vmem:[%s7 + $0x258] sm:$0xff]
    %v3096 = vld [vmem:[%s7 + $0x260] sm:$0xff]
    %v3097 = vld [vmem:[%s7 + $0x268] sm:$0xff]
    %v3098 = vld [vmem:[%s7 + $0x270] sm:$0xff]
    %v3099 = vld [vmem:[%s7 + $0x278] sm:$0xff]
    %v3100 = vld [vmem:[%s7 + $0x280] sm:$0xff]
    %v3101 = vld [vmem:[%s7 + $0x288] sm:$0xff]
    %v3102 = vld [vmem:[%s7 + $0x290] sm:$0xff]
    %v3103 = vld [vmem:[%s7 + $0x298] sm:$0xff]
    %v3104 = vld [vmem:[%s7 + $0x2a0] sm:$0xff]
    %v3105 = vld [vmem:[%s7 + $0x2a8] sm:$0xff]
    %v3106 = vld [vmem:[%s7 + $0x2b0] sm:$0xff]
    %v3107 = vld [vmem:[%s7 + $0x2b8] sm:$0xff]
    %v3108 = vld [vmem:[%s7 + $0x2c0] sm:$0xff]
    %v3109 = vld [vmem:[%s7 + $0x2c8] sm:$0xff]
    %v3110 = vld [vmem:[%s7 + $0x2d0] sm:$0xff]
    %v3111 = vld [vmem:[%s7 + $0x2d8] sm:$0xff]
    %v3112 = vld [vmem:[%s7 + $0x2e0] sm:$0xff]
    %v3113 = vld [vmem:[%s7 + $0x2e8] sm:$0xff]
    %v3114 = vld [vmem:[%s7 + $0x2f0] sm:$0xff]
    %v3115 = vld [vmem:[%s7 + $0x2f8] sm:$0xff]
    %v3116 = vld [vmem:[%s7 + $0x300] sm:$0xff]
    %v3117 = vld [vmem:[%s7 + $0x308] sm:$0xff]
    %v3118 = vld [vmem:[%s7 + $0x310] sm:$0xff]
    %v3119 = vld [vmem:[%s7 + $0x318] sm:$0xff]
    %v3120 = vld [vmem:[%s7 + $0x320] sm:$0xff]
    %v3121 = vld [vmem:[%s7 + $0x328] sm:$0xff]
    %v3122 = vld [vmem:[%s7 + $0x330] sm:$0xff]
    %v3123 = vld [vmem:[%s7 + $0x338] sm:$0xff]
    %v3124 = vld [vmem:[%s7 + $0x340] sm:$0xff]
    %v3125 = vld [vmem:[%s7 + $0x348] sm:$0xff]
    %v3126 = vld [vmem:[%s7 + $0x350] sm:$0xff]
    %v3127 = vld [vmem:[%s7 + $0x358] sm:$0xff]
    %v3128 = vld [vmem:[%s7 + $0x360] sm:$0xff]
    %v3129 = vld [vmem:[%s7 + $0x368] sm:$0xff]
    %v3130 = vld [vmem:[%s7 + $0x370] sm:$0xff]
    %v3131 = vld [vmem:[%s7 + $0x378] sm:$0xff]
    %v3132 = vld [vmem:[%s7 + $0x380] sm:$0xff]
    %v3133 = vld [vmem:[%s7 + $0x388] sm:$0xff]
    %v3134 = vld [vmem:[%s7 + $0x390] sm:$0xff]
    %v3135 = vld [vmem:[%s7 + $0x398] sm:$0xff]
    %v3136 = vld [vmem:[%s7 + $0x3a0] sm:$0xff]
    %v3137 = vld [vmem:[%s7 + $0x3a8] sm:$0xff]
    %v3138 = vld [vmem:[%s7 + $0x3b0] sm:$0xff]
    %v3139 = vld [vmem:[%s7 + $0x3b8] sm:$0xff]
    %v3140 = vld [vmem:[%s7 + $0x3c0] sm:$0xff]
    %v3141 = vld [vmem:[%s7 + $0x3c8] sm:$0xff]
    %v3142 = vld [vmem:[%s7 + $0x3d0] sm:$0xff]
    %v3143 = vld [vmem:[%s7 + $0x3d8] sm:$0xff]
    %v3144 = vld [vmem:[%s7 + $0x3e0] sm:$0xff]
    %v3145 = vld [vmem:[%s7 + $0x3e8] sm:$0xff]
    %v3146 = vld [vmem:[%s7 + $0x3f0] sm:$0xff]
    %v3147 = vld [vmem:[%s7 + $0x3f8] sm:$0xff]
    %v3148 = vld [vmem:[%s8] sm:$0xf]
    %v3150 = vlaneseq
    %v3151 = vshrl.u32 %v3150, 7
    %v3152 = vsub.s32 0, %v3151
    %v3153 = vrot.slane %v3148, %v3152
    %v3154 = vlaneseq
    %v3155 = vshrl.u32 %v3154, 7
    %v3156 = vsub.s32 1, %v3155
    %v3157 = vrot.slane %v3148, %v3156
    %v3158 = vlaneseq
    %v3159 = vshrl.u32 %v3158, 7
    %v3160 = vsub.s32 2, %v3159
    %v3161 = vrot.slane %v3148, %v3160
    %v3162 = vlaneseq
    %v3163 = vshrl.u32 %v3162, 7
    %v3164 = vsub.s32 3, %v3163
    %v3165 = vrot.slane %v3148, %v3164
    %v3298 = vunpack.c.l.b16 %v3020
    %v3299 = vunpack.c.h.b16 %v3020
    %v3300 = vunpack.c.l.b16 %v3021
    %v3301 = vunpack.c.h.b16 %v3021
    %v3302 = vunpack.c.l.b16 %v3022
    %v3303 = vunpack.c.h.b16 %v3022
    %v3304 = vunpack.c.l.b16 %v3023
    %v3305 = vunpack.c.h.b16 %v3023
    %v3306 = vunpack.c.l.b16 %v3024
    %v3307 = vunpack.c.h.b16 %v3024
    %v3308 = vunpack.c.l.b16 %v3025
    %v3309 = vunpack.c.h.b16 %v3025
    %v3310 = vunpack.c.l.b16 %v3026
    %v3311 = vunpack.c.h.b16 %v3026
    %v3312 = vunpack.c.l.b16 %v3027
    %v3313 = vunpack.c.h.b16 %v3027
    %v3314 = vunpack.c.l.b16 %v3028
    %v3315 = vunpack.c.h.b16 %v3028
    %v3316 = vunpack.c.l.b16 %v3029
    %v3317 = vunpack.c.h.b16 %v3029
    %v3318 = vunpack.c.l.b16 %v3030
    %v3319 = vunpack.c.h.b16 %v3030
    %v3320 = vunpack.c.l.b16 %v3031
    %v3321 = vunpack.c.h.b16 %v3031
    %v3322 = vunpack.c.l.b16 %v3032
    %v3323 = vunpack.c.h.b16 %v3032
    %v3324 = vunpack.c.l.b16 %v3033
    %v3325 = vunpack.c.h.b16 %v3033
    %v3326 = vunpack.c.l.b16 %v3034
    %v3327 = vunpack.c.h.b16 %v3034
    %v3328 = vunpack.c.l.b16 %v3035
    %v3329 = vunpack.c.h.b16 %v3035
    %v3330 = vunpack.c.l.b16 %v3036
    %v3331 = vunpack.c.h.b16 %v3036
    %v3332 = vunpack.c.l.b16 %v3037
    %v3333 = vunpack.c.h.b16 %v3037
    %v3334 = vunpack.c.l.b16 %v3038
    %v3335 = vunpack.c.h.b16 %v3038
    %v3336 = vunpack.c.l.b16 %v3039
    %v3337 = vunpack.c.h.b16 %v3039
    %v3338 = vunpack.c.l.b16 %v3040
    %v3339 = vunpack.c.h.b16 %v3040
    %v3340 = vunpack.c.l.b16 %v3041
    %v3341 = vunpack.c.h.b16 %v3041
    %v3342 = vunpack.c.l.b16 %v3042
    %v3343 = vunpack.c.h.b16 %v3042
    %v3344 = vunpack.c.l.b16 %v3043
    %v3345 = vunpack.c.h.b16 %v3043
    %v3346 = vunpack.c.l.b16 %v3044
    %v3347 = vunpack.c.h.b16 %v3044
    %v3348 = vunpack.c.l.b16 %v3045
    %v3349 = vunpack.c.h.b16 %v3045
    %v3350 = vunpack.c.l.b16 %v3046
    %v3351 = vunpack.c.h.b16 %v3046
    %v3352 = vunpack.c.l.b16 %v3047
    %v3353 = vunpack.c.h.b16 %v3047
    %v3354 = vunpack.c.l.b16 %v3048
    %v3355 = vunpack.c.h.b16 %v3048
    %v3356 = vunpack.c.l.b16 %v3049
    %v3357 = vunpack.c.h.b16 %v3049
    %v3358 = vunpack.c.l.b16 %v3050
    %v3359 = vunpack.c.h.b16 %v3050
    %v3360 = vunpack.c.l.b16 %v3051
    %v3361 = vunpack.c.h.b16 %v3051
    %v3362 = vunpack.c.l.b16 %v3052
    %v3363 = vunpack.c.h.b16 %v3052
    %v3364 = vunpack.c.l.b16 %v3053
    %v3365 = vunpack.c.h.b16 %v3053
    %v3366 = vunpack.c.l.b16 %v3054
    %v3367 = vunpack.c.h.b16 %v3054
    %v3368 = vunpack.c.l.b16 %v3055
    %v3369 = vunpack.c.h.b16 %v3055
    %v3370 = vunpack.c.l.b16 %v3056
    %v3371 = vunpack.c.h.b16 %v3056
    %v3372 = vunpack.c.l.b16 %v3057
    %v3373 = vunpack.c.h.b16 %v3057
    %v3374 = vunpack.c.l.b16 %v3058
    %v3375 = vunpack.c.h.b16 %v3058
    %v3376 = vunpack.c.l.b16 %v3059
    %v3377 = vunpack.c.h.b16 %v3059
    %v3378 = vunpack.c.l.b16 %v3060
    %v3379 = vunpack.c.h.b16 %v3060
    %v3380 = vunpack.c.l.b16 %v3061
    %v3381 = vunpack.c.h.b16 %v3061
    %v3382 = vunpack.c.l.b16 %v3062
    %v3383 = vunpack.c.h.b16 %v3062
    %v3384 = vunpack.c.l.b16 %v3063
    %v3385 = vunpack.c.h.b16 %v3063
    %v3386 = vunpack.c.l.b16 %v3064
    %v3387 = vunpack.c.h.b16 %v3064
    %v3388 = vunpack.c.l.b16 %v3065
    %v3389 = vunpack.c.h.b16 %v3065
    %v3390 = vunpack.c.l.b16 %v3066
    %v3391 = vunpack.c.h.b16 %v3066
    %v3392 = vunpack.c.l.b16 %v3067
    %v3393 = vunpack.c.h.b16 %v3067
    %v3394 = vunpack.c.l.b16 %v3068
    %v3395 = vunpack.c.h.b16 %v3068
    %v3396 = vunpack.c.l.b16 %v3069
    %v3397 = vunpack.c.h.b16 %v3069
    %v3398 = vunpack.c.l.b16 %v3070
    %v3399 = vunpack.c.h.b16 %v3070
    %v3400 = vunpack.c.l.b16 %v3071
    %v3401 = vunpack.c.h.b16 %v3071
    %v3402 = vunpack.c.l.b16 %v3072
    %v3403 = vunpack.c.h.b16 %v3072
    %v3404 = vunpack.c.l.b16 %v3073
    %v3405 = vunpack.c.h.b16 %v3073
    %v3406 = vunpack.c.l.b16 %v3074
    %v3407 = vunpack.c.h.b16 %v3074
    %v3408 = vunpack.c.l.b16 %v3075
    %v3409 = vunpack.c.h.b16 %v3075
    %v3410 = vunpack.c.l.b16 %v3076
    %v3411 = vunpack.c.h.b16 %v3076
    %v3412 = vunpack.c.l.b16 %v3077
    %v3413 = vunpack.c.h.b16 %v3077
    %v3414 = vunpack.c.l.b16 %v3078
    %v3415 = vunpack.c.h.b16 %v3078
    %v3416 = vunpack.c.l.b16 %v3079
    %v3417 = vunpack.c.h.b16 %v3079
    %v3418 = vunpack.c.l.b16 %v3080
    %v3419 = vunpack.c.h.b16 %v3080
    %v3420 = vunpack.c.l.b16 %v3081
    %v3421 = vunpack.c.h.b16 %v3081
    %v3422 = vunpack.c.l.b16 %v3082
    %v3423 = vunpack.c.h.b16 %v3082
    %v3424 = vunpack.c.l.b16 %v3083
    %v3425 = vunpack.c.h.b16 %v3083
    %v3426 = vunpack.c.l.b16 %v3084
    %v3427 = vunpack.c.h.b16 %v3084
    %v3428 = vunpack.c.l.b16 %v3085
    %v3429 = vunpack.c.h.b16 %v3085
    %v3430 = vunpack.c.l.b16 %v3086
    %v3431 = vunpack.c.h.b16 %v3086
    %v3432 = vunpack.c.l.b16 %v3087
    %v3433 = vunpack.c.h.b16 %v3087
    %v3434 = vunpack.c.l.b16 %v3088
    %v3435 = vunpack.c.h.b16 %v3088
    %v3436 = vunpack.c.l.b16 %v3089
    %v3437 = vunpack.c.h.b16 %v3089
    %v3438 = vunpack.c.l.b16 %v3090
    %v3439 = vunpack.c.h.b16 %v3090
    %v3440 = vunpack.c.l.b16 %v3091
    %v3441 = vunpack.c.h.b16 %v3091
    %v3442 = vunpack.c.l.b16 %v3092
    %v3443 = vunpack.c.h.b16 %v3092
    %v3444 = vunpack.c.l.b16 %v3093
    %v3445 = vunpack.c.h.b16 %v3093
    %v3446 = vunpack.c.l.b16 %v3094
    %v3447 = vunpack.c.h.b16 %v3094
    %v3448 = vunpack.c.l.b16 %v3095
    %v3449 = vunpack.c.h.b16 %v3095
    %v3450 = vunpack.c.l.b16 %v3096
    %v3451 = vunpack.c.h.b16 %v3096
    %v3452 = vunpack.c.l.b16 %v3097
    %v3453 = vunpack.c.h.b16 %v3097
    %v3454 = vunpack.c.l.b16 %v3098
    %v3455 = vunpack.c.h.b16 %v3098
    %v3456 = vunpack.c.l.b16 %v3099
    %v3457 = vunpack.c.h.b16 %v3099
    %v3458 = vunpack.c.l.b16 %v3100
    %v3459 = vunpack.c.h.b16 %v3100
    %v3460 = vunpack.c.l.b16 %v3101
    %v3461 = vunpack.c.h.b16 %v3101
    %v3462 = vunpack.c.l.b16 %v3102
    %v3463 = vunpack.c.h.b16 %v3102
    %v3464 = vunpack.c.l.b16 %v3103
    %v3465 = vunpack.c.h.b16 %v3103
    %v3466 = vunpack.c.l.b16 %v3104
    %v3467 = vunpack.c.h.b16 %v3104
    %v3468 = vunpack.c.l.b16 %v3105
    %v3469 = vunpack.c.h.b16 %v3105
    %v3470 = vunpack.c.l.b16 %v3106
    %v3471 = vunpack.c.h.b16 %v3106
    %v3472 = vunpack.c.l.b16 %v3107
    %v3473 = vunpack.c.h.b16 %v3107
    %v3474 = vunpack.c.l.b16 %v3108
    %v3475 = vunpack.c.h.b16 %v3108
    %v3476 = vunpack.c.l.b16 %v3109
    %v3477 = vunpack.c.h.b16 %v3109
    %v3478 = vunpack.c.l.b16 %v3110
    %v3479 = vunpack.c.h.b16 %v3110
    %v3480 = vunpack.c.l.b16 %v3111
    %v3481 = vunpack.c.h.b16 %v3111
    %v3482 = vunpack.c.l.b16 %v3112
    %v3483 = vunpack.c.h.b16 %v3112
    %v3484 = vunpack.c.l.b16 %v3113
    %v3485 = vunpack.c.h.b16 %v3113
    %v3486 = vunpack.c.l.b16 %v3114
    %v3487 = vunpack.c.h.b16 %v3114
    %v3488 = vunpack.c.l.b16 %v3115
    %v3489 = vunpack.c.h.b16 %v3115
    %v3490 = vunpack.c.l.b16 %v3116
    %v3491 = vunpack.c.h.b16 %v3116
    %v3492 = vunpack.c.l.b16 %v3117
    %v3493 = vunpack.c.h.b16 %v3117
    %v3494 = vunpack.c.l.b16 %v3118
    %v3495 = vunpack.c.h.b16 %v3118
    %v3496 = vunpack.c.l.b16 %v3119
    %v3497 = vunpack.c.h.b16 %v3119
    %v3498 = vunpack.c.l.b16 %v3120
    %v3499 = vunpack.c.h.b16 %v3120
    %v3500 = vunpack.c.l.b16 %v3121
    %v3501 = vunpack.c.h.b16 %v3121
    %v3502 = vunpack.c.l.b16 %v3122
    %v3503 = vunpack.c.h.b16 %v3122
    %v3504 = vunpack.c.l.b16 %v3123
    %v3505 = vunpack.c.h.b16 %v3123
    %v3506 = vunpack.c.l.b16 %v3124
    %v3507 = vunpack.c.h.b16 %v3124
    %v3508 = vunpack.c.l.b16 %v3125
    %v3509 = vunpack.c.h.b16 %v3125
    %v3510 = vunpack.c.l.b16 %v3126
    %v3511 = vunpack.c.h.b16 %v3126
    %v3512 = vunpack.c.l.b16 %v3127
    %v3513 = vunpack.c.h.b16 %v3127
    %v3514 = vunpack.c.l.b16 %v3128
    %v3515 = vunpack.c.h.b16 %v3128
    %v3516 = vunpack.c.l.b16 %v3129
    %v3517 = vunpack.c.h.b16 %v3129
    %v3518 = vunpack.c.l.b16 %v3130
    %v3519 = vunpack.c.h.b16 %v3130
    %v3520 = vunpack.c.l.b16 %v3131
    %v3521 = vunpack.c.h.b16 %v3131
    %v3522 = vunpack.c.l.b16 %v3132
    %v3523 = vunpack.c.h.b16 %v3132
    %v3524 = vunpack.c.l.b16 %v3133
    %v3525 = vunpack.c.h.b16 %v3133
    %v3526 = vunpack.c.l.b16 %v3134
    %v3527 = vunpack.c.h.b16 %v3134
    %v3528 = vunpack.c.l.b16 %v3135
    %v3529 = vunpack.c.h.b16 %v3135
    %v3530 = vunpack.c.l.b16 %v3136
    %v3531 = vunpack.c.h.b16 %v3136
    %v3532 = vunpack.c.l.b16 %v3137
    %v3533 = vunpack.c.h.b16 %v3137
    %v3534 = vunpack.c.l.b16 %v3138
    %v3535 = vunpack.c.h.b16 %v3138
    %v3536 = vunpack.c.l.b16 %v3139
    %v3537 = vunpack.c.h.b16 %v3139
    %v3538 = vunpack.c.l.b16 %v3140
    %v3539 = vunpack.c.h.b16 %v3140
    %v3540 = vunpack.c.l.b16 %v3141
    %v3541 = vunpack.c.h.b16 %v3141
    %v3542 = vunpack.c.l.b16 %v3142
    %v3543 = vunpack.c.h.b16 %v3142
    %v3544 = vunpack.c.l.b16 %v3143
    %v3545 = vunpack.c.h.b16 %v3143
    %v3546 = vunpack.c.l.b16 %v3144
    %v3547 = vunpack.c.h.b16 %v3144
    %v3548 = vunpack.c.l.b16 %v3145
    %v3549 = vunpack.c.h.b16 %v3145
    %v3550 = vunpack.c.l.b16 %v3146
    %v3551 = vunpack.c.h.b16 %v3146
    %v3552 = vunpack.c.l.b16 %v3147
    %v3553 = vunpack.c.h.b16 %v3147
    %v3554 = vpack.c.b16 %v3302, %v3298
    %v3555 = vpack.c.b16 %v3303, %v3299
    %v3556 = vpack.c.b16 %v3304, %v3300
    %v3557 = vpack.c.b16 %v3305, %v3301
    %v3558 = vpack.c.b16 %v3310, %v3306
    %v3559 = vpack.c.b16 %v3311, %v3307
    %v3560 = vpack.c.b16 %v3312, %v3308
    %v3561 = vpack.c.b16 %v3313, %v3309
    %v3562 = vpack.c.b16 %v3318, %v3314
    %v3563 = vpack.c.b16 %v3319, %v3315
    %v3564 = vpack.c.b16 %v3320, %v3316
    %v3565 = vpack.c.b16 %v3321, %v3317
    %v3566 = vpack.c.b16 %v3326, %v3322
    %v3567 = vpack.c.b16 %v3327, %v3323
    %v3568 = vpack.c.b16 %v3328, %v3324
    %v3569 = vpack.c.b16 %v3329, %v3325
    %v3570 = vpack.c.b16 %v3334, %v3330
    %v3571 = vpack.c.b16 %v3335, %v3331
    %v3572 = vpack.c.b16 %v3336, %v3332
    %v3573 = vpack.c.b16 %v3337, %v3333
    %v3574 = vpack.c.b16 %v3342, %v3338
    %v3575 = vpack.c.b16 %v3343, %v3339
    %v3576 = vpack.c.b16 %v3344, %v3340
    %v3577 = vpack.c.b16 %v3345, %v3341
    %v3578 = vpack.c.b16 %v3350, %v3346
    %v3579 = vpack.c.b16 %v3351, %v3347
    %v3580 = vpack.c.b16 %v3352, %v3348
    %v3581 = vpack.c.b16 %v3353, %v3349
    %v3582 = vpack.c.b16 %v3358, %v3354
    %v3583 = vpack.c.b16 %v3359, %v3355
    %v3584 = vpack.c.b16 %v3360, %v3356
    %v3585 = vpack.c.b16 %v3361, %v3357
    %v3586 = vpack.c.b16 %v3366, %v3362
    %v3587 = vpack.c.b16 %v3367, %v3363
    %v3588 = vpack.c.b16 %v3368, %v3364
    %v3589 = vpack.c.b16 %v3369, %v3365
    %v3590 = vpack.c.b16 %v3374, %v3370
    %v3591 = vpack.c.b16 %v3375, %v3371
    %v3592 = vpack.c.b16 %v3376, %v3372
    %v3593 = vpack.c.b16 %v3377, %v3373
    %v3594 = vpack.c.b16 %v3382, %v3378
    %v3595 = vpack.c.b16 %v3383, %v3379
    %v3596 = vpack.c.b16 %v3384, %v3380
    %v3597 = vpack.c.b16 %v3385, %v3381
    %v3598 = vpack.c.b16 %v3390, %v3386
    %v3599 = vpack.c.b16 %v3391, %v3387
    %v3600 = vpack.c.b16 %v3392, %v3388
    %v3601 = vpack.c.b16 %v3393, %v3389
    %v3602 = vpack.c.b16 %v3398, %v3394
    %v3603 = vpack.c.b16 %v3399, %v3395
    %v3604 = vpack.c.b16 %v3400, %v3396
    %v3605 = vpack.c.b16 %v3401, %v3397
    %v3606 = vpack.c.b16 %v3406, %v3402
    %v3607 = vpack.c.b16 %v3407, %v3403
    %v3608 = vpack.c.b16 %v3408, %v3404
    %v3609 = vpack.c.b16 %v3409, %v3405
    %v3610 = vpack.c.b16 %v3414, %v3410
    %v3611 = vpack.c.b16 %v3415, %v3411
    %v3612 = vpack.c.b16 %v3416, %v3412
    %v3613 = vpack.c.b16 %v3417, %v3413
    %v3614 = vpack.c.b16 %v3422, %v3418
    %v3615 = vpack.c.b16 %v3423, %v3419
    %v3616 = vpack.c.b16 %v3424, %v3420
    %v3617 = vpack.c.b16 %v3425, %v3421
    %v3618 = vpack.c.b16 %v3430, %v3426
    %v3619 = vpack.c.b16 %v3431, %v3427
    %v3620 = vpack.c.b16 %v3432, %v3428
    %v3621 = vpack.c.b16 %v3433, %v3429
    %v3622 = vpack.c.b16 %v3438, %v3434
    %v3623 = vpack.c.b16 %v3439, %v3435
    %v3624 = vpack.c.b16 %v3440, %v3436
    %v3625 = vpack.c.b16 %v3441, %v3437
    %v3626 = vpack.c.b16 %v3446, %v3442
    %v3627 = vpack.c.b16 %v3447, %v3443
    %v3628 = vpack.c.b16 %v3448, %v3444
    %v3629 = vpack.c.b16 %v3449, %v3445
    %v3630 = vpack.c.b16 %v3454, %v3450
    %v3631 = vpack.c.b16 %v3455, %v3451
    %v3632 = vpack.c.b16 %v3456, %v3452
    %v3633 = vpack.c.b16 %v3457, %v3453
    %v3634 = vpack.c.b16 %v3462, %v3458
    %v3635 = vpack.c.b16 %v3463, %v3459
    %v3636 = vpack.c.b16 %v3464, %v3460
    %v3637 = vpack.c.b16 %v3465, %v3461
    %v3638 = vpack.c.b16 %v3470, %v3466
    %v3639 = vpack.c.b16 %v3471, %v3467
    %v3640 = vpack.c.b16 %v3472, %v3468
    %v3641 = vpack.c.b16 %v3473, %v3469
    %v3642 = vpack.c.b16 %v3478, %v3474
    %v3643 = vpack.c.b16 %v3479, %v3475
    %v3644 = vpack.c.b16 %v3480, %v3476
    %v3645 = vpack.c.b16 %v3481, %v3477
    %v3646 = vpack.c.b16 %v3486, %v3482
    %v3647 = vpack.c.b16 %v3487, %v3483
    %v3648 = vpack.c.b16 %v3488, %v3484
    %v3649 = vpack.c.b16 %v3489, %v3485
    %v3650 = vpack.c.b16 %v3494, %v3490
    %v3651 = vpack.c.b16 %v3495, %v3491
    %v3652 = vpack.c.b16 %v3496, %v3492
    %v3653 = vpack.c.b16 %v3497, %v3493
    %v3654 = vpack.c.b16 %v3502, %v3498
    %v3655 = vpack.c.b16 %v3503, %v3499
    %v3656 = vpack.c.b16 %v3504, %v3500
    %v3657 = vpack.c.b16 %v3505, %v3501
    %v3658 = vpack.c.b16 %v3510, %v3506
    %v3659 = vpack.c.b16 %v3511, %v3507
    %v3660 = vpack.c.b16 %v3512, %v3508
    %v3661 = vpack.c.b16 %v3513, %v3509
    %v3662 = vpack.c.b16 %v3518, %v3514
    %v3663 = vpack.c.b16 %v3519, %v3515
    %v3664 = vpack.c.b16 %v3520, %v3516
    %v3665 = vpack.c.b16 %v3521, %v3517
    %v3666 = vpack.c.b16 %v3526, %v3522
    %v3667 = vpack.c.b16 %v3527, %v3523
    %v3668 = vpack.c.b16 %v3528, %v3524
    %v3669 = vpack.c.b16 %v3529, %v3525
    %v3670 = vpack.c.b16 %v3534, %v3530
    %v3671 = vpack.c.b16 %v3535, %v3531
    %v3672 = vpack.c.b16 %v3536, %v3532
    %v3673 = vpack.c.b16 %v3537, %v3533
    %v3674 = vpack.c.b16 %v3542, %v3538
    %v3675 = vpack.c.b16 %v3543, %v3539
    %v3676 = vpack.c.b16 %v3544, %v3540
    %v3677 = vpack.c.b16 %v3545, %v3541
    %v3678 = vpack.c.b16 %v3550, %v3546
    %v3679 = vpack.c.b16 %v3551, %v3547
    %v3680 = vpack.c.b16 %v3552, %v3548
    %v3681 = vpack.c.b16 %v3553, %v3549
    %3810 = vmatprep.subr.bf16.mxu0 %v3583
    %3811 = vmatpush1.bf16.msra.mxu0 %v3582
    %3812 = vmatprep.subr.bf16.mxu0 %v3579
    %3813 = vmatpush1.bf16.msra.mxu0 %v3578
    %3814 = vmatprep.subr.bf16.mxu0 %v3575
    %3815 = vmatpush1.bf16.msra.mxu0 %v3574
    %3816 = vmatprep.subr.bf16.mxu0 %v3571
    %3817 = vmatpush1.bf16.msra.mxu0 %v3570
    %3818 = vmatprep.subr.bf16.mxu0 %v3567
    %3819 = vmatpush1.bf16.msra.mxu0 %v3566
    %3820 = vmatprep.subr.bf16.mxu0 %v3563
    %3821 = vmatpush1.bf16.msra.mxu0 %v3562
    %3822 = vmatprep.subr.bf16.mxu0 %v3559
    %3823 = vmatpush1.bf16.msra.mxu0 %v3558
    %3824 = vmatprep.subr.bf16.mxu0 %v3555
    %3825 = vmatpush1.bf16.msra.mxu0 %v3554
    %3826 = vmatprep.subr.bf16.mxu0 %v3615
    %3827 = vmatpush2.bf16.msra.mxu0 %v3614
    %3828 = vmatprep.subr.bf16.mxu0 %v3611
    %3829 = vmatpush2.bf16.msra.mxu0 %v3610
    %3830 = vmatprep.subr.bf16.mxu0 %v3607
    %3831 = vmatpush2.bf16.msra.mxu0 %v3606
    %3832 = vmatprep.subr.bf16.mxu0 %v3603
    %3833 = vmatpush2.bf16.msra.mxu0 %v3602
    %3834 = vmatprep.subr.bf16.mxu0 %v3599
    %3835 = vmatpush2.bf16.msra.mxu0 %v3598
    %3836 = vmatprep.subr.bf16.mxu0 %v3595
    %3837 = vmatpush2.bf16.msra.mxu0 %v3594
    %3838 = vmatprep.subr.bf16.mxu0 %v3591
    %3839 = vmatpush2.bf16.msra.mxu0 %v3590
    %3840 = vmatprep.subr.bf16.mxu0 %v3587
    %3841 = vmatpush2.bf16.msra.mxu0 %v3586
    %3842 = vmatprep.mubr.bf16.mxu0 %v3017
    %3843 = vmatmul.mubr.bf16.gmra.mxu0 %v3016
    %v3844 = vpop.f32.mrf.mxu0
    %v3845 = vadd.f32 %v3153, %v3844
    %v3846 = vpop.f32.mrf.mxu0
    %v3847 = vadd.f32 %v3157, %v3846
    %v3848 = vpop.f32.mrf.mxu0
    %v3849 = vpop.f32.mrf.mxu0
    %3850 = vdwg.mxu0
    %3851 = vmatprep.subr.bf16.mxu0 %v3647
    %3852 = vmatpush1.bf16.msra.mxu0 %v3646
    %3853 = vmatprep.subr.bf16.mxu0 %v3643
    %3854 = vmatpush1.bf16.msra.mxu0 %v3642
    %3855 = vmatprep.subr.bf16.mxu0 %v3639
    %3856 = vmatpush1.bf16.msra.mxu0 %v3638
    %3857 = vmatprep.subr.bf16.mxu0 %v3635
    %3858 = vmatpush1.bf16.msra.mxu0 %v3634
    %3859 = vmatprep.subr.bf16.mxu0 %v3631
    %3860 = vmatpush1.bf16.msra.mxu0 %v3630
    %3861 = vmatprep.subr.bf16.mxu0 %v3627
    %3862 = vmatpush1.bf16.msra.mxu0 %v3626
    %3863 = vmatprep.subr.bf16.mxu0 %v3623
    %3864 = vmatpush1.bf16.msra.mxu0 %v3622
    %3865 = vmatprep.subr.bf16.mxu0 %v3619
    %3866 = vmatpush1.bf16.msra.mxu0 %v3618
    %3867 = vmatprep.subr.bf16.mxu0 %v3679
    %3868 = vmatpush2.bf16.msra.mxu0 %v3678
    %3869 = vmatprep.subr.bf16.mxu0 %v3675
    %3870 = vmatpush2.bf16.msra.mxu0 %v3674
    %3871 = vmatprep.subr.bf16.mxu0 %v3671
    %3872 = vmatpush2.bf16.msra.mxu0 %v3670
    %3873 = vmatprep.subr.bf16.mxu0 %v3667
    %3874 = vmatpush2.bf16.msra.mxu0 %v3666
    %3875 = vmatprep.subr.bf16.mxu0 %v3663
    %3876 = vmatpush2.bf16.msra.mxu0 %v3662
    %3877 = vmatprep.subr.bf16.mxu0 %v3659
    %3878 = vmatpush2.bf16.msra.mxu0 %v3658
    %3879 = vmatprep.subr.bf16.mxu0 %v3655
    %3880 = vmatpush2.bf16.msra.mxu0 %v3654
    %3881 = vmatprep.subr.bf16.mxu0 %v3651
    %3882 = vmatpush2.bf16.msra.mxu0 %v3650
    %3883 = vmatprep.mubr.bf16.mxu0 %v3019
    %3884 = vmatmul.mubr.bf16.gmra.mxu0 %v3018
    %v3885 = vpop.f32.mrf.mxu0
    %v3886 = vadd.f32 %v3845, %v3885
    %v3887 = vpop.f32.mrf.mxu0
    %v3888 = vadd.f32 %v3847, %v3887
    %v3889 = vpop.f32.mrf.mxu0
    %v3890 = vpop.f32.mrf.mxu0
    %3891 = vdwg.mxu0
    %3892 = vmatprep.subr.bf16.mxu0 %v3585
    %3893 = vmatpush1.bf16.msra.mxu0 %v3584
    %3894 = vmatprep.subr.bf16.mxu0 %v3581
    %3895 = vmatpush1.bf16.msra.mxu0 %v3580
    %3896 = vmatprep.subr.bf16.mxu0 %v3577
    %3897 = vmatpush1.bf16.msra.mxu0 %v3576
    %3898 = vmatprep.subr.bf16.mxu0 %v3573
    %3899 = vmatpush1.bf16.msra.mxu0 %v3572
    %3900 = vmatprep.subr.bf16.mxu0 %v3569
    %3901 = vmatpush1.bf16.msra.mxu0 %v3568
    %3902 = vmatprep.subr.bf16.mxu0 %v3565
    %3903 = vmatpush1.bf16.msra.mxu0 %v3564
    %3904 = vmatprep.subr.bf16.mxu0 %v3561
    %3905 = vmatpush1.bf16.msra.mxu0 %v3560
    %3906 = vmatprep.subr.bf16.mxu0 %v3557
    %3907 = vmatpush1.bf16.msra.mxu0 %v3556
    %3908 = vmatprep.subr.bf16.mxu0 %v3617
    %3909 = vmatpush2.bf16.msra.mxu0 %v3616
    %3910 = vmatprep.subr.bf16.mxu0 %v3613
    %3911 = vmatpush2.bf16.msra.mxu0 %v3612
    %3912 = vmatprep.subr.bf16.mxu0 %v3609
    %3913 = vmatpush2.bf16.msra.mxu0 %v3608
    %3914 = vmatprep.subr.bf16.mxu0 %v3605
    %3915 = vmatpush2.bf16.msra.mxu0 %v3604
    %3916 = vmatprep.subr.bf16.mxu0 %v3601
    %3917 = vmatpush2.bf16.msra.mxu0 %v3600
    %3918 = vmatprep.subr.bf16.mxu0 %v3597
    %3919 = vmatpush2.bf16.msra.mxu0 %v3596
    %3920 = vmatprep.subr.bf16.mxu0 %v3593
    %3921 = vmatpush2.bf16.msra.mxu0 %v3592
    %3922 = vmatprep.subr.bf16.mxu0 %v3589
    %3923 = vmatpush2.bf16.msra.mxu0 %v3588
    %3924 = vmatprep.mubr.bf16.mxu0 %v3017
    %3925 = vmatmul.mubr.bf16.gmra.mxu0 %v3016
    %v3926 = vpop.f32.mrf.mxu0
    %v3927 = vadd.f32 %v3161, %v3926
    %v3928 = vpop.f32.mrf.mxu0
    %v3929 = vadd.f32 %v3165, %v3928
    %v3930 = vpop.f32.mrf.mxu0
    %v3931 = vpop.f32.mrf.mxu0
    %3932 = vdwg.mxu0
    %3933 = vmatprep.subr.bf16.mxu0 %v3649
    %3934 = vmatpush1.bf16.msra.mxu0 %v3648
    %3935 = vmatprep.subr.bf16.mxu0 %v3645
    %3936 = vmatpush1.bf16.msra.mxu0 %v3644
    %3937 = vmatprep.subr.bf16.mxu0 %v3641
    %3938 = vmatpush1.bf16.msra.mxu0 %v3640
    %3939 = vmatprep.subr.bf16.mxu0 %v3637
    %3940 = vmatpush1.bf16.msra.mxu0 %v3636
    %3941 = vmatprep.subr.bf16.mxu0 %v3633
    %3942 = vmatpush1.bf16.msra.mxu0 %v3632
    %3943 = vmatprep.subr.bf16.mxu0 %v3629
    %3944 = vmatpush1.bf16.msra.mxu0 %v3628
    %3945 = vmatprep.subr.bf16.mxu0 %v3625
    %3946 = vmatpush1.bf16.msra.mxu0 %v3624
    %3947 = vmatprep.subr.bf16.mxu0 %v3621
    %3948 = vmatpush1.bf16.msra.mxu0 %v3620
    %3949 = vmatprep.subr.bf16.mxu0 %v3681
    %3950 = vmatpush2.bf16.msra.mxu0 %v3680
    %3951 = vmatprep.subr.bf16.mxu0 %v3677
    %3952 = vmatpush2.bf16.msra.mxu0 %v3676
    %3953 = vmatprep.subr.bf16.mxu0 %v3673
    %3954 = vmatpush2.bf16.msra.mxu0 %v3672
    %3955 = vmatprep.subr.bf16.mxu0 %v3669
    %3956 = vmatpush2.bf16.msra.mxu0 %v3668
    %3957 = vmatprep.subr.bf16.mxu0 %v3665
    %3958 = vmatpush2.bf16.msra.mxu0 %v3664
    %3959 = vmatprep.subr.bf16.mxu0 %v3661
    %3960 = vmatpush2.bf16.msra.mxu0 %v3660
    %3961 = vmatprep.subr.bf16.mxu0 %v3657
    %3962 = vmatpush2.bf16.msra.mxu0 %v3656
    %3963 = vmatprep.subr.bf16.mxu0 %v3653
    %3964 = vmatpush2.bf16.msra.mxu0 %v3652
    %3965 = vmatprep.mubr.bf16.mxu0 %v3019
    %3966 = vmatmul.mubr.bf16.gmra.mxu0 %v3018
    %v3967 = vpop.f32.mrf.mxu0
    %v3968 = vadd.f32 %v3927, %v3967
    %v3969 = vpop.f32.mrf.mxu0
    %v3970 = vadd.f32 %v3929, %v3969
    %v3971 = vpop.f32.mrf.mxu0
    %v3972 = vpop.f32.mrf.mxu0
    %3973 = vdwg.mxu0
    %v3974 = vmax.f32 %v3886, 0.0
    %v3975 = vmax.f32 %v3888, 0.0
    %v3976 = vmax.f32 %v3968, 0.0
    %v3977 = vmax.f32 %v3970, 0.0
    %v3978 = vpack.c.bf16 %v3974, %v3974
    %v3979 = vpack.c.bf16 %v3975, %v3975
    %v3980 = vpack.c.bf16 %v3976, %v3976
    %v3981 = vpack.c.bf16 %v3977, %v3977
    %v3982 = vld [vmem:[%s9] sm:$0xf]
    %v3983 = vld [vmem:[%s9 + $0x4] sm:$0xf]
    %v3984 = vld [vmem:[%s9 + $0x8] sm:$0xf]
    %v3985 = vld [vmem:[%s9 + $0xc] sm:$0xf]
    %v3986 = vld [vmem:[%s9 + $0x10] sm:$0xf]
    %v3987 = vld [vmem:[%s9 + $0x14] sm:$0xf]
    %v3988 = vld [vmem:[%s9 + $0x18] sm:$0xf]
    %v3989 = vld [vmem:[%s9 + $0x1c] sm:$0xf]
    %v3990 = vld [vmem:[%s9 + $0x20] sm:$0xf]
    %v3991 = vld [vmem:[%s9 + $0x24] sm:$0xf]
    %v3992 = vld [vmem:[%s9 + $0x28] sm:$0xf]
    %v3993 = vld [vmem:[%s9 + $0x2c] sm:$0xf]
    %v3994 = vld [vmem:[%s9 + $0x30] sm:$0xf]
    %v3995 = vld [vmem:[%s9 + $0x34] sm:$0xf]
    %v3996 = vld [vmem:[%s9 + $0x38] sm:$0xf]
    %v3997 = vld [vmem:[%s9 + $0x3c] sm:$0xf]
    %v3998 = vld [vmem:[%s9 + $0x40] sm:$0xf]
    %v3999 = vld [vmem:[%s9 + $0x44] sm:$0xf]
    %v4000 = vld [vmem:[%s9 + $0x48] sm:$0xf]
    %v4001 = vld [vmem:[%s9 + $0x4c] sm:$0xf]
    %v4002 = vld [vmem:[%s9 + $0x50] sm:$0xf]
    %v4003 = vld [vmem:[%s9 + $0x54] sm:$0xf]
    %v4004 = vld [vmem:[%s9 + $0x58] sm:$0xf]
    %v4005 = vld [vmem:[%s9 + $0x5c] sm:$0xf]
    %v4006 = vld [vmem:[%s9 + $0x60] sm:$0xf]
    %v4007 = vld [vmem:[%s9 + $0x64] sm:$0xf]
    %v4008 = vld [vmem:[%s9 + $0x68] sm:$0xf]
    %v4009 = vld [vmem:[%s9 + $0x6c] sm:$0xf]
    %v4010 = vld [vmem:[%s9 + $0x70] sm:$0xf]
    %v4011 = vld [vmem:[%s9 + $0x74] sm:$0xf]
    %v4012 = vld [vmem:[%s9 + $0x78] sm:$0xf]
    %v4013 = vld [vmem:[%s9 + $0x7c] sm:$0xf]
    %v4014 = vld [vmem:[%s9 + $0x80] sm:$0xf]
    %v4015 = vld [vmem:[%s9 + $0x84] sm:$0xf]
    %v4016 = vld [vmem:[%s9 + $0x88] sm:$0xf]
    %v4017 = vld [vmem:[%s9 + $0x8c] sm:$0xf]
    %v4018 = vld [vmem:[%s9 + $0x90] sm:$0xf]
    %v4019 = vld [vmem:[%s9 + $0x94] sm:$0xf]
    %v4020 = vld [vmem:[%s9 + $0x98] sm:$0xf]
    %v4021 = vld [vmem:[%s9 + $0x9c] sm:$0xf]
    %v4022 = vld [vmem:[%s9 + $0xa0] sm:$0xf]
    %v4023 = vld [vmem:[%s9 + $0xa4] sm:$0xf]
    %v4024 = vld [vmem:[%s9 + $0xa8] sm:$0xf]
    %v4025 = vld [vmem:[%s9 + $0xac] sm:$0xf]
    %v4026 = vld [vmem:[%s9 + $0xb0] sm:$0xf]
    %v4027 = vld [vmem:[%s9 + $0xb4] sm:$0xf]
    %v4028 = vld [vmem:[%s9 + $0xb8] sm:$0xf]
    %v4029 = vld [vmem:[%s9 + $0xbc] sm:$0xf]
    %v4030 = vld [vmem:[%s9 + $0xc0] sm:$0xf]
    %v4031 = vld [vmem:[%s9 + $0xc4] sm:$0xf]
    %v4032 = vld [vmem:[%s9 + $0xc8] sm:$0xf]
    %v4033 = vld [vmem:[%s9 + $0xcc] sm:$0xf]
    %v4034 = vld [vmem:[%s9 + $0xd0] sm:$0xf]
    %v4035 = vld [vmem:[%s9 + $0xd4] sm:$0xf]
    %v4036 = vld [vmem:[%s9 + $0xd8] sm:$0xf]
    %v4037 = vld [vmem:[%s9 + $0xdc] sm:$0xf]
    %v4038 = vld [vmem:[%s9 + $0xe0] sm:$0xf]
    %v4039 = vld [vmem:[%s9 + $0xe4] sm:$0xf]
    %v4040 = vld [vmem:[%s9 + $0xe8] sm:$0xf]
    %v4041 = vld [vmem:[%s9 + $0xec] sm:$0xf]
    %v4042 = vld [vmem:[%s9 + $0xf0] sm:$0xf]
    %v4043 = vld [vmem:[%s9 + $0xf4] sm:$0xf]
    %v4044 = vld [vmem:[%s9 + $0xf8] sm:$0xf]
    %v4045 = vld [vmem:[%s9 + $0xfc] sm:$0xf]
    %v4110 = vunpack.c.l.b16 %v3982
    %v4111 = vunpack.c.l.b16 %v3983
    %v4112 = vunpack.c.l.b16 %v3984
    %v4113 = vunpack.c.l.b16 %v3985
    %v4114 = vunpack.c.l.b16 %v3986
    %v4115 = vunpack.c.l.b16 %v3987
    %v4116 = vunpack.c.l.b16 %v3988
    %v4117 = vunpack.c.l.b16 %v3989
    %v4118 = vunpack.c.l.b16 %v3990
    %v4119 = vunpack.c.l.b16 %v3991
    %v4120 = vunpack.c.l.b16 %v3992
    %v4121 = vunpack.c.l.b16 %v3993
    %v4122 = vunpack.c.l.b16 %v3994
    %v4123 = vunpack.c.l.b16 %v3995
    %v4124 = vunpack.c.l.b16 %v3996
    %v4125 = vunpack.c.l.b16 %v3997
    %v4126 = vunpack.c.l.b16 %v3998
    %v4127 = vunpack.c.l.b16 %v3999
    %v4128 = vunpack.c.l.b16 %v4000
    %v4129 = vunpack.c.l.b16 %v4001
    %v4130 = vunpack.c.l.b16 %v4002
    %v4131 = vunpack.c.l.b16 %v4003
    %v4132 = vunpack.c.l.b16 %v4004
    %v4133 = vunpack.c.l.b16 %v4005
    %v4134 = vunpack.c.l.b16 %v4006
    %v4135 = vunpack.c.l.b16 %v4007
    %v4136 = vunpack.c.l.b16 %v4008
    %v4137 = vunpack.c.l.b16 %v4009
    %v4138 = vunpack.c.l.b16 %v4010
    %v4139 = vunpack.c.l.b16 %v4011
    %v4140 = vunpack.c.l.b16 %v4012
    %v4141 = vunpack.c.l.b16 %v4013
    %v4142 = vunpack.c.l.b16 %v4014
    %v4143 = vunpack.c.l.b16 %v4015
    %v4144 = vunpack.c.l.b16 %v4016
    %v4145 = vunpack.c.l.b16 %v4017
    %v4146 = vunpack.c.l.b16 %v4018
    %v4147 = vunpack.c.l.b16 %v4019
    %v4148 = vunpack.c.l.b16 %v4020
    %v4149 = vunpack.c.l.b16 %v4021
    %v4150 = vunpack.c.l.b16 %v4022
    %v4151 = vunpack.c.l.b16 %v4023
    %v4152 = vunpack.c.l.b16 %v4024
    %v4153 = vunpack.c.l.b16 %v4025
    %v4154 = vunpack.c.l.b16 %v4026
    %v4155 = vunpack.c.l.b16 %v4027
    %v4156 = vunpack.c.l.b16 %v4028
    %v4157 = vunpack.c.l.b16 %v4029
    %v4158 = vunpack.c.l.b16 %v4030
    %v4159 = vunpack.c.l.b16 %v4031
    %v4160 = vunpack.c.l.b16 %v4032
    %v4161 = vunpack.c.l.b16 %v4033
    %v4162 = vunpack.c.l.b16 %v4034
    %v4163 = vunpack.c.l.b16 %v4035
    %v4164 = vunpack.c.l.b16 %v4036
    %v4165 = vunpack.c.l.b16 %v4037
    %v4166 = vunpack.c.l.b16 %v4038
    %v4167 = vunpack.c.l.b16 %v4039
    %v4168 = vunpack.c.l.b16 %v4040
    %v4169 = vunpack.c.l.b16 %v4041
    %v4170 = vunpack.c.l.b16 %v4042
    %v4171 = vunpack.c.l.b16 %v4043
    %v4172 = vunpack.c.l.b16 %v4044
    %v4173 = vunpack.c.l.b16 %v4045
    %v4174 = vpack.c.b16 %v4111, %v4110
    %v4175 = vpack.c.b16 %v4113, %v4112
    %v4176 = vpack.c.b16 %v4115, %v4114
    %v4177 = vpack.c.b16 %v4117, %v4116
    %v4178 = vpack.c.b16 %v4119, %v4118
    %v4179 = vpack.c.b16 %v4121, %v4120
    %v4180 = vpack.c.b16 %v4123, %v4122
    %v4181 = vpack.c.b16 %v4125, %v4124
    %v4182 = vpack.c.b16 %v4127, %v4126
    %v4183 = vpack.c.b16 %v4129, %v4128
    %v4184 = vpack.c.b16 %v4131, %v4130
    %v4185 = vpack.c.b16 %v4133, %v4132
    %v4186 = vpack.c.b16 %v4135, %v4134
    %v4187 = vpack.c.b16 %v4137, %v4136
    %v4188 = vpack.c.b16 %v4139, %v4138
    %v4189 = vpack.c.b16 %v4141, %v4140
    %v4190 = vpack.c.b16 %v4143, %v4142
    %v4191 = vpack.c.b16 %v4145, %v4144
    %v4192 = vpack.c.b16 %v4147, %v4146
    %v4193 = vpack.c.b16 %v4149, %v4148
    %v4194 = vpack.c.b16 %v4151, %v4150
    %v4195 = vpack.c.b16 %v4153, %v4152
    %v4196 = vpack.c.b16 %v4155, %v4154
    %v4197 = vpack.c.b16 %v4157, %v4156
    %v4198 = vpack.c.b16 %v4159, %v4158
    %v4199 = vpack.c.b16 %v4161, %v4160
    %v4200 = vpack.c.b16 %v4163, %v4162
    %v4201 = vpack.c.b16 %v4165, %v4164
    %v4202 = vpack.c.b16 %v4167, %v4166
    %v4203 = vpack.c.b16 %v4169, %v4168
    %v4204 = vpack.c.b16 %v4171, %v4170
    %v4205 = vpack.c.b16 %v4173, %v4172
    %4238 = vmatprep.subr.bf16.mxu0 0
    %4239 = vmatpush1.bf16.msra.mxu0 %v4181
    %4240 = vmatprep.subr.bf16.mxu0 0
    %4241 = vmatpush1.bf16.msra.mxu0 %v4180
    %4242 = vmatprep.subr.bf16.mxu0 0
    %4243 = vmatpush1.bf16.msra.mxu0 %v4179
    %4244 = vmatprep.subr.bf16.mxu0 0
    %4245 = vmatpush1.bf16.msra.mxu0 %v4178
    %4246 = vmatprep.subr.bf16.mxu0 0
    %4247 = vmatpush1.bf16.msra.mxu0 %v4177
    %4248 = vmatprep.subr.bf16.mxu0 0
    %4249 = vmatpush1.bf16.msra.mxu0 %v4176
    %4250 = vmatprep.subr.bf16.mxu0 0
    %4251 = vmatpush1.bf16.msra.mxu0 %v4175
    %4252 = vmatprep.subr.bf16.mxu0 0
    %4253 = vmatpush1.bf16.msra.mxu0 %v4174
    %4254 = vmatprep.subr.bf16.mxu0 0
    %4255 = vmatpush2.bf16.msra.mxu0 %v4189
    %4256 = vmatprep.subr.bf16.mxu0 0
    %4257 = vmatpush2.bf16.msra.mxu0 %v4188
    %4258 = vmatprep.subr.bf16.mxu0 0
    %4259 = vmatpush2.bf16.msra.mxu0 %v4187
    %4260 = vmatprep.subr.bf16.mxu0 0
    %4261 = vmatpush2.bf16.msra.mxu0 %v4186
    %4262 = vmatprep.subr.bf16.mxu0 0
    %4263 = vmatpush2.bf16.msra.mxu0 %v4185
    %4264 = vmatprep.subr.bf16.mxu0 0
    %4265 = vmatpush2.bf16.msra.mxu0 %v4184
    %4266 = vmatprep.subr.bf16.mxu0 0
    %4267 = vmatpush2.bf16.msra.mxu0 %v4183
    %4268 = vmatprep.subr.bf16.mxu0 0
    %4269 = vmatpush2.bf16.msra.mxu0 %v4182
    %4270 = vmatprep.mubr.bf16.mxu0 %v3979
    %4271 = vmatmul.mubr.bf16.gmra.mxu0 %v3978
    %v4272 = vpop.f32.mrf.mxu0
    %v4273 = vadd.f32 0.0, %v4272
    %v4274 = vpop.f32.mrf.mxu0
    %v4275 = vpop.f32.mrf.mxu0
    %v4276 = vpop.f32.mrf.mxu0
    %4277 = vdwg.mxu0
    %4278 = vmatprep.subr.bf16.mxu0 0
    %4279 = vmatpush1.bf16.msra.mxu0 %v4197
    %4280 = vmatprep.subr.bf16.mxu0 0
    %4281 = vmatpush1.bf16.msra.mxu0 %v4196
    %4282 = vmatprep.subr.bf16.mxu0 0
    %4283 = vmatpush1.bf16.msra.mxu0 %v4195
    %4284 = vmatprep.subr.bf16.mxu0 0
    %4285 = vmatpush1.bf16.msra.mxu0 %v4194
    %4286 = vmatprep.subr.bf16.mxu0 0
    %4287 = vmatpush1.bf16.msra.mxu0 %v4193
    %4288 = vmatprep.subr.bf16.mxu0 0
    %4289 = vmatpush1.bf16.msra.mxu0 %v4192
    %4290 = vmatprep.subr.bf16.mxu0 0
    %4291 = vmatpush1.bf16.msra.mxu0 %v4191
    %4292 = vmatprep.subr.bf16.mxu0 0
    %4293 = vmatpush1.bf16.msra.mxu0 %v4190
    %4294 = vmatprep.subr.bf16.mxu0 0
    %4295 = vmatpush2.bf16.msra.mxu0 %v4205
    %4296 = vmatprep.subr.bf16.mxu0 0
    %4297 = vmatpush2.bf16.msra.mxu0 %v4204
    %4298 = vmatprep.subr.bf16.mxu0 0
    %4299 = vmatpush2.bf16.msra.mxu0 %v4203
    %4300 = vmatprep.subr.bf16.mxu0 0
    %4301 = vmatpush2.bf16.msra.mxu0 %v4202
    %4302 = vmatprep.subr.bf16.mxu0 0
    %4303 = vmatpush2.bf16.msra.mxu0 %v4201
    %4304 = vmatprep.subr.bf16.mxu0 0
    %4305 = vmatpush2.bf16.msra.mxu0 %v4200
    %4306 = vmatprep.subr.bf16.mxu0 0
    %4307 = vmatpush2.bf16.msra.mxu0 %v4199
    %4308 = vmatprep.subr.bf16.mxu0 0
    %4309 = vmatpush2.bf16.msra.mxu0 %v4198
    %4310 = vmatprep.mubr.bf16.mxu0 %v3981
    %4311 = vmatmul.mubr.bf16.gmra.mxu0 %v3980
    %v4312 = vpop.f32.mrf.mxu0
    %v4313 = vadd.f32 %v4273, %v4312
    %v4314 = vpop.f32.mrf.mxu0
    %v4315 = vpop.f32.mrf.mxu0
    %v4316 = vpop.f32.mrf.mxu0
    %4317 = vdwg.mxu0
    %v4318 = vld [vmem:[%s11] sm:$0x1]
    %4320 = vset.pattern.permute.xlu0 0
    %4321 = vperm.xlu0 %4320, %v4313
    %v4322 = vpop.permute.xlu0 %4321
    %v4325 = vlaneseq
    %v4326 = vshrl.u32 %v4325, 7
    %v4327 = vsub.s32 0, %v4326
    %v4328 = vrot.slane %v4318, %v4327
    %v4330 = vadd.f32 %v4322, %v4328
    %v4331 = vxor.u32 %v4330, 2147483648
    %v4332 = vmul.f32 %v4331, 1.442695
    %v4333 = vpow.pop %v4332
    %v4334 = vadd.f32 %v4333, 1.0
    %v4335 = vrcp.pop %v4334
    %v4336 = vmul.f32 1.0, %v4335
    %v4337 = vld [vmem:[%s10] sm:$0x1]
    %v4339 = vlaneseq
    %v4340 = vshrl.u32 %v4339, 7
    %v4341 = vsub.s32 0, %v4340
    %v4342 = vrot.slane %v4337, %v4341
    %4343 = vrot.lane.b32.xlu0 %v4342, 1
    %v4344 = vpop.permute.xlu0 %4343
    %v4346 = vadd.f32 %v4313, %v4344
    %4348 = vrot.lane.b32.xlu0 %v4336, 4
    %v4349 = vpop.permute.xlu0 %4348
    %v4352 = vrot.slane %v4346, 2
    %4353 = vrot.lane.b32.xlu0 %v4352, 7
    %v4354 = vpop.permute.xlu0 %4353
    %4358 = vset.pattern.permute.xlu0 0
    %4359 = vperm.xlu0 %4358, %v2616
    %v4360 = vpop.permute.xlu0 %4359
    %4361 = vset.pattern.permute.xlu0 0
    %4362 = vperm.xlu0 %4361, %v2617
    %v4363 = vpop.permute.xlu0 %4362
    %v4364 = vlaneseq
    %v4365 = vand.u32 %v4364, 127
    %v4366 = vadd.s32 %v4365, 4294967281
    %v4367 = vlaneseq
    %v4368 = vshrl.u32 %v4367, 7
    %v4369 = vsub.s32 %v4366, %v4368
    %v4370 = vrot.slane %v4360, %v4369
    %v4371 = vlaneseq
    %v4372 = vshrl.u32 %v4371, 7
    %v4373 = vsub.s32 %v4366, %v4372
    %v4374 = vrot.slane %v4363, %v4373
    %v4375 = vsel %vm2982, %v4374, %v4370
    %4377 = vset.pattern.permute.xlu0 1
    %4378 = vperm.xlu0 %4377, %v2616
    %v4379 = vpop.permute.xlu0 %4378
    %4380 = vset.pattern.permute.xlu0 1
    %4381 = vperm.xlu0 %4380, %v2617
    %v4382 = vpop.permute.xlu0 %4381
    %v4383 = vadd.s32 %v4365, 4294967273
    %v4384 = vlaneseq
    %v4385 = vshrl.u32 %v4384, 7
    %v4386 = vsub.s32 %v4383, %v4385
    %v4387 = vrot.slane %v4379, %v4386
    %v4388 = vlaneseq
    %v4389 = vshrl.u32 %v4388, 7
    %v4390 = vsub.s32 %v4383, %v4389
    %v4391 = vrot.slane %v4382, %v4390
    %v4392 = vsel %vm2982, %v4391, %v4387
    %vm4394 = vcmask 31744
    %v4395 = vsel %vm4394, %v4330, %v4349
    %v4396 = vsel %vm2650, %v4395, %v4354
    %vm4397 = vcmask 121856
    %v4398 = vsel %vm4397, %v4396, %v4375
    %vm4399 = vcmask 187392
    %v4400 = vsel %vm4399, %v4398, %v4392
    %vm4401 = vcmask 252928
    %v4402 = vsel %vm4401, %v4400, 0.0
    %4403 = vst [vmem:[%s13] sm:$0x3] %v4402
    // Predicated region
    $region50: #{_net_forward_impl.1} parent=1 // pred_check
      _
    $region51: #{_net_forward_impl.1} parent=1 // pred_check_branch
      %4405 = sbr.rel (0) target = $region53
    $region52: #{_net_forward_impl.1} parent=1 // pred_region
      %s4407 = ssub.s32 1024, 1024
      %4408 = vsyncadd [#allocation3], %s4407
      %s4409 = sshll.u32 [#allocation2], 4
      %s4410 = int_to_ptr.vmem [resolvable:$true] %s4409
      %4415 = dma.vmem_to_hbm [thread:$0]  %s4410, 1024, %s12, [#allocation3], 512, 512, 32
    $region53: #{_net_forward_impl.1} parent=1 // pred_fallthru
      _
    // Predicated region
    $region54: #{_net_forward_impl.1} parent=1 // pred_check
      _
    $region55: #{_net_forward_impl.1} parent=1 // pred_check_branch
      %4417 = sbr.rel (0) target = $region57
    $region56: #{_net_forward_impl.1} parent=1 // pred_region
      _
    $region57: #{_net_forward_impl.1} parent=1 // pred_fallthru
      _
    // Predicated region
    $region58: #{_net_forward_impl.1} parent=1 // pred_check
      _
    $region59: #{_net_forward_impl.1} parent=1 // pred_check_branch
      %4419 = sbr.rel (0) target = $region61
    $region60: #{_net_forward_impl.1} parent=1 // pred_region
      %4420 = dma.done [#allocation3], 1024
    $region61: #{_net_forward_impl.1} parent=1 // pred_fallthru
      _
    // Predicated region
    $region62: #{_net_forward_impl.1} parent=1 // pred_check
      _
    $region63: #{_net_forward_impl.1} parent=1 // pred_check_branch
      %4422 = sbr.rel (0) target = $region65
    $region64: #{_net_forward_impl.1} parent=1 // pred_region
      _
    $region65: #{_net_forward_impl.1} parent=1 // pred_fallthru
      _
    %4423 = vsyncpa [#allocation3], 1

// kernel: _net_forward_impl.1
$region0: #{_net_forward_impl.1}
  #allocation0 [shape = 'u32[]', space=smem, size = 0x4, offset = 0x4, fixed_abs, tag = 'smem constant byte address 0x4 - core index']
  #allocation1 [shape = 'u32[144,128]{1,0:T(1,128)}', space=vmem, size = 0x12000, scoped, tag = 'internal scratch']
  %s0 = inlined_call_operand.vmem [shape: f32[16,1024], index: 0, kind: input, shape index: {}]
  %s1 = inlined_call_operand.vmem [shape: bf16[1024,512], index: 1, kind: input, shape index: {}]
  %s2 = inlined_call_operand.vmem [shape: f32[1,512], index: 2, kind: input, shape index: {}]
  %s3 = inlined_call_operand.vmem [shape: bf16[512,256], index: 3, kind: input, shape index: {}]
  %s4 = inlined_call_operand.vmem [shape: f32[1,256], index: 4, kind: input, shape index: {}]
  %s5 = inlined_call_operand.vmem [shape: f32[128,2], index: 5, kind: input, shape index: {}]
  %s6 = inlined_call_operand.vmem [shape: f32[1,2], index: 6, kind: input, shape index: {}]
  %s7 = inlined_call_operand.vmem [shape: bf16[512,512], index: 7, kind: input, shape index: {}]
  %s8 = inlined_call_operand.vmem [shape: f32[1,512], index: 8, kind: input, shape index: {}]
  %s9 = inlined_call_operand.vmem [shape: bf16[512,8], index: 9, kind: input, shape index: {}]
  %s10 = inlined_call_operand.vmem [shape: f32[1,7], index: 10, kind: input, shape index: {}]
  %s11 = inlined_call_operand.vmem [shape: f32[1,4], index: 11, kind: input, shape index: {}]
  %s12 = inlined_call_operand.hbm [shape: f32[16,512], index: 12, kind: output, shape index: {0}]
  %s13 = inlined_call_operand.vmem [shape: f32[2,128], index: 13, kind: output, shape index: {1}]
  %14 = xla_tuple %s12, %s13
  %s15 = sld [smem:[#allocation0]]
  $region66: #{_net_forward_impl.1} parent=0
    _
  %s17 = ssub.s32 1, %s15
  %s18 = scalar_select 0, %s17, %s15
  $region1: #{_net_forward_impl.1} parent=0
    #allocation2 [shape = 'u8[32768]{0}', space=vmem, size = 0x8000, scoped, tag = 'output window, operand 0, single buffered']
    #allocation3 [shape = 's32[1]{0}', space=sflag, size = 0x4, scoped, tag = 'scoped memory for _net_forward_impl.1']
    %19 = vsyncpa [#allocation3], 0
    // Predicated region
    $region2: #{_net_forward_impl.1} parent=1 // pred_check
      _
    $region3: #{_net_forward_impl.1} parent=1 // pred_check_branch
      %21 = sbr.rel (0) target = $region5
    $region4: #{_net_forward_impl.1} parent=1 // pred_region
      _
    $region5: #{_net_forward_impl.1} parent=1 // pred_fallthru
      _
    // Predicated region
    $region6: #{_net_forward_impl.1} parent=1 // pred_check
      _
    $region7: #{_net_forward_impl.1} parent=1 // pred_check_branch
      %23 = sbr.rel (0) target = $region9
    $region8: #{_net_forward_impl.1} parent=1 // pred_region
      _
    $region9: #{_net_forward_impl.1} parent=1 // pred_fallthru
      _
    // Predicated region
    $region10: #{_net_forward_impl.1} parent=1 // pred_check
      _
    $region11: #{_net_forward_impl.1} parent=1 // pred_check_branch
      %25 = sbr.rel (0) target = $region13
    $region12: #{_net_forward_impl.1} parent=1 // pred_region
      _
    $region13: #{_net_forward_impl.1} parent=1 // pred_fallthru
      _
    // Predicated region
    $region14: #{_net_forward_impl.1} parent=1 // pred_check
      _
    $region15: #{_net_forward_impl.1} parent=1 // pred_check_branch
      %27 = sbr.rel (0) target = $region17
    $region16: #{_net_forward_impl.1} parent=1 // pred_region
      _
    $region17: #{_net_forward_impl.1} parent=1 // pred_fallthru
      _
    // Predicated region
    $region18: #{_net_forward_impl.1} parent=1 // pred_check
      _
    $region19: #{_net_forward_impl.1} parent=1 // pred_check_branch
      %29 = sbr.rel (0) target = $region21
    $region20: #{_net_forward_impl.1} parent=1 // pred_region
      _
    $region21: #{_net_forward_impl.1} parent=1 // pred_fallthru
      _
    // Predicated region
    $region22: #{_net_forward_impl.1} parent=1 // pred_check
      _
    $region23: #{_net_forward_impl.1} parent=1 // pred_check_branch
      %31 = sbr.rel (0) target = $region25
    $region24: #{_net_forward_impl.1} parent=1 // pred_region
      _
    $region25: #{_net_forward_impl.1} parent=1 // pred_fallthru
      _
    // Predicated region
    $region26: #{_net_forward_impl.1} parent=1 // pred_check
      _
    $region27: #{_net_forward_impl.1} parent=1 // pred_check_branch
      %33 = sbr.rel (0) target = $region29
    $region28: #{_net_forward_impl.1} parent=1 // pred_region
      _
    $region29: #{_net_forward_impl.1} parent=1 // pred_fallthru
      _
    // Predicated region
    $region30: #{_net_forward_impl.1} parent=1 // pred_check
      _
    $region31: #{_net_forward_impl.1} parent=1 // pred_check_branch
      %35 = sbr.rel (0) target = $region33
    $region32: #{_net_forward_impl.1} parent=1 // pred_region
      _
    $region33: #{_net_forward_impl.1} parent=1 // pred_fallthru
      _
    // Predicated region
    $region34: #{_net_forward_impl.1} parent=1 // pred_check
      _
    $region35: #{_net_forward_impl.1} parent=1 // pred_check_branch
      %37 = sbr.rel (0) target = $region37
    $region36: #{_net_forward_impl.1} parent=1 // pred_region
      _
    $region37: #{_net_forward_impl.1} parent=1 // pred_fallthru
      _
    // Predicated region
    $region38: #{_net_forward_impl.1} parent=1 // pred_check
      _
    $region39: #{_net_forward_impl.1} parent=1 // pred_check_branch
      %39 = sbr.rel (0) target = $region41
    $region40: #{_net_forward_impl.1} parent=1 // pred_region
      _
    $region41: #{_net_forward_impl.1} parent=1 // pred_fallthru
      _
    // Predicated region
    $region42: #{_net_forward_impl.1} parent=1 // pred_check
      _
    $region43: #{_net_forward_impl.1} parent=1 // pred_check_branch
      %41 = sbr.rel (0) target = $region45
    $region44: #{_net_forward_impl.1} parent=1 // pred_region
      _
    $region45: #{_net_forward_impl.1} parent=1 // pred_fallthru
      _
    // Predicated region
    $region46: #{_net_forward_impl.1} parent=1 // pred_check
      _
    $region47: #{_net_forward_impl.1} parent=1 // pred_check_branch
      %43 = sbr.rel (0) target = $region49
    $region48: #{_net_forward_impl.1} parent=1 // pred_region
      _
    $region49: #{_net_forward_impl.1} parent=1 // pred_fallthru
      _
    %v45 = vld [vmem:[%s0] sm:$0xff]
    %v46 = vld [vmem:[%s0 + $0x8] sm:$0xff]
    %v47 = vld [vmem:[%s0 + $0x10] sm:$0xff]
    %v48 = vld [vmem:[%s0 + $0x18] sm:$0xff]
    %v49 = vld [vmem:[%s0 + $0x20] sm:$0xff]
    %v50 = vld [vmem:[%s0 + $0x28] sm:$0xff]
    %v51 = vld [vmem:[%s0 + $0x30] sm:$0xff]
    %v52 = vld [vmem:[%s0 + $0x38] sm:$0xff]
    %v53 = vld [vmem:[%s0 + $0x40] sm:$0xff]
    %v54 = vld [vmem:[%s0 + $0x48] sm:$0xff]
    %v55 = vld [vmem:[%s0 + $0x50] sm:$0xff]
    %v56 = vld [vmem:[%s0 + $0x58] sm:$0xff]
    %v57 = vld [vmem:[%s0 + $0x60] sm:$0xff]
    %v58 = vld [vmem:[%s0 + $0x68] sm:$0xff]
    %v59 = vld [vmem:[%s0 + $0x70] sm:$0xff]
    %v60 = vld [vmem:[%s0 + $0x78] sm:$0xff]
    %v61 = vpack.c.bf16 %v53, %v45
    %v62 = vpack.c.bf16 %v54, %v46
    %v63 = vpack.c.bf16 %v55, %v47
    %v64 = vpack.c.bf16 %v56, %v48
    %v65 = vpack.c.bf16 %v57, %v49
    %v66 = vpack.c.bf16 %v58, %v50
    %v67 = vpack.c.bf16 %v59, %v51
    %v68 = vpack.c.bf16 %v60, %v52
    %v69 = vld [vmem:[%s1] sm:$0xff]
    %v70 = vld [vmem:[%s1 + $0x8] sm:$0xff]
    %v71 = vld [vmem:[%s1 + $0x10] sm:$0xff]
    %v72 = vld [vmem:[%s1 + $0x18] sm:$0xff]
    %v73 = vld [vmem:[%s1 + $0x20] sm:$0xff]
    %v74 = vld [vmem:[%s1 + $0x28] sm:$0xff]
    %v75 = vld [vmem:[%s1 + $0x30] sm:$0xff]
    %v76 = vld [vmem:[%s1 + $0x38] sm:$0xff]
    %v77 = vld [vmem:[%s1 + $0x40] sm:$0xff]
    %v78 = vld [vmem:[%s1 + $0x48] sm:$0xff]
    %v79 = vld [vmem:[%s1 + $0x50] sm:$0xff]
    %v80 = vld [vmem:[%s1 + $0x58] sm:$0xff]
    %v81 = vld [vmem:[%s1 + $0x60] sm:$0xff]
    %v82 = vld [vmem:[%s1 + $0x68] sm:$0xff]
    %v83 = vld [vmem:[%s1 + $0x70] sm:$0xff]
    %v84 = vld [vmem:[%s1 + $0x78] sm:$0xff]
    %v85 = vld [vmem:[%s1 + $0x80] sm:$0xff]
    %v86 = vld [vmem:[%s1 + $0x88] sm:$0xff]
    %v87 = vld [vmem:[%s1 + $0x90] sm:$0xff]
    %v88 = vld [vmem:[%s1 + $0x98] sm:$0xff]
    %v89 = vld [vmem:[%s1 + $0xa0] sm:$0xff]
    %v90 = vld [vmem:[%s1 + $0xa8] sm:$0xff]
    %v91 = vld [vmem:[%s1 + $0xb0] sm:$0xff]
    %v92 = vld [vmem:[%s1 + $0xb8] sm:$0xff]
    %v93 = vld [vmem:[%s1 + $0xc0] sm:$0xff]
    %v94 = vld [vmem:[%s1 + $0xc8] sm:$0xff]
    %v95 = vld [vmem:[%s1 + $0xd0] sm:$0xff]
    %v96 = vld [vmem:[%s1 + $0xd8] sm:$0xff]
    %v97 = vld [vmem:[%s1 + $0xe0] sm:$0xff]
    %v98 = vld [vmem:[%s1 + $0xe8] sm:$0xff]
    %v99 = vld [vmem:[%s1 + $0xf0] sm:$0xff]
    %v100 = vld [vmem:[%s1 + $0xf8] sm:$0xff]
    %v101 = vld [vmem:[%s1 + $0x100] sm:$0xff]
    %v102 = vld [vmem:[%s1 + $0x108] sm:$0xff]
    %v103 = vld [vmem:[%s1 + $0x110] sm:$0xff]
    %v104 = vld [vmem:[%s1 + $0x118] sm:$0xff]
    %v105 = vld [vmem:[%s1 + $0x120] sm:$0xff]
    %v106 = vld [vmem:[%s1 + $0x128] sm:$0xff]
    %v107 = vld [vmem:[%s1 + $0x130] sm:$0xff]
    %v108 = vld [vmem:[%s1 + $0x138] sm:$0xff]
    %v109 = vld [vmem:[%s1 + $0x140] sm:$0xff]
    %v110 = vld [vmem:[%s1 + $0x148] sm:$0xff]
    %v111 = vld [vmem:[%s1 + $0x150] sm:$0xff]
    %v112 = vld [vmem:[%s1 + $0x158] sm:$0xff]
    %v113 = vld [vmem:[%s1 + $0x160] sm:$0xff]
    %v114 = vld [vmem:[%s1 + $0x168] sm:$0xff]
    %v115 = vld [vmem:[%s1 + $0x170] sm:$0xff]
    %v116 = vld [vmem:[%s1 + $0x178] sm:$0xff]
    %v117 = vld [vmem:[%s1 + $0x180] sm:$0xff]
    %v118 = vld [vmem:[%s1 + $0x188] sm:$0xff]
    %v119 = vld [vmem:[%s1 + $0x190] sm:$0xff]
    %v120 = vld [vmem:[%s1 + $0x198] sm:$0xff]
    %v121 = vld [vmem:[%s1 + $0x1a0] sm:$0xff]
    %v122 = vld [vmem:[%s1 + $0x1a8] sm:$0xff]
    %v123 = vld [vmem:[%s1 + $0x1b0] sm:$0xff]
    %v124 = vld [vmem:[%s1 + $0x1b8] sm:$0xff]
    %v125 = vld [vmem:[%s1 + $0x1c0] sm:$0xff]
    %v126 = vld [vmem:[%s1 + $0x1c8] sm:$0xff]
    %v127 = vld [vmem:[%s1 + $0x1d0] sm:$0xff]
    %v128 = vld [vmem:[%s1 + $0x1d8] sm:$0xff]
    %v129 = vld [vmem:[%s1 + $0x1e0] sm:$0xff]
    %v130 = vld [vmem:[%s1 + $0x1e8] sm:$0xff]
    %v131 = vld [vmem:[%s1 + $0x1f0] sm:$0xff]
    %v132 = vld [vmem:[%s1 + $0x1f8] sm:$0xff]
    %v133 = vld [vmem:[%s1 + $0x200] sm:$0xff]
    %v134 = vld [vmem:[%s1 + $0x208] sm:$0xff]
    %v135 = vld [vmem:[%s1 + $0x210] sm:$0xff]
    %v136 = vld [vmem:[%s1 + $0x218] sm:$0xff]
    %v137 = vld [vmem:[%s1 + $0x220] sm:$0xff]
    %v138 = vld [vmem:[%s1 + $0x228] sm:$0xff]
    %v139 = vld [vmem:[%s1 + $0x230] sm:$0xff]
    %v140 = vld [vmem:[%s1 + $0x238] sm:$0xff]
    %v141 = vld [vmem:[%s1 + $0x240] sm:$0xff]
    %v142 = vld [vmem:[%s1 + $0x248] sm:$0xff]
    %v143 = vld [vmem:[%s1 + $0x250] sm:$0xff]
    %v144 = vld [vmem:[%s1 + $0x258] sm:$0xff]
    %v145 = vld [vmem:[%s1 + $0x260] sm:$0xff]
    %v146 = vld [vmem:[%s1 + $0x268] sm:$0xff]
    %v147 = vld [vmem:[%s1 + $0x270] sm:$0xff]
    %v148 = vld [vmem:[%s1 + $0x278] sm:$0xff]
    %v149 = vld [vmem:[%s1 + $0x280] sm:$0xff]
    %v150 = vld [vmem:[%s1 + $0x288] sm:$0xff]
    %v151 = vld [vmem:[%s1 + $0x290] sm:$0xff]
    %v152 = vld [vmem:[%s1 + $0x298] sm:$0xff]
    %v153 = vld [vmem:[%s1 + $0x2a0] sm:$0xff]
    %v154 = vld [vmem:[%s1 + $0x2a8] sm:$0xff]
    %v155 = vld [vmem:[%s1 + $0x2b0] sm:$0xff]
    %v156 = vld [vmem:[%s1 + $0x2b8] sm:$0xff]
    %v157 = vld [vmem:[%s1 + $0x2c0] sm:$0xff]
    %v158 = vld [vmem:[%s1 + $0x2c8] sm:$0xff]
    %v159 = vld [vmem:[%s1 + $0x2d0] sm:$0xff]
    %v160 = vld [vmem:[%s1 + $0x2d8] sm:$0xff]
    %v161 = vld [vmem:[%s1 + $0x2e0] sm:$0xff]
    %v162 = vld [vmem:[%s1 + $0x2e8] sm:$0xff]
    %v163 = vld [vmem:[%s1 + $0x2f0] sm:$0xff]
    %v164 = vld [vmem:[%s1 + $0x2f8] sm:$0xff]
    %v165 = vld [vmem:[%s1 + $0x300] sm:$0xff]
    %v166 = vld [vmem:[%s1 + $0x308] sm:$0xff]
    %v167 = vld [vmem:[%s1 + $0x310] sm:$0xff]
    %v168 = vld [vmem:[%s1 + $0x318] sm:$0xff]
    %v169 = vld [vmem:[%s1 + $0x320] sm:$0xff]
    %v170 = vld [vmem:[%s1 + $0x328] sm:$0xff]
    %v171 = vld [vmem:[%s1 + $0x330] sm:$0xff]
    %v172 = vld [vmem:[%s1 + $0x338] sm:$0xff]
    %v173 = vld [vmem:[%s1 + $0x340] sm:$0xff]
    %v174 = vld [vmem:[%s1 + $0x348] sm:$0xff]
    %v175 = vld [vmem:[%s1 + $0x350] sm:$0xff]
    %v176 = vld [vmem:[%s1 + $0x358] sm:$0xff]
    %v177 = vld [vmem:[%s1 + $0x360] sm:$0xff]
    %v178 = vld [vmem:[%s1 + $0x368] sm:$0xff]
    %v179 = vld [vmem:[%s1 + $0x370] sm:$0xff]
    %v180 = vld [vmem:[%s1 + $0x378] sm:$0xff]
    %v181 = vld [vmem:[%s1 + $0x380] sm:$0xff]
    %v182 = vld [vmem:[%s1 + $0x388] sm:$0xff]
    %v183 = vld [vmem:[%s1 + $0x390] sm:$0xff]
    %v184 = vld [vmem:[%s1 + $0x398] sm:$0xff]
    %v185 = vld [vmem:[%s1 + $0x3a0] sm:$0xff]
    %v186 = vld [vmem:[%s1 + $0x3a8] sm:$0xff]
    %v187 = vld [vmem:[%s1 + $0x3b0] sm:$0xff]
    %v188 = vld [vmem:[%s1 + $0x3b8] sm:$0xff]
    %v189 = vld [vmem:[%s1 + $0x3c0] sm:$0xff]
    %v190 = vld [vmem:[%s1 + $0x3c8] sm:$0xff]
    %v191 = vld [vmem:[%s1 + $0x3d0] sm:$0xff]
    %v192 = vld [vmem:[%s1 + $0x3d8] sm:$0xff]
    %v193 = vld [vmem:[%s1 + $0x3e0] sm:$0xff]
    %v194 = vld [vmem:[%s1 + $0x3e8] sm:$0xff]
    %v195 = vld [vmem:[%s1 + $0x3f0] sm:$0xff]
    %v196 = vld [vmem:[%s1 + $0x3f8] sm:$0xff]
    %v197 = vld [vmem:[%s1 + $0x400] sm:$0xff]
    %v198 = vld [vmem:[%s1 + $0x408] sm:$0xff]
    %v199 = vld [vmem:[%s1 + $0x410] sm:$0xff]
    %v200 = vld [vmem:[%s1 + $0x418] sm:$0xff]
    %v201 = vld [vmem:[%s1 + $0x420] sm:$0xff]
    %v202 = vld [vmem:[%s1 + $0x428] sm:$0xff]
    %v203 = vld [vmem:[%s1 + $0x430] sm:$0xff]
    %v204 = vld [vmem:[%s1 + $0x438] sm:$0xff]
    %v205 = vld [vmem:[%s1 + $0x440] sm:$0xff]
    %v206 = vld [vmem:[%s1 + $0x448] sm:$0xff]
    %v207 = vld [vmem:[%s1 + $0x450] sm:$0xff]
    %v208 = vld [vmem:[%s1 + $0x458] sm:$0xff]
    %v209 = vld [vmem:[%s1 + $0x460] sm:$0xff]
    %v210 = vld [vmem:[%s1 + $0x468] sm:$0xff]
    %v211 = vld [vmem:[%s1 + $0x470] sm:$0xff]
    %v212 = vld [vmem:[%s1 + $0x478] sm:$0xff]
    %v213 = vld [vmem:[%s1 + $0x480] sm:$0xff]
    %v214 = vld [vmem:[%s1 + $0x488] sm:$0xff]
    %v215 = vld [vmem:[%s1 + $0x490] sm:$0xff]
    %v216 = vld [vmem:[%s1 + $0x498] sm:$0xff]
    %v217 = vld [vmem:[%s1 + $0x4a0] sm:$0xff]
    %v218 = vld [vmem:[%s1 + $0x4a8] sm:$0xff]
    %v219 = vld [vmem:[%s1 + $0x4b0] sm:$0xff]
    %v220 = vld [vmem:[%s1 + $0x4b8] sm:$0xff]
    %v221 = vld [vmem:[%s1 + $0x4c0] sm:$0xff]
    %v222 = vld [vmem:[%s1 + $0x4c8] sm:$0xff]
    %v223 = vld [vmem:[%s1 + $0x4d0] sm:$0xff]
    %v224 = vld [vmem:[%s1 + $0x4d8] sm:$0xff]
    %v225 = vld [vmem:[%s1 + $0x4e0] sm:$0xff]
    %v226 = vld [vmem:[%s1 + $0x4e8] sm:$0xff]
    %v227 = vld [vmem:[%s1 + $0x4f0] sm:$0xff]
    %v228 = vld [vmem:[%s1 + $0x4f8] sm:$0xff]
    %v229 = vld [vmem:[%s1 + $0x500] sm:$0xff]
    %v230 = vld [vmem:[%s1 + $0x508] sm:$0xff]
    %v231 = vld [vmem:[%s1 + $0x510] sm:$0xff]
    %v232 = vld [vmem:[%s1 + $0x518] sm:$0xff]
    %v233 = vld [vmem:[%s1 + $0x520] sm:$0xff]
    %v234 = vld [vmem:[%s1 + $0x528] sm:$0xff]
    %v235 = vld [vmem:[%s1 + $0x530] sm:$0xff]
    %v236 = vld [vmem:[%s1 + $0x538] sm:$0xff]
    %v237 = vld [vmem:[%s1 + $0x540] sm:$0xff]
    %v238 = vld [vmem:[%s1 + $0x548] sm:$0xff]
    %v239 = vld [vmem:[%s1 + $0x550] sm:$0xff]
    %v240 = vld [vmem:[%s1 + $0x558] sm:$0xff]
    %v241 = vld [vmem:[%s1 + $0x560] sm:$0xff]
    %v242 = vld [vmem:[%s1 + $0x568] sm:$0xff]
    %v243 = vld [vmem:[%s1 + $0x570] sm:$0xff]
    %v244 = vld [vmem:[%s1 + $0x578] sm:$0xff]
    %v245 = vld [vmem:[%s1 + $0x580] sm:$0xff]
    %v246 = vld [vmem:[%s1 + $0x588] sm:$0xff]
    %v247 = vld [vmem:[%s1 + $0x590] sm:$0xff]
    %v248 = vld [vmem:[%s1 + $0x598] sm:$0xff]
    %v249 = vld [vmem:[%s1 + $0x5a0] sm:$0xff]
    %v250 = vld [vmem:[%s1 + $0x5a8] sm:$0xff]
    %v251 = vld [vmem:[%s1 + $0x5b0] sm:$0xff]
    %v252 = vld [vmem:[%s1 + $0x5b8] sm:$0xff]
    %v253 = vld [vmem:[%s1 + $0x5c0] sm:$0xff]
    %v254 = vld [vmem:[%s1 + $0x5c8] sm:$0xff]
    %v255 = vld [vmem:[%s1 + $0x5d0] sm:$0xff]
    %v256 = vld [vmem:[%s1 + $0x5d8] sm:$0xff]
    %v257 = vld [vmem:[%s1 + $0x5e0] sm:$0xff]
    %v258 = vld [vmem:[%s1 + $0x5e8] sm:$0xff]
    %v259 = vld [vmem:[%s1 + $0x5f0] sm:$0xff]
    %v260 = vld [vmem:[%s1 + $0x5f8] sm:$0xff]
    %v261 = vld [vmem:[%s1 + $0x600] sm:$0xff]
    %v262 = vld [vmem:[%s1 + $0x608] sm:$0xff]
    %v263 = vld [vmem:[%s1 + $0x610] sm:$0xff]
    %v264 = vld [vmem:[%s1 + $0x618] sm:$0xff]
    %v265 = vld [vmem:[%s1 + $0x620] sm:$0xff]
    %v266 = vld [vmem:[%s1 + $0x628] sm:$0xff]
    %v267 = vld [vmem:[%s1 + $0x630] sm:$0xff]
    %v268 = vld [vmem:[%s1 + $0x638] sm:$0xff]
    %v269 = vld [vmem:[%s1 + $0x640] sm:$0xff]
    %v270 = vld [vmem:[%s1 + $0x648] sm:$0xff]
    %v271 = vld [vmem:[%s1 + $0x650] sm:$0xff]
    %v272 = vld [vmem:[%s1 + $0x658] sm:$0xff]
    %v273 = vld [vmem:[%s1 + $0x660] sm:$0xff]
    %v274 = vld [vmem:[%s1 + $0x668] sm:$0xff]
    %v275 = vld [vmem:[%s1 + $0x670] sm:$0xff]
    %v276 = vld [vmem:[%s1 + $0x678] sm:$0xff]
    %v277 = vld [vmem:[%s1 + $0x680] sm:$0xff]
    %v278 = vld [vmem:[%s1 + $0x688] sm:$0xff]
    %v279 = vld [vmem:[%s1 + $0x690] sm:$0xff]
    %v280 = vld [vmem:[%s1 + $0x698] sm:$0xff]
    %v281 = vld [vmem:[%s1 + $0x6a0] sm:$0xff]
    %v282 = vld [vmem:[%s1 + $0x6a8] sm:$0xff]
    %v283 = vld [vmem:[%s1 + $0x6b0] sm:$0xff]
    %v284 = vld [vmem:[%s1 + $0x6b8] sm:$0xff]
    %v285 = vld [vmem:[%s1 + $0x6c0] sm:$0xff]
    %v286 = vld [vmem:[%s1 + $0x6c8] sm:$0xff]
    %v287 = vld [vmem:[%s1 + $0x6d0] sm:$0xff]
    %v288 = vld [vmem:[%s1 + $0x6d8] sm:$0xff]
    %v289 = vld [vmem:[%s1 + $0x6e0] sm:$0xff]
    %v290 = vld [vmem:[%s1 + $0x6e8] sm:$0xff]
    %v291 = vld [vmem:[%s1 + $0x6f0] sm:$0xff]
    %v292 = vld [vmem:[%s1 + $0x6f8] sm:$0xff]
    %v293 = vld [vmem:[%s1 + $0x700] sm:$0xff]
    %v294 = vld [vmem:[%s1 + $0x708] sm:$0xff]
    %v295 = vld [vmem:[%s1 + $0x710] sm:$0xff]
    %v296 = vld [vmem:[%s1 + $0x718] sm:$0xff]
    %v297 = vld [vmem:[%s1 + $0x720] sm:$0xff]
    %v298 = vld [vmem:[%s1 + $0x728] sm:$0xff]
    %v299 = vld [vmem:[%s1 + $0x730] sm:$0xff]
    %v300 = vld [vmem:[%s1 + $0x738] sm:$0xff]
    %v301 = vld [vmem:[%s1 + $0x740] sm:$0xff]
    %v302 = vld [vmem:[%s1 + $0x748] sm:$0xff]
    %v303 = vld [vmem:[%s1 + $0x750] sm:$0xff]
    %v304 = vld [vmem:[%s1 + $0x758] sm:$0xff]
    %v305 = vld [vmem:[%s1 + $0x760] sm:$0xff]
    %v306 = vld [vmem:[%s1 + $0x768] sm:$0xff]
    %v307 = vld [vmem:[%s1 + $0x770] sm:$0xff]
    %v308 = vld [vmem:[%s1 + $0x778] sm:$0xff]
    %v309 = vld [vmem:[%s1 + $0x780] sm:$0xff]
    %v310 = vld [vmem:[%s1 + $0x788] sm:$0xff]
    %v311 = vld [vmem:[%s1 + $0x790] sm:$0xff]
    %v312 = vld [vmem:[%s1 + $0x798] sm:$0xff]
    %v313 = vld [vmem:[%s1 + $0x7a0] sm:$0xff]
    %v314 = vld [vmem:[%s1 + $0x7a8] sm:$0xff]
    %v315 = vld [vmem:[%s1 + $0x7b0] sm:$0xff]
    %v316 = vld [vmem:[%s1 + $0x7b8] sm:$0xff]
    %v317 = vld [vmem:[%s1 + $0x7c0] sm:$0xff]
    %v318 = vld [vmem:[%s1 + $0x7c8] sm:$0xff]
    %v319 = vld [vmem:[%s1 + $0x7d0] sm:$0xff]
    %v320 = vld [vmem:[%s1 + $0x7d8] sm:$0xff]
    %v321 = vld [vmem:[%s1 + $0x7e0] sm:$0xff]
    %v322 = vld [vmem:[%s1 + $0x7e8] sm:$0xff]
    %v323 = vld [vmem:[%s1 + $0x7f0] sm:$0xff]
    %v324 = vld [vmem:[%s1 + $0x7f8] sm:$0xff]
    %v325 = vld [vmem:[%s2] sm:$0xf]
    %v327 = vlaneseq
    %v328 = vshrl.u32 %v327, 7
    %v329 = vsub.s32 0, %v328
    %v330 = vrot.slane %v325, %v329
    %v331 = vlaneseq
    %v332 = vshrl.u32 %v331, 7
    %v333 = vsub.s32 1, %v332
    %v334 = vrot.slane %v325, %v333
    %v335 = vlaneseq
    %v336 = vshrl.u32 %v335, 7
    %v337 = vsub.s32 2, %v336
    %v338 = vrot.slane %v325, %v337
    %v339 = vlaneseq
    %v340 = vshrl.u32 %v339, 7
    %v341 = vsub.s32 3, %v340
    %v342 = vrot.slane %v325, %v341
    %v603 = vunpack.c.l.b16 %v69
    %v604 = vunpack.c.h.b16 %v69
    %v605 = vunpack.c.l.b16 %v70
    %v606 = vunpack.c.h.b16 %v70
    %v607 = vunpack.c.l.b16 %v71
    %v608 = vunpack.c.h.b16 %v71
    %v609 = vunpack.c.l.b16 %v72
    %v610 = vunpack.c.h.b16 %v72
    %v611 = vunpack.c.l.b16 %v73
    %v612 = vunpack.c.h.b16 %v73
    %v613 = vunpack.c.l.b16 %v74
    %v614 = vunpack.c.h.b16 %v74
    %v615 = vunpack.c.l.b16 %v75
    %v616 = vunpack.c.h.b16 %v75
    %v617 = vunpack.c.l.b16 %v76
    %v618 = vunpack.c.h.b16 %v76
    %v619 = vunpack.c.l.b16 %v77
    %v620 = vunpack.c.h.b16 %v77
    %v621 = vunpack.c.l.b16 %v78
    %v622 = vunpack.c.h.b16 %v78
    %v623 = vunpack.c.l.b16 %v79
    %v624 = vunpack.c.h.b16 %v79
    %v625 = vunpack.c.l.b16 %v80
    %v626 = vunpack.c.h.b16 %v80
    %v627 = vunpack.c.l.b16 %v81
    %v628 = vunpack.c.h.b16 %v81
    %v629 = vunpack.c.l.b16 %v82
    %v630 = vunpack.c.h.b16 %v82
    %v631 = vunpack.c.l.b16 %v83
    %v632 = vunpack.c.h.b16 %v83
    %v633 = vunpack.c.l.b16 %v84
    %v634 = vunpack.c.h.b16 %v84
    %v635 = vunpack.c.l.b16 %v85
    %v636 = vunpack.c.h.b16 %v85
    %v637 = vunpack.c.l.b16 %v86
    %v638 = vunpack.c.h.b16 %v86
    %v639 = vunpack.c.l.b16 %v87
    %v640 = vunpack.c.h.b16 %v87
    %v641 = vunpack.c.l.b16 %v88
    %v642 = vunpack.c.h.b16 %v88
    %v643 = vunpack.c.l.b16 %v89
    %v644 = vunpack.c.h.b16 %v89
    %v645 = vunpack.c.l.b16 %v90
    %v646 = vunpack.c.h.b16 %v90
    %v647 = vunpack.c.l.b16 %v91
    %v648 = vunpack.c.h.b16 %v91
    %v649 = vunpack.c.l.b16 %v92
    %v650 = vunpack.c.h.b16 %v92
    %v651 = vunpack.c.l.b16 %v93
    %v652 = vunpack.c.h.b16 %v93
    %v653 = vunpack.c.l.b16 %v94
    %v654 = vunpack.c.h.b16 %v94
    %v655 = vunpack.c.l.b16 %v95
    %v656 = vunpack.c.h.b16 %v95
    %v657 = vunpack.c.l.b16 %v96
    %v658 = vunpack.c.h.b16 %v96
    %v659 = vunpack.c.l.b16 %v97
    %v660 = vunpack.c.h.b16 %v97
    %v661 = vunpack.c.l.b16 %v98
    %v662 = vunpack.c.h.b16 %v98
    %v663 = vunpack.c.l.b16 %v99
    %v664 = vunpack.c.h.b16 %v99
    %v665 = vunpack.c.l.b16 %v100
    %v666 = vunpack.c.h.b16 %v100
    %v667 = vunpack.c.l.b16 %v101
    %v668 = vunpack.c.h.b16 %v101
    %v669 = vunpack.c.l.b16 %v102
    %v670 = vunpack.c.h.b16 %v102
    %v671 = vunpack.c.l.b16 %v103
    %v672 = vunpack.c.h.b16 %v103
    %v673 = vunpack.c.l.b16 %v104
    %v674 = vunpack.c.h.b16 %v104
    %v675 = vunpack.c.l.b16 %v105
    %v676 = vunpack.c.h.b16 %v105
    %v677 = vunpack.c.l.b16 %v106
    %v678 = vunpack.c.h.b16 %v106
    %v679 = vunpack.c.l.b16 %v107
    %v680 = vunpack.c.h.b16 %v107
    %v681 = vunpack.c.l.b16 %v108
    %v682 = vunpack.c.h.b16 %v108
    %v683 = vunpack.c.l.b16 %v109
    %v684 = vunpack.c.h.b16 %v109
    %v685 = vunpack.c.l.b16 %v110
    %v686 = vunpack.c.h.b16 %v110
    %v687 = vunpack.c.l.b16 %v111
    %v688 = vunpack.c.h.b16 %v111
    %v689 = vunpack.c.l.b16 %v112
    %v690 = vunpack.c.h.b16 %v112
    %v691 = vunpack.c.l.b16 %v113
    %v692 = vunpack.c.h.b16 %v113
    %v693 = vunpack.c.l.b16 %v114
    %v694 = vunpack.c.h.b16 %v114
    %v695 = vunpack.c.l.b16 %v115
    %v696 = vunpack.c.h.b16 %v115
    %v697 = vunpack.c.l.b16 %v116
    %v698 = vunpack.c.h.b16 %v116
    %v699 = vunpack.c.l.b16 %v117
    %v700 = vunpack.c.h.b16 %v117
    %v701 = vunpack.c.l.b16 %v118
    %v702 = vunpack.c.h.b16 %v118
    %v703 = vunpack.c.l.b16 %v119
    %v704 = vunpack.c.h.b16 %v119
    %v705 = vunpack.c.l.b16 %v120
    %v706 = vunpack.c.h.b16 %v120
    %v707 = vunpack.c.l.b16 %v121
    %v708 = vunpack.c.h.b16 %v121
    %v709 = vunpack.c.l.b16 %v122
    %v710 = vunpack.c.h.b16 %v122
    %v711 = vunpack.c.l.b16 %v123
    %v712 = vunpack.c.h.b16 %v123
    %v713 = vunpack.c.l.b16 %v124
    %v714 = vunpack.c.h.b16 %v124
    %v715 = vunpack.c.l.b16 %v125
    %v716 = vunpack.c.h.b16 %v125
    %v717 = vunpack.c.l.b16 %v126
    %v718 = vunpack.c.h.b16 %v126
    %v719 = vunpack.c.l.b16 %v127
    %v720 = vunpack.c.h.b16 %v127
    %v721 = vunpack.c.l.b16 %v128
    %v722 = vunpack.c.h.b16 %v128
    %v723 = vunpack.c.l.b16 %v129
    %v724 = vunpack.c.h.b16 %v129
    %v725 = vunpack.c.l.b16 %v130
    %v726 = vunpack.c.h.b16 %v130
    %v727 = vunpack.c.l.b16 %v131
    %v728 = vunpack.c.h.b16 %v131
    %v729 = vunpack.c.l.b16 %v132
    %v730 = vunpack.c.h.b16 %v132
    %v731 = vunpack.c.l.b16 %v133
    %v732 = vunpack.c.h.b16 %v133
    %v733 = vunpack.c.l.b16 %v134
    %v734 = vunpack.c.h.b16 %v134
    %v735 = vunpack.c.l.b16 %v135
    %v736 = vunpack.c.h.b16 %v135
    %v737 = vunpack.c.l.b16 %v136
    %v738 = vunpack.c.h.b16 %v136
    %v739 = vunpack.c.l.b16 %v137
    %v740 = vunpack.c.h.b16 %v137
    %v741 = vunpack.c.l.b16 %v138
    %v742 = vunpack.c.h.b16 %v138
    %v743 = vunpack.c.l.b16 %v139
    %v744 = vunpack.c.h.b16 %v139
    %v745 = vunpack.c.l.b16 %v140
    %v746 = vunpack.c.h.b16 %v140
    %v747 = vunpack.c.l.b16 %v141
    %v748 = vunpack.c.h.b16 %v141
    %v749 = vunpack.c.l.b16 %v142
    %v750 = vunpack.c.h.b16 %v142
    %v751 = vunpack.c.l.b16 %v143
    %v752 = vunpack.c.h.b16 %v143
    %v753 = vunpack.c.l.b16 %v144
    %v754 = vunpack.c.h.b16 %v144
    %v755 = vunpack.c.l.b16 %v145
    %v756 = vunpack.c.h.b16 %v145
    %v757 = vunpack.c.l.b16 %v146
    %v758 = vunpack.c.h.b16 %v146
    %v759 = vunpack.c.l.b16 %v147
    %v760 = vunpack.c.h.b16 %v147
    %v761 = vunpack.c.l.b16 %v148
    %v762 = vunpack.c.h.b16 %v148
    %v763 = vunpack.c.l.b16 %v149
    %v764 = vunpack.c.h.b16 %v149
    %v765 = vunpack.c.l.b16 %v150
    %v766 = vunpack.c.h.b16 %v150
    %v767 = vunpack.c.l.b16 %v151
    %v768 = vunpack.c.h.b16 %v151
    %v769 = vunpack.c.l.b16 %v152
    %v770 = vunpack.c.h.b16 %v152
    %v771 = vunpack.c.l.b16 %v153
    %v772 = vunpack.c.h.b16 %v153
    %v773 = vunpack.c.l.b16 %v154
    %v774 = vunpack.c.h.b16 %v154
    %v775 = vunpack.c.l.b16 %v155
    %v776 = vunpack.c.h.b16 %v155
    %v777 = vunpack.c.l.b16 %v156
    %v778 = vunpack.c.h.b16 %v156
    %v779 = vunpack.c.l.b16 %v157
    %v780 = vunpack.c.h.b16 %v157
    %v781 = vunpack.c.l.b16 %v158
    %v782 = vunpack.c.h.b16 %v158
    %v783 = vunpack.c.l.b16 %v159
    %v784 = vunpack.c.h.b16 %v159
    %v785 = vunpack.c.l.b16 %v160
    %v786 = vunpack.c.h.b16 %v160
    %v787 = vunpack.c.l.b16 %v161
    %v788 = vunpack.c.h.b16 %v161
    %v789 = vunpack.c.l.b16 %v162
    %v790 = vunpack.c.h.b16 %v162
    %v791 = vunpack.c.l.b16 %v163
    %v792 = vunpack.c.h.b16 %v163
    %v793 = vunpack.c.l.b16 %v164
    %v794 = vunpack.c.h.b16 %v164
    %v795 = vunpack.c.l.b16 %v165
    %v796 = vunpack.c.h.b16 %v165
    %v797 = vunpack.c.l.b16 %v166
    %v798 = vunpack.c.h.b16 %v166
    %v799 = vunpack.c.l.b16 %v167
    %v800 = vunpack.c.h.b16 %v167
    %v801 = vunpack.c.l.b16 %v168
    %v802 = vunpack.c.h.b16 %v168
    %v803 = vunpack.c.l.b16 %v169
    %v804 = vunpack.c.h.b16 %v169
    %v805 = vunpack.c.l.b16 %v170
    %v806 = vunpack.c.h.b16 %v170
    %v807 = vunpack.c.l.b16 %v171
    %v808 = vunpack.c.h.b16 %v171
    %v809 = vunpack.c.l.b16 %v172
    %v810 = vunpack.c.h.b16 %v172
    %v811 = vunpack.c.l.b16 %v173
    %v812 = vunpack.c.h.b16 %v173
    %v813 = vunpack.c.l.b16 %v174
    %v814 = vunpack.c.h.b16 %v174
    %v815 = vunpack.c.l.b16 %v175
    %v816 = vunpack.c.h.b16 %v175
    %v817 = vunpack.c.l.b16 %v176
    %v818 = vunpack.c.h.b16 %v176
    %v819 = vunpack.c.l.b16 %v177
    %v820 = vunpack.c.h.b16 %v177
    %v821 = vunpack.c.l.b16 %v178
    %v822 = vunpack.c.h.b16 %v178
    %v823 = vunpack.c.l.b16 %v179
    %v824 = vunpack.c.h.b16 %v179
    %v825 = vunpack.c.l.b16 %v180
    %v826 = vunpack.c.h.b16 %v180
    %v827 = vunpack.c.l.b16 %v181
    %v828 = vunpack.c.h.b16 %v181
    %v829 = vunpack.c.l.b16 %v182
    %v830 = vunpack.c.h.b16 %v182
    %v831 = vunpack.c.l.b16 %v183
    %v832 = vunpack.c.h.b16 %v183
    %v833 = vunpack.c.l.b16 %v184
    %v834 = vunpack.c.h.b16 %v184
    %v835 = vunpack.c.l.b16 %v185
    %v836 = vunpack.c.h.b16 %v185
    %v837 = vunpack.c.l.b16 %v186
    %v838 = vunpack.c.h.b16 %v186
    %v839 = vunpack.c.l.b16 %v187
    %v840 = vunpack.c.h.b16 %v187
    %v841 = vunpack.c.l.b16 %v188
    %v842 = vunpack.c.h.b16 %v188
    %v843 = vunpack.c.l.b16 %v189
    %v844 = vunpack.c.h.b16 %v189
    %v845 = vunpack.c.l.b16 %v190
    %v846 = vunpack.c.h.b16 %v190
    %v847 = vunpack.c.l.b16 %v191
    %v848 = vunpack.c.h.b16 %v191
    %v849 = vunpack.c.l.b16 %v192
    %v850 = vunpack.c.h.b16 %v192
    %v851 = vunpack.c.l.b16 %v193
    %v852 = vunpack.c.h.b16 %v193
    %v853 = vunpack.c.l.b16 %v194
    %v854 = vunpack.c.h.b16 %v194
    %v855 = vunpack.c.l.b16 %v195
    %v856 = vunpack.c.h.b16 %v195
    %v857 = vunpack.c.l.b16 %v196
    %v858 = vunpack.c.h.b16 %v196
    %v859 = vunpack.c.l.b16 %v197
    %v860 = vunpack.c.h.b16 %v197
    %v861 = vunpack.c.l.b16 %v198
    %v862 = vunpack.c.h.b16 %v198
    %v863 = vunpack.c.l.b16 %v199
    %v864 = vunpack.c.h.b16 %v199
    %v865 = vunpack.c.l.b16 %v200
    %v866 = vunpack.c.h.b16 %v200
    %v867 = vunpack.c.l.b16 %v201
    %v868 = vunpack.c.h.b16 %v201
    %v869 = vunpack.c.l.b16 %v202
    %v870 = vunpack.c.h.b16 %v202
    %v871 = vunpack.c.l.b16 %v203
    %v872 = vunpack.c.h.b16 %v203
    %v873 = vunpack.c.l.b16 %v204
    %v874 = vunpack.c.h.b16 %v204
    %v875 = vunpack.c.l.b16 %v205
    %v876 = vunpack.c.h.b16 %v205
    %v877 = vunpack.c.l.b16 %v206
    %v878 = vunpack.c.h.b16 %v206
    %v879 = vunpack.c.l.b16 %v207
    %v880 = vunpack.c.h.b16 %v207
    %v881 = vunpack.c.l.b16 %v208
    %v882 = vunpack.c.h.b16 %v208
    %v883 = vunpack.c.l.b16 %v209
    %v884 = vunpack.c.h.b16 %v209
    %v885 = vunpack.c.l.b16 %v210
    %v886 = vunpack.c.h.b16 %v210
    %v887 = vunpack.c.l.b16 %v211
    %v888 = vunpack.c.h.b16 %v211
    %v889 = vunpack.c.l.b16 %v212
    %v890 = vunpack.c.h.b16 %v212
    %v891 = vunpack.c.l.b16 %v213
    %v892 = vunpack.c.h.b16 %v213
    %v893 = vunpack.c.l.b16 %v214
    %v894 = vunpack.c.h.b16 %v214
    %v895 = vunpack.c.l.b16 %v215
    %v896 = vunpack.c.h.b16 %v215
    %v897 = vunpack.c.l.b16 %v216
    %v898 = vunpack.c.h.b16 %v216
    %v899 = vunpack.c.l.b16 %v217
    %v900 = vunpack.c.h.b16 %v217
    %v901 = vunpack.c.l.b16 %v218
    %v902 = vunpack.c.h.b16 %v218
    %v903 = vunpack.c.l.b16 %v219
    %v904 = vunpack.c.h.b16 %v219
    %v905 = vunpack.c.l.b16 %v220
    %v906 = vunpack.c.h.b16 %v220
    %v907 = vunpack.c.l.b16 %v221
    %v908 = vunpack.c.h.b16 %v221
    %v909 = vunpack.c.l.b16 %v222
    %v910 = vunpack.c.h.b16 %v222
    %v911 = vunpack.c.l.b16 %v223
    %v912 = vunpack.c.h.b16 %v223
    %v913 = vunpack.c.l.b16 %v224
    %v914 = vunpack.c.h.b16 %v224
    %v915 = vunpack.c.l.b16 %v225
    %v916 = vunpack.c.h.b16 %v225
    %v917 = vunpack.c.l.b16 %v226
    %v918 = vunpack.c.h.b16 %v226
    %v919 = vunpack.c.l.b16 %v227
    %v920 = vunpack.c.h.b16 %v227
    %v921 = vunpack.c.l.b16 %v228
    %v922 = vunpack.c.h.b16 %v228
    %v923 = vunpack.c.l.b16 %v229
    %v924 = vunpack.c.h.b16 %v229
    %v925 = vunpack.c.l.b16 %v230
    %v926 = vunpack.c.h.b16 %v230
    %v927 = vunpack.c.l.b16 %v231
    %v928 = vunpack.c.h.b16 %v231
    %v929 = vunpack.c.l.b16 %v232
    %v930 = vunpack.c.h.b16 %v232
    %v931 = vunpack.c.l.b16 %v233
    %v932 = vunpack.c.h.b16 %v233
    %v933 = vunpack.c.l.b16 %v234
    %v934 = vunpack.c.h.b16 %v234
    %v935 = vunpack.c.l.b16 %v235
    %v936 = vunpack.c.h.b16 %v235
    %v937 = vunpack.c.l.b16 %v236
    %v938 = vunpack.c.h.b16 %v236
    %v939 = vunpack.c.l.b16 %v237
    %v940 = vunpack.c.h.b16 %v237
    %v941 = vunpack.c.l.b16 %v238
    %v942 = vunpack.c.h.b16 %v238
    %v943 = vunpack.c.l.b16 %v239
    %v944 = vunpack.c.h.b16 %v239
    %v945 = vunpack.c.l.b16 %v240
    %v946 = vunpack.c.h.b16 %v240
    %v947 = vunpack.c.l.b16 %v241
    %v948 = vunpack.c.h.b16 %v241
    %v949 = vunpack.c.l.b16 %v242
    %v950 = vunpack.c.h.b16 %v242
    %v951 = vunpack.c.l.b16 %v243
    %v952 = vunpack.c.h.b16 %v243
    %v953 = vunpack.c.l.b16 %v244
    %v954 = vunpack.c.h.b16 %v244
    %v955 = vunpack.c.l.b16 %v245
    %v956 = vunpack.c.h.b16 %v245
    %v957 = vunpack.c.l.b16 %v246
    %v958 = vunpack.c.h.b16 %v246
    %v959 = vunpack.c.l.b16 %v247
    %v960 = vunpack.c.h.b16 %v247
    %v961 = vunpack.c.l.b16 %v248
    %v962 = vunpack.c.h.b16 %v248
    %v963 = vunpack.c.l.b16 %v249
    %v964 = vunpack.c.h.b16 %v249
    %v965 = vunpack.c.l.b16 %v250
    %v966 = vunpack.c.h.b16 %v250
    %v967 = vunpack.c.l.b16 %v251
    %v968 = vunpack.c.h.b16 %v251
    %v969 = vunpack.c.l.b16 %v252
    %v970 = vunpack.c.h.b16 %v252
    %v971 = vunpack.c.l.b16 %v253
    %v972 = vunpack.c.h.b16 %v253
    %v973 = vunpack.c.l.b16 %v254
    %v974 = vunpack.c.h.b16 %v254
    %v975 = vunpack.c.l.b16 %v255
    %v976 = vunpack.c.h.b16 %v255
    %v977 = vunpack.c.l.b16 %v256
    %v978 = vunpack.c.h.b16 %v256
    %v979 = vunpack.c.l.b16 %v257
    %v980 = vunpack.c.h.b16 %v257
    %v981 = vunpack.c.l.b16 %v258
    %v982 = vunpack.c.h.b16 %v258
    %v983 = vunpack.c.l.b16 %v259
    %v984 = vunpack.c.h.b16 %v259
    %v985 = vunpack.c.l.b16 %v260
    %v986 = vunpack.c.h.b16 %v260
    %v987 = vunpack.c.l.b16 %v261
    %v988 = vunpack.c.h.b16 %v261
    %v989 = vunpack.c.l.b16 %v262
    %v990 = vunpack.c.h.b16 %v262
    %v991 = vunpack.c.l.b16 %v263
    %v992 = vunpack.c.h.b16 %v263
    %v993 = vunpack.c.l.b16 %v264
    %v994 = vunpack.c.h.b16 %v264
    %v995 = vunpack.c.l.b16 %v265
    %v996 = vunpack.c.h.b16 %v265
    %v997 = vunpack.c.l.b16 %v266
    %v998 = vunpack.c.h.b16 %v266
    %v999 = vunpack.c.l.b16 %v267
    %v1000 = vunpack.c.h.b16 %v267
    %v1001 = vunpack.c.l.b16 %v268
    %v1002 = vunpack.c.h.b16 %v268
    %v1003 = vunpack.c.l.b16 %v269
    %v1004 = vunpack.c.h.b16 %v269
    %v1005 = vunpack.c.l.b16 %v270
    %v1006 = vunpack.c.h.b16 %v270
    %v1007 = vunpack.c.l.b16 %v271
    %v1008 = vunpack.c.h.b16 %v271
    %v1009 = vunpack.c.l.b16 %v272
    %v1010 = vunpack.c.h.b16 %v272
    %v1011 = vunpack.c.l.b16 %v273
    %v1012 = vunpack.c.h.b16 %v273
    %v1013 = vunpack.c.l.b16 %v274
    %v1014 = vunpack.c.h.b16 %v274
    %v1015 = vunpack.c.l.b16 %v275
    %v1016 = vunpack.c.h.b16 %v275
    %v1017 = vunpack.c.l.b16 %v276
    %v1018 = vunpack.c.h.b16 %v276
    %v1019 = vunpack.c.l.b16 %v277
    %v1020 = vunpack.c.h.b16 %v277
    %v1021 = vunpack.c.l.b16 %v278
    %v1022 = vunpack.c.h.b16 %v278
    %v1023 = vunpack.c.l.b16 %v279
    %v1024 = vunpack.c.h.b16 %v279
    %v1025 = vunpack.c.l.b16 %v280
    %v1026 = vunpack.c.h.b16 %v280
    %v1027 = vunpack.c.l.b16 %v281
    %v1028 = vunpack.c.h.b16 %v281
    %v1029 = vunpack.c.l.b16 %v282
    %v1030 = vunpack.c.h.b16 %v282
    %v1031 = vunpack.c.l.b16 %v283
    %v1032 = vunpack.c.h.b16 %v283
    %v1033 = vunpack.c.l.b16 %v284
    %v1034 = vunpack.c.h.b16 %v284
    %v1035 = vunpack.c.l.b16 %v285
    %v1036 = vunpack.c.h.b16 %v285
    %v1037 = vunpack.c.l.b16 %v286
    %v1038 = vunpack.c.h.b16 %v286
    %v1039 = vunpack.c.l.b16 %v287
    %v1040 = vunpack.c.h.b16 %v287
    %v1041 = vunpack.c.l.b16 %v288
    %v1042 = vunpack.c.h.b16 %v288
    %v1043 = vunpack.c.l.b16 %v289
    %v1044 = vunpack.c.h.b16 %v289
    %v1045 = vunpack.c.l.b16 %v290
    %v1046 = vunpack.c.h.b16 %v290
    %v1047 = vunpack.c.l.b16 %v291
    %v1048 = vunpack.c.h.b16 %v291
    %v1049 = vunpack.c.l.b16 %v292
    %v1050 = vunpack.c.h.b16 %v292
    %v1051 = vunpack.c.l.b16 %v293
    %v1052 = vunpack.c.h.b16 %v293
    %v1053 = vunpack.c.l.b16 %v294
    %v1054 = vunpack.c.h.b16 %v294
    %v1055 = vunpack.c.l.b16 %v295
    %v1056 = vunpack.c.h.b16 %v295
    %v1057 = vunpack.c.l.b16 %v296
    %v1058 = vunpack.c.h.b16 %v296
    %v1059 = vunpack.c.l.b16 %v297
    %v1060 = vunpack.c.h.b16 %v297
    %v1061 = vunpack.c.l.b16 %v298
    %v1062 = vunpack.c.h.b16 %v298
    %v1063 = vunpack.c.l.b16 %v299
    %v1064 = vunpack.c.h.b16 %v299
    %v1065 = vunpack.c.l.b16 %v300
    %v1066 = vunpack.c.h.b16 %v300
    %v1067 = vunpack.c.l.b16 %v301
    %v1068 = vunpack.c.h.b16 %v301
    %v1069 = vunpack.c.l.b16 %v302
    %v1070 = vunpack.c.h.b16 %v302
    %v1071 = vunpack.c.l.b16 %v303
    %v1072 = vunpack.c.h.b16 %v303
    %v1073 = vunpack.c.l.b16 %v304
    %v1074 = vunpack.c.h.b16 %v304
    %v1075 = vunpack.c.l.b16 %v305
    %v1076 = vunpack.c.h.b16 %v305
    %v1077 = vunpack.c.l.b16 %v306
    %v1078 = vunpack.c.h.b16 %v306
    %v1079 = vunpack.c.l.b16 %v307
    %v1080 = vunpack.c.h.b16 %v307
    %v1081 = vunpack.c.l.b16 %v308
    %v1082 = vunpack.c.h.b16 %v308
    %v1083 = vunpack.c.l.b16 %v309
    %v1084 = vunpack.c.h.b16 %v309
    %v1085 = vunpack.c.l.b16 %v310
    %v1086 = vunpack.c.h.b16 %v310
    %v1087 = vunpack.c.l.b16 %v311
    %v1088 = vunpack.c.h.b16 %v311
    %v1089 = vunpack.c.l.b16 %v312
    %v1090 = vunpack.c.h.b16 %v312
    %v1091 = vunpack.c.l.b16 %v313
    %v1092 = vunpack.c.h.b16 %v313
    %v1093 = vunpack.c.l.b16 %v314
    %v1094 = vunpack.c.h.b16 %v314
    %v1095 = vunpack.c.l.b16 %v315
    %v1096 = vunpack.c.h.b16 %v315
    %v1097 = vunpack.c.l.b16 %v316
    %v1098 = vunpack.c.h.b16 %v316
    %v1099 = vunpack.c.l.b16 %v317
    %v1100 = vunpack.c.h.b16 %v317
    %v1101 = vunpack.c.l.b16 %v318
    %v1102 = vunpack.c.h.b16 %v318
    %v1103 = vunpack.c.l.b16 %v319
    %v1104 = vunpack.c.h.b16 %v319
    %v1105 = vunpack.c.l.b16 %v320
    %v1106 = vunpack.c.h.b16 %v320
    %v1107 = vunpack.c.l.b16 %v321
    %v1108 = vunpack.c.h.b16 %v321
    %v1109 = vunpack.c.l.b16 %v322
    %v1110 = vunpack.c.h.b16 %v322
    %v1111 = vunpack.c.l.b16 %v323
    %v1112 = vunpack.c.h.b16 %v323
    %v1113 = vunpack.c.l.b16 %v324
    %v1114 = vunpack.c.h.b16 %v324
    %v1115 = vpack.c.b16 %v607, %v603
    %v1116 = vpack.c.b16 %v608, %v604
    %v1117 = vpack.c.b16 %v609, %v605
    %v1118 = vpack.c.b16 %v610, %v606
    %v1119 = vpack.c.b16 %v615, %v611
    %v1120 = vpack.c.b16 %v616, %v612
    %v1121 = vpack.c.b16 %v617, %v613
    %v1122 = vpack.c.b16 %v618, %v614
    %v1123 = vpack.c.b16 %v623, %v619
    %v1124 = vpack.c.b16 %v624, %v620
    %v1125 = vpack.c.b16 %v625, %v621
    %v1126 = vpack.c.b16 %v626, %v622
    %v1127 = vpack.c.b16 %v631, %v627
    %v1128 = vpack.c.b16 %v632, %v628
    %v1129 = vpack.c.b16 %v633, %v629
    %v1130 = vpack.c.b16 %v634, %v630
    %v1131 = vpack.c.b16 %v639, %v635
    %v1132 = vpack.c.b16 %v640, %v636
    %v1133 = vpack.c.b16 %v641, %v637
    %v1134 = vpack.c.b16 %v642, %v638
    %v1135 = vpack.c.b16 %v647, %v643
    %v1136 = vpack.c.b16 %v648, %v644
    %v1137 = vpack.c.b16 %v649, %v645
    %v1138 = vpack.c.b16 %v650, %v646
    %v1139 = vpack.c.b16 %v655, %v651
    %v1140 = vpack.c.b16 %v656, %v652
    %v1141 = vpack.c.b16 %v657, %v653
    %v1142 = vpack.c.b16 %v658, %v654
    %v1143 = vpack.c.b16 %v663, %v659
    %v1144 = vpack.c.b16 %v664, %v660
    %v1145 = vpack.c.b16 %v665, %v661
    %v1146 = vpack.c.b16 %v666, %v662
    %v1147 = vpack.c.b16 %v671, %v667
    %v1148 = vpack.c.b16 %v672, %v668
    %v1149 = vpack.c.b16 %v673, %v669
    %v1150 = vpack.c.b16 %v674, %v670
    %v1151 = vpack.c.b16 %v679, %v675
    %v1152 = vpack.c.b16 %v680, %v676
    %v1153 = vpack.c.b16 %v681, %v677
    %v1154 = vpack.c.b16 %v682, %v678
    %v1155 = vpack.c.b16 %v687, %v683
    %v1156 = vpack.c.b16 %v688, %v684
    %v1157 = vpack.c.b16 %v689, %v685
    %v1158 = vpack.c.b16 %v690, %v686
    %v1159 = vpack.c.b16 %v695, %v691
    %v1160 = vpack.c.b16 %v696, %v692
    %v1161 = vpack.c.b16 %v697, %v693
    %v1162 = vpack.c.b16 %v698, %v694
    %v1163 = vpack.c.b16 %v703, %v699
    %v1164 = vpack.c.b16 %v704, %v700
    %v1165 = vpack.c.b16 %v705, %v701
    %v1166 = vpack.c.b16 %v706, %v702
    %v1167 = vpack.c.b16 %v711, %v707
    %v1168 = vpack.c.b16 %v712, %v708
    %v1169 = vpack.c.b16 %v713, %v709
    %v1170 = vpack.c.b16 %v714, %v710
    %v1171 = vpack.c.b16 %v719, %v715
    %v1172 = vpack.c.b16 %v720, %v716
    %v1173 = vpack.c.b16 %v721, %v717
    %v1174 = vpack.c.b16 %v722, %v718
    %v1175 = vpack.c.b16 %v727, %v723
    %v1176 = vpack.c.b16 %v728, %v724
    %v1177 = vpack.c.b16 %v729, %v725
    %v1178 = vpack.c.b16 %v730, %v726
    %v1179 = vpack.c.b16 %v735, %v731
    %v1180 = vpack.c.b16 %v736, %v732
    %v1181 = vpack.c.b16 %v737, %v733
    %v1182 = vpack.c.b16 %v738, %v734
    %v1183 = vpack.c.b16 %v743, %v739
    %v1184 = vpack.c.b16 %v744, %v740
    %v1185 = vpack.c.b16 %v745, %v741
    %v1186 = vpack.c.b16 %v746, %v742
    %v1187 = vpack.c.b16 %v751, %v747
    %v1188 = vpack.c.b16 %v752, %v748
    %v1189 = vpack.c.b16 %v753, %v749
    %v1190 = vpack.c.b16 %v754, %v750
    %v1191 = vpack.c.b16 %v759, %v755
    %v1192 = vpack.c.b16 %v760, %v756
    %v1193 = vpack.c.b16 %v761, %v757
    %v1194 = vpack.c.b16 %v762, %v758
    %v1195 = vpack.c.b16 %v767, %v763
    %v1196 = vpack.c.b16 %v768, %v764
    %v1197 = vpack.c.b16 %v769, %v765
    %v1198 = vpack.c.b16 %v770, %v766
    %v1199 = vpack.c.b16 %v775, %v771
    %v1200 = vpack.c.b16 %v776, %v772
    %v1201 = vpack.c.b16 %v777, %v773
    %v1202 = vpack.c.b16 %v778, %v774
    %v1203 = vpack.c.b16 %v783, %v779
    %v1204 = vpack.c.b16 %v784, %v780
    %v1205 = vpack.c.b16 %v785, %v781
    %v1206 = vpack.c.b16 %v786, %v782
    %v1207 = vpack.c.b16 %v791, %v787
    %v1208 = vpack.c.b16 %v792, %v788
    %v1209 = vpack.c.b16 %v793, %v789
    %v1210 = vpack.c.b16 %v794, %v790
    %v1211 = vpack.c.b16 %v799, %v795
    %v1212 = vpack.c.b16 %v800, %v796
    %v1213 = vpack.c.b16 %v801, %v797
    %v1214 = vpack.c.b16 %v802, %v798
    %v1215 = vpack.c.b16 %v807, %v803
    %v1216 = vpack.c.b16 %v808, %v804
    %v1217 = vpack.c.b16 %v809, %v805
    %v1218 = vpack.c.b16 %v810, %v806
    %v1219 = vpack.c.b16 %v815, %v811
    %v1220 = vpack.c.b16 %v816, %v812
    %v1221 = vpack.c.b16 %v817, %v813
    %v1222 = vpack.c.b16 %v818, %v814
    %v1223 = vpack.c.b16 %v823, %v819
    %v1224 = vpack.c.b16 %v824, %v820
    %v1225 = vpack.c.b16 %v825, %v821
    %v1226 = vpack.c.b16 %v826, %v822
    %v1227 = vpack.c.b16 %v831, %v827
    %v1228 = vpack.c.b16 %v832, %v828
    %v1229 = vpack.c.b16 %v833, %v829
    %v1230 = vpack.c.b16 %v834, %v830
    %v1231 = vpack.c.b16 %v839, %v835
    %v1232 = vpack.c.b16 %v840, %v836
    %v1233 = vpack.c.b16 %v841, %v837
    %v1234 = vpack.c.b16 %v842, %v838
    %v1235 = vpack.c.b16 %v847, %v843
    %v1236 = vpack.c.b16 %v848, %v844
    %v1237 = vpack.c.b16 %v849, %v845
    %v1238 = vpack.c.b16 %v850, %v846
    %v1239 = vpack.c.b16 %v855, %v851
    %v1240 = vpack.c.b16 %v856, %v852
    %v1241 = vpack.c.b16 %v857, %v853
    %v1242 = vpack.c.b16 %v858, %v854
    %v1243 = vpack.c.b16 %v863, %v859
    %v1244 = vpack.c.b16 %v864, %v860
    %v1245 = vpack.c.b16 %v865, %v861
    %v1246 = vpack.c.b16 %v866, %v862
    %v1247 = vpack.c.b16 %v871, %v867
    %v1248 = vpack.c.b16 %v872, %v868
    %v1249 = vpack.c.b16 %v873, %v869
    %v1250 = vpack.c.b16 %v874, %v870
    %v1251 = vpack.c.b16 %v879, %v875
    %v1252 = vpack.c.b16 %v880, %v876
    %v1253 = vpack.c.b16 %v881, %v877
    %v1254 = vpack.c.b16 %v882, %v878
    %v1255 = vpack.c.b16 %v887, %v883
    %v1256 = vpack.c.b16 %v888, %v884
    %v1257 = vpack.c.b16 %v889, %v885
    %v1258 = vpack.c.b16 %v890, %v886
    %v1259 = vpack.c.b16 %v895, %v891
    %v1260 = vpack.c.b16 %v896, %v892
    %v1261 = vpack.c.b16 %v897, %v893
    %v1262 = vpack.c.b16 %v898, %v894
    %v1263 = vpack.c.b16 %v903, %v899
    %v1264 = vpack.c.b16 %v904, %v900
    %v1265 = vpack.c.b16 %v905, %v901
    %v1266 = vpack.c.b16 %v906, %v902
    %v1267 = vpack.c.b16 %v911, %v907
    %v1268 = vpack.c.b16 %v912, %v908
    %v1269 = vpack.c.b16 %v913, %v909
    %v1270 = vpack.c.b16 %v914, %v910
    %v1271 = vpack.c.b16 %v919, %v915
    %v1272 = vpack.c.b16 %v920, %v916
    %v1273 = vpack.c.b16 %v921, %v917
    %v1274 = vpack.c.b16 %v922, %v918
    %v1275 = vpack.c.b16 %v927, %v923
    %v1276 = vpack.c.b16 %v928, %v924
    %v1277 = vpack.c.b16 %v929, %v925
    %v1278 = vpack.c.b16 %v930, %v926
    %v1279 = vpack.c.b16 %v935, %v931
    %v1280 = vpack.c.b16 %v936, %v932
    %v1281 = vpack.c.b16 %v937, %v933
    %v1282 = vpack.c.b16 %v938, %v934
    %v1283 = vpack.c.b16 %v943, %v939
    %v1284 = vpack.c.b16 %v944, %v940
    %v1285 = vpack.c.b16 %v945, %v941
    %v1286 = vpack.c.b16 %v946, %v942
    %v1287 = vpack.c.b16 %v951, %v947
    %v1288 = vpack.c.b16 %v952, %v948
    %v1289 = vpack.c.b16 %v953, %v949
    %v1290 = vpack.c.b16 %v954, %v950
    %v1291 = vpack.c.b16 %v959, %v955
    %v1292 = vpack.c.b16 %v960, %v956
    %v1293 = vpack.c.b16 %v961, %v957
    %v1294 = vpack.c.b16 %v962, %v958
    %v1295 = vpack.c.b16 %v967, %v963
    %v1296 = vpack.c.b16 %v968, %v964
    %v1297 = vpack.c.b16 %v969, %v965
    %v1298 = vpack.c.b16 %v970, %v966
    %v1299 = vpack.c.b16 %v975, %v971
    %v1300 = vpack.c.b16 %v976, %v972
    %v1301 = vpack.c.b16 %v977, %v973
    %v1302 = vpack.c.b16 %v978, %v974
    %v1303 = vpack.c.b16 %v983, %v979
    %v1304 = vpack.c.b16 %v984, %v980
    %v1305 = vpack.c.b16 %v985, %v981
    %v1306 = vpack.c.b16 %v986, %v982
    %v1307 = vpack.c.b16 %v991, %v987
    %v1308 = vpack.c.b16 %v992, %v988
    %v1309 = vpack.c.b16 %v993, %v989
    %v1310 = vpack.c.b16 %v994, %v990
    %v1311 = vpack.c.b16 %v999, %v995
    %v1312 = vpack.c.b16 %v1000, %v996
    %v1313 = vpack.c.b16 %v1001, %v997
    %v1314 = vpack.c.b16 %v1002, %v998
    %v1315 = vpack.c.b16 %v1007, %v1003
    %v1316 = vpack.c.b16 %v1008, %v1004
    %v1317 = vpack.c.b16 %v1009, %v1005
    %v1318 = vpack.c.b16 %v1010, %v1006
    %v1319 = vpack.c.b16 %v1015, %v1011
    %v1320 = vpack.c.b16 %v1016, %v1012
    %v1321 = vpack.c.b16 %v1017, %v1013
    %v1322 = vpack.c.b16 %v1018, %v1014
    %v1323 = vpack.c.b16 %v1023, %v1019
    %v1324 = vpack.c.b16 %v1024, %v1020
    %v1325 = vpack.c.b16 %v1025, %v1021
    %v1326 = vpack.c.b16 %v1026, %v1022
    %v1327 = vpack.c.b16 %v1031, %v1027
    %v1328 = vpack.c.b16 %v1032, %v1028
    %v1329 = vpack.c.b16 %v1033, %v1029
    %v1330 = vpack.c.b16 %v1034, %v1030
    %v1331 = vpack.c.b16 %v1039, %v1035
    %v1332 = vpack.c.b16 %v1040, %v1036
    %v1333 = vpack.c.b16 %v1041, %v1037
    %v1334 = vpack.c.b16 %v1042, %v1038
    %v1335 = vpack.c.b16 %v1047, %v1043
    %v1336 = vpack.c.b16 %v1048, %v1044
    %v1337 = vpack.c.b16 %v1049, %v1045
    %v1338 = vpack.c.b16 %v1050, %v1046
    %v1339 = vpack.c.b16 %v1055, %v1051
    %v1340 = vpack.c.b16 %v1056, %v1052
    %v1341 = vpack.c.b16 %v1057, %v1053
    %v1342 = vpack.c.b16 %v1058, %v1054
    %v1343 = vpack.c.b16 %v1063, %v1059
    %v1344 = vpack.c.b16 %v1064, %v1060
    %v1345 = vpack.c.b16 %v1065, %v1061
    %v1346 = vpack.c.b16 %v1066, %v1062
    %v1347 = vpack.c.b16 %v1071, %v1067
    %v1348 = vpack.c.b16 %v1072, %v1068
    %v1349 = vpack.c.b16 %v1073, %v1069
    %v1350 = vpack.c.b16 %v1074, %v1070
    %v1351 = vpack.c.b16 %v1079, %v1075
    %v1352 = vpack.c.b16 %v1080, %v1076
    %v1353 = vpack.c.b16 %v1081, %v1077
    %v1354 = vpack.c.b16 %v1082, %v1078
    %v1355 = vpack.c.b16 %v1087, %v1083
    %v1356 = vpack.c.b16 %v1088, %v1084
    %v1357 = vpack.c.b16 %v1089, %v1085
    %v1358 = vpack.c.b16 %v1090, %v1086
    %v1359 = vpack.c.b16 %v1095, %v1091
    %v1360 = vpack.c.b16 %v1096, %v1092
    %v1361 = vpack.c.b16 %v1097, %v1093
    %v1362 = vpack.c.b16 %v1098, %v1094
    %v1363 = vpack.c.b16 %v1103, %v1099
    %v1364 = vpack.c.b16 %v1104, %v1100
    %v1365 = vpack.c.b16 %v1105, %v1101
    %v1366 = vpack.c.b16 %v1106, %v1102
    %v1367 = vpack.c.b16 %v1111, %v1107
    %v1368 = vpack.c.b16 %v1112, %v1108
    %v1369 = vpack.c.b16 %v1113, %v1109
    %v1370 = vpack.c.b16 %v1114, %v1110
    %1627 = vmatprep.subr.bf16.mxu0 %v1144
    %1628 = vmatpush1.bf16.msra.mxu0 %v1143
    %1629 = vmatprep.subr.bf16.mxu0 %v1140
    %1630 = vmatpush1.bf16.msra.mxu0 %v1139
    %1631 = vmatprep.subr.bf16.mxu0 %v1136
    %1632 = vmatpush1.bf16.msra.mxu0 %v1135
    %1633 = vmatprep.subr.bf16.mxu0 %v1132
    %1634 = vmatpush1.bf16.msra.mxu0 %v1131
    %1635 = vmatprep.subr.bf16.mxu0 %v1128
    %1636 = vmatpush1.bf16.msra.mxu0 %v1127
    %1637 = vmatprep.subr.bf16.mxu0 %v1124
    %1638 = vmatpush1.bf16.msra.mxu0 %v1123
    %1639 = vmatprep.subr.bf16.mxu0 %v1120
    %1640 = vmatpush1.bf16.msra.mxu0 %v1119
    %1641 = vmatprep.subr.bf16.mxu0 %v1116
    %1642 = vmatpush1.bf16.msra.mxu0 %v1115
    %1643 = vmatprep.subr.bf16.mxu0 %v1176
    %1644 = vmatpush2.bf16.msra.mxu0 %v1175
    %1645 = vmatprep.subr.bf16.mxu0 %v1172
    %1646 = vmatpush2.bf16.msra.mxu0 %v1171
    %1647 = vmatprep.subr.bf16.mxu0 %v1168
    %1648 = vmatpush2.bf16.msra.mxu0 %v1167
    %1649 = vmatprep.subr.bf16.mxu0 %v1164
    %1650 = vmatpush2.bf16.msra.mxu0 %v1163
    %1651 = vmatprep.subr.bf16.mxu0 %v1160
    %1652 = vmatpush2.bf16.msra.mxu0 %v1159
    %1653 = vmatprep.subr.bf16.mxu0 %v1156
    %1654 = vmatpush2.bf16.msra.mxu0 %v1155
    %1655 = vmatprep.subr.bf16.mxu0 %v1152
    %1656 = vmatpush2.bf16.msra.mxu0 %v1151
    %1657 = vmatprep.subr.bf16.mxu0 %v1148
    %1658 = vmatpush2.bf16.msra.mxu0 %v1147
    %1659 = vmatprep.mubr.bf16.mxu0 %v62
    %1660 = vmatmul.mubr.bf16.gmra.mxu0 %v61
    %v1661 = vpop.f32.mrf.mxu0
    %v1662 = vadd.f32 %v330, %v1661
    %v1663 = vpop.f32.mrf.mxu0
    %v1664 = vadd.f32 %v334, %v1663
    %v1665 = vpop.f32.mrf.mxu0
    %v1666 = vadd.f32 %v330, %v1665
    %v1667 = vpop.f32.mrf.mxu0
    %v1668 = vadd.f32 %v334, %v1667
    %1669 = vdwg.mxu0
    %1670 = vmatprep.subr.bf16.mxu0 %v1208
    %1671 = vmatpush1.bf16.msra.mxu0 %v1207
    %1672 = vmatprep.subr.bf16.mxu0 %v1204
    %1673 = vmatpush1.bf16.msra.mxu0 %v1203
    %1674 = vmatprep.subr.bf16.mxu0 %v1200
    %1675 = vmatpush1.bf16.msra.mxu0 %v1199
    %1676 = vmatprep.subr.bf16.mxu0 %v1196
    %1677 = vmatpush1.bf16.msra.mxu0 %v1195
    %1678 = vmatprep.subr.bf16.mxu0 %v1192
    %1679 = vmatpush1.bf16.msra.mxu0 %v1191
    %1680 = vmatprep.subr.bf16.mxu0 %v1188
    %1681 = vmatpush1.bf16.msra.mxu0 %v1187
    %1682 = vmatprep.subr.bf16.mxu0 %v1184
    %1683 = vmatpush1.bf16.msra.mxu0 %v1183
    %1684 = vmatprep.subr.bf16.mxu0 %v1180
    %1685 = vmatpush1.bf16.msra.mxu0 %v1179
    %1686 = vmatprep.subr.bf16.mxu0 %v1240
    %1687 = vmatpush2.bf16.msra.mxu0 %v1239
    %1688 = vmatprep.subr.bf16.mxu0 %v1236
    %1689 = vmatpush2.bf16.msra.mxu0 %v1235
    %1690 = vmatprep.subr.bf16.mxu0 %v1232
    %1691 = vmatpush2.bf16.msra.mxu0 %v1231
    %1692 = vmatprep.subr.bf16.mxu0 %v1228
    %1693 = vmatpush2.bf16.msra.mxu0 %v1227
    %1694 = vmatprep.subr.bf16.mxu0 %v1224
    %1695 = vmatpush2.bf16.msra.mxu0 %v1223
    %1696 = vmatprep.subr.bf16.mxu0 %v1220
    %1697 = vmatpush2.bf16.msra.mxu0 %v1219
    %1698 = vmatprep.subr.bf16.mxu0 %v1216
    %1699 = vmatpush2.bf16.msra.mxu0 %v1215
    %1700 = vmatprep.subr.bf16.mxu0 %v1212
    %1701 = vmatpush2.bf16.msra.mxu0 %v1211
    %1702 = vmatprep.mubr.bf16.mxu0 %v64
    %1703 = vmatmul.mubr.bf16.gmra.mxu0 %v63
    %v1704 = vpop.f32.mrf.mxu0
    %v1705 = vadd.f32 %v1662, %v1704
    %v1706 = vpop.f32.mrf.mxu0
    %v1707 = vadd.f32 %v1664, %v1706
    %v1708 = vpop.f32.mrf.mxu0
    %v1709 = vadd.f32 %v1666, %v1708
    %v1710 = vpop.f32.mrf.mxu0
    %v1711 = vadd.f32 %v1668, %v1710
    %1712 = vdwg.mxu0
    %1713 = vmatprep.subr.bf16.mxu0 %v1272
    %1714 = vmatpush1.bf16.msra.mxu0 %v1271
    %1715 = vmatprep.subr.bf16.mxu0 %v1268
    %1716 = vmatpush1.bf16.msra.mxu0 %v1267
    %1717 = vmatprep.subr.bf16.mxu0 %v1264
    %1718 = vmatpush1.bf16.msra.mxu0 %v1263
    %1719 = vmatprep.subr.bf16.mxu0 %v1260
    %1720 = vmatpush1.bf16.msra.mxu0 %v1259
    %1721 = vmatprep.subr.bf16.mxu0 %v1256
    %1722 = vmatpush1.bf16.msra.mxu0 %v1255
    %1723 = vmatprep.subr.bf16.mxu0 %v1252
    %1724 = vmatpush1.bf16.msra.mxu0 %v1251
    %1725 = vmatprep.subr.bf16.mxu0 %v1248
    %1726 = vmatpush1.bf16.msra.mxu0 %v1247
    %1727 = vmatprep.subr.bf16.mxu0 %v1244
    %1728 = vmatpush1.bf16.msra.mxu0 %v1243
    %1729 = vmatprep.subr.bf16.mxu0 %v1304
    %1730 = vmatpush2.bf16.msra.mxu0 %v1303
    %1731 = vmatprep.subr.bf16.mxu0 %v1300
    %1732 = vmatpush2.bf16.msra.mxu0 %v1299
    %1733 = vmatprep.subr.bf16.mxu0 %v1296
    %1734 = vmatpush2.bf16.msra.mxu0 %v1295
    %1735 = vmatprep.subr.bf16.mxu0 %v1292
    %1736 = vmatpush2.bf16.msra.mxu0 %v1291
    %1737 = vmatprep.subr.bf16.mxu0 %v1288
    %1738 = vmatpush2.bf16.msra.mxu0 %v1287
    %1739 = vmatprep.subr.bf16.mxu0 %v1284
    %1740 = vmatpush2.bf16.msra.mxu0 %v1283
    %1741 = vmatprep.subr.bf16.mxu0 %v1280
    %1742 = vmatpush2.bf16.msra.mxu0 %v1279
    %1743 = vmatprep.subr.bf16.mxu0 %v1276
    %1744 = vmatpush2.bf16.msra.mxu0 %v1275
    %1745 = vmatprep.mubr.bf16.mxu0 %v66
    %1746 = vmatmul.mubr.bf16.gmra.mxu0 %v65
    %v1747 = vpop.f32.mrf.mxu0
    %v1748 = vadd.f32 %v1705, %v1747
    %v1749 = vpop.f32.mrf.mxu0
    %v1750 = vadd.f32 %v1707, %v1749
    %v1751 = vpop.f32.mrf.mxu0
    %v1752 = vadd.f32 %v1709, %v1751
    %v1753 = vpop.f32.mrf.mxu0
    %v1754 = vadd.f32 %v1711, %v1753
    %1755 = vdwg.mxu0
    %1756 = vmatprep.subr.bf16.mxu0 %v1336
    %1757 = vmatpush1.bf16.msra.mxu0 %v1335
    %1758 = vmatprep.subr.bf16.mxu0 %v1332
    %1759 = vmatpush1.bf16.msra.mxu0 %v1331
    %1760 = vmatprep.subr.bf16.mxu0 %v1328
    %1761 = vmatpush1.bf16.msra.mxu0 %v1327
    %1762 = vmatprep.subr.bf16.mxu0 %v1324
    %1763 = vmatpush1.bf16.msra.mxu0 %v1323
    %1764 = vmatprep.subr.bf16.mxu0 %v1320
    %1765 = vmatpush1.bf16.msra.mxu0 %v1319
    %1766 = vmatprep.subr.bf16.mxu0 %v1316
    %1767 = vmatpush1.bf16.msra.mxu0 %v1315
    %1768 = vmatprep.subr.bf16.mxu0 %v1312
    %1769 = vmatpush1.bf16.msra.mxu0 %v1311
    %1770 = vmatprep.subr.bf16.mxu0 %v1308
    %1771 = vmatpush1.bf16.msra.mxu0 %v1307
    %1772 = vmatprep.subr.bf16.mxu0 %v1368
    %1773 = vmatpush2.bf16.msra.mxu0 %v1367
    %1774 = vmatprep.subr.bf16.mxu0 %v1364
    %1775 = vmatpush2.bf16.msra.mxu0 %v1363
    %1776 = vmatprep.subr.bf16.mxu0 %v1360
    %1777 = vmatpush2.bf16.msra.mxu0 %v1359
    %1778 = vmatprep.subr.bf16.mxu0 %v1356
    %1779 = vmatpush2.bf16.msra.mxu0 %v1355
    %1780 = vmatprep.subr.bf16.mxu0 %v1352
    %1781 = vmatpush2.bf16.msra.mxu0 %v1351
    %1782 = vmatprep.subr.bf16.mxu0 %v1348
    %1783 = vmatpush2.bf16.msra.mxu0 %v1347
    %1784 = vmatprep.subr.bf16.mxu0 %v1344
    %1785 = vmatpush2.bf16.msra.mxu0 %v1343
    %1786 = vmatprep.subr.bf16.mxu0 %v1340
    %1787 = vmatpush2.bf16.msra.mxu0 %v1339
    %1788 = vmatprep.mubr.bf16.mxu0 %v68
    %1789 = vmatmul.mubr.bf16.gmra.mxu0 %v67
    %v1790 = vpop.f32.mrf.mxu0
    %v1791 = vadd.f32 %v1748, %v1790
    %v1792 = vpop.f32.mrf.mxu0
    %v1793 = vadd.f32 %v1750, %v1792
    %v1794 = vpop.f32.mrf.mxu0
    %v1795 = vadd.f32 %v1752, %v1794
    %v1796 = vpop.f32.mrf.mxu0
    %v1797 = vadd.f32 %v1754, %v1796
    %1798 = vdwg.mxu0
    %1799 = vmatprep.subr.bf16.mxu0 %v1146
    %1800 = vmatpush1.bf16.msra.mxu0 %v1145
    %1801 = vmatprep.subr.bf16.mxu0 %v1142
    %1802 = vmatpush1.bf16.msra.mxu0 %v1141
    %1803 = vmatprep.subr.bf16.mxu0 %v1138
    %1804 = vmatpush1.bf16.msra.mxu0 %v1137
    %1805 = vmatprep.subr.bf16.mxu0 %v1134
    %1806 = vmatpush1.bf16.msra.mxu0 %v1133
    %1807 = vmatprep.subr.bf16.mxu0 %v1130
    %1808 = vmatpush1.bf16.msra.mxu0 %v1129
    %1809 = vmatprep.subr.bf16.mxu0 %v1126
    %1810 = vmatpush1.bf16.msra.mxu0 %v1125
    %1811 = vmatprep.subr.bf16.mxu0 %v1122
    %1812 = vmatpush1.bf16.msra.mxu0 %v1121
    %1813 = vmatprep.subr.bf16.mxu0 %v1118
    %1814 = vmatpush1.bf16.msra.mxu0 %v1117
    %1815 = vmatprep.subr.bf16.mxu0 %v1178
    %1816 = vmatpush2.bf16.msra.mxu0 %v1177
    %1817 = vmatprep.subr.bf16.mxu0 %v1174
    %1818 = vmatpush2.bf16.msra.mxu0 %v1173
    %1819 = vmatprep.subr.bf16.mxu0 %v1170
    %1820 = vmatpush2.bf16.msra.mxu0 %v1169
    %1821 = vmatprep.subr.bf16.mxu0 %v1166
    %1822 = vmatpush2.bf16.msra.mxu0 %v1165
    %1823 = vmatprep.subr.bf16.mxu0 %v1162
    %1824 = vmatpush2.bf16.msra.mxu0 %v1161
    %1825 = vmatprep.subr.bf16.mxu0 %v1158
    %1826 = vmatpush2.bf16.msra.mxu0 %v1157
    %1827 = vmatprep.subr.bf16.mxu0 %v1154
    %1828 = vmatpush2.bf16.msra.mxu0 %v1153
    %1829 = vmatprep.subr.bf16.mxu0 %v1150
    %1830 = vmatpush2.bf16.msra.mxu0 %v1149
    %1831 = vmatprep.mubr.bf16.mxu0 %v62
    %1832 = vmatmul.mubr.bf16.gmra.mxu0 %v61
    %v1833 = vpop.f32.mrf.mxu0
    %v1834 = vadd.f32 %v338, %v1833
    %v1835 = vpop.f32.mrf.mxu0
    %v1836 = vadd.f32 %v342, %v1835
    %v1837 = vpop.f32.mrf.mxu0
    %v1838 = vadd.f32 %v338, %v1837
    %v1839 = vpop.f32.mrf.mxu0
    %v1840 = vadd.f32 %v342, %v1839
    %1841 = vdwg.mxu0
    %1842 = vmatprep.subr.bf16.mxu0 %v1210
    %1843 = vmatpush1.bf16.msra.mxu0 %v1209
    %1844 = vmatprep.subr.bf16.mxu0 %v1206
    %1845 = vmatpush1.bf16.msra.mxu0 %v1205
    %1846 = vmatprep.subr.bf16.mxu0 %v1202
    %1847 = vmatpush1.bf16.msra.mxu0 %v1201
    %1848 = vmatprep.subr.bf16.mxu0 %v1198
    %1849 = vmatpush1.bf16.msra.mxu0 %v1197
    %1850 = vmatprep.subr.bf16.mxu0 %v1194
    %1851 = vmatpush1.bf16.msra.mxu0 %v1193
    %1852 = vmatprep.subr.bf16.mxu0 %v1190
    %1853 = vmatpush1.bf16.msra.mxu0 %v1189
    %1854 = vmatprep.subr.bf16.mxu0 %v1186
    %1855 = vmatpush1.bf16.msra.mxu0 %v1185
    %1856 = vmatprep.subr.bf16.mxu0 %v1182
    %1857 = vmatpush1.bf16.msra.mxu0 %v1181
    %1858 = vmatprep.subr.bf16.mxu0 %v1242
    %1859 = vmatpush2.bf16.msra.mxu0 %v1241
    %1860 = vmatprep.subr.bf16.mxu0 %v1238
    %1861 = vmatpush2.bf16.msra.mxu0 %v1237
    %1862 = vmatprep.subr.bf16.mxu0 %v1234
    %1863 = vmatpush2.bf16.msra.mxu0 %v1233
    %1864 = vmatprep.subr.bf16.mxu0 %v1230
    %1865 = vmatpush2.bf16.msra.mxu0 %v1229
    %1866 = vmatprep.subr.bf16.mxu0 %v1226
    %1867 = vmatpush2.bf16.msra.mxu0 %v1225
    %1868 = vmatprep.subr.bf16.mxu0 %v1222
    %1869 = vmatpush2.bf16.msra.mxu0 %v1221
    %1870 = vmatprep.subr.bf16.mxu0 %v1218
    %1871 = vmatpush2.bf16.msra.mxu0 %v1217
    %1872 = vmatprep.subr.bf16.mxu0 %v1214
    %1873 = vmatpush2.bf16.msra.mxu0 %v1213
    %1874 = vmatprep.mubr.bf16.mxu0 %v64
    %1875 = vmatmul.mubr.bf16.gmra.mxu0 %v63
    %v1876 = vpop.f32.mrf.mxu0
    %v1877 = vadd.f32 %v1834, %v1876
    %v1878 = vpop.f32.mrf.mxu0
    %v1879 = vadd.f32 %v1836, %v1878
    %v1880 = vpop.f32.mrf.mxu0
    %v1881 = vadd.f32 %v1838, %v1880
    %v1882 = vpop.f32.mrf.mxu0
    %v1883 = vadd.f32 %v1840, %v1882
    %1884 = vdwg.mxu0
    %1885 = vmatprep.subr.bf16.mxu0 %v1274
    %1886 = vmatpush1.bf16.msra.mxu0 %v1273
    %1887 = vmatprep.subr.bf16.mxu0 %v1270
    %1888 = vmatpush1.bf16.msra.mxu0 %v1269
    %1889 = vmatprep.subr.bf16.mxu0 %v1266
    %1890 = vmatpush1.bf16.msra.mxu0 %v1265
    %1891 = vmatprep.subr.bf16.mxu0 %v1262
    %1892 = vmatpush1.bf16.msra.mxu0 %v1261
    %1893 = vmatprep.subr.bf16.mxu0 %v1258
    %1894 = vmatpush1.bf16.msra.mxu0 %v1257
    %1895 = vmatprep.subr.bf16.mxu0 %v1254
    %1896 = vmatpush1.bf16.msra.mxu0 %v1253
    %1897 = vmatprep.subr.bf16.mxu0 %v1250
    %1898 = vmatpush1.bf16.msra.mxu0 %v1249
    %1899 = vmatprep.subr.bf16.mxu0 %v1246
    %1900 = vmatpush1.bf16.msra.mxu0 %v1245
    %1901 = vmatprep.subr.bf16.mxu0 %v1306
    %1902 = vmatpush2.bf16.msra.mxu0 %v1305
    %1903 = vmatprep.subr.bf16.mxu0 %v1302
    %1904 = vmatpush2.bf16.msra.mxu0 %v1301
    %1905 = vmatprep.subr.bf16.mxu0 %v1298
    %1906 = vmatpush2.bf16.msra.mxu0 %v1297
    %1907 = vmatprep.subr.bf16.mxu0 %v1294
    %1908 = vmatpush2.bf16.msra.mxu0 %v1293
    %1909 = vmatprep.subr.bf16.mxu0 %v1290
    %1910 = vmatpush2.bf16.msra.mxu0 %v1289
    %1911 = vmatprep.subr.bf16.mxu0 %v1286
    %1912 = vmatpush2.bf16.msra.mxu0 %v1285
    %1913 = vmatprep.subr.bf16.mxu0 %v1282
    %1914 = vmatpush2.bf16.msra.mxu0 %v1281
    %1915 = vmatprep.subr.bf16.mxu0 %v1278
    %1916 = vmatpush2.bf16.msra.mxu0 %v1277
    %1917 = vmatprep.mubr.bf16.mxu0 %v66
    %1918 = vmatmul.mubr.bf16.gmra.mxu0 %v65
    %v1919 = vpop.f32.mrf.mxu0
    %v1920 = vadd.f32 %v1877, %v1919
    %v1921 = vpop.f32.mrf.mxu0
    %v1922 = vadd.f32 %v1879, %v1921
    %v1923 = vpop.f32.mrf.mxu0
    %v1924 = vadd.f32 %v1881, %v1923
    %v1925 = vpop.f32.mrf.mxu0
    %v1926 = vadd.f32 %v1883, %v1925
    %1927 = vdwg.mxu0
    %1928 = vmatprep.subr.bf16.mxu0 %v1338
    %1929 = vmatpush1.bf16.msra.mxu0 %v1337
    %1930 = vmatprep.subr.bf16.mxu0 %v1334
    %1931 = vmatpush1.bf16.msra.mxu0 %v1333
    %1932 = vmatprep.subr.bf16.mxu0 %v1330
    %1933 = vmatpush1.bf16.msra.mxu0 %v1329
    %1934 = vmatprep.subr.bf16.mxu0 %v1326
    %1935 = vmatpush1.bf16.msra.mxu0 %v1325
    %1936 = vmatprep.subr.bf16.mxu0 %v1322
    %1937 = vmatpush1.bf16.msra.mxu0 %v1321
    %1938 = vmatprep.subr.bf16.mxu0 %v1318
    %1939 = vmatpush1.bf16.msra.mxu0 %v1317
    %1940 = vmatprep.subr.bf16.mxu0 %v1314
    %1941 = vmatpush1.bf16.msra.mxu0 %v1313
    %1942 = vmatprep.subr.bf16.mxu0 %v1310
    %1943 = vmatpush1.bf16.msra.mxu0 %v1309
    %1944 = vmatprep.subr.bf16.mxu0 %v1370
    %1945 = vmatpush2.bf16.msra.mxu0 %v1369
    %1946 = vmatprep.subr.bf16.mxu0 %v1366
    %1947 = vmatpush2.bf16.msra.mxu0 %v1365
    %1948 = vmatprep.subr.bf16.mxu0 %v1362
    %1949 = vmatpush2.bf16.msra.mxu0 %v1361
    %1950 = vmatprep.subr.bf16.mxu0 %v1358
    %1951 = vmatpush2.bf16.msra.mxu0 %v1357
    %1952 = vmatprep.subr.bf16.mxu0 %v1354
    %1953 = vmatpush2.bf16.msra.mxu0 %v1353
    %1954 = vmatprep.subr.bf16.mxu0 %v1350
    %1955 = vmatpush2.bf16.msra.mxu0 %v1349
    %1956 = vmatprep.subr.bf16.mxu0 %v1346
    %1957 = vmatpush2.bf16.msra.mxu0 %v1345
    %1958 = vmatprep.subr.bf16.mxu0 %v1342
    %1959 = vmatpush2.bf16.msra.mxu0 %v1341
    %1960 = vmatprep.mubr.bf16.mxu0 %v68
    %1961 = vmatmul.mubr.bf16.gmra.mxu0 %v67
    %v1962 = vpop.f32.mrf.mxu0
    %v1963 = vadd.f32 %v1920, %v1962
    %v1964 = vpop.f32.mrf.mxu0
    %v1965 = vadd.f32 %v1922, %v1964
    %v1966 = vpop.f32.mrf.mxu0
    %v1967 = vadd.f32 %v1924, %v1966
    %v1968 = vpop.f32.mrf.mxu0
    %v1969 = vadd.f32 %v1926, %v1968
    %1970 = vdwg.mxu0
    %1971 = vst [vmem:[#allocation2] sm:$0xff] %v1791
    %1972 = vst [vmem:[#allocation2 + $0x8] sm:$0xff] %v1793
    %1973 = vst [vmem:[#allocation2 + $0x10] sm:$0xff] %v1963
    %1974 = vst [vmem:[#allocation2 + $0x18] sm:$0xff] %v1965
    %1975 = vst [vmem:[#allocation2 + $0x20] sm:$0xff] %v1795
    %1976 = vst [vmem:[#allocation2 + $0x28] sm:$0xff] %v1797
    %1977 = vst [vmem:[#allocation2 + $0x30] sm:$0xff] %v1967
    %1978 = vst [vmem:[#allocation2 + $0x38] sm:$0xff] %v1969
    %v1979 = vpack.c.bf16 %v1795, %v1791
    %v1980 = vpack.c.bf16 %v1797, %v1793
    %v1981 = vpack.c.bf16 %v1967, %v1963
    %v1982 = vpack.c.bf16 %v1969, %v1965
    %v1983 = vld [vmem:[%s3] sm:$0xff]
    %v1984 = vld [vmem:[%s3 + $0x8] sm:$0xff]
    %v1985 = vld [vmem:[%s3 + $0x10] sm:$0xff]
    %v1986 = vld [vmem:[%s3 + $0x18] sm:$0xff]
    %v1987 = vld [vmem:[%s3 + $0x20] sm:$0xff]
    %v1988 = vld [vmem:[%s3 + $0x28] sm:$0xff]
    %v1989 = vld [vmem:[%s3 + $0x30] sm:$0xff]
    %v1990 = vld [vmem:[%s3 + $0x38] sm:$0xff]
    %v1991 = vld [vmem:[%s3 + $0x40] sm:$0xff]
    %v1992 = vld [vmem:[%s3 + $0x48] sm:$0xff]
    %v1993 = vld [vmem:[%s3 + $0x50] sm:$0xff]
    %v1994 = vld [vmem:[%s3 + $0x58] sm:$0xff]
    %v1995 = vld [vmem:[%s3 + $0x60] sm:$0xff]
    %v1996 = vld [vmem:[%s3 + $0x68] sm:$0xff]
    %v1997 = vld [vmem:[%s3 + $0x70] sm:$0xff]
    %v1998 = vld [vmem:[%s3 + $0x78] sm:$0xff]
    %v1999 = vld [vmem:[%s3 + $0x80] sm:$0xff]
    %v2000 = vld [vmem:[%s3 + $0x88] sm:$0xff]
    %v2001 = vld [vmem:[%s3 + $0x90] sm:$0xff]
    %v2002 = vld [vmem:[%s3 + $0x98] sm:$0xff]
    %v2003 = vld [vmem:[%s3 + $0xa0] sm:$0xff]
    %v2004 = vld [vmem:[%s3 + $0xa8] sm:$0xff]
    %v2005 = vld [vmem:[%s3 + $0xb0] sm:$0xff]
    %v2006 = vld [vmem:[%s3 + $0xb8] sm:$0xff]
    %v2007 = vld [vmem:[%s3 + $0xc0] sm:$0xff]
    %v2008 = vld [vmem:[%s3 + $0xc8] sm:$0xff]
    %v2009 = vld [vmem:[%s3 + $0xd0] sm:$0xff]
    %v2010 = vld [vmem:[%s3 + $0xd8] sm:$0xff]
    %v2011 = vld [vmem:[%s3 + $0xe0] sm:$0xff]
    %v2012 = vld [vmem:[%s3 + $0xe8] sm:$0xff]
    %v2013 = vld [vmem:[%s3 + $0xf0] sm:$0xff]
    %v2014 = vld [vmem:[%s3 + $0xf8] sm:$0xff]
    %v2015 = vld [vmem:[%s3 + $0x100] sm:$0xff]
    %v2016 = vld [vmem:[%s3 + $0x108] sm:$0xff]
    %v2017 = vld [vmem:[%s3 + $0x110] sm:$0xff]
    %v2018 = vld [vmem:[%s3 + $0x118] sm:$0xff]
    %v2019 = vld [vmem:[%s3 + $0x120] sm:$0xff]
    %v2020 = vld [vmem:[%s3 + $0x128] sm:$0xff]
    %v2021 = vld [vmem:[%s3 + $0x130] sm:$0xff]
    %v2022 = vld [vmem:[%s3 + $0x138] sm:$0xff]
    %v2023 = vld [vmem:[%s3 + $0x140] sm:$0xff]
    %v2024 = vld [vmem:[%s3 + $0x148] sm:$0xff]
    %v2025 = vld [vmem:[%s3 + $0x150] sm:$0xff]
    %v2026 = vld [vmem:[%s3 + $0x158] sm:$0xff]
    %v2027 = vld [vmem:[%s3 + $0x160] sm:$0xff]
    %v2028 = vld [vmem:[%s3 + $0x168] sm:$0xff]
    %v2029 = vld [vmem:[%s3 + $0x170] sm:$0xff]
    %v2030 = vld [vmem:[%s3 + $0x178] sm:$0xff]
    %v2031 = vld [vmem:[%s3 + $0x180] sm:$0xff]
    %v2032 = vld [vmem:[%s3 + $0x188] sm:$0xff]
    %v2033 = vld [vmem:[%s3 + $0x190] sm:$0xff]
    %v2034 = vld [vmem:[%s3 + $0x198] sm:$0xff]
    %v2035 = vld [vmem:[%s3 + $0x1a0] sm:$0xff]
    %v2036 = vld [vmem:[%s3 + $0x1a8] sm:$0xff]
    %v2037 = vld [vmem:[%s3 + $0x1b0] sm:$0xff]
    %v2038 = vld [vmem:[%s3 + $0x1b8] sm:$0xff]
    %v2039 = vld [vmem:[%s3 + $0x1c0] sm:$0xff]
    %v2040 = vld [vmem:[%s3 + $0x1c8] sm:$0xff]
    %v2041 = vld [vmem:[%s3 + $0x1d0] sm:$0xff]
    %v2042 = vld [vmem:[%s3 + $0x1d8] sm:$0xff]
    %v2043 = vld [vmem:[%s3 + $0x1e0] sm:$0xff]
    %v2044 = vld [vmem:[%s3 + $0x1e8] sm:$0xff]
    %v2045 = vld [vmem:[%s3 + $0x1f0] sm:$0xff]
    %v2046 = vld [vmem:[%s3 + $0x1f8] sm:$0xff]
    %v2047 = vld [vmem:[%s4] sm:$0x3]
    %v2049 = vlaneseq
    %v2050 = vshrl.u32 %v2049, 7
    %v2051 = vsub.s32 0, %v2050
    %v2052 = vrot.slane %v2047, %v2051
    %v2053 = vlaneseq
    %v2054 = vshrl.u32 %v2053, 7
    %v2055 = vsub.s32 1, %v2054
    %v2056 = vrot.slane %v2047, %v2055
    %v2123 = vunpack.c.l.b16 %v1983
    %v2124 = vunpack.c.h.b16 %v1983
    %v2125 = vunpack.c.l.b16 %v1984
    %v2126 = vunpack.c.h.b16 %v1984
    %v2127 = vunpack.c.l.b16 %v1985
    %v2128 = vunpack.c.h.b16 %v1985
    %v2129 = vunpack.c.l.b16 %v1986
    %v2130 = vunpack.c.h.b16 %v1986
    %v2131 = vunpack.c.l.b16 %v1987
    %v2132 = vunpack.c.h.b16 %v1987
    %v2133 = vunpack.c.l.b16 %v1988
    %v2134 = vunpack.c.h.b16 %v1988
    %v2135 = vunpack.c.l.b16 %v1989
    %v2136 = vunpack.c.h.b16 %v1989
    %v2137 = vunpack.c.l.b16 %v1990
    %v2138 = vunpack.c.h.b16 %v1990
    %v2139 = vunpack.c.l.b16 %v1991
    %v2140 = vunpack.c.h.b16 %v1991
    %v2141 = vunpack.c.l.b16 %v1992
    %v2142 = vunpack.c.h.b16 %v1992
    %v2143 = vunpack.c.l.b16 %v1993
    %v2144 = vunpack.c.h.b16 %v1993
    %v2145 = vunpack.c.l.b16 %v1994
    %v2146 = vunpack.c.h.b16 %v1994
    %v2147 = vunpack.c.l.b16 %v1995
    %v2148 = vunpack.c.h.b16 %v1995
    %v2149 = vunpack.c.l.b16 %v1996
    %v2150 = vunpack.c.h.b16 %v1996
    %v2151 = vunpack.c.l.b16 %v1997
    %v2152 = vunpack.c.h.b16 %v1997
    %v2153 = vunpack.c.l.b16 %v1998
    %v2154 = vunpack.c.h.b16 %v1998
    %v2155 = vunpack.c.l.b16 %v1999
    %v2156 = vunpack.c.h.b16 %v1999
    %v2157 = vunpack.c.l.b16 %v2000
    %v2158 = vunpack.c.h.b16 %v2000
    %v2159 = vunpack.c.l.b16 %v2001
    %v2160 = vunpack.c.h.b16 %v2001
    %v2161 = vunpack.c.l.b16 %v2002
    %v2162 = vunpack.c.h.b16 %v2002
    %v2163 = vunpack.c.l.b16 %v2003
    %v2164 = vunpack.c.h.b16 %v2003
    %v2165 = vunpack.c.l.b16 %v2004
    %v2166 = vunpack.c.h.b16 %v2004
    %v2167 = vunpack.c.l.b16 %v2005
    %v2168 = vunpack.c.h.b16 %v2005
    %v2169 = vunpack.c.l.b16 %v2006
    %v2170 = vunpack.c.h.b16 %v2006
    %v2171 = vunpack.c.l.b16 %v2007
    %v2172 = vunpack.c.h.b16 %v2007
    %v2173 = vunpack.c.l.b16 %v2008
    %v2174 = vunpack.c.h.b16 %v2008
    %v2175 = vunpack.c.l.b16 %v2009
    %v2176 = vunpack.c.h.b16 %v2009
    %v2177 = vunpack.c.l.b16 %v2010
    %v2178 = vunpack.c.h.b16 %v2010
    %v2179 = vunpack.c.l.b16 %v2011
    %v2180 = vunpack.c.h.b16 %v2011
    %v2181 = vunpack.c.l.b16 %v2012
    %v2182 = vunpack.c.h.b16 %v2012
    %v2183 = vunpack.c.l.b16 %v2013
    %v2184 = vunpack.c.h.b16 %v2013
    %v2185 = vunpack.c.l.b16 %v2014
    %v2186 = vunpack.c.h.b16 %v2014
    %v2187 = vunpack.c.l.b16 %v2015
    %v2188 = vunpack.c.h.b16 %v2015
    %v2189 = vunpack.c.l.b16 %v2016
    %v2190 = vunpack.c.h.b16 %v2016
    %v2191 = vunpack.c.l.b16 %v2017
    %v2192 = vunpack.c.h.b16 %v2017
    %v2193 = vunpack.c.l.b16 %v2018
    %v2194 = vunpack.c.h.b16 %v2018
    %v2195 = vunpack.c.l.b16 %v2019
    %v2196 = vunpack.c.h.b16 %v2019
    %v2197 = vunpack.c.l.b16 %v2020
    %v2198 = vunpack.c.h.b16 %v2020
    %v2199 = vunpack.c.l.b16 %v2021
    %v2200 = vunpack.c.h.b16 %v2021
    %v2201 = vunpack.c.l.b16 %v2022
    %v2202 = vunpack.c.h.b16 %v2022
    %v2203 = vunpack.c.l.b16 %v2023
    %v2204 = vunpack.c.h.b16 %v2023
    %v2205 = vunpack.c.l.b16 %v2024
    %v2206 = vunpack.c.h.b16 %v2024
    %v2207 = vunpack.c.l.b16 %v2025
    %v2208 = vunpack.c.h.b16 %v2025
    %v2209 = vunpack.c.l.b16 %v2026
    %v2210 = vunpack.c.h.b16 %v2026
    %v2211 = vunpack.c.l.b16 %v2027
    %v2212 = vunpack.c.h.b16 %v2027
    %v2213 = vunpack.c.l.b16 %v2028
    %v2214 = vunpack.c.h.b16 %v2028
    %v2215 = vunpack.c.l.b16 %v2029
    %v2216 = vunpack.c.h.b16 %v2029
    %v2217 = vunpack.c.l.b16 %v2030
    %v2218 = vunpack.c.h.b16 %v2030
    %v2219 = vunpack.c.l.b16 %v2031
    %v2220 = vunpack.c.h.b16 %v2031
    %v2221 = vunpack.c.l.b16 %v2032
    %v2222 = vunpack.c.h.b16 %v2032
    %v2223 = vunpack.c.l.b16 %v2033
    %v2224 = vunpack.c.h.b16 %v2033
    %v2225 = vunpack.c.l.b16 %v2034
    %v2226 = vunpack.c.h.b16 %v2034
    %v2227 = vunpack.c.l.b16 %v2035
    %v2228 = vunpack.c.h.b16 %v2035
    %v2229 = vunpack.c.l.b16 %v2036
    %v2230 = vunpack.c.h.b16 %v2036
    %v2231 = vunpack.c.l.b16 %v2037
    %v2232 = vunpack.c.h.b16 %v2037
    %v2233 = vunpack.c.l.b16 %v2038
    %v2234 = vunpack.c.h.b16 %v2038
    %v2235 = vunpack.c.l.b16 %v2039
    %v2236 = vunpack.c.h.b16 %v2039
    %v2237 = vunpack.c.l.b16 %v2040
    %v2238 = vunpack.c.h.b16 %v2040
    %v2239 = vunpack.c.l.b16 %v2041
    %v2240 = vunpack.c.h.b16 %v2041
    %v2241 = vunpack.c.l.b16 %v2042
    %v2242 = vunpack.c.h.b16 %v2042
    %v2243 = vunpack.c.l.b16 %v2043
    %v2244 = vunpack.c.h.b16 %v2043
    %v2245 = vunpack.c.l.b16 %v2044
    %v2246 = vunpack.c.h.b16 %v2044
    %v2247 = vunpack.c.l.b16 %v2045
    %v2248 = vunpack.c.h.b16 %v2045
    %v2249 = vunpack.c.l.b16 %v2046
    %v2250 = vunpack.c.h.b16 %v2046
    %v2251 = vpack.c.b16 %v2125, %v2123
    %v2252 = vpack.c.b16 %v2126, %v2124
    %v2253 = vpack.c.b16 %v2129, %v2127
    %v2254 = vpack.c.b16 %v2130, %v2128
    %v2255 = vpack.c.b16 %v2133, %v2131
    %v2256 = vpack.c.b16 %v2134, %v2132
    %v2257 = vpack.c.b16 %v2137, %v2135
    %v2258 = vpack.c.b16 %v2138, %v2136
    %v2259 = vpack.c.b16 %v2141, %v2139
    %v2260 = vpack.c.b16 %v2142, %v2140
    %v2261 = vpack.c.b16 %v2145, %v2143
    %v2262 = vpack.c.b16 %v2146, %v2144
    %v2263 = vpack.c.b16 %v2149, %v2147
    %v2264 = vpack.c.b16 %v2150, %v2148
    %v2265 = vpack.c.b16 %v2153, %v2151
    %v2266 = vpack.c.b16 %v2154, %v2152
    %v2267 = vpack.c.b16 %v2157, %v2155
    %v2268 = vpack.c.b16 %v2158, %v2156
    %v2269 = vpack.c.b16 %v2161, %v2159
    %v2270 = vpack.c.b16 %v2162, %v2160
    %v2271 = vpack.c.b16 %v2165, %v2163
    %v2272 = vpack.c.b16 %v2166, %v2164
    %v2273 = vpack.c.b16 %v2169, %v2167
    %v2274 = vpack.c.b16 %v2170, %v2168
    %v2275 = vpack.c.b16 %v2173, %v2171
    %v2276 = vpack.c.b16 %v2174, %v2172
    %v2277 = vpack.c.b16 %v2177, %v2175
    %v2278 = vpack.c.b16 %v2178, %v2176
    %v2279 = vpack.c.b16 %v2181, %v2179
    %v2280 = vpack.c.b16 %v2182, %v2180
    %v2281 = vpack.c.b16 %v2185, %v2183
    %v2282 = vpack.c.b16 %v2186, %v2184
    %v2283 = vpack.c.b16 %v2189, %v2187
    %v2284 = vpack.c.b16 %v2190, %v2188
    %v2285 = vpack.c.b16 %v2193, %v2191
    %v2286 = vpack.c.b16 %v2194, %v2192
    %v2287 = vpack.c.b16 %v2197, %v2195
    %v2288 = vpack.c.b16 %v2198, %v2196
    %v2289 = vpack.c.b16 %v2201, %v2199
    %v2290 = vpack.c.b16 %v2202, %v2200
    %v2291 = vpack.c.b16 %v2205, %v2203
    %v2292 = vpack.c.b16 %v2206, %v2204
    %v2293 = vpack.c.b16 %v2209, %v2207
    %v2294 = vpack.c.b16 %v2210, %v2208
    %v2295 = vpack.c.b16 %v2213, %v2211
    %v2296 = vpack.c.b16 %v2214, %v2212
    %v2297 = vpack.c.b16 %v2217, %v2215
    %v2298 = vpack.c.b16 %v2218, %v2216
    %v2299 = vpack.c.b16 %v2221, %v2219
    %v2300 = vpack.c.b16 %v2222, %v2220
    %v2301 = vpack.c.b16 %v2225, %v2223
    %v2302 = vpack.c.b16 %v2226, %v2224
    %v2303 = vpack.c.b16 %v2229, %v2227
    %v2304 = vpack.c.b16 %v2230, %v2228
    %v2305 = vpack.c.b16 %v2233, %v2231
    %v2306 = vpack.c.b16 %v2234, %v2232
    %v2307 = vpack.c.b16 %v2237, %v2235
    %v2308 = vpack.c.b16 %v2238, %v2236
    %v2309 = vpack.c.b16 %v2241, %v2239
    %v2310 = vpack.c.b16 %v2242, %v2240
    %v2311 = vpack.c.b16 %v2245, %v2243
    %v2312 = vpack.c.b16 %v2246, %v2244
    %v2313 = vpack.c.b16 %v2249, %v2247
    %v2314 = vpack.c.b16 %v2250, %v2248
    %2379 = vmatprep.subr.bf16.mxu0 %v2266
    %2380 = vmatpush1.bf16.msra.mxu0 %v2265
    %2381 = vmatprep.subr.bf16.mxu0 %v2264
    %2382 = vmatpush1.bf16.msra.mxu0 %v2263
    %2383 = vmatprep.subr.bf16.mxu0 %v2262
    %2384 = vmatpush1.bf16.msra.mxu0 %v2261
    %2385 = vmatprep.subr.bf16.mxu0 %v2260
    %2386 = vmatpush1.bf16.msra.mxu0 %v2259
    %2387 = vmatprep.subr.bf16.mxu0 %v2258
    %2388 = vmatpush1.bf16.msra.mxu0 %v2257
    %2389 = vmatprep.subr.bf16.mxu0 %v2256
    %2390 = vmatpush1.bf16.msra.mxu0 %v2255
    %2391 = vmatprep.subr.bf16.mxu0 %v2254
    %2392 = vmatpush1.bf16.msra.mxu0 %v2253
    %2393 = vmatprep.subr.bf16.mxu0 %v2252
    %2394 = vmatpush1.bf16.msra.mxu0 %v2251
    %2395 = vmatprep.subr.bf16.mxu0 %v2282
    %2396 = vmatpush2.bf16.msra.mxu0 %v2281
    %2397 = vmatprep.subr.bf16.mxu0 %v2280
    %2398 = vmatpush2.bf16.msra.mxu0 %v2279
    %2399 = vmatprep.subr.bf16.mxu0 %v2278
    %2400 = vmatpush2.bf16.msra.mxu0 %v2277
    %2401 = vmatprep.subr.bf16.mxu0 %v2276
    %2402 = vmatpush2.bf16.msra.mxu0 %v2275
    %2403 = vmatprep.subr.bf16.mxu0 %v2274
    %2404 = vmatpush2.bf16.msra.mxu0 %v2273
    %2405 = vmatprep.subr.bf16.mxu0 %v2272
    %2406 = vmatpush2.bf16.msra.mxu0 %v2271
    %2407 = vmatprep.subr.bf16.mxu0 %v2270
    %2408 = vmatpush2.bf16.msra.mxu0 %v2269
    %2409 = vmatprep.subr.bf16.mxu0 %v2268
    %2410 = vmatpush2.bf16.msra.mxu0 %v2267
    %2411 = vmatprep.mubr.bf16.mxu0 %v1980
    %2412 = vmatmul.mubr.bf16.gmra.mxu0 %v1979
    %v2413 = vpop.f32.mrf.mxu0
    %v2414 = vadd.f32 %v2052, %v2413
    %v2415 = vpop.f32.mrf.mxu0
    %v2416 = vadd.f32 %v2056, %v2415
    %v2417 = vpop.f32.mrf.mxu0
    %v2418 = vadd.f32 %v2052, %v2417
    %v2419 = vpop.f32.mrf.mxu0
    %v2420 = vadd.f32 %v2056, %v2419
    %2421 = vdwg.mxu0
    %2422 = vmatprep.subr.bf16.mxu0 %v2298
    %2423 = vmatpush1.bf16.msra.mxu0 %v2297
    %2424 = vmatprep.subr.bf16.mxu0 %v2296
    %2425 = vmatpush1.bf16.msra.mxu0 %v2295
    %2426 = vmatprep.subr.bf16.mxu0 %v2294
    %2427 = vmatpush1.bf16.msra.mxu0 %v2293
    %2428 = vmatprep.subr.bf16.mxu0 %v2292
    %2429 = vmatpush1.bf16.msra.mxu0 %v2291
    %2430 = vmatprep.subr.bf16.mxu0 %v2290
    %2431 = vmatpush1.bf16.msra.mxu0 %v2289
    %2432 = vmatprep.subr.bf16.mxu0 %v2288
    %2433 = vmatpush1.bf16.msra.mxu0 %v2287
    %2434 = vmatprep.subr.bf16.mxu0 %v2286
    %2435 = vmatpush1.bf16.msra.mxu0 %v2285
    %2436 = vmatprep.subr.bf16.mxu0 %v2284
    %2437 = vmatpush1.bf16.msra.mxu0 %v2283
    %2438 = vmatprep.subr.bf16.mxu0 %v2314
    %2439 = vmatpush2.bf16.msra.mxu0 %v2313
    %2440 = vmatprep.subr.bf16.mxu0 %v2312
    %2441 = vmatpush2.bf16.msra.mxu0 %v2311
    %2442 = vmatprep.subr.bf16.mxu0 %v2310
    %2443 = vmatpush2.bf16.msra.mxu0 %v2309
    %2444 = vmatprep.subr.bf16.mxu0 %v2308
    %2445 = vmatpush2.bf16.msra.mxu0 %v2307
    %2446 = vmatprep.subr.bf16.mxu0 %v2306
    %2447 = vmatpush2.bf16.msra.mxu0 %v2305
    %2448 = vmatprep.subr.bf16.mxu0 %v2304
    %2449 = vmatpush2.bf16.msra.mxu0 %v2303
    %2450 = vmatprep.subr.bf16.mxu0 %v2302
    %2451 = vmatpush2.bf16.msra.mxu0 %v2301
    %2452 = vmatprep.subr.bf16.mxu0 %v2300
    %2453 = vmatpush2.bf16.msra.mxu0 %v2299
    %2454 = vmatprep.mubr.bf16.mxu0 %v1982
    %2455 = vmatmul.mubr.bf16.gmra.mxu0 %v1981
    %v2456 = vpop.f32.mrf.mxu0
    %v2457 = vadd.f32 %v2414, %v2456
    %v2458 = vpop.f32.mrf.mxu0
    %v2459 = vadd.f32 %v2416, %v2458
    %v2460 = vpop.f32.mrf.mxu0
    %v2461 = vadd.f32 %v2418, %v2460
    %v2462 = vpop.f32.mrf.mxu0
    %v2463 = vadd.f32 %v2420, %v2462
    %2464 = vdwg.mxu0
    %v2465 = vtanh.pop %v2457
    %v2466 = vtanh.pop %v2461
    %v2467 = vxor.u32 %v2459, 2147483648
    %v2468 = vxor.u32 %v2463, 2147483648
    %v2469 = vmul.f32 %v2467, 1.442695
    %v2470 = vpow.pop %v2469
    %v2471 = vmul.f32 %v2468, 1.442695
    %v2472 = vpow.pop %v2471
    %v2473 = vadd.f32 %v2470, 1.0
    %v2474 = vadd.f32 %v2472, 1.0
    %v2475 = vrcp.pop %v2473
    %v2476 = vmul.f32 1.0, %v2475
    %v2477 = vrcp.pop %v2474
    %v2478 = vmul.f32 1.0, %v2477
    %v2479 = vmul.f32 %v2465, %v2476
    %v2480 = vmul.f32 %v2466, %v2478
    %v2481 = vld [vmem:[%s5] sm:$0xff]
    %v2482 = vld [vmem:[%s5 + $0x8] sm:$0xff]
    %v2483 = vld [vmem:[%s5 + $0x10] sm:$0xff]
    %v2484 = vld [vmem:[%s5 + $0x18] sm:$0xff]
    %v2485 = vld [vmem:[%s5 + $0x20] sm:$0xff]
    %v2486 = vld [vmem:[%s5 + $0x28] sm:$0xff]
    %v2487 = vld [vmem:[%s5 + $0x30] sm:$0xff]
    %v2488 = vld [vmem:[%s5 + $0x38] sm:$0xff]
    %v2489 = vld [vmem:[%s5 + $0x40] sm:$0xff]
    %v2490 = vld [vmem:[%s5 + $0x48] sm:$0xff]
    %v2491 = vld [vmem:[%s5 + $0x50] sm:$0xff]
    %v2492 = vld [vmem:[%s5 + $0x58] sm:$0xff]
    %v2493 = vld [vmem:[%s5 + $0x60] sm:$0xff]
    %v2494 = vld [vmem:[%s5 + $0x68] sm:$0xff]
    %v2495 = vld [vmem:[%s5 + $0x70] sm:$0xff]
    %v2496 = vld [vmem:[%s5 + $0x78] sm:$0xff]
    %v2497 = vld [vmem:[%s6] sm:$0x1]
    %v2499 = vlaneseq
    %v2500 = vshrl.u32 %v2499, 7
    %v2501 = vsub.s32 0, %v2500
    %v2502 = vrot.slane %v2497, %v2501
    %2504 = vmatprep.subr.mxu0 0.0
    %2505 = vmatpush1.msra.mxu0 %v2496
    %2506 = vmatprep.subr.mxu0 0.0
    %2507 = vmatpush1.msra.mxu0 %v2495
    %2508 = vmatprep.subr.mxu0 0.0
    %2509 = vmatpush1.msra.mxu0 %v2494
    %2510 = vmatprep.subr.mxu0 0.0
    %2511 = vmatpush1.msra.mxu0 %v2493
    %2512 = vmatprep.subr.mxu0 0.0
    %2513 = vmatpush1.msra.mxu0 %v2492
    %2514 = vmatprep.subr.mxu0 0.0
    %2515 = vmatpush1.msra.mxu0 %v2491
    %2516 = vmatprep.subr.mxu0 0.0
    %2517 = vmatpush1.msra.mxu0 %v2490
    %2518 = vmatprep.subr.mxu0 0.0
    %2519 = vmatpush1.msra.mxu0 %v2489
    %2520 = vmatprep.subr.mxu0 0.0
    %2521 = vmatpush1.msra.mxu0 %v2488
    %2522 = vmatprep.subr.mxu0 0.0
    %2523 = vmatpush1.msra.mxu0 %v2487
    %2524 = vmatprep.subr.mxu0 0.0
    %2525 = vmatpush1.msra.mxu0 %v2486
    %2526 = vmatprep.subr.mxu0 0.0
    %2527 = vmatpush1.msra.mxu0 %v2485
    %2528 = vmatprep.subr.mxu0 0.0
    %2529 = vmatpush1.msra.mxu0 %v2484
    %2530 = vmatprep.subr.mxu0 0.0
    %2531 = vmatpush1.msra.mxu0 %v2483
    %2532 = vmatprep.subr.mxu0 0.0
    %2533 = vmatpush1.msra.mxu0 %v2482
    %2534 = vmatprep.subr.mxu0 0.0
    %2535 = vmatpush1.msra.mxu0 %v2481
    %2536 = vmatprep.subr.mxu0 0.0
    %2537 = vmatpush2.msra.mxu0 0.0
    %2538 = vmatprep.subr.mxu0 0.0
    %2539 = vmatpush2.msra.mxu0 0.0
    %2540 = vmatprep.subr.mxu0 0.0
    %2541 = vmatpush2.msra.mxu0 0.0
    %2542 = vmatprep.subr.mxu0 0.0
    %2543 = vmatpush2.msra.mxu0 0.0
    %2544 = vmatprep.subr.mxu0 0.0
    %2545 = vmatpush2.msra.mxu0 0.0
    %2546 = vmatprep.subr.mxu0 0.0
    %2547 = vmatpush2.msra.mxu0 0.0
    %2548 = vmatprep.subr.mxu0 0.0
    %2549 = vmatpush2.msra.mxu0 0.0
    %2550 = vmatprep.subr.mxu0 0.0
    %2551 = vmatpush2.msra.mxu0 0.0
    %2552 = vmatprep.subr.mxu0 0.0
    %2553 = vmatpush2.msra.mxu0 0.0
    %2554 = vmatprep.subr.mxu0 0.0
    %2555 = vmatpush2.msra.mxu0 0.0
    %2556 = vmatprep.subr.mxu0 0.0
    %2557 = vmatpush2.msra.mxu0 0.0
    %2558 = vmatprep.subr.mxu0 0.0
    %2559 = vmatpush2.msra.mxu0 0.0
    %2560 = vmatprep.subr.mxu0 0.0
    %2561 = vmatpush2.msra.mxu0 0.0
    %2562 = vmatprep.subr.mxu0 0.0
    %2563 = vmatpush2.msra.mxu0 0.0
    %2564 = vmatprep.subr.mxu0 0.0
    %2565 = vmatpush2.msra.mxu0 0.0
    %2566 = vmatprep.subr.mxu0 0.0
    %2567 = vmatpush2.msra.mxu0 0.0
    %2568 = vmatprep.mubr.f32.mxu0 0.0
    %2569 = vmatmul.mubr.f32.gmra.mxu0 %v2479
    %v2570 = vpop.f32.mrf.mxu0
    %v2571 = vadd.f32 %v2502, %v2570
    %v2572 = vpop.f32.mrf.mxu0
    %2573 = vmatprep.mubr.f32.mxu0 0.0
    %2574 = vmatmul.mubr.f32.gmra.mxu0 %v2480
    %v2575 = vpop.f32.mrf.mxu0
    %v2576 = vadd.f32 %v2502, %v2575
    %v2577 = vpop.f32.mrf.mxu0
    %2578 = vdwg.mxu0
    %vm2579 = vcmask 15360
    %v2580 = vsel %vm2579, %v2571, -inf
    %v2581 = vrot.slane %v2580, 4
    %v2582 = vmax.f32 %v2580, %v2581
    %v2583 = vrot.slane %v2582, 2
    %v2584 = vmax.f32 %v2582, %v2583
    %v2585 = vrot.slane %v2584, 1
    %v2586 = vmax.f32 %v2584, %v2585
    %v2587 = vsel %vm2579, %v2576, -inf
    %v2588 = vrot.slane %v2587, 4
    %v2589 = vmax.f32 %v2587, %v2588
    %v2590 = vrot.slane %v2589, 2
    %v2591 = vmax.f32 %v2589, %v2590
    %v2592 = vrot.slane %v2591, 1
    %v2593 = vmax.f32 %v2591, %v2592
    %v2594 = vsub.f32 %v2571, %v2586
    %v2595 = vsub.f32 %v2576, %v2593
    %v2596 = vmul.f32 %v2594, 1.442695
    %v2597 = vpow.pop %v2596
    %v2598 = vmul.f32 %v2595, 1.442695
    %v2599 = vpow.pop %v2598
    %v2600 = vsel %vm2579, %v2597, 0.0
    %v2601 = vrot.slane %v2600, 4
    %v2602 = vadd.f32 %v2600, %v2601
    %v2603 = vrot.slane %v2602, 2
    %v2604 = vadd.f32 %v2602, %v2603
    %v2605 = vrot.slane %v2604, 1
    %v2606 = vadd.f32 %v2604, %v2605
    %v2607 = vsel %vm2579, %v2599, 0.0
    %v2608 = vrot.slane %v2607, 4
    %v2609 = vadd.f32 %v2607, %v2608
    %v2610 = vrot.slane %v2609, 2
    %v2611 = vadd.f32 %v2609, %v2610
    %v2612 = vrot.slane %v2611, 1
    %v2613 = vadd.f32 %v2611, %v2612
    %v2614 = vrcp.pop %v2606
    %v2615 = vrcp.pop %v2613
    %v2616 = vmul.f32 %v2597, %v2614
    %v2617 = vmul.f32 %v2599, %v2615
    %2618 = vxpose.xlu0.b32.start [1/16] %v2616, 128
    %2619 = vxpose.xlu0.b32.cont [2/16] 0.0, 128
    %2620 = vxpose.xlu0.b32.cont [3/16] 0.0, 128
    %2621 = vxpose.xlu0.b32.cont [4/16] 0.0, 128
    %2622 = vxpose.xlu0.b32.cont [5/16] 0.0, 128
    %2623 = vxpose.xlu0.b32.cont [6/16] 0.0, 128
    %2624 = vxpose.xlu0.b32.cont [7/16] 0.0, 128
    %2625 = vxpose.xlu0.b32.cont [8/16] 0.0, 128
    %2626 = vxpose.xlu0.b32.cont [9/16] 0.0, 128
    %2627 = vxpose.xlu0.b32.cont [10/16] 0.0, 128
    %2628 = vxpose.xlu0.b32.cont [11/16] 0.0, 128
    %2629 = vxpose.xlu0.b32.cont [12/16] 0.0, 128
    %2630 = vxpose.xlu0.b32.cont [13/16] 0.0, 128
    %2631 = vxpose.xlu0.b32.cont [14/16] 0.0, 128
    %2632 = vxpose.xlu0.b32.cont [15/16] 0.0, 128
    %2633 = vxpose.xlu0.b32.end [16/16] 0.0, 128
    %v2634 = vpop.trf.xlu0
    %v2635 = vpop.trf.xlu0
    %v2636 = vpop.trf.xlu0
    %v2637 = vpop.trf.xlu0
    %v2638 = vpop.trf.xlu0
    %v2639 = vpop.trf.xlu0
    %v2640 = vpop.trf.xlu0
    %v2641 = vpop.trf.xlu0
    %v2642 = vpop.trf.xlu0
    %v2643 = vpop.trf.xlu0
    %v2644 = vpop.trf.xlu0
    %v2645 = vpop.trf.xlu0
    %v2646 = vpop.trf.xlu0
    %v2647 = vpop.trf.xlu0
    %v2648 = vpop.trf.xlu0
    %v2649 = vpop.trf.xlu0
    %vm2650 = vcmask 64512
    %v2652 = vsel %vm2650, %v2634, 0
    %2654 = vmatprep.subr.mxu0 0.0
    %2655 = vmatpush1.msra.mxu0 0.0
    %2656 = vmatprep.subr.mxu0 0.0
    %2657 = vmatpush1.msra.mxu0 0.0
    %2658 = vmatprep.subr.mxu0 0.0
    %2659 = vmatpush1.msra.mxu0 0.0
    %2660 = vmatprep.subr.mxu0 0.0
    %2661 = vmatpush1.msra.mxu0 0.0
    %2662 = vmatprep.subr.mxu0 0.0
    %2663 = vmatpush1.msra.mxu0 0.0
    %2664 = vmatprep.subr.mxu0 0.0
    %2665 = vmatpush1.msra.mxu0 0.0
    %2666 = vmatprep.subr.mxu0 0.0
    %2667 = vmatpush1.msra.mxu0 0.0
    %2668 = vmatprep.subr.mxu0 0.0
    %2669 = vmatpush1.msra.mxu0 0.0
    %2670 = vmatprep.subr.mxu0 0.0
    %2671 = vmatpush1.msra.mxu0 0.0
    %2672 = vmatprep.subr.mxu0 0.0
    %2673 = vmatpush1.msra.mxu0 0.0
    %2674 = vmatprep.subr.mxu0 0.0
    %2675 = vmatpush1.msra.mxu0 0.0
    %2676 = vmatprep.subr.mxu0 0.0
    %2677 = vmatpush1.msra.mxu0 0.0
    %2678 = vmatprep.subr.mxu0 0.0
    %2679 = vmatpush1.msra.mxu0 0.0
    %2680 = vmatprep.subr.mxu0 0.0
    %2681 = vmatpush1.msra.mxu0 0.0
    %2682 = vmatprep.subr.mxu0 0.0
    %2683 = vmatpush1.msra.mxu0 0.0
    %2684 = vmatprep.subr.mxu0 %v1793
    %2685 = vmatpush1.msra.mxu0 %v1791
    %2686 = vmatprep.subr.mxu0 0.0
    %2687 = vmatpush2.msra.mxu0 0.0
    %2688 = vmatprep.subr.mxu0 0.0
    %2689 = vmatpush2.msra.mxu0 0.0
    %2690 = vmatprep.subr.mxu0 0.0
    %2691 = vmatpush2.msra.mxu0 0.0
    %2692 = vmatprep.subr.mxu0 0.0
    %2693 = vmatpush2.msra.mxu0 0.0
    %2694 = vmatprep.subr.mxu0 0.0
    %2695 = vmatpush2.msra.mxu0 0.0
    %2696 = vmatprep.subr.mxu0 0.0
    %2697 = vmatpush2.msra.mxu0 0.0
    %2698 = vmatprep.subr.mxu0 0.0
    %2699 = vmatpush2.msra.mxu0 0.0
    %2700 = vmatprep.subr.mxu0 0.0
    %2701 = vmatpush2.msra.mxu0 0.0
    %2702 = vmatprep.subr.mxu0 0.0
    %2703 = vmatpush2.msra.mxu0 0.0
    %2704 = vmatprep.subr.mxu0 0.0
    %2705 = vmatpush2.msra.mxu0 0.0
    %2706 = vmatprep.subr.mxu0 0.0
    %2707 = vmatpush2.msra.mxu0 0.0
    %2708 = vmatprep.subr.mxu0 0.0
    %2709 = vmatpush2.msra.mxu0 0.0
    %2710 = vmatprep.subr.mxu0 0.0
    %2711 = vmatpush2.msra.mxu0 0.0
    %2712 = vmatprep.subr.mxu0 0.0
    %2713 = vmatpush2.msra.mxu0 0.0
    %2714 = vmatprep.subr.mxu0 0.0
    %2715 = vmatpush2.msra.mxu0 0.0
    %2716 = vmatprep.subr.mxu0 0.0
    %2717 = vmatpush2.msra.mxu0 0.0
    %2718 = vmatprep.mubr.f32.mxu0 0.0
    %2719 = vmatmul.mubr.f32.gmra.mxu0 %v2652
    %v2720 = vpop.f32.mrf.mxu0
    %v2721 = vadd.f32 0.0, %v2720
    %v2722 = vpop.f32.mrf.mxu0
    %v2723 = vadd.f32 0.0, %v2722
    %2724 = vdwg.mxu0
    %2725 = vmatprep.subr.mxu0 0.0
    %2726 = vmatpush1.msra.mxu0 0.0
    %2727 = vmatprep.subr.mxu0 0.0
    %2728 = vmatpush1.msra.mxu0 0.0
    %2729 = vmatprep.subr.mxu0 0.0
    %2730 = vmatpush1.msra.mxu0 0.0
    %2731 = vmatprep.subr.mxu0 0.0
    %2732 = vmatpush1.msra.mxu0 0.0
    %2733 = vmatprep.subr.mxu0 0.0
    %2734 = vmatpush1.msra.mxu0 0.0
    %2735 = vmatprep.subr.mxu0 0.0
    %2736 = vmatpush1.msra.mxu0 0.0
    %2737 = vmatprep.subr.mxu0 0.0
    %2738 = vmatpush1.msra.mxu0 0.0
    %2739 = vmatprep.subr.mxu0 0.0
    %2740 = vmatpush1.msra.mxu0 0.0
    %2741 = vmatprep.subr.mxu0 0.0
    %2742 = vmatpush1.msra.mxu0 0.0
    %2743 = vmatprep.subr.mxu0 0.0
    %2744 = vmatpush1.msra.mxu0 0.0
    %2745 = vmatprep.subr.mxu0 0.0
    %2746 = vmatpush1.msra.mxu0 0.0
    %2747 = vmatprep.subr.mxu0 0.0
    %2748 = vmatpush1.msra.mxu0 0.0
    %2749 = vmatprep.subr.mxu0 0.0
    %2750 = vmatpush1.msra.mxu0 0.0
    %2751 = vmatprep.subr.mxu0 0.0
    %2752 = vmatpush1.msra.mxu0 0.0
    %2753 = vmatprep.subr.mxu0 0.0
    %2754 = vmatpush1.msra.mxu0 0.0
    %2755 = vmatprep.subr.mxu0 %v1965
    %2756 = vmatpush1.msra.mxu0 %v1963
    %2757 = vmatprep.subr.mxu0 0.0
    %2758 = vmatpush2.msra.mxu0 0.0
    %2759 = vmatprep.subr.mxu0 0.0
    %2760 = vmatpush2.msra.mxu0 0.0
    %2761 = vmatprep.subr.mxu0 0.0
    %2762 = vmatpush2.msra.mxu0 0.0
    %2763 = vmatprep.subr.mxu0 0.0
    %2764 = vmatpush2.msra.mxu0 0.0
    %2765 = vmatprep.subr.mxu0 0.0
    %2766 = vmatpush2.msra.mxu0 0.0
    %2767 = vmatprep.subr.mxu0 0.0
    %2768 = vmatpush2.msra.mxu0 0.0
    %2769 = vmatprep.subr.mxu0 0.0
    %2770 = vmatpush2.msra.mxu0 0.0
    %2771 = vmatprep.subr.mxu0 0.0
    %2772 = vmatpush2.msra.mxu0 0.0
    %2773 = vmatprep.subr.mxu0 0.0
    %2774 = vmatpush2.msra.mxu0 0.0
    %2775 = vmatprep.subr.mxu0 0.0
    %2776 = vmatpush2.msra.mxu0 0.0
    %2777 = vmatprep.subr.mxu0 0.0
    %2778 = vmatpush2.msra.mxu0 0.0
    %2779 = vmatprep.subr.mxu0 0.0
    %2780 = vmatpush2.msra.mxu0 0.0
    %2781 = vmatprep.subr.mxu0 0.0
    %2782 = vmatpush2.msra.mxu0 0.0
    %2783 = vmatprep.subr.mxu0 0.0
    %2784 = vmatpush2.msra.mxu0 0.0
    %2785 = vmatprep.subr.mxu0 0.0
    %2786 = vmatpush2.msra.mxu0 0.0
    %2787 = vmatprep.subr.mxu0 0.0
    %2788 = vmatpush2.msra.mxu0 0.0
    %2789 = vmatprep.mubr.f32.mxu0 0.0
    %2790 = vmatmul.mubr.f32.gmra.mxu0 %v2652
    %v2791 = vpop.f32.mrf.mxu0
    %v2792 = vadd.f32 0.0, %v2791
    %v2793 = vpop.f32.mrf.mxu0
    %v2794 = vadd.f32 0.0, %v2793
    %2795 = vdwg.mxu0
    %2796 = vxpose.xlu0.b32.start [1/16] %v2617, 128
    %2797 = vxpose.xlu0.b32.cont [2/16] 0.0, 128
    %2798 = vxpose.xlu0.b32.cont [3/16] 0.0, 128
    %2799 = vxpose.xlu0.b32.cont [4/16] 0.0, 128
    %2800 = vxpose.xlu0.b32.cont [5/16] 0.0, 128
    %2801 = vxpose.xlu0.b32.cont [6/16] 0.0, 128
    %2802 = vxpose.xlu0.b32.cont [7/16] 0.0, 128
    %2803 = vxpose.xlu0.b32.cont [8/16] 0.0, 128
    %2804 = vxpose.xlu0.b32.cont [9/16] 0.0, 128
    %2805 = vxpose.xlu0.b32.cont [10/16] 0.0, 128
    %2806 = vxpose.xlu0.b32.cont [11/16] 0.0, 128
    %2807 = vxpose.xlu0.b32.cont [12/16] 0.0, 128
    %2808 = vxpose.xlu0.b32.cont [13/16] 0.0, 128
    %2809 = vxpose.xlu0.b32.cont [14/16] 0.0, 128
    %2810 = vxpose.xlu0.b32.cont [15/16] 0.0, 128
    %2811 = vxpose.xlu0.b32.end [16/16] 0.0, 128
    %v2812 = vpop.trf.xlu0
    %v2813 = vpop.trf.xlu0
    %v2814 = vpop.trf.xlu0
    %v2815 = vpop.trf.xlu0
    %v2816 = vpop.trf.xlu0
    %v2817 = vpop.trf.xlu0
    %v2818 = vpop.trf.xlu0
    %v2819 = vpop.trf.xlu0
    %v2820 = vpop.trf.xlu0
    %v2821 = vpop.trf.xlu0
    %v2822 = vpop.trf.xlu0
    %v2823 = vpop.trf.xlu0
    %v2824 = vpop.trf.xlu0
    %v2825 = vpop.trf.xlu0
    %v2826 = vpop.trf.xlu0
    %v2827 = vpop.trf.xlu0
    %v2829 = vsel %vm2650, %v2812, 0
    %2831 = vmatprep.subr.mxu0 0.0
    %2832 = vmatpush1.msra.mxu0 0.0
    %2833 = vmatprep.subr.mxu0 0.0
    %2834 = vmatpush1.msra.mxu0 0.0
    %2835 = vmatprep.subr.mxu0 0.0
    %2836 = vmatpush1.msra.mxu0 0.0
    %2837 = vmatprep.subr.mxu0 0.0
    %2838 = vmatpush1.msra.mxu0 0.0
    %2839 = vmatprep.subr.mxu0 0.0
    %2840 = vmatpush1.msra.mxu0 0.0
    %2841 = vmatprep.subr.mxu0 0.0
    %2842 = vmatpush1.msra.mxu0 0.0
    %2843 = vmatprep.subr.mxu0 0.0
    %2844 = vmatpush1.msra.mxu0 0.0
    %2845 = vmatprep.subr.mxu0 0.0
    %2846 = vmatpush1.msra.mxu0 0.0
    %2847 = vmatprep.subr.mxu0 0.0
    %2848 = vmatpush1.msra.mxu0 0.0
    %2849 = vmatprep.subr.mxu0 0.0
    %2850 = vmatpush1.msra.mxu0 0.0
    %2851 = vmatprep.subr.mxu0 0.0
    %2852 = vmatpush1.msra.mxu0 0.0
    %2853 = vmatprep.subr.mxu0 0.0
    %2854 = vmatpush1.msra.mxu0 0.0
    %2855 = vmatprep.subr.mxu0 0.0
    %2856 = vmatpush1.msra.mxu0 0.0
    %2857 = vmatprep.subr.mxu0 0.0
    %2858 = vmatpush1.msra.mxu0 0.0
    %2859 = vmatprep.subr.mxu0 0.0
    %2860 = vmatpush1.msra.mxu0 0.0
    %2861 = vmatprep.subr.mxu0 %v1797
    %2862 = vmatpush1.msra.mxu0 %v1795
    %2863 = vmatprep.subr.mxu0 0.0
    %2864 = vmatpush2.msra.mxu0 0.0
    %2865 = vmatprep.subr.mxu0 0.0
    %2866 = vmatpush2.msra.mxu0 0.0
    %2867 = vmatprep.subr.mxu0 0.0
    %2868 = vmatpush2.msra.mxu0 0.0
    %2869 = vmatprep.subr.mxu0 0.0
    %2870 = vmatpush2.msra.mxu0 0.0
    %2871 = vmatprep.subr.mxu0 0.0
    %2872 = vmatpush2.msra.mxu0 0.0
    %2873 = vmatprep.subr.mxu0 0.0
    %2874 = vmatpush2.msra.mxu0 0.0
    %2875 = vmatprep.subr.mxu0 0.0
    %2876 = vmatpush2.msra.mxu0 0.0
    %2877 = vmatprep.subr.mxu0 0.0
    %2878 = vmatpush2.msra.mxu0 0.0
    %2879 = vmatprep.subr.mxu0 0.0
    %2880 = vmatpush2.msra.mxu0 0.0
    %2881 = vmatprep.subr.mxu0 0.0
    %2882 = vmatpush2.msra.mxu0 0.0
    %2883 = vmatprep.subr.mxu0 0.0
    %2884 = vmatpush2.msra.mxu0 0.0
    %2885 = vmatprep.subr.mxu0 0.0
    %2886 = vmatpush2.msra.mxu0 0.0
    %2887 = vmatprep.subr.mxu0 0.0
    %2888 = vmatpush2.msra.mxu0 0.0
    %2889 = vmatprep.subr.mxu0 0.0
    %2890 = vmatpush2.msra.mxu0 0.0
    %2891 = vmatprep.subr.mxu0 0.0
    %2892 = vmatpush2.msra.mxu0 0.0
    %2893 = vmatprep.subr.mxu0 0.0
    %2894 = vmatpush2.msra.mxu0 0.0
    %2895 = vmatprep.mubr.f32.mxu0 0.0
    %2896 = vmatmul.mubr.f32.gmra.mxu0 %v2829
    %v2897 = vpop.f32.mrf.mxu0
    %v2898 = vadd.f32 0.0, %v2897
    %v2899 = vpop.f32.mrf.mxu0
    %v2900 = vadd.f32 0.0, %v2899
    %2901 = vdwg.mxu0
    %2902 = vmatprep.subr.mxu0 0.0
    %2903 = vmatpush1.msra.mxu0 0.0
    %2904 = vmatprep.subr.mxu0 0.0
    %2905 = vmatpush1.msra.mxu0 0.0
    %2906 = vmatprep.subr.mxu0 0.0
    %2907 = vmatpush1.msra.mxu0 0.0
    %2908 = vmatprep.subr.mxu0 0.0
    %2909 = vmatpush1.msra.mxu0 0.0
    %2910 = vmatprep.subr.mxu0 0.0
    %2911 = vmatpush1.msra.mxu0 0.0
    %2912 = vmatprep.subr.mxu0 0.0
    %2913 = vmatpush1.msra.mxu0 0.0
    %2914 = vmatprep.subr.mxu0 0.0
    %2915 = vmatpush1.msra.mxu0 0.0
    %2916 = vmatprep.subr.mxu0 0.0
    %2917 = vmatpush1.msra.mxu0 0.0
    %2918 = vmatprep.subr.mxu0 0.0
    %2919 = vmatpush1.msra.mxu0 0.0
    %2920 = vmatprep.subr.mxu0 0.0
    %2921 = vmatpush1.msra.mxu0 0.0
    %2922 = vmatprep.subr.mxu0 0.0
    %2923 = vmatpush1.msra.mxu0 0.0
    %2924 = vmatprep.subr.mxu0 0.0
    %2925 = vmatpush1.msra.mxu0 0.0
    %2926 = vmatprep.subr.mxu0 0.0
    %2927 = vmatpush1.msra.mxu0 0.0
    %2928 = vmatprep.subr.mxu0 0.0
    %2929 = vmatpush1.msra.mxu0 0.0
    %2930 = vmatprep.subr.mxu0 0.0
    %2931 = vmatpush1.msra.mxu0 0.0
    %2932 = vmatprep.subr.mxu0 %v1969
    %2933 = vmatpush1.msra.mxu0 %v1967
    %2934 = vmatprep.subr.mxu0 0.0
    %2935 = vmatpush2.msra.mxu0 0.0
    %2936 = vmatprep.subr.mxu0 0.0
    %2937 = vmatpush2.msra.mxu0 0.0
    %2938 = vmatprep.subr.mxu0 0.0
    %2939 = vmatpush2.msra.mxu0 0.0
    %2940 = vmatprep.subr.mxu0 0.0
    %2941 = vmatpush2.msra.mxu0 0.0
    %2942 = vmatprep.subr.mxu0 0.0
    %2943 = vmatpush2.msra.mxu0 0.0
    %2944 = vmatprep.subr.mxu0 0.0
    %2945 = vmatpush2.msra.mxu0 0.0
    %2946 = vmatprep.subr.mxu0 0.0
    %2947 = vmatpush2.msra.mxu0 0.0
    %2948 = vmatprep.subr.mxu0 0.0
    %2949 = vmatpush2.msra.mxu0 0.0
    %2950 = vmatprep.subr.mxu0 0.0
    %2951 = vmatpush2.msra.mxu0 0.0
    %2952 = vmatprep.subr.mxu0 0.0
    %2953 = vmatpush2.msra.mxu0 0.0
    %2954 = vmatprep.subr.mxu0 0.0
    %2955 = vmatpush2.msra.mxu0 0.0
    %2956 = vmatprep.subr.mxu0 0.0
    %2957 = vmatpush2.msra.mxu0 0.0
    %2958 = vmatprep.subr.mxu0 0.0
    %2959 = vmatpush2.msra.mxu0 0.0
    %2960 = vmatprep.subr.mxu0 0.0
    %2961 = vmatpush2.msra.mxu0 0.0
    %2962 = vmatprep.subr.mxu0 0.0
    %2963 = vmatpush2.msra.mxu0 0.0
    %2964 = vmatprep.subr.mxu0 0.0
    %2965 = vmatpush2.msra.mxu0 0.0
    %2966 = vmatprep.mubr.f32.mxu0 0.0
    %2967 = vmatmul.mubr.f32.gmra.mxu0 %v2829
    %v2968 = vpop.f32.mrf.mxu0
    %v2969 = vadd.f32 0.0, %v2968
    %v2970 = vpop.f32.mrf.mxu0
    %v2971 = vadd.f32 0.0, %v2970
    %2972 = vdwg.mxu0
    %v2981 = vrot.slane %v2898, 7
    %vm2982 = vcmask 1041409
    %v2983 = vsel %vm2982, %v2981, %v2721
    %v2984 = vrot.slane %v2900, 7
    %v2985 = vsel %vm2982, %v2984, %v2723
    %v2986 = vrot.slane %v2969, 7
    %v2987 = vsel %vm2982, %v2986, %v2792
    %v2988 = vrot.slane %v2971, 7
    %v2989 = vsel %vm2982, %v2988, %v2794
    %v2994 = vrot.slane %v2721, 7
    %v2995 = vrot.slane %v2898, 6
    %vm2996 = vcmask 1043459
    %v2997 = vsel %vm2996, %v2995, %v2994
    %v2998 = vrot.slane %v2723, 7
    %v2999 = vrot.slane %v2900, 6
    %v3000 = vsel %vm2996, %v2999, %v2998
    %v3001 = vrot.slane %v2792, 7
    %v3002 = vrot.slane %v2969, 6
    %v3003 = vsel %vm2996, %v3002, %v3001
    %v3004 = vrot.slane %v2794, 7
    %v3005 = vrot.slane %v2971, 6
    %v3006 = vsel %vm2996, %v3005, %v3004
    %vm3011 = vcmask 1041408
    %v3012 = vsel %vm3011, %v2983, %v2997
    %v3013 = vsel %vm3011, %v2985, %v3000
    %v3014 = vsel %vm3011, %v2987, %v3003
    %v3015 = vsel %vm3011, %v2989, %v3006
    %v3016 = vpack.c.bf16 %v3012, %v3012
    %v3017 = vpack.c.bf16 %v3013, %v3013
    %v3018 = vpack.c.bf16 %v3014, %v3014
    %v3019 = vpack.c.bf16 %v3015, %v3015
    %v3020 = vld [vmem:[%s7] sm:$0xff]
    %v3021 = vld [vmem:[%s7 + $0x8] sm:$0xff]
    %v3022 = vld [vmem:[%s7 + $0x10] sm:$0xff]
    %v3023 = vld [vmem:[%s7 + $0x18] sm:$0xff]
    %v3024 = vld [vmem:[%s7 + $0x20] sm:$0xff]
    %v3025 = vld [vmem:[%s7 + $0x28] sm:$0xff]
    %v3026 = vld [vmem:[%s7 + $0x30] sm:$0xff]
    %v3027 = vld [vmem:[%s7 + $0x38] sm:$0xff]
    %v3028 = vld [vmem:[%s7 + $0x40] sm:$0xff]
    %v3029 = vld [vmem:[%s7 + $0x48] sm:$0xff]
    %v3030 = vld [vmem:[%s7 + $0x50] sm:$0xff]
    %v3031 = vld [vmem:[%s7 + $0x58] sm:$0xff]
    %v3032 = vld [vmem:[%s7 + $0x60] sm:$0xff]
    %v3033 = vld [vmem:[%s7 + $0x68] sm:$0xff]
    %v3034 = vld [vmem:[%s7 + $0x70] sm:$0xff]
    %v3035 = vld [vmem:[%s7 + $0x78] sm:$0xff]
    %v3036 = vld [vmem:[%s7 + $0x80] sm:$0xff]
    %v3037 = vld [vmem:[%s7 + $0x88] sm:$0xff]
    %v3038 = vld [vmem:[%s7 + $0x90] sm:$0xff]
    %v3039 = vld [vmem:[%s7 + $0x98] sm:$0xff]
    %v3040 = vld [vmem:[%s7 + $0xa0] sm:$0xff]
    %v3041 = vld [vmem:[%s7 + $0xa8] sm:$0xff]
    %v3042 = vld [vmem:[%s7 + $0xb0] sm:$0xff]
    %v3043 = vld [vmem:[%s7 + $0xb8] sm:$0xff]
    %v3044 = vld [vmem:[%s7 + $0xc0] sm:$0xff]
    %v3045 = vld [vmem:[%s7 + $0xc8] sm:$0xff]
    %v3046 = vld [vmem:[%s7 + $0xd0] sm:$0xff]
    %v3047 = vld [vmem:[%s7 + $0xd8] sm:$0xff]
    %v3048 = vld [vmem:[%s7 + $0xe0] sm:$0xff]
    %v3049 = vld [vmem:[%s7 + $0xe8] sm:$0xff]
    %v3050 = vld [vmem:[%s7 + $0xf0] sm:$0xff]
    %v3051 = vld [vmem:[%s7 + $0xf8] sm:$0xff]
    %v3052 = vld [vmem:[%s7 + $0x100] sm:$0xff]
    %v3053 = vld [vmem:[%s7 + $0x108] sm:$0xff]
    %v3054 = vld [vmem:[%s7 + $0x110] sm:$0xff]
    %v3055 = vld [vmem:[%s7 + $0x118] sm:$0xff]
    %v3056 = vld [vmem:[%s7 + $0x120] sm:$0xff]
    %v3057 = vld [vmem:[%s7 + $0x128] sm:$0xff]
    %v3058 = vld [vmem:[%s7 + $0x130] sm:$0xff]
    %v3059 = vld [vmem:[%s7 + $0x138] sm:$0xff]
    %v3060 = vld [vmem:[%s7 + $0x140] sm:$0xff]
    %v3061 = vld [vmem:[%s7 + $0x148] sm:$0xff]
    %v3062 = vld [vmem:[%s7 + $0x150] sm:$0xff]
    %v3063 = vld [vmem:[%s7 + $0x158] sm:$0xff]
    %v3064 = vld [vmem:[%s7 + $0x160] sm:$0xff]
    %v3065 = vld [vmem:[%s7 + $0x168] sm:$0xff]
    %v3066 = vld [vmem:[%s7 + $0x170] sm:$0xff]
    %v3067 = vld [vmem:[%s7 + $0x178] sm:$0xff]
    %v3068 = vld [vmem:[%s7 + $0x180] sm:$0xff]
    %v3069 = vld [vmem:[%s7 + $0x188] sm:$0xff]
    %v3070 = vld [vmem:[%s7 + $0x190] sm:$0xff]
    %v3071 = vld [vmem:[%s7 + $0x198] sm:$0xff]
    %v3072 = vld [vmem:[%s7 + $0x1a0] sm:$0xff]
    %v3073 = vld [vmem:[%s7 + $0x1a8] sm:$0xff]
    %v3074 = vld [vmem:[%s7 + $0x1b0] sm:$0xff]
    %v3075 = vld [vmem:[%s7 + $0x1b8] sm:$0xff]
    %v3076 = vld [vmem:[%s7 + $0x1c0] sm:$0xff]
    %v3077 = vld [vmem:[%s7 + $0x1c8] sm:$0xff]
    %v3078 = vld [vmem:[%s7 + $0x1d0] sm:$0xff]
    %v3079 = vld [vmem:[%s7 + $0x1d8] sm:$0xff]
    %v3080 = vld [vmem:[%s7 + $0x1e0] sm:$0xff]
    %v3081 = vld [vmem:[%s7 + $0x1e8] sm:$0xff]
    %v3082 = vld [vmem:[%s7 + $0x1f0] sm:$0xff]
    %v3083 = vld [vmem:[%s7 + $0x1f8] sm:$0xff]
    %v3084 = vld [vmem:[%s7 + $0x200] sm:$0xff]
    %v3085 = vld [vmem:[%s7 + $0x208] sm:$0xff]
    %v3086 = vld [vmem:[%s7 + $0x210] sm:$0xff]
    %v3087 = vld [vmem:[%s7 + $0x218] sm:$0xff]
    %v3088 = vld [vmem:[%s7 + $0x220] sm:$0xff]
    %v3089 = vld [vmem:[%s7 + $0x228] sm:$0xff]
    %v3090 = vld [vmem:[%s7 + $0x230] sm:$0xff]
    %v3091 = vld [vmem:[%s7 + $0x238] sm:$0xff]
    %v3092 = vld [vmem:[%s7 + $0x240] sm:$0xff]
    %v3093 = vld [vmem:[%s7 + $0x248] sm:$0xff]
    %v3094 = vld [vmem:[%s7 + $0x250] sm:$0xff]
    %v3095 = vld [vmem:[%s7 + $0x258] sm:$0xff]
    %v3096 = vld [vmem:[%s7 + $0x260] sm:$0xff]
    %v3097 = vld [vmem:[%s7 + $0x268] sm:$0xff]
    %v3098 = vld [vmem:[%s7 + $0x270] sm:$0xff]
    %v3099 = vld [vmem:[%s7 + $0x278] sm:$0xff]
    %v3100 = vld [vmem:[%s7 + $0x280] sm:$0xff]
    %v3101 = vld [vmem:[%s7 + $0x288] sm:$0xff]
    %v3102 = vld [vmem:[%s7 + $0x290] sm:$0xff]
    %v3103 = vld [vmem:[%s7 + $0x298] sm:$0xff]
    %v3104 = vld [vmem:[%s7 + $0x2a0] sm:$0xff]
    %v3105 = vld [vmem:[%s7 + $0x2a8] sm:$0xff]
    %v3106 = vld [vmem:[%s7 + $0x2b0] sm:$0xff]
    %v3107 = vld [vmem:[%s7 + $0x2b8] sm:$0xff]
    %v3108 = vld [vmem:[%s7 + $0x2c0] sm:$0xff]
    %v3109 = vld [vmem:[%s7 + $0x2c8] sm:$0xff]
    %v3110 = vld [vmem:[%s7 + $0x2d0] sm:$0xff]
    %v3111 = vld [vmem:[%s7 + $0x2d8] sm:$0xff]
    %v3112 = vld [vmem:[%s7 + $0x2e0] sm:$0xff]
    %v3113 = vld [vmem:[%s7 + $0x2e8] sm:$0xff]
    %v3114 = vld [vmem:[%s7 + $0x2f0] sm:$0xff]
    %v3115 = vld [vmem:[%s7 + $0x2f8] sm:$0xff]
    %v3116 = vld [vmem:[%s7 + $0x300] sm:$0xff]
    %v3117 = vld [vmem:[%s7 + $0x308] sm:$0xff]
    %v3118 = vld [vmem:[%s7 + $0x310] sm:$0xff]
    %v3119 = vld [vmem:[%s7 + $0x318] sm:$0xff]
    %v3120 = vld [vmem:[%s7 + $0x320] sm:$0xff]
    %v3121 = vld [vmem:[%s7 + $0x328] sm:$0xff]
    %v3122 = vld [vmem:[%s7 + $0x330] sm:$0xff]
    %v3123 = vld [vmem:[%s7 + $0x338] sm:$0xff]
    %v3124 = vld [vmem:[%s7 + $0x340] sm:$0xff]
    %v3125 = vld [vmem:[%s7 + $0x348] sm:$0xff]
    %v3126 = vld [vmem:[%s7 + $0x350] sm:$0xff]
    %v3127 = vld [vmem:[%s7 + $0x358] sm:$0xff]
    %v3128 = vld [vmem:[%s7 + $0x360] sm:$0xff]
    %v3129 = vld [vmem:[%s7 + $0x368] sm:$0xff]
    %v3130 = vld [vmem:[%s7 + $0x370] sm:$0xff]
    %v3131 = vld [vmem:[%s7 + $0x378] sm:$0xff]
    %v3132 = vld [vmem:[%s7 + $0x380] sm:$0xff]
    %v3133 = vld [vmem:[%s7 + $0x388] sm:$0xff]
    %v3134 = vld [vmem:[%s7 + $0x390] sm:$0xff]
    %v3135 = vld [vmem:[%s7 + $0x398] sm:$0xff]
    %v3136 = vld [vmem:[%s7 + $0x3a0] sm:$0xff]
    %v3137 = vld [vmem:[%s7 + $0x3a8] sm:$0xff]
    %v3138 = vld [vmem:[%s7 + $0x3b0] sm:$0xff]
    %v3139 = vld [vmem:[%s7 + $0x3b8] sm:$0xff]
    %v3140 = vld [vmem:[%s7 + $0x3c0] sm:$0xff]
    %v3141 = vld [vmem:[%s7 + $0x3c8] sm:$0xff]
    %v3142 = vld [vmem:[%s7 + $0x3d0] sm:$0xff]
    %v3143 = vld [vmem:[%s7 + $0x3d8] sm:$0xff]
    %v3144 = vld [vmem:[%s7 + $0x3e0] sm:$0xff]
    %v3145 = vld [vmem:[%s7 + $0x3e8] sm:$0xff]
    %v3146 = vld [vmem:[%s7 + $0x3f0] sm:$0xff]
    %v3147 = vld [vmem:[%s7 + $0x3f8] sm:$0xff]
    %v3148 = vld [vmem:[%s8] sm:$0xf]
    %v3150 = vlaneseq
    %v3151 = vshrl.u32 %v3150, 7
    %v3152 = vsub.s32 0, %v3151
    %v3153 = vrot.slane %v3148, %v3152
    %v3154 = vlaneseq
    %v3155 = vshrl.u32 %v3154, 7
    %v3156 = vsub.s32 1, %v3155
    %v3157 = vrot.slane %v3148, %v3156
    %v3158 = vlaneseq
    %v3159 = vshrl.u32 %v3158, 7
    %v3160 = vsub.s32 2, %v3159
    %v3161 = vrot.slane %v3148, %v3160
    %v3162 = vlaneseq
    %v3163 = vshrl.u32 %v3162, 7
    %v3164 = vsub.s32 3, %v3163
    %v3165 = vrot.slane %v3148, %v3164
    %v3298 = vunpack.c.l.b16 %v3020
    %v3299 = vunpack.c.h.b16 %v3020
    %v3300 = vunpack.c.l.b16 %v3021
    %v3301 = vunpack.c.h.b16 %v3021
    %v3302 = vunpack.c.l.b16 %v3022
    %v3303 = vunpack.c.h.b16 %v3022
    %v3304 = vunpack.c.l.b16 %v3023
    %v3305 = vunpack.c.h.b16 %v3023
    %v3306 = vunpack.c.l.b16 %v3024
    %v3307 = vunpack.c.h.b16 %v3024
    %v3308 = vunpack.c.l.b16 %v3025
    %v3309 = vunpack.c.h.b16 %v3025
    %v3310 = vunpack.c.l.b16 %v3026
    %v3311 = vunpack.c.h.b16 %v3026
    %v3312 = vunpack.c.l.b16 %v3027
    %v3313 = vunpack.c.h.b16 %v3027
    %v3314 = vunpack.c.l.b16 %v3028
    %v3315 = vunpack.c.h.b16 %v3028
    %v3316 = vunpack.c.l.b16 %v3029
    %v3317 = vunpack.c.h.b16 %v3029
    %v3318 = vunpack.c.l.b16 %v3030
    %v3319 = vunpack.c.h.b16 %v3030
    %v3320 = vunpack.c.l.b16 %v3031
    %v3321 = vunpack.c.h.b16 %v3031
    %v3322 = vunpack.c.l.b16 %v3032
    %v3323 = vunpack.c.h.b16 %v3032
    %v3324 = vunpack.c.l.b16 %v3033
    %v3325 = vunpack.c.h.b16 %v3033
    %v3326 = vunpack.c.l.b16 %v3034
    %v3327 = vunpack.c.h.b16 %v3034
    %v3328 = vunpack.c.l.b16 %v3035
    %v3329 = vunpack.c.h.b16 %v3035
    %v3330 = vunpack.c.l.b16 %v3036
    %v3331 = vunpack.c.h.b16 %v3036
    %v3332 = vunpack.c.l.b16 %v3037
    %v3333 = vunpack.c.h.b16 %v3037
    %v3334 = vunpack.c.l.b16 %v3038
    %v3335 = vunpack.c.h.b16 %v3038
    %v3336 = vunpack.c.l.b16 %v3039
    %v3337 = vunpack.c.h.b16 %v3039
    %v3338 = vunpack.c.l.b16 %v3040
    %v3339 = vunpack.c.h.b16 %v3040
    %v3340 = vunpack.c.l.b16 %v3041
    %v3341 = vunpack.c.h.b16 %v3041
    %v3342 = vunpack.c.l.b16 %v3042
    %v3343 = vunpack.c.h.b16 %v3042
    %v3344 = vunpack.c.l.b16 %v3043
    %v3345 = vunpack.c.h.b16 %v3043
    %v3346 = vunpack.c.l.b16 %v3044
    %v3347 = vunpack.c.h.b16 %v3044
    %v3348 = vunpack.c.l.b16 %v3045
    %v3349 = vunpack.c.h.b16 %v3045
    %v3350 = vunpack.c.l.b16 %v3046
    %v3351 = vunpack.c.h.b16 %v3046
    %v3352 = vunpack.c.l.b16 %v3047
    %v3353 = vunpack.c.h.b16 %v3047
    %v3354 = vunpack.c.l.b16 %v3048
    %v3355 = vunpack.c.h.b16 %v3048
    %v3356 = vunpack.c.l.b16 %v3049
    %v3357 = vunpack.c.h.b16 %v3049
    %v3358 = vunpack.c.l.b16 %v3050
    %v3359 = vunpack.c.h.b16 %v3050
    %v3360 = vunpack.c.l.b16 %v3051
    %v3361 = vunpack.c.h.b16 %v3051
    %v3362 = vunpack.c.l.b16 %v3052
    %v3363 = vunpack.c.h.b16 %v3052
    %v3364 = vunpack.c.l.b16 %v3053
    %v3365 = vunpack.c.h.b16 %v3053
    %v3366 = vunpack.c.l.b16 %v3054
    %v3367 = vunpack.c.h.b16 %v3054
    %v3368 = vunpack.c.l.b16 %v3055
    %v3369 = vunpack.c.h.b16 %v3055
    %v3370 = vunpack.c.l.b16 %v3056
    %v3371 = vunpack.c.h.b16 %v3056
    %v3372 = vunpack.c.l.b16 %v3057
    %v3373 = vunpack.c.h.b16 %v3057
    %v3374 = vunpack.c.l.b16 %v3058
    %v3375 = vunpack.c.h.b16 %v3058
    %v3376 = vunpack.c.l.b16 %v3059
    %v3377 = vunpack.c.h.b16 %v3059
    %v3378 = vunpack.c.l.b16 %v3060
    %v3379 = vunpack.c.h.b16 %v3060
    %v3380 = vunpack.c.l.b16 %v3061
    %v3381 = vunpack.c.h.b16 %v3061
    %v3382 = vunpack.c.l.b16 %v3062
    %v3383 = vunpack.c.h.b16 %v3062
    %v3384 = vunpack.c.l.b16 %v3063
    %v3385 = vunpack.c.h.b16 %v3063
    %v3386 = vunpack.c.l.b16 %v3064
    %v3387 = vunpack.c.h.b16 %v3064
    %v3388 = vunpack.c.l.b16 %v3065
    %v3389 = vunpack.c.h.b16 %v3065
    %v3390 = vunpack.c.l.b16 %v3066
    %v3391 = vunpack.c.h.b16 %v3066
    %v3392 = vunpack.c.l.b16 %v3067
    %v3393 = vunpack.c.h.b16 %v3067
    %v3394 = vunpack.c.l.b16 %v3068
    %v3395 = vunpack.c.h.b16 %v3068
    %v3396 = vunpack.c.l.b16 %v3069
    %v3397 = vunpack.c.h.b16 %v3069
    %v3398 = vunpack.c.l.b16 %v3070
    %v3399 = vunpack.c.h.b16 %v3070
    %v3400 = vunpack.c.l.b16 %v3071
    %v3401 = vunpack.c.h.b16 %v3071
    %v3402 = vunpack.c.l.b16 %v3072
    %v3403 = vunpack.c.h.b16 %v3072
    %v3404 = vunpack.c.l.b16 %v3073
    %v3405 = vunpack.c.h.b16 %v3073
    %v3406 = vunpack.c.l.b16 %v3074
    %v3407 = vunpack.c.h.b16 %v3074
    %v3408 = vunpack.c.l.b16 %v3075
    %v3409 = vunpack.c.h.b16 %v3075
    %v3410 = vunpack.c.l.b16 %v3076
    %v3411 = vunpack.c.h.b16 %v3076
    %v3412 = vunpack.c.l.b16 %v3077
    %v3413 = vunpack.c.h.b16 %v3077
    %v3414 = vunpack.c.l.b16 %v3078
    %v3415 = vunpack.c.h.b16 %v3078
    %v3416 = vunpack.c.l.b16 %v3079
    %v3417 = vunpack.c.h.b16 %v3079
    %v3418 = vunpack.c.l.b16 %v3080
    %v3419 = vunpack.c.h.b16 %v3080
    %v3420 = vunpack.c.l.b16 %v3081
    %v3421 = vunpack.c.h.b16 %v3081
    %v3422 = vunpack.c.l.b16 %v3082
    %v3423 = vunpack.c.h.b16 %v3082
    %v3424 = vunpack.c.l.b16 %v3083
    %v3425 = vunpack.c.h.b16 %v3083
    %v3426 = vunpack.c.l.b16 %v3084
    %v3427 = vunpack.c.h.b16 %v3084
    %v3428 = vunpack.c.l.b16 %v3085
    %v3429 = vunpack.c.h.b16 %v3085
    %v3430 = vunpack.c.l.b16 %v3086
    %v3431 = vunpack.c.h.b16 %v3086
    %v3432 = vunpack.c.l.b16 %v3087
    %v3433 = vunpack.c.h.b16 %v3087
    %v3434 = vunpack.c.l.b16 %v3088
    %v3435 = vunpack.c.h.b16 %v3088
    %v3436 = vunpack.c.l.b16 %v3089
    %v3437 = vunpack.c.h.b16 %v3089
    %v3438 = vunpack.c.l.b16 %v3090
    %v3439 = vunpack.c.h.b16 %v3090
    %v3440 = vunpack.c.l.b16 %v3091
    %v3441 = vunpack.c.h.b16 %v3091
    %v3442 = vunpack.c.l.b16 %v3092
    %v3443 = vunpack.c.h.b16 %v3092
    %v3444 = vunpack.c.l.b16 %v3093
    %v3445 = vunpack.c.h.b16 %v3093
    %v3446 = vunpack.c.l.b16 %v3094
    %v3447 = vunpack.c.h.b16 %v3094
    %v3448 = vunpack.c.l.b16 %v3095
    %v3449 = vunpack.c.h.b16 %v3095
    %v3450 = vunpack.c.l.b16 %v3096
    %v3451 = vunpack.c.h.b16 %v3096
    %v3452 = vunpack.c.l.b16 %v3097
    %v3453 = vunpack.c.h.b16 %v3097
    %v3454 = vunpack.c.l.b16 %v3098
    %v3455 = vunpack.c.h.b16 %v3098
    %v3456 = vunpack.c.l.b16 %v3099
    %v3457 = vunpack.c.h.b16 %v3099
    %v3458 = vunpack.c.l.b16 %v3100
    %v3459 = vunpack.c.h.b16 %v3100
    %v3460 = vunpack.c.l.b16 %v3101
    %v3461 = vunpack.c.h.b16 %v3101
    %v3462 = vunpack.c.l.b16 %v3102
    %v3463 = vunpack.c.h.b16 %v3102
    %v3464 = vunpack.c.l.b16 %v3103
    %v3465 = vunpack.c.h.b16 %v3103
    %v3466 = vunpack.c.l.b16 %v3104
    %v3467 = vunpack.c.h.b16 %v3104
    %v3468 = vunpack.c.l.b16 %v3105
    %v3469 = vunpack.c.h.b16 %v3105
    %v3470 = vunpack.c.l.b16 %v3106
    %v3471 = vunpack.c.h.b16 %v3106
    %v3472 = vunpack.c.l.b16 %v3107
    %v3473 = vunpack.c.h.b16 %v3107
    %v3474 = vunpack.c.l.b16 %v3108
    %v3475 = vunpack.c.h.b16 %v3108
    %v3476 = vunpack.c.l.b16 %v3109
    %v3477 = vunpack.c.h.b16 %v3109
    %v3478 = vunpack.c.l.b16 %v3110
    %v3479 = vunpack.c.h.b16 %v3110
    %v3480 = vunpack.c.l.b16 %v3111
    %v3481 = vunpack.c.h.b16 %v3111
    %v3482 = vunpack.c.l.b16 %v3112
    %v3483 = vunpack.c.h.b16 %v3112
    %v3484 = vunpack.c.l.b16 %v3113
    %v3485 = vunpack.c.h.b16 %v3113
    %v3486 = vunpack.c.l.b16 %v3114
    %v3487 = vunpack.c.h.b16 %v3114
    %v3488 = vunpack.c.l.b16 %v3115
    %v3489 = vunpack.c.h.b16 %v3115
    %v3490 = vunpack.c.l.b16 %v3116
    %v3491 = vunpack.c.h.b16 %v3116
    %v3492 = vunpack.c.l.b16 %v3117
    %v3493 = vunpack.c.h.b16 %v3117
    %v3494 = vunpack.c.l.b16 %v3118
    %v3495 = vunpack.c.h.b16 %v3118
    %v3496 = vunpack.c.l.b16 %v3119
    %v3497 = vunpack.c.h.b16 %v3119
    %v3498 = vunpack.c.l.b16 %v3120
    %v3499 = vunpack.c.h.b16 %v3120
    %v3500 = vunpack.c.l.b16 %v3121
    %v3501 = vunpack.c.h.b16 %v3121
    %v3502 = vunpack.c.l.b16 %v3122
    %v3503 = vunpack.c.h.b16 %v3122
    %v3504 = vunpack.c.l.b16 %v3123
    %v3505 = vunpack.c.h.b16 %v3123
    %v3506 = vunpack.c.l.b16 %v3124
    %v3507 = vunpack.c.h.b16 %v3124
    %v3508 = vunpack.c.l.b16 %v3125
    %v3509 = vunpack.c.h.b16 %v3125
    %v3510 = vunpack.c.l.b16 %v3126
    %v3511 = vunpack.c.h.b16 %v3126
    %v3512 = vunpack.c.l.b16 %v3127
    %v3513 = vunpack.c.h.b16 %v3127
    %v3514 = vunpack.c.l.b16 %v3128
    %v3515 = vunpack.c.h.b16 %v3128
    %v3516 = vunpack.c.l.b16 %v3129
    %v3517 = vunpack.c.h.b16 %v3129
    %v3518 = vunpack.c.l.b16 %v3130
    %v3519 = vunpack.c.h.b16 %v3130
    %v3520 = vunpack.c.l.b16 %v3131
    %v3521 = vunpack.c.h.b16 %v3131
    %v3522 = vunpack.c.l.b16 %v3132
    %v3523 = vunpack.c.h.b16 %v3132
    %v3524 = vunpack.c.l.b16 %v3133
    %v3525 = vunpack.c.h.b16 %v3133
    %v3526 = vunpack.c.l.b16 %v3134
    %v3527 = vunpack.c.h.b16 %v3134
    %v3528 = vunpack.c.l.b16 %v3135
    %v3529 = vunpack.c.h.b16 %v3135
    %v3530 = vunpack.c.l.b16 %v3136
    %v3531 = vunpack.c.h.b16 %v3136
    %v3532 = vunpack.c.l.b16 %v3137
    %v3533 = vunpack.c.h.b16 %v3137
    %v3534 = vunpack.c.l.b16 %v3138
    %v3535 = vunpack.c.h.b16 %v3138
    %v3536 = vunpack.c.l.b16 %v3139
    %v3537 = vunpack.c.h.b16 %v3139
    %v3538 = vunpack.c.l.b16 %v3140
    %v3539 = vunpack.c.h.b16 %v3140
    %v3540 = vunpack.c.l.b16 %v3141
    %v3541 = vunpack.c.h.b16 %v3141
    %v3542 = vunpack.c.l.b16 %v3142
    %v3543 = vunpack.c.h.b16 %v3142
    %v3544 = vunpack.c.l.b16 %v3143
    %v3545 = vunpack.c.h.b16 %v3143
    %v3546 = vunpack.c.l.b16 %v3144
    %v3547 = vunpack.c.h.b16 %v3144
    %v3548 = vunpack.c.l.b16 %v3145
    %v3549 = vunpack.c.h.b16 %v3145
    %v3550 = vunpack.c.l.b16 %v3146
    %v3551 = vunpack.c.h.b16 %v3146
    %v3552 = vunpack.c.l.b16 %v3147
    %v3553 = vunpack.c.h.b16 %v3147
    %v3554 = vpack.c.b16 %v3302, %v3298
    %v3555 = vpack.c.b16 %v3303, %v3299
    %v3556 = vpack.c.b16 %v3304, %v3300
    %v3557 = vpack.c.b16 %v3305, %v3301
    %v3558 = vpack.c.b16 %v3310, %v3306
    %v3559 = vpack.c.b16 %v3311, %v3307
    %v3560 = vpack.c.b16 %v3312, %v3308
    %v3561 = vpack.c.b16 %v3313, %v3309
    %v3562 = vpack.c.b16 %v3318, %v3314
    %v3563 = vpack.c.b16 %v3319, %v3315
    %v3564 = vpack.c.b16 %v3320, %v3316
    %v3565 = vpack.c.b16 %v3321, %v3317
    %v3566 = vpack.c.b16 %v3326, %v3322
    %v3567 = vpack.c.b16 %v3327, %v3323
    %v3568 = vpack.c.b16 %v3328, %v3324
    %v3569 = vpack.c.b16 %v3329, %v3325
    %v3570 = vpack.c.b16 %v3334, %v3330
    %v3571 = vpack.c.b16 %v3335, %v3331
    %v3572 = vpack.c.b16 %v3336, %v3332
    %v3573 = vpack.c.b16 %v3337, %v3333
    %v3574 = vpack.c.b16 %v3342, %v3338
    %v3575 = vpack.c.b16 %v3343, %v3339
    %v3576 = vpack.c.b16 %v3344, %v3340
    %v3577 = vpack.c.b16 %v3345, %v3341
    %v3578 = vpack.c.b16 %v3350, %v3346
    %v3579 = vpack.c.b16 %v3351, %v3347
    %v3580 = vpack.c.b16 %v3352, %v3348
    %v3581 = vpack.c.b16 %v3353, %v3349
    %v3582 = vpack.c.b16 %v3358, %v3354
    %v3583 = vpack.c.b16 %v3359, %v3355
    %v3584 = vpack.c.b16 %v3360, %v3356
    %v3585 = vpack.c.b16 %v3361, %v3357
    %v3586 = vpack.c.b16 %v3366, %v3362
    %v3587 = vpack.c.b16 %v3367, %v3363
    %v3588 = vpack.c.b16 %v3368, %v3364
    %v3589 = vpack.c.b16 %v3369, %v3365
    %v3590 = vpack.c.b16 %v3374, %v3370
    %v3591 = vpack.c.b16 %v3375, %v3371
    %v3592 = vpack.c.b16 %v3376, %v3372
    %v3593 = vpack.c.b16 %v3377, %v3373
    %v3594 = vpack.c.b16 %v3382, %v3378
    %v3595 = vpack.c.b16 %v3383, %v3379
    %v3596 = vpack.c.b16 %v3384, %v3380
    %v3597 = vpack.c.b16 %v3385, %v3381
    %v3598 = vpack.c.b16 %v3390, %v3386
    %v3599 = vpack.c.b16 %v3391, %v3387
    %v3600 = vpack.c.b16 %v3392, %v3388
    %v3601 = vpack.c.b16 %v3393, %v3389
    %v3602 = vpack.c.b16 %v3398, %v3394
    %v3603 = vpack.c.b16 %v3399, %v3395
    %v3604 = vpack.c.b16 %v3400, %v3396
    %v3605 = vpack.c.b16 %v3401, %v3397
    %v3606 = vpack.c.b16 %v3406, %v3402
    %v3607 = vpack.c.b16 %v3407, %v3403
    %v3608 = vpack.c.b16 %v3408, %v3404
    %v3609 = vpack.c.b16 %v3409, %v3405
    %v3610 = vpack.c.b16 %v3414, %v3410
    %v3611 = vpack.c.b16 %v3415, %v3411
    %v3612 = vpack.c.b16 %v3416, %v3412
    %v3613 = vpack.c.b16 %v3417, %v3413
    %v3614 = vpack.c.b16 %v3422, %v3418
    %v3615 = vpack.c.b16 %v3423, %v3419
    %v3616 = vpack.c.b16 %v3424, %v3420
    %v3617 = vpack.c.b16 %v3425, %v3421
    %v3618 = vpack.c.b16 %v3430, %v3426
    %v3619 = vpack.c.b16 %v3431, %v3427
    %v3620 = vpack.c.b16 %v3432, %v3428
    %v3621 = vpack.c.b16 %v3433, %v3429
    %v3622 = vpack.c.b16 %v3438, %v3434
    %v3623 = vpack.c.b16 %v3439, %v3435
    %v3624 = vpack.c.b16 %v3440, %v3436
    %v3625 = vpack.c.b16 %v3441, %v3437
    %v3626 = vpack.c.b16 %v3446, %v3442
    %v3627 = vpack.c.b16 %v3447, %v3443
    %v3628 = vpack.c.b16 %v3448, %v3444
    %v3629 = vpack.c.b16 %v3449, %v3445
    %v3630 = vpack.c.b16 %v3454, %v3450
    %v3631 = vpack.c.b16 %v3455, %v3451
    %v3632 = vpack.c.b16 %v3456, %v3452
    %v3633 = vpack.c.b16 %v3457, %v3453
    %v3634 = vpack.c.b16 %v3462, %v3458
    %v3635 = vpack.c.b16 %v3463, %v3459
    %v3636 = vpack.c.b16 %v3464, %v3460
    %v3637 = vpack.c.b16 %v3465, %v3461
    %v3638 = vpack.c.b16 %v3470, %v3466
    %v3639 = vpack.c.b16 %v3471, %v3467
    %v3640 = vpack.c.b16 %v3472, %v3468
    %v3641 = vpack.c.b16 %v3473, %v3469
    %v3642 = vpack.c.b16 %v3478, %v3474
    %v3643 = vpack.c.b16 %v3479, %v3475
    %v3644 = vpack.c.b16 %v3480, %v3476
    %v3645 = vpack.c.b16 %v3481, %v3477
    %v3646 = vpack.c.b16 %v3486, %v3482
    %v3647 = vpack.c.b16 %v3487, %v3483
    %v3648 = vpack.c.b16 %v3488, %v3484
    %v3649 = vpack.c.b16 %v3489, %v3485
    %v3650 = vpack.c.b16 %v3494, %v3490
    %v3651 = vpack.c.b16 %v3495, %v3491
    %v3652 = vpack.c.b16 %v3496, %v3492
    %v3653 = vpack.c.b16 %v3497, %v3493
    %v3654 = vpack.c.b16 %v3502, %v3498
    %v3655 = vpack.c.b16 %v3503, %v3499
    %v3656 = vpack.c.b16 %v3504, %v3500
    %v3657 = vpack.c.b16 %v3505, %v3501
    %v3658 = vpack.c.b16 %v3510, %v3506
    %v3659 = vpack.c.b16 %v3511, %v3507
    %v3660 = vpack.c.b16 %v3512, %v3508
    %v3661 = vpack.c.b16 %v3513, %v3509
    %v3662 = vpack.c.b16 %v3518, %v3514
    %v3663 = vpack.c.b16 %v3519, %v3515
    %v3664 = vpack.c.b16 %v3520, %v3516
    %v3665 = vpack.c.b16 %v3521, %v3517
    %v3666 = vpack.c.b16 %v3526, %v3522
    %v3667 = vpack.c.b16 %v3527, %v3523
    %v3668 = vpack.c.b16 %v3528, %v3524
    %v3669 = vpack.c.b16 %v3529, %v3525
    %v3670 = vpack.c.b16 %v3534, %v3530
    %v3671 = vpack.c.b16 %v3535, %v3531
    %v3672 = vpack.c.b16 %v3536, %v3532
    %v3673 = vpack.c.b16 %v3537, %v3533
    %v3674 = vpack.c.b16 %v3542, %v3538
    %v3675 = vpack.c.b16 %v3543, %v3539
    %v3676 = vpack.c.b16 %v3544, %v3540
    %v3677 = vpack.c.b16 %v3545, %v3541
    %v3678 = vpack.c.b16 %v3550, %v3546
    %v3679 = vpack.c.b16 %v3551, %v3547
    %v3680 = vpack.c.b16 %v3552, %v3548
    %v3681 = vpack.c.b16 %v3553, %v3549
    %3810 = vmatprep.subr.bf16.mxu0 %v3583
    %3811 = vmatpush1.bf16.msra.mxu0 %v3582
    %3812 = vmatprep.subr.bf16.mxu0 %v3579
    %3813 = vmatpush1.bf16.msra.mxu0 %v3578
    %3814 = vmatprep.subr.bf16.mxu0 %v3575
    %3815 = vmatpush1.bf16.msra.mxu0 %v3574
    %3816 = vmatprep.subr.bf16.mxu0 %v3571
    %3817 = vmatpush1.bf16.msra.mxu0 %v3570
    %3818 = vmatprep.subr.bf16.mxu0 %v3567
    %3819 = vmatpush1.bf16.msra.mxu0 %v3566
    %3820 = vmatprep.subr.bf16.mxu0 %v3563
    %3821 = vmatpush1.bf16.msra.mxu0 %v3562
    %3822 = vmatprep.subr.bf16.mxu0 %v3559
    %3823 = vmatpush1.bf16.msra.mxu0 %v3558
    %3824 = vmatprep.subr.bf16.mxu0 %v3555
    %3825 = vmatpush1.bf16.msra.mxu0 %v3554
    %3826 = vmatprep.subr.bf16.mxu0 %v3615
    %3827 = vmatpush2.bf16.msra.mxu0 %v3614
    %3828 = vmatprep.subr.bf16.mxu0 %v3611
    %3829 = vmatpush2.bf16.msra.mxu0 %v3610
    %3830 = vmatprep.subr.bf16.mxu0 %v3607
    %3831 = vmatpush2.bf16.msra.mxu0 %v3606
    %3832 = vmatprep.subr.bf16.mxu0 %v3603
    %3833 = vmatpush2.bf16.msra.mxu0 %v3602
    %3834 = vmatprep.subr.bf16.mxu0 %v3599
    %3835 = vmatpush2.bf16.msra.mxu0 %v3598
    %3836 = vmatprep.subr.bf16.mxu0 %v3595
    %3837 = vmatpush2.bf16.msra.mxu0 %v3594
    %3838 = vmatprep.subr.bf16.mxu0 %v3591
    %3839 = vmatpush2.bf16.msra.mxu0 %v3590
    %3840 = vmatprep.subr.bf16.mxu0 %v3587
    %3841 = vmatpush2.bf16.msra.mxu0 %v3586
    %3842 = vmatprep.mubr.bf16.mxu0 %v3017
    %3843 = vmatmul.mubr.bf16.gmra.mxu0 %v3016
    %v3844 = vpop.f32.mrf.mxu0
    %v3845 = vadd.f32 %v3153, %v3844
    %v3846 = vpop.f32.mrf.mxu0
    %v3847 = vadd.f32 %v3157, %v3846
    %v3848 = vpop.f32.mrf.mxu0
    %v3849 = vpop.f32.mrf.mxu0
    %3850 = vdwg.mxu0
    %3851 = vmatprep.subr.bf16.mxu0 %v3647
    %3852 = vmatpush1.bf16.msra.mxu0 %v3646
    %3853 = vmatprep.subr.bf16.mxu0 %v3643
    %3854 = vmatpush1.bf16.msra.mxu0 %v3642
    %3855 = vmatprep.subr.bf16.mxu0 %v3639
    %3856 = vmatpush1.bf16.msra.mxu0 %v3638
    %3857 = vmatprep.subr.bf16.mxu0 %v3635
    %3858 = vmatpush1.bf16.msra.mxu0 %v3634
    %3859 = vmatprep.subr.bf16.mxu0 %v3631
    %3860 = vmatpush1.bf16.msra.mxu0 %v3630
    %3861 = vmatprep.subr.bf16.mxu0 %v3627
    %3862 = vmatpush1.bf16.msra.mxu0 %v3626
    %3863 = vmatprep.subr.bf16.mxu0 %v3623
    %3864 = vmatpush1.bf16.msra.mxu0 %v3622
    %3865 = vmatprep.subr.bf16.mxu0 %v3619
    %3866 = vmatpush1.bf16.msra.mxu0 %v3618
    %3867 = vmatprep.subr.bf16.mxu0 %v3679
    %3868 = vmatpush2.bf16.msra.mxu0 %v3678
    %3869 = vmatprep.subr.bf16.mxu0 %v3675
    %3870 = vmatpush2.bf16.msra.mxu0 %v3674
    %3871 = vmatprep.subr.bf16.mxu0 %v3671
    %3872 = vmatpush2.bf16.msra.mxu0 %v3670
    %3873 = vmatprep.subr.bf16.mxu0 %v3667
    %3874 = vmatpush2.bf16.msra.mxu0 %v3666
    %3875 = vmatprep.subr.bf16.mxu0 %v3663
    %3876 = vmatpush2.bf16.msra.mxu0 %v3662
    %3877 = vmatprep.subr.bf16.mxu0 %v3659
    %3878 = vmatpush2.bf16.msra.mxu0 %v3658
    %3879 = vmatprep.subr.bf16.mxu0 %v3655
    %3880 = vmatpush2.bf16.msra.mxu0 %v3654
    %3881 = vmatprep.subr.bf16.mxu0 %v3651
    %3882 = vmatpush2.bf16.msra.mxu0 %v3650
    %3883 = vmatprep.mubr.bf16.mxu0 %v3019
    %3884 = vmatmul.mubr.bf16.gmra.mxu0 %v3018
    %v3885 = vpop.f32.mrf.mxu0
    %v3886 = vadd.f32 %v3845, %v3885
    %v3887 = vpop.f32.mrf.mxu0
    %v3888 = vadd.f32 %v3847, %v3887
    %v3889 = vpop.f32.mrf.mxu0
    %v3890 = vpop.f32.mrf.mxu0
    %3891 = vdwg.mxu0
    %3892 = vmatprep.subr.bf16.mxu0 %v3585
    %3893 = vmatpush1.bf16.msra.mxu0 %v3584
    %3894 = vmatprep.subr.bf16.mxu0 %v3581
    %3895 = vmatpush1.bf16.msra.mxu0 %v3580
    %3896 = vmatprep.subr.bf16.mxu0 %v3577
    %3897 = vmatpush1.bf16.msra.mxu0 %v3576
    %3898 = vmatprep.subr.bf16.mxu0 %v3573
    %3899 = vmatpush1.bf16.msra.mxu0 %v3572
    %3900 = vmatprep.subr.bf16.mxu0 %v3569
    %3901 = vmatpush1.bf16.msra.mxu0 %v3568
    %3902 = vmatprep.subr.bf16.mxu0 %v3565
    %3903 = vmatpush1.bf16.msra.mxu0 %v3564
    %3904 = vmatprep.subr.bf16.mxu0 %v3561
    %3905 = vmatpush1.bf16.msra.mxu0 %v3560
    %3906 = vmatprep.subr.bf16.mxu0 %v3557
    %3907 = vmatpush1.bf16.msra.mxu0 %v3556
    %3908 = vmatprep.subr.bf16.mxu0 %v3617
    %3909 = vmatpush2.bf16.msra.mxu0 %v3616
    %3910 = vmatprep.subr.bf16.mxu0 %v3613
    %3911 = vmatpush2.bf16.msra.mxu0 %v3612
    %3912 = vmatprep.subr.bf16.mxu0 %v3609
    %3913 = vmatpush2.bf16.msra.mxu0 %v3608
    %3914 = vmatprep.subr.bf16.mxu0 %v3605
    %3915 = vmatpush2.bf16.msra.mxu0 %v3604
    %3916 = vmatprep.subr.bf16.mxu0 %v3601
    %3917 = vmatpush2.bf16.msra.mxu0 %v3600
    %3918 = vmatprep.subr.bf16.mxu0 %v3597
    %3919 = vmatpush2.bf16.msra.mxu0 %v3596
    %3920 = vmatprep.subr.bf16.mxu0 %v3593
    %3921 = vmatpush2.bf16.msra.mxu0 %v3592
    %3922 = vmatprep.subr.bf16.mxu0 %v3589
    %3923 = vmatpush2.bf16.msra.mxu0 %v3588
    %3924 = vmatprep.mubr.bf16.mxu0 %v3017
    %3925 = vmatmul.mubr.bf16.gmra.mxu0 %v3016
    %v3926 = vpop.f32.mrf.mxu0
    %v3927 = vadd.f32 %v3161, %v3926
    %v3928 = vpop.f32.mrf.mxu0
    %v3929 = vadd.f32 %v3165, %v3928
    %v3930 = vpop.f32.mrf.mxu0
    %v3931 = vpop.f32.mrf.mxu0
    %3932 = vdwg.mxu0
    %3933 = vmatprep.subr.bf16.mxu0 %v3649
    %3934 = vmatpush1.bf16.msra.mxu0 %v3648
    %3935 = vmatprep.subr.bf16.mxu0 %v3645
    %3936 = vmatpush1.bf16.msra.mxu0 %v3644
    %3937 = vmatprep.subr.bf16.mxu0 %v3641
    %3938 = vmatpush1.bf16.msra.mxu0 %v3640
    %3939 = vmatprep.subr.bf16.mxu0 %v3637
    %3940 = vmatpush1.bf16.msra.mxu0 %v3636
    %3941 = vmatprep.subr.bf16.mxu0 %v3633
    %3942 = vmatpush1.bf16.msra.mxu0 %v3632
    %3943 = vmatprep.subr.bf16.mxu0 %v3629
    %3944 = vmatpush1.bf16.msra.mxu0 %v3628
    %3945 = vmatprep.subr.bf16.mxu0 %v3625
    %3946 = vmatpush1.bf16.msra.mxu0 %v3624
    %3947 = vmatprep.subr.bf16.mxu0 %v3621
    %3948 = vmatpush1.bf16.msra.mxu0 %v3620
    %3949 = vmatprep.subr.bf16.mxu0 %v3681
    %3950 = vmatpush2.bf16.msra.mxu0 %v3680
    %3951 = vmatprep.subr.bf16.mxu0 %v3677
    %3952 = vmatpush2.bf16.msra.mxu0 %v3676
    %3953 = vmatprep.subr.bf16.mxu0 %v3673
    %3954 = vmatpush2.bf16.msra.mxu0 %v3672
    %3955 = vmatprep.subr.bf16.mxu0 %v3669
    %3956 = vmatpush2.bf16.msra.mxu0 %v3668
    %3957 = vmatprep.subr.bf16.mxu0 %v3665
    %3958 = vmatpush2.bf16.msra.mxu0 %v3664
    %3959 = vmatprep.subr.bf16.mxu0 %v3661
    %3960 = vmatpush2.bf16.msra.mxu0 %v3660
    %3961 = vmatprep.subr.bf16.mxu0 %v3657
    %3962 = vmatpush2.bf16.msra.mxu0 %v3656
    %3963 = vmatprep.subr.bf16.mxu0 %v3653
    %3964 = vmatpush2.bf16.msra.mxu0 %v3652
    %3965 = vmatprep.mubr.bf16.mxu0 %v3019
    %3966 = vmatmul.mubr.bf16.gmra.mxu0 %v3018
    %v3967 = vpop.f32.mrf.mxu0
    %v3968 = vadd.f32 %v3927, %v3967
    %v3969 = vpop.f32.mrf.mxu0
    %v3970 = vadd.f32 %v3929, %v3969
    %v3971 = vpop.f32.mrf.mxu0
    %v3972 = vpop.f32.mrf.mxu0
    %3973 = vdwg.mxu0
    %v3974 = vmax.f32 %v3886, 0.0
    %v3975 = vmax.f32 %v3888, 0.0
    %v3976 = vmax.f32 %v3968, 0.0
    %v3977 = vmax.f32 %v3970, 0.0
    %v3978 = vpack.c.bf16 %v3974, %v3974
    %v3979 = vpack.c.bf16 %v3975, %v3975
    %v3980 = vpack.c.bf16 %v3976, %v3976
    %v3981 = vpack.c.bf16 %v3977, %v3977
    %v3982 = vld [vmem:[%s9] sm:$0xf]
    %v3983 = vld [vmem:[%s9 + $0x4] sm:$0xf]
    %v3984 = vld [vmem:[%s9 + $0x8] sm:$0xf]
    %v3985 = vld [vmem:[%s9 + $0xc] sm:$0xf]
    %v3986 = vld [vmem:[%s9 + $0x10] sm:$0xf]
    %v3987 = vld [vmem:[%s9 + $0x14] sm:$0xf]
    %v3988 = vld [vmem:[%s9 + $0x18] sm:$0xf]
    %v3989 = vld [vmem:[%s9 + $0x1c] sm:$0xf]
    %v3990 = vld [vmem:[%s9 + $0x20] sm:$0xf]
    %v3991 = vld [vmem:[%s9 + $0x24] sm:$0xf]
    %v3992 = vld [vmem:[%s9 + $0x28] sm:$0xf]
    %v3993 = vld [vmem:[%s9 + $0x2c] sm:$0xf]
    %v3994 = vld [vmem:[%s9 + $0x30] sm:$0xf]
    %v3995 = vld [vmem:[%s9 + $0x34] sm:$0xf]
    %v3996 = vld [vmem:[%s9 + $0x38] sm:$0xf]
    %v3997 = vld [vmem:[%s9 + $0x3c] sm:$0xf]
    %v3998 = vld [vmem:[%s9 + $0x40] sm:$0xf]
    %v3999 = vld [vmem:[%s9 + $0x44] sm:$0xf]
    %v4000 = vld [vmem:[%s9 + $0x48] sm:$0xf]
    %v4001 = vld [vmem:[%s9 + $0x4c] sm:$0xf]
    %v4002 = vld [vmem:[%s9 + $0x50] sm:$0xf]
    %v4003 = vld [vmem:[%s9 + $0x54] sm:$0xf]
    %v4004 = vld [vmem:[%s9 + $0x58] sm:$0xf]
    %v4005 = vld [vmem:[%s9 + $0x5c] sm:$0xf]
    %v4006 = vld [vmem:[%s9 + $0x60] sm:$0xf]
    %v4007 = vld [vmem:[%s9 + $0x64] sm:$0xf]
    %v4008 = vld [vmem:[%s9 + $0x68] sm:$0xf]
    %v4009 = vld [vmem:[%s9 + $0x6c] sm:$0xf]
    %v4010 = vld [vmem:[%s9 + $0x70] sm:$0xf]
    %v4011 = vld [vmem:[%s9 + $0x74] sm:$0xf]
    %v4012 = vld [vmem:[%s9 + $0x78] sm:$0xf]
    %v4013 = vld [vmem:[%s9 + $0x7c] sm:$0xf]
    %v4014 = vld [vmem:[%s9 + $0x80] sm:$0xf]
    %v4015 = vld [vmem:[%s9 + $0x84] sm:$0xf]
    %v4016 = vld [vmem:[%s9 + $0x88] sm:$0xf]
    %v4017 = vld [vmem:[%s9 + $0x8c] sm:$0xf]
    %v4018 = vld [vmem:[%s9 + $0x90] sm:$0xf]
    %v4019 = vld [vmem:[%s9 + $0x94] sm:$0xf]
    %v4020 = vld [vmem:[%s9 + $0x98] sm:$0xf]
    %v4021 = vld [vmem:[%s9 + $0x9c] sm:$0xf]
    %v4022 = vld [vmem:[%s9 + $0xa0] sm:$0xf]
    %v4023 = vld [vmem:[%s9 + $0xa4] sm:$0xf]
    %v4024 = vld [vmem:[%s9 + $0xa8] sm:$0xf]
    %v4025 = vld [vmem:[%s9 + $0xac] sm:$0xf]
    %v4026 = vld [vmem:[%s9 + $0xb0] sm:$0xf]
    %v4027 = vld [vmem:[%s9 + $0xb4] sm:$0xf]
    %v4028 = vld [vmem:[%s9 + $0xb8] sm:$0xf]
    %v4029 = vld [vmem:[%s9 + $0xbc] sm:$0xf]
    %v4030 = vld [vmem:[%s9 + $0xc0] sm:$0xf]
    %v4031 = vld [vmem:[%s9 + $0xc4] sm:$0xf]
    %v4032 = vld [vmem:[%s9 + $0xc8] sm:$0xf]
    %v4033 = vld [vmem:[%s9 + $0xcc] sm:$0xf]
    %v4034 = vld [vmem:[%s9 + $0xd0] sm:$0xf]
    %v4035 = vld [vmem:[%s9 + $0xd4] sm:$0xf]
    %v4036 = vld [vmem:[%s9 + $0xd8] sm:$0xf]
    %v4037 = vld [vmem:[%s9 + $0xdc] sm:$0xf]
    %v4038 = vld [vmem:[%s9 + $0xe0] sm:$0xf]
    %v4039 = vld [vmem:[%s9 + $0xe4] sm:$0xf]
    %v4040 = vld [vmem:[%s9 + $0xe8] sm:$0xf]
    %v4041 = vld [vmem:[%s9 + $0xec] sm:$0xf]
    %v4042 = vld [vmem:[%s9 + $0xf0] sm:$0xf]
    %v4043 = vld [vmem:[%s9 + $0xf4] sm:$0xf]
    %v4044 = vld [vmem:[%s9 + $0xf8] sm:$0xf]
    %v4045 = vld [vmem:[%s9 + $0xfc] sm:$0xf]
    %v4110 = vunpack.c.l.b16 %v3982
    %v4111 = vunpack.c.l.b16 %v3983
    %v4112 = vunpack.c.l.b16 %v3984
    %v4113 = vunpack.c.l.b16 %v3985
    %v4114 = vunpack.c.l.b16 %v3986
    %v4115 = vunpack.c.l.b16 %v3987
    %v4116 = vunpack.c.l.b16 %v3988
    %v4117 = vunpack.c.l.b16 %v3989
    %v4118 = vunpack.c.l.b16 %v3990
    %v4119 = vunpack.c.l.b16 %v3991
    %v4120 = vunpack.c.l.b16 %v3992
    %v4121 = vunpack.c.l.b16 %v3993
    %v4122 = vunpack.c.l.b16 %v3994
    %v4123 = vunpack.c.l.b16 %v3995
    %v4124 = vunpack.c.l.b16 %v3996
    %v4125 = vunpack.c.l.b16 %v3997
    %v4126 = vunpack.c.l.b16 %v3998
    %v4127 = vunpack.c.l.b16 %v3999
    %v4128 = vunpack.c.l.b16 %v4000
    %v4129 = vunpack.c.l.b16 %v4001
    %v4130 = vunpack.c.l.b16 %v4002
    %v4131 = vunpack.c.l.b16 %v4003
    %v4132 = vunpack.c.l.b16 %v4004
    %v4133 = vunpack.c.l.b16 %v4005
    %v4134 = vunpack.c.l.b16 %v4006
    %v4135 = vunpack.c.l.b16 %v4007
    %v4136 = vunpack.c.l.b16 %v4008
    %v4137 = vunpack.c.l.b16 %v4009
    %v4138 = vunpack.c.l.b16 %v4010
    %v4139 = vunpack.c.l.b16 %v4011
    %v4140 = vunpack.c.l.b16 %v4012
    %v4141 = vunpack.c.l.b16 %v4013
    %v4142 = vunpack.c.l.b16 %v4014
    %v4143 = vunpack.c.l.b16 %v4015
    %v4144 = vunpack.c.l.b16 %v4016
    %v4145 = vunpack.c.l.b16 %v4017
    %v4146 = vunpack.c.l.b16 %v4018
    %v4147 = vunpack.c.l.b16 %v4019
    %v4148 = vunpack.c.l.b16 %v4020
    %v4149 = vunpack.c.l.b16 %v4021
    %v4150 = vunpack.c.l.b16 %v4022
    %v4151 = vunpack.c.l.b16 %v4023
    %v4152 = vunpack.c.l.b16 %v4024
    %v4153 = vunpack.c.l.b16 %v4025
    %v4154 = vunpack.c.l.b16 %v4026
    %v4155 = vunpack.c.l.b16 %v4027
    %v4156 = vunpack.c.l.b16 %v4028
    %v4157 = vunpack.c.l.b16 %v4029
    %v4158 = vunpack.c.l.b16 %v4030
    %v4159 = vunpack.c.l.b16 %v4031
    %v4160 = vunpack.c.l.b16 %v4032
    %v4161 = vunpack.c.l.b16 %v4033
    %v4162 = vunpack.c.l.b16 %v4034
    %v4163 = vunpack.c.l.b16 %v4035
    %v4164 = vunpack.c.l.b16 %v4036
    %v4165 = vunpack.c.l.b16 %v4037
    %v4166 = vunpack.c.l.b16 %v4038
    %v4167 = vunpack.c.l.b16 %v4039
    %v4168 = vunpack.c.l.b16 %v4040
    %v4169 = vunpack.c.l.b16 %v4041
    %v4170 = vunpack.c.l.b16 %v4042
    %v4171 = vunpack.c.l.b16 %v4043
    %v4172 = vunpack.c.l.b16 %v4044
    %v4173 = vunpack.c.l.b16 %v4045
    %v4174 = vpack.c.b16 %v4111, %v4110
    %v4175 = vpack.c.b16 %v4113, %v4112
    %v4176 = vpack.c.b16 %v4115, %v4114
    %v4177 = vpack.c.b16 %v4117, %v4116
    %v4178 = vpack.c.b16 %v4119, %v4118
    %v4179 = vpack.c.b16 %v4121, %v4120
    %v4180 = vpack.c.b16 %v4123, %v4122
    %v4181 = vpack.c.b16 %v4125, %v4124
    %v4182 = vpack.c.b16 %v4127, %v4126
    %v4183 = vpack.c.b16 %v4129, %v4128
    %v4184 = vpack.c.b16 %v4131, %v4130
    %v4185 = vpack.c.b16 %v4133, %v4132
    %v4186 = vpack.c.b16 %v4135, %v4134
    %v4187 = vpack.c.b16 %v4137, %v4136
    %v4188 = vpack.c.b16 %v4139, %v4138
    %v4189 = vpack.c.b16 %v4141, %v4140
    %v4190 = vpack.c.b16 %v4143, %v4142
    %v4191 = vpack.c.b16 %v4145, %v4144
    %v4192 = vpack.c.b16 %v4147, %v4146
    %v4193 = vpack.c.b16 %v4149, %v4148
    %v4194 = vpack.c.b16 %v4151, %v4150
    %v4195 = vpack.c.b16 %v4153, %v4152
    %v4196 = vpack.c.b16 %v4155, %v4154
    %v4197 = vpack.c.b16 %v4157, %v4156
    %v4198 = vpack.c.b16 %v4159, %v4158
    %v4199 = vpack.c.b16 %v4161, %v4160
    %v4200 = vpack.c.b16 %v4163, %v4162
    %v4201 = vpack.c.b16 %v4165, %v4164
    %v4202 = vpack.c.b16 %v4167, %v4166
    %v4203 = vpack.c.b16 %v4169, %v4168
    %v4204 = vpack.c.b16 %v4171, %v4170
    %v4205 = vpack.c.b16 %v4173, %v4172
    %4238 = vmatprep.subr.bf16.mxu0 0
    %4239 = vmatpush1.bf16.msra.mxu0 %v4181
    %4240 = vmatprep.subr.bf16.mxu0 0
    %4241 = vmatpush1.bf16.msra.mxu0 %v4180
    %4242 = vmatprep.subr.bf16.mxu0 0
    %4243 = vmatpush1.bf16.msra.mxu0 %v4179
    %4244 = vmatprep.subr.bf16.mxu0 0
    %4245 = vmatpush1.bf16.msra.mxu0 %v4178
    %4246 = vmatprep.subr.bf16.mxu0 0
    %4247 = vmatpush1.bf16.msra.mxu0 %v4177
    %4248 = vmatprep.subr.bf16.mxu0 0
    %4249 = vmatpush1.bf16.msra.mxu0 %v4176
    %4250 = vmatprep.subr.bf16.mxu0 0
    %4251 = vmatpush1.bf16.msra.mxu0 %v4175
    %4252 = vmatprep.subr.bf16.mxu0 0
    %4253 = vmatpush1.bf16.msra.mxu0 %v4174
    %4254 = vmatprep.subr.bf16.mxu0 0
    %4255 = vmatpush2.bf16.msra.mxu0 %v4189
    %4256 = vmatprep.subr.bf16.mxu0 0
    %4257 = vmatpush2.bf16.msra.mxu0 %v4188
    %4258 = vmatprep.subr.bf16.mxu0 0
    %4259 = vmatpush2.bf16.msra.mxu0 %v4187
    %4260 = vmatprep.subr.bf16.mxu0 0
    %4261 = vmatpush2.bf16.msra.mxu0 %v4186
    %4262 = vmatprep.subr.bf16.mxu0 0
    %4263 = vmatpush2.bf16.msra.mxu0 %v4185
    %4264 = vmatprep.subr.bf16.mxu0 0
    %4265 = vmatpush2.bf16.msra.mxu0 %v4184
    %4266 = vmatprep.subr.bf16.mxu0 0
    %4267 = vmatpush2.bf16.msra.mxu0 %v4183
    %4268 = vmatprep.subr.bf16.mxu0 0
    %4269 = vmatpush2.bf16.msra.mxu0 %v4182
    %4270 = vmatprep.mubr.bf16.mxu0 %v3979
    %4271 = vmatmul.mubr.bf16.gmra.mxu0 %v3978
    %v4272 = vpop.f32.mrf.mxu0
    %v4273 = vadd.f32 0.0, %v4272
    %v4274 = vpop.f32.mrf.mxu0
    %v4275 = vpop.f32.mrf.mxu0
    %v4276 = vpop.f32.mrf.mxu0
    %4277 = vdwg.mxu0
    %4278 = vmatprep.subr.bf16.mxu0 0
    %4279 = vmatpush1.bf16.msra.mxu0 %v4197
    %4280 = vmatprep.subr.bf16.mxu0 0
    %4281 = vmatpush1.bf16.msra.mxu0 %v4196
    %4282 = vmatprep.subr.bf16.mxu0 0
    %4283 = vmatpush1.bf16.msra.mxu0 %v4195
    %4284 = vmatprep.subr.bf16.mxu0 0
    %4285 = vmatpush1.bf16.msra.mxu0 %v4194
    %4286 = vmatprep.subr.bf16.mxu0 0
    %4287 = vmatpush1.bf16.msra.mxu0 %v4193
    %4288 = vmatprep.subr.bf16.mxu0 0
    %4289 = vmatpush1.bf16.msra.mxu0 %v4192
    %4290 = vmatprep.subr.bf16.mxu0 0
    %4291 = vmatpush1.bf16.msra.mxu0 %v4191
    %4292 = vmatprep.subr.bf16.mxu0 0
    %4293 = vmatpush1.bf16.msra.mxu0 %v4190
    %4294 = vmatprep.subr.bf16.mxu0 0
    %4295 = vmatpush2.bf16.msra.mxu0 %v4205
    %4296 = vmatprep.subr.bf16.mxu0 0
    %4297 = vmatpush2.bf16.msra.mxu0 %v4204
    %4298 = vmatprep.subr.bf16.mxu0 0
    %4299 = vmatpush2.bf16.msra.mxu0 %v4203
    %4300 = vmatprep.subr.bf16.mxu0 0
    %4301 = vmatpush2.bf16.msra.mxu0 %v4202
    %4302 = vmatprep.subr.bf16.mxu0 0
    %4303 = vmatpush2.bf16.msra.mxu0 %v4201
    %4304 = vmatprep.subr.bf16.mxu0 0
    %4305 = vmatpush2.bf16.msra.mxu0 %v4200
    %4306 = vmatprep.subr.bf16.mxu0 0
    %4307 = vmatpush2.bf16.msra.mxu0 %v4199
    %4308 = vmatprep.subr.bf16.mxu0 0
    %4309 = vmatpush2.bf16.msra.mxu0 %v4198
    %4310 = vmatprep.mubr.bf16.mxu0 %v3981
    %4311 = vmatmul.mubr.bf16.gmra.mxu0 %v3980
    %v4312 = vpop.f32.mrf.mxu0
    %v4313 = vadd.f32 %v4273, %v4312
    %v4314 = vpop.f32.mrf.mxu0
    %v4315 = vpop.f32.mrf.mxu0
    %v4316 = vpop.f32.mrf.mxu0
    %4317 = vdwg.mxu0
    %v4318 = vld [vmem:[%s11] sm:$0x1]
    %4320 = vset.pattern.permute.xlu0 0
    %4321 = vperm.xlu0 %4320, %v4313
    %v4322 = vpop.permute.xlu0 %4321
    %v4325 = vlaneseq
    %v4326 = vshrl.u32 %v4325, 7
    %v4327 = vsub.s32 0, %v4326
    %v4328 = vrot.slane %v4318, %v4327
    %v4330 = vadd.f32 %v4322, %v4328
    %v4331 = vxor.u32 %v4330, 2147483648
    %v4332 = vmul.f32 %v4331, 1.442695
    %v4333 = vpow.pop %v4332
    %v4334 = vadd.f32 %v4333, 1.0
    %v4335 = vrcp.pop %v4334
    %v4336 = vmul.f32 1.0, %v4335
    %v4337 = vld [vmem:[%s10] sm:$0x1]
    %v4339 = vlaneseq
    %v4340 = vshrl.u32 %v4339, 7
    %v4341 = vsub.s32 0, %v4340
    %v4342 = vrot.slane %v4337, %v4341
    %4343 = vrot.lane.b32.xlu0 %v4342, 1
    %v4344 = vpop.permute.xlu0 %4343
    %v4346 = vadd.f32 %v4313, %v4344
    %4348 = vrot.lane.b32.xlu0 %v4336, 4
    %v4349 = vpop.permute.xlu0 %4348
    %v4352 = vrot.slane %v4346, 2
    %4353 = vrot.lane.b32.xlu0 %v4352, 7
    %v4354 = vpop.permute.xlu0 %4353
    %4358 = vset.pattern.permute.xlu0 0
    %4359 = vperm.xlu0 %4358, %v2616
    %v4360 = vpop.permute.xlu0 %4359
    %4361 = vset.pattern.permute.xlu0 0
    %4362 = vperm.xlu0 %4361, %v2617
    %v4363 = vpop.permute.xlu0 %4362
    %v4364 = vlaneseq
    %v4365 = vand.u32 %v4364, 127
    %v4366 = vadd.s32 %v4365, 4294967281
    %v4367 = vlaneseq
    %v4368 = vshrl.u32 %v4367, 7
    %v4369 = vsub.s32 %v4366, %v4368
    %v4370 = vrot.slane %v4360, %v4369
    %v4371 = vlaneseq
    %v4372 = vshrl.u32 %v4371, 7
    %v4373 = vsub.s32 %v4366, %v4372
    %v4374 = vrot.slane %v4363, %v4373
    %v4375 = vsel %vm2982, %v4374, %v4370
    %4377 = vset.pattern.permute.xlu0 1
    %4378 = vperm.xlu0 %4377, %v2616
    %v4379 = vpop.permute.xlu0 %4378
    %4380 = vset.pattern.permute.xlu0 1
    %4381 = vperm.xlu0 %4380, %v2617
    %v4382 = vpop.permute.xlu0 %4381
    %v4383 = vadd.s32 %v4365, 4294967273
    %v4384 = vlaneseq
    %v4385 = vshrl.u32 %v4384, 7
    %v4386 = vsub.s32 %v4383, %v4385
    %v4387 = vrot.slane %v4379, %v4386
    %v4388 = vlaneseq
    %v4389 = vshrl.u32 %v4388, 7
    %v4390 = vsub.s32 %v4383, %v4389
    %v4391 = vrot.slane %v4382, %v4390
    %v4392 = vsel %vm2982, %v4391, %v4387
    %vm4394 = vcmask 31744
    %v4395 = vsel %vm4394, %v4330, %v4349
    %v4396 = vsel %vm2650, %v4395, %v4354
    %vm4397 = vcmask 121856
    %v4398 = vsel %vm4397, %v4396, %v4375
    %vm4399 = vcmask 187392
    %v4400 = vsel %vm4399, %v4398, %v4392
    %vm4401 = vcmask 252928
    %v4402 = vsel %vm4401, %v4400, 0.0
    %4403 = vst [vmem:[%s13] sm:$0x3] %v4402
    // Predicated region
    $region50: #{_net_forward_impl.1} parent=1 // pred_check
      _
    $region51: #{_net_forward_impl.1} parent=1 // pred_check_branch
      %4405 = sbr.rel (0) target = $region53
    $region52: #{_net_forward_impl.1} parent=1 // pred_region
      %s4407 = ssub.s32 1024, 1024
      %4408 = vsyncadd [#allocation3], %s4407
      %s4409 = sshll.u32 [#allocation2], 4
      %s4410 = int_to_ptr.vmem [resolvable:$true] %s4409
      %4415 = dma.vmem_to_hbm [thread:$0]  %s4410, 1024, %s12, [#allocation3], 512, 512, 32
    $region53: #{_net_forward_impl.1} parent=1 // pred_fallthru
      _
    // Predicated region
    $region54: #{_net_forward_impl.1} parent=1 // pred_check
      _
    $region55: #{_net_forward_impl.1} parent=1 // pred_check_branch
      %4417 = sbr.rel (0) target = $region57
    $region56: #{_net_forward_impl.1} parent=1 // pred_region
      _
    $region57: #{_net_forward_impl.1} parent=1 // pred_fallthru
      _
    // Predicated region
    $region58: #{_net_forward_impl.1} parent=1 // pred_check
      _
    $region59: #{_net_forward_impl.1} parent=1 // pred_check_branch
      %4419 = sbr.rel (0) target = $region61
    $region60: #{_net_forward_impl.1} parent=1 // pred_region
      %4420 = dma.done [#allocation3], 1024
    $region61: #{_net_forward_impl.1} parent=1 // pred_fallthru
      _
    // Predicated region
    $region62: #{_net_forward_impl.1} parent=1 // pred_check
      _
    $region63: #{_net_forward_impl.1} parent=1 // pred_check_branch
      %4422 = sbr.rel (0) target = $region65
    $region64: #{_net_forward_impl.1} parent=1 // pred_region
      _
    $region65: #{_net_forward_impl.1} parent=1 // pred_fallthru
      _
    %4423 = vsyncpa [#allocation3], 1

</llo_original>
